<compile_context>
chip_gen: v6e
topology: v6e:2x2x1
jax: 0.10.0
libtpu: 0.0.40
codegen_flags: <defaults>
</compile_context>

<pallas_src>
import jax
import jax.numpy as jnp
from jax.experimental import pallas as pl
from jax.experimental.pallas import tpu as pltpu


# ---------------------------------------------------------------------------
# Fused Pallas kernel
# ---------------------------------------------------------------------------
def _fused_cnn_kernel(x_ref, w1_ref, b1_ref, w2_ref, b2_ref,
                      wf1_ref, bf1_ref, wf2_ref, bf2_ref, o_ref):
    f32 = jnp.float32
    L = x_ref.shape[-1]          # NB * 784 lanes
    NB = o_ref.shape[0]          # images in this batch block

    def shift(v, t):
        # result[:, l] = v[:, l + t]  (static lane shift; wrap reaches unused lanes only)
        return jnp.roll(v, -t, axis=1) if t else v

    x_row = x_ref[0]             # (1, L) f32

    # ---- conv1: Conv2d(1, 8, k=7, dilation=2), 28x28 -> 16x16 -----------------
    # One input channel => K=49 GEMM would leave the MXU empty; do 49 broadcast
    # FMAs on the VPU over the whole lane slab instead.
    w1 = w1_ref[...]             # (8, 49) f32, column index = kh*7 + kw
    y1 = None
    for kh in range(7):
        for kw in range(7):
            k = kh * 7 + kw
            t = 56 * kh + 2 * kw                        # dilation 2: (2kh)*28 + 2kw
            term = w1[:, k:k + 1] * shift(x_row, t)     # (8,1)*(1,L) -> (8,L)
            y1 = term if y1 is None else y1 + term

    # ---- max_pool2d(2) + bias + relu (16x16 -> 8x8) ---------------------------
    y1 = jnp.maximum(jnp.maximum(y1, shift(y1, 1)),
                     jnp.maximum(shift(y1, 28), shift(y1, 29)))
    a1 = jnp.maximum(y1 + b1_ref[...], 0.0)             # (8, L); valid at 56*pi + 2*pj

    # ---- conv2: Conv2d(8, 32, k=5), 8x8 -> 4x4: in-kernel im2col + one MXU GEMM
    # Sublane block (kh*5 + kw) holds the 8 conv1 channels shifted by that tap.
    p2 = jnp.concatenate(
        [shift(a1, 56 * kh + 2 * kw) for kh in range(5) for kw in range(5)],
        axis=0)                                          # (200, L) f32, 8-row aligned
    y2 = jnp.dot(w2_ref[...], p2.astype(jnp.bfloat16),   # (32,200)bf16 @ (200,L)bf16
                 preferred_element_type=f32)             # -> (32, L) f32

    # Dropout2d: identity (eval semantics).
    # ---- max_pool2d(2) + bias + relu (4x4 -> 2x2) -----------------------------
    y2 = jnp.maximum(jnp.maximum(y2, shift(y2, 2)),
                     jnp.maximum(shift(y2, 56), shift(y2, 58)))
    a2 = jnp.maximum(y2 + b2_ref[...], 0.0)              # (32, L); valid at 112*po + 4*pw

    # ---- flatten (.view(-1, 128); NCHW permutation folded into fc1 weight) -----
    # Stack the 4 pooled positions on sublanes; lane n*784 then holds image n's
    # full 128-feature vector.  Gather those NB columns with a one-hot matmul.
    g = jnp.concatenate([shift(a2, off) for off in (0, 4, 112, 116)], axis=0)  # (128, L)
    lane = jax.lax.broadcasted_iota(jnp.int32, (L, NB), 0)
    img = jax.lax.broadcasted_iota(jnp.int32, (L, NB), 1)
    sel = (lane == img * 784).astype(f32)                # (L, NB) one-hot
    feats = jnp.dot(g, sel, preferred_element_type=f32).T    # (NB, 128) f32

    # ---- head: fc1 -> relu -> fc2 -> relu -> log_softmax ----------------------
    h = jnp.dot(feats.astype(jnp.bfloat16), wf1_ref[...],
                preferred_element_type=f32) + bf1_ref[...]
    h = jnp.maximum(h, 0.0)
    z = jnp.dot(h.astype(jnp.bfloat16), wf2_ref[...],
                preferred_element_type=f32) + bf2_ref[...]
    z = jnp.maximum(z, 0.0)
    m = jnp.max(z, axis=1, keepdims=True)
    o_ref[...] = (z - m) - jnp.log(jnp.sum(jnp.exp(z - m), axis=1, keepdims=True))


# ---------------------------------------------------------------------------
# Wrapper: parameter prep (layout/permutation/bf16 cast) + pallas_call
# ---------------------------------------------------------------------------
def cnn_dilation_net_forward(x, params):
    """x: (N, 1, 28, 28) float32 (NCHW, like PyTorch) -> (N, 10) log-probs."""
    N = x.shape[0]
    NB = 8 if N % 8 == 0 else N          # batch block (8 => shards across v7x cores)
    num_blocks = N // NB
    L = NB * 784

    x_flat = x.reshape(num_blocks, 1, L).astype(jnp.float32)

    bf16 = jnp.bfloat16
    w1 = params["conv1_w"].reshape(8, 49).astype(jnp.float32)                  # [c, kh*7+kw]
    b1 = params["conv1_b"].reshape(8, 1).astype(jnp.float32)
    w2 = jnp.transpose(params["conv2_w"], (0, 2, 3, 1)).reshape(32, 200).astype(bf16)
    b2 = params["conv2_b"].reshape(32, 1).astype(jnp.float32)
    # fc1_w rows are torch-ordered (c*4 + h*2 + w); re-order to ((h*2+w)*32 + c)
    # so the kernel's (pool-pos, channel) flatten hits the right rows.
    wf1 = jnp.transpose(params["fc1_w"].reshape(32, 4, 50), (1, 0, 2)).reshape(128, 50).astype(bf16)
    bf1 = params["fc1_b"].reshape(1, 50).astype(jnp.float32)
    wf2 = params["fc2_w"].astype(bf16)
    bf2 = params["fc2_b"].reshape(1, 10).astype(jnp.float32)

    def full(shp):
        return pl.BlockSpec(shp, lambda i, _n=len(shp): (0,) * _n)

    return pl.pallas_call(
        _fused_cnn_kernel,
        out_shape=jax.ShapeDtypeStruct((N, 10), jnp.float32),
        grid=(num_blocks,),
        in_specs=[
            pl.BlockSpec((1, 1, L), lambda i: (i, 0, 0)),   # one batch block of images
            full((8, 49)), full((8, 1)),
            full((32, 200)), full((32, 1)),
            full((128, 50)), full((1, 50)),
            full((50, 10)), full((1, 10)),
        ],
        out_specs=pl.BlockSpec((NB, 10), lambda i: (i, 0)),
        compiler_params=pltpu.CompilerParams(
            dimension_semantics=("parallel",)),
    )(x_flat, w1, b1, w2, b2, wf1, bf1, wf2, bf2)


# ---------------------------------------------------------------------------
# Pure-JAX reference (f32) for a correctness sanity check
# ---------------------------------------------------------------------------
def _reference_forward(x, params):
    dn = ("NCHW", "OIHW", "NCHW")
    y = jax.lax.conv_general_dilated(x, params["conv1_w"], (1, 1), "VALID",
                                     rhs_dilation=(2, 2), dimension_numbers=dn)
    y = y + params["conv1_b"].reshape(1, 8, 1, 1)
    y = jax.lax.reduce_window(y, -jnp.inf, jax.lax.max, (1, 1, 2, 2), (1, 1, 2, 2), "VALID")
    y = jnp.maximum(y, 0.0)
    y = jax.lax.conv_general_dilated(y, params["conv2_w"], (1, 1), "VALID",
                                     dimension_numbers=dn)
    y = y + params["conv2_b"].reshape(1, 32, 1, 1)
    y = jax.lax.reduce_window(y, -jnp.inf, jax.lax.max, (1, 1, 2, 2), (1, 1, 2, 2), "VALID")
    y = jnp.maximum(y, 0.0)
    y = y.reshape(x.shape[0], 128)
    h = jnp.maximum(y @ params["fc1_w"] + params["fc1_b"], 0.0)
    z = jnp.maximum(h @ params["fc2_w"] + params["fc2_b"], 0.0)
    return jax.nn.log_softmax(z, axis=1)


# ---------------------------------------------------------------------------
# Main
# ---------------------------------------------------------------------------
if __name__ == "__main__":
    key = jax.random.PRNGKey(0)
    ks = jax.random.split(key, 9)

    # input must be (N, 1, 28, 28): 28 -> conv1(k7,d2) 16 -> pool 8
    #                                  -> conv2(k5)     4 -> pool 2; 32*2*2 = 128
    x = jax.random.normal(ks[0], (2, 1, 28, 28), jnp.float32)

    params = {
        # conv weights kept in PyTorch (OC, IC, KH, KW) layout
        "conv1_w": 0.10 * jax.random.normal(ks[1], (8, 1, 7, 7), jnp.float32),
        "conv1_b": 0.10 * jax.random.normal(ks[2], (8,), jnp.float32),
        "conv2_w": 0.05 * jax.random.normal(ks[3], (32, 8, 5, 5), jnp.float32),
        "conv2_b": 0.05 * jax.random.normal(ks[4], (32,), jnp.float32),
        # fc weights stored as (in, out) == torch weight.T
        "fc1_w": 0.05 * jax.random.normal(ks[5], (128, 50), jnp.float32),
        "fc1_b": 0.05 * jax.random.normal(ks[6], (50,), jnp.float32),
        "fc2_w": 0.10 * jax.random.normal(ks[7], (50, 10), jnp.float32),
        "fc2_b": 0.10 * jax.random.normal(ks[8], (10,), jnp.float32),
    }

    out = jax.jit(cnn_dilation_net_forward)(x, params)
    jax.block_until_ready(out)

    assert out.shape == (2, 10), out.shape
    # log_softmax sanity: exp(rows) sum to 1
    assert bool(jnp.allclose(jnp.sum(jnp.exp(out), axis=1), 1.0, atol=1e-4))
    # numerical check vs. f32 reference (kernel uses bf16 MXU inputs, f32 accumulate)
    ref = _reference_forward(x, params)
    assert float(jnp.max(jnp.abs(out - ref))) < 1e-1, float(jnp.max(jnp.abs(out - ref)))
    print("KERNEL_OK")
</pallas_src>

<mosaic_0001>
module attributes {stable_mosaic.version = 11 : i64} {
  func.func @_fused_cnn_kernel(%arg0: i32, %arg1: memref<1x1x1568xf32, #tpu.memory_space<vmem>>, %arg2: memref<8x49xf32, #tpu.memory_space<vmem>>, %arg3: memref<8x1xf32, #tpu.memory_space<vmem>>, %arg4: memref<32x200xbf16, #tpu.memory_space<vmem>>, %arg5: memref<32x1xf32, #tpu.memory_space<vmem>>, %arg6: memref<128x50xbf16, #tpu.memory_space<vmem>>, %arg7: memref<1x50xf32, #tpu.memory_space<vmem>>, %arg8: memref<50x10xbf16, #tpu.memory_space<vmem>>, %arg9: memref<1x10xf32, #tpu.memory_space<vmem>>, %arg10: memref<2x10xf32, #tpu.memory_space<vmem>>) attributes {dimension_semantics = [#tpu.dimension_semantics<parallel>], iteration_bounds = array<i64: 1>, scalar_prefetch = 0 : i64, scratch_operands = 0 : i64, tpu.core_type = #tpu.core_type<tc>, window_params = [{transform_indices = @transform_0, window_bounds = array<i64: 1, 1, 1568>}, {pipeline_mode = #tpu.pipeline_mode<synchronous>, transform_indices = @transform_1, window_bounds = array<i64: 8, 49>}, {pipeline_mode = #tpu.pipeline_mode<synchronous>, transform_indices = @transform_2, window_bounds = array<i64: 8, 1>}, {pipeline_mode = #tpu.pipeline_mode<synchronous>, transform_indices = @transform_3, window_bounds = array<i64: 32, 200>}, {pipeline_mode = #tpu.pipeline_mode<synchronous>, transform_indices = @transform_4, window_bounds = array<i64: 32, 1>}, {pipeline_mode = #tpu.pipeline_mode<synchronous>, transform_indices = @transform_5, window_bounds = array<i64: 128, 50>}, {pipeline_mode = #tpu.pipeline_mode<synchronous>, transform_indices = @transform_6, window_bounds = array<i64: 1, 50>}, {pipeline_mode = #tpu.pipeline_mode<synchronous>, transform_indices = @transform_7, window_bounds = array<i64: 50, 10>}, {pipeline_mode = #tpu.pipeline_mode<synchronous>, transform_indices = @transform_8, window_bounds = array<i64: 1, 10>}, {transform_indices = @transform_9, window_bounds = array<i64: 2, 10>}]} {
    %c0 = arith.constant 0 : index
    %c0_0 = arith.constant 0 : index
    %c0_1 = arith.constant 0 : index
    %0 = vector.load %arg1[%c0, %c0_0, %c0_1] : memref<1x1x1568xf32, #tpu.memory_space<vmem>>, vector<1x1x1568xf32>
    %1 = vector.shape_cast %0 : vector<1x1x1568xf32> to vector<1x1568xf32>
    %c0_2 = arith.constant 0 : index
    %c0_3 = arith.constant 0 : index
    %2 = vector.load %arg2[%c0_2, %c0_3] : memref<8x49xf32, #tpu.memory_space<vmem>>, vector<8x49xf32>
    %3 = vector.extract_strided_slice %2 {offsets = [0, 0], sizes = [8, 1], strides = [1, 1]} : vector<8x49xf32> to vector<8x1xf32>
    %4 = vector.broadcast %3 : vector<8x1xf32> to vector<8x1568xf32>
    %5 = vector.broadcast %1 : vector<1x1568xf32> to vector<8x1568xf32>
    %6 = arith.mulf %4, %5 : vector<8x1568xf32>
    %7 = vector.extract_strided_slice %2 {offsets = [0, 1], sizes = [8, 1], strides = [1, 1]} : vector<8x49xf32> to vector<8x1xf32>
    %8 = vector.extract_strided_slice %1 {offsets = [0, 2], sizes = [1, 1566], strides = [1, 1]} : vector<1x1568xf32> to vector<1x1566xf32>
    %9 = vector.extract_strided_slice %1 {offsets = [0, 0], sizes = [1, 2], strides = [1, 1]} : vector<1x1568xf32> to vector<1x2xf32>
    %10 = tpu.concatenate %8, %9 in 1 : vector<1x1566xf32>, vector<1x2xf32> -> vector<1x1568xf32>
    %11 = vector.broadcast %7 : vector<8x1xf32> to vector<8x1568xf32>
    %12 = vector.broadcast %10 : vector<1x1568xf32> to vector<8x1568xf32>
    %13 = arith.mulf %11, %12 : vector<8x1568xf32>
    %14 = arith.addf %6, %13 : vector<8x1568xf32>
    %15 = vector.extract_strided_slice %2 {offsets = [0, 2], sizes = [8, 1], strides = [1, 1]} : vector<8x49xf32> to vector<8x1xf32>
    %16 = vector.extract_strided_slice %1 {offsets = [0, 4], sizes = [1, 1564], strides = [1, 1]} : vector<1x1568xf32> to vector<1x1564xf32>
    %17 = vector.extract_strided_slice %1 {offsets = [0, 0], sizes = [1, 4], strides = [1, 1]} : vector<1x1568xf32> to vector<1x4xf32>
    %18 = tpu.concatenate %16, %17 in 1 : vector<1x1564xf32>, vector<1x4xf32> -> vector<1x1568xf32>
    %19 = vector.broadcast %15 : vector<8x1xf32> to vector<8x1568xf32>
    %20 = vector.broadcast %18 : vector<1x1568xf32> to vector<8x1568xf32>
    %21 = arith.mulf %19, %20 : vector<8x1568xf32>
    %22 = arith.addf %14, %21 : vector<8x1568xf32>
    %23 = vector.extract_strided_slice %2 {offsets = [0, 3], sizes = [8, 1], strides = [1, 1]} : vector<8x49xf32> to vector<8x1xf32>
    %24 = vector.extract_strided_slice %1 {offsets = [0, 6], sizes = [1, 1562], strides = [1, 1]} : vector<1x1568xf32> to vector<1x1562xf32>
    %25 = vector.extract_strided_slice %1 {offsets = [0, 0], sizes = [1, 6], strides = [1, 1]} : vector<1x1568xf32> to vector<1x6xf32>
    %26 = tpu.concatenate %24, %25 in 1 : vector<1x1562xf32>, vector<1x6xf32> -> vector<1x1568xf32>
    %27 = vector.broadcast %23 : vector<8x1xf32> to vector<8x1568xf32>
    %28 = vector.broadcast %26 : vector<1x1568xf32> to vector<8x1568xf32>
    %29 = arith.mulf %27, %28 : vector<8x1568xf32>
    %30 = arith.addf %22, %29 : vector<8x1568xf32>
    %31 = vector.extract_strided_slice %2 {offsets = [0, 4], sizes = [8, 1], strides = [1, 1]} : vector<8x49xf32> to vector<8x1xf32>
    %32 = vector.extract_strided_slice %1 {offsets = [0, 8], sizes = [1, 1560], strides = [1, 1]} : vector<1x1568xf32> to vector<1x1560xf32>
    %33 = vector.extract_strided_slice %1 {offsets = [0, 0], sizes = [1, 8], strides = [1, 1]} : vector<1x1568xf32> to vector<1x8xf32>
    %34 = tpu.concatenate %32, %33 in 1 : vector<1x1560xf32>, vector<1x8xf32> -> vector<1x1568xf32>
    %35 = vector.broadcast %31 : vector<8x1xf32> to vector<8x1568xf32>
    %36 = vector.broadcast %34 : vector<1x1568xf32> to vector<8x1568xf32>
    %37 = arith.mulf %35, %36 : vector<8x1568xf32>
    %38 = arith.addf %30, %37 : vector<8x1568xf32>
    %39 = vector.extract_strided_slice %2 {offsets = [0, 5], sizes = [8, 1], strides = [1, 1]} : vector<8x49xf32> to vector<8x1xf32>
    %40 = vector.extract_strided_slice %1 {offsets = [0, 10], sizes = [1, 1558], strides = [1, 1]} : vector<1x1568xf32> to vector<1x1558xf32>
    %41 = vector.extract_strided_slice %1 {offsets = [0, 0], sizes = [1, 10], strides = [1, 1]} : vector<1x1568xf32> to vector<1x10xf32>
    %42 = tpu.concatenate %40, %41 in 1 : vector<1x1558xf32>, vector<1x10xf32> -> vector<1x1568xf32>
    %43 = vector.broadcast %39 : vector<8x1xf32> to vector<8x1568xf32>
    %44 = vector.broadcast %42 : vector<1x1568xf32> to vector<8x1568xf32>
    %45 = arith.mulf %43, %44 : vector<8x1568xf32>
    %46 = arith.addf %38, %45 : vector<8x1568xf32>
    %47 = vector.extract_strided_slice %2 {offsets = [0, 6], sizes = [8, 1], strides = [1, 1]} : vector<8x49xf32> to vector<8x1xf32>
    %48 = vector.extract_strided_slice %1 {offsets = [0, 12], sizes = [1, 1556], strides = [1, 1]} : vector<1x1568xf32> to vector<1x1556xf32>
    %49 = vector.extract_strided_slice %1 {offsets = [0, 0], sizes = [1, 12], strides = [1, 1]} : vector<1x1568xf32> to vector<1x12xf32>
    %50 = tpu.concatenate %48, %49 in 1 : vector<1x1556xf32>, vector<1x12xf32> -> vector<1x1568xf32>
    %51 = vector.broadcast %47 : vector<8x1xf32> to vector<8x1568xf32>
    %52 = vector.broadcast %50 : vector<1x1568xf32> to vector<8x1568xf32>
    %53 = arith.mulf %51, %52 : vector<8x1568xf32>
    %54 = arith.addf %46, %53 : vector<8x1568xf32>
    %55 = vector.extract_strided_slice %2 {offsets = [0, 7], sizes = [8, 1], strides = [1, 1]} : vector<8x49xf32> to vector<8x1xf32>
    %56 = vector.extract_strided_slice %1 {offsets = [0, 56], sizes = [1, 1512], strides = [1, 1]} : vector<1x1568xf32> to vector<1x1512xf32>
    %57 = vector.extract_strided_slice %1 {offsets = [0, 0], sizes = [1, 56], strides = [1, 1]} : vector<1x1568xf32> to vector<1x56xf32>
    %58 = tpu.concatenate %56, %57 in 1 : vector<1x1512xf32>, vector<1x56xf32> -> vector<1x1568xf32>
    %59 = vector.broadcast %55 : vector<8x1xf32> to vector<8x1568xf32>
    %60 = vector.broadcast %58 : vector<1x1568xf32> to vector<8x1568xf32>
    %61 = arith.mulf %59, %60 : vector<8x1568xf32>
    %62 = arith.addf %54, %61 : vector<8x1568xf32>
    %63 = vector.extract_strided_slice %2 {offsets = [0, 8], sizes = [8, 1], strides = [1, 1]} : vector<8x49xf32> to vector<8x1xf32>
    %64 = vector.extract_strided_slice %1 {offsets = [0, 58], sizes = [1, 1510], strides = [1, 1]} : vector<1x1568xf32> to vector<1x1510xf32>
    %65 = vector.extract_strided_slice %1 {offsets = [0, 0], sizes = [1, 58], strides = [1, 1]} : vector<1x1568xf32> to vector<1x58xf32>
    %66 = tpu.concatenate %64, %65 in 1 : vector<1x1510xf32>, vector<1x58xf32> -> vector<1x1568xf32>
    %67 = vector.broadcast %63 : vector<8x1xf32> to vector<8x1568xf32>
    %68 = vector.broadcast %66 : vector<1x1568xf32> to vector<8x1568xf32>
    %69 = arith.mulf %67, %68 : vector<8x1568xf32>
    %70 = arith.addf %62, %69 : vector<8x1568xf32>
    %71 = vector.extract_strided_slice %2 {offsets = [0, 9], sizes = [8, 1], strides = [1, 1]} : vector<8x49xf32> to vector<8x1xf32>
    %72 = vector.extract_strided_slice %1 {offsets = [0, 60], sizes = [1, 1508], strides = [1, 1]} : vector<1x1568xf32> to vector<1x1508xf32>
    %73 = vector.extract_strided_slice %1 {offsets = [0, 0], sizes = [1, 60], strides = [1, 1]} : vector<1x1568xf32> to vector<1x60xf32>
    %74 = tpu.concatenate %72, %73 in 1 : vector<1x1508xf32>, vector<1x60xf32> -> vector<1x1568xf32>
    %75 = vector.broadcast %71 : vector<8x1xf32> to vector<8x1568xf32>
    %76 = vector.broadcast %74 : vector<1x1568xf32> to vector<8x1568xf32>
    %77 = arith.mulf %75, %76 : vector<8x1568xf32>
    %78 = arith.addf %70, %77 : vector<8x1568xf32>
    %79 = vector.extract_strided_slice %2 {offsets = [0, 10], sizes = [8, 1], strides = [1, 1]} : vector<8x49xf32> to vector<8x1xf32>
    %80 = vector.extract_strided_slice %1 {offsets = [0, 62], sizes = [1, 1506], strides = [1, 1]} : vector<1x1568xf32> to vector<1x1506xf32>
    %81 = vector.extract_strided_slice %1 {offsets = [0, 0], sizes = [1, 62], strides = [1, 1]} : vector<1x1568xf32> to vector<1x62xf32>
    %82 = tpu.concatenate %80, %81 in 1 : vector<1x1506xf32>, vector<1x62xf32> -> vector<1x1568xf32>
    %83 = vector.broadcast %79 : vector<8x1xf32> to vector<8x1568xf32>
    %84 = vector.broadcast %82 : vector<1x1568xf32> to vector<8x1568xf32>
    %85 = arith.mulf %83, %84 : vector<8x1568xf32>
    %86 = arith.addf %78, %85 : vector<8x1568xf32>
    %87 = vector.extract_strided_slice %2 {offsets = [0, 11], sizes = [8, 1], strides = [1, 1]} : vector<8x49xf32> to vector<8x1xf32>
    %88 = vector.extract_strided_slice %1 {offsets = [0, 64], sizes = [1, 1504], strides = [1, 1]} : vector<1x1568xf32> to vector<1x1504xf32>
    %89 = vector.extract_strided_slice %1 {offsets = [0, 0], sizes = [1, 64], strides = [1, 1]} : vector<1x1568xf32> to vector<1x64xf32>
    %90 = tpu.concatenate %88, %89 in 1 : vector<1x1504xf32>, vector<1x64xf32> -> vector<1x1568xf32>
    %91 = vector.broadcast %87 : vector<8x1xf32> to vector<8x1568xf32>
    %92 = vector.broadcast %90 : vector<1x1568xf32> to vector<8x1568xf32>
    %93 = arith.mulf %91, %92 : vector<8x1568xf32>
    %94 = arith.addf %86, %93 : vector<8x1568xf32>
    %95 = vector.extract_strided_slice %2 {offsets = [0, 12], sizes = [8, 1], strides = [1, 1]} : vector<8x49xf32> to vector<8x1xf32>
    %96 = vector.extract_strided_slice %1 {offsets = [0, 66], sizes = [1, 1502], strides = [1, 1]} : vector<1x1568xf32> to vector<1x1502xf32>
    %97 = vector.extract_strided_slice %1 {offsets = [0, 0], sizes = [1, 66], strides = [1, 1]} : vector<1x1568xf32> to vector<1x66xf32>
    %98 = tpu.concatenate %96, %97 in 1 : vector<1x1502xf32>, vector<1x66xf32> -> vector<1x1568xf32>
    %99 = vector.broadcast %95 : vector<8x1xf32> to vector<8x1568xf32>
    %100 = vector.broadcast %98 : vector<1x1568xf32> to vector<8x1568xf32>
    %101 = arith.mulf %99, %100 : vector<8x1568xf32>
    %102 = arith.addf %94, %101 : vector<8x1568xf32>
    %103 = vector.extract_strided_slice %2 {offsets = [0, 13], sizes = [8, 1], strides = [1, 1]} : vector<8x49xf32> to vector<8x1xf32>
    %104 = vector.extract_strided_slice %1 {offsets = [0, 68], sizes = [1, 1500], strides = [1, 1]} : vector<1x1568xf32> to vector<1x1500xf32>
    %105 = vector.extract_strided_slice %1 {offsets = [0, 0], sizes = [1, 68], strides = [1, 1]} : vector<1x1568xf32> to vector<1x68xf32>
    %106 = tpu.concatenate %104, %105 in 1 : vector<1x1500xf32>, vector<1x68xf32> -> vector<1x1568xf32>
    %107 = vector.broadcast %103 : vector<8x1xf32> to vector<8x1568xf32>
    %108 = vector.broadcast %106 : vector<1x1568xf32> to vector<8x1568xf32>
    %109 = arith.mulf %107, %108 : vector<8x1568xf32>
    %110 = arith.addf %102, %109 : vector<8x1568xf32>
    %111 = vector.extract_strided_slice %2 {offsets = [0, 14], sizes = [8, 1], strides = [1, 1]} : vector<8x49xf32> to vector<8x1xf32>
    %112 = vector.extract_strided_slice %1 {offsets = [0, 112], sizes = [1, 1456], strides = [1, 1]} : vector<1x1568xf32> to vector<1x1456xf32>
    %113 = vector.extract_strided_slice %1 {offsets = [0, 0], sizes = [1, 112], strides = [1, 1]} : vector<1x1568xf32> to vector<1x112xf32>
    %114 = tpu.concatenate %112, %113 in 1 : vector<1x1456xf32>, vector<1x112xf32> -> vector<1x1568xf32>
    %115 = vector.broadcast %111 : vector<8x1xf32> to vector<8x1568xf32>
    %116 = vector.broadcast %114 : vector<1x1568xf32> to vector<8x1568xf32>
    %117 = arith.mulf %115, %116 : vector<8x1568xf32>
    %118 = arith.addf %110, %117 : vector<8x1568xf32>
    %119 = vector.extract_strided_slice %2 {offsets = [0, 15], sizes = [8, 1], strides = [1, 1]} : vector<8x49xf32> to vector<8x1xf32>
    %120 = vector.extract_strided_slice %1 {offsets = [0, 114], sizes = [1, 1454], strides = [1, 1]} : vector<1x1568xf32> to vector<1x1454xf32>
    %121 = vector.extract_strided_slice %1 {offsets = [0, 0], sizes = [1, 114], strides = [1, 1]} : vector<1x1568xf32> to vector<1x114xf32>
    %122 = tpu.concatenate %120, %121 in 1 : vector<1x1454xf32>, vector<1x114xf32> -> vector<1x1568xf32>
    %123 = vector.broadcast %119 : vector<8x1xf32> to vector<8x1568xf32>
    %124 = vector.broadcast %122 : vector<1x1568xf32> to vector<8x1568xf32>
    %125 = arith.mulf %123, %124 : vector<8x1568xf32>
    %126 = arith.addf %118, %125 : vector<8x1568xf32>
    %127 = vector.extract_strided_slice %2 {offsets = [0, 16], sizes = [8, 1], strides = [1, 1]} : vector<8x49xf32> to vector<8x1xf32>
    %128 = vector.extract_strided_slice %1 {offsets = [0, 116], sizes = [1, 1452], strides = [1, 1]} : vector<1x1568xf32> to vector<1x1452xf32>
    %129 = vector.extract_strided_slice %1 {offsets = [0, 0], sizes = [1, 116], strides = [1, 1]} : vector<1x1568xf32> to vector<1x116xf32>
    %130 = tpu.concatenate %128, %129 in 1 : vector<1x1452xf32>, vector<1x116xf32> -> vector<1x1568xf32>
    %131 = vector.broadcast %127 : vector<8x1xf32> to vector<8x1568xf32>
    %132 = vector.broadcast %130 : vector<1x1568xf32> to vector<8x1568xf32>
    %133 = arith.mulf %131, %132 : vector<8x1568xf32>
    %134 = arith.addf %126, %133 : vector<8x1568xf32>
    %135 = vector.extract_strided_slice %2 {offsets = [0, 17], sizes = [8, 1], strides = [1, 1]} : vector<8x49xf32> to vector<8x1xf32>
    %136 = vector.extract_strided_slice %1 {offsets = [0, 118], sizes = [1, 1450], strides = [1, 1]} : vector<1x1568xf32> to vector<1x1450xf32>
    %137 = vector.extract_strided_slice %1 {offsets = [0, 0], sizes = [1, 118], strides = [1, 1]} : vector<1x1568xf32> to vector<1x118xf32>
    %138 = tpu.concatenate %136, %137 in 1 : vector<1x1450xf32>, vector<1x118xf32> -> vector<1x1568xf32>
    %139 = vector.broadcast %135 : vector<8x1xf32> to vector<8x1568xf32>
    %140 = vector.broadcast %138 : vector<1x1568xf32> to vector<8x1568xf32>
    %141 = arith.mulf %139, %140 : vector<8x1568xf32>
    %142 = arith.addf %134, %141 : vector<8x1568xf32>
    %143 = vector.extract_strided_slice %2 {offsets = [0, 18], sizes = [8, 1], strides = [1, 1]} : vector<8x49xf32> to vector<8x1xf32>
    %144 = vector.extract_strided_slice %1 {offsets = [0, 120], sizes = [1, 1448], strides = [1, 1]} : vector<1x1568xf32> to vector<1x1448xf32>
    %145 = vector.extract_strided_slice %1 {offsets = [0, 0], sizes = [1, 120], strides = [1, 1]} : vector<1x1568xf32> to vector<1x120xf32>
    %146 = tpu.concatenate %144, %145 in 1 : vector<1x1448xf32>, vector<1x120xf32> -> vector<1x1568xf32>
    %147 = vector.broadcast %143 : vector<8x1xf32> to vector<8x1568xf32>
    %148 = vector.broadcast %146 : vector<1x1568xf32> to vector<8x1568xf32>
    %149 = arith.mulf %147, %148 : vector<8x1568xf32>
    %150 = arith.addf %142, %149 : vector<8x1568xf32>
    %151 = vector.extract_strided_slice %2 {offsets = [0, 19], sizes = [8, 1], strides = [1, 1]} : vector<8x49xf32> to vector<8x1xf32>
    %152 = vector.extract_strided_slice %1 {offsets = [0, 122], sizes = [1, 1446], strides = [1, 1]} : vector<1x1568xf32> to vector<1x1446xf32>
    %153 = vector.extract_strided_slice %1 {offsets = [0, 0], sizes = [1, 122], strides = [1, 1]} : vector<1x1568xf32> to vector<1x122xf32>
    %154 = tpu.concatenate %152, %153 in 1 : vector<1x1446xf32>, vector<1x122xf32> -> vector<1x1568xf32>
    %155 = vector.broadcast %151 : vector<8x1xf32> to vector<8x1568xf32>
    %156 = vector.broadcast %154 : vector<1x1568xf32> to vector<8x1568xf32>
    %157 = arith.mulf %155, %156 : vector<8x1568xf32>
    %158 = arith.addf %150, %157 : vector<8x1568xf32>
    %159 = vector.extract_strided_slice %2 {offsets = [0, 20], sizes = [8, 1], strides = [1, 1]} : vector<8x49xf32> to vector<8x1xf32>
    %160 = vector.extract_strided_slice %1 {offsets = [0, 124], sizes = [1, 1444], strides = [1, 1]} : vector<1x1568xf32> to vector<1x1444xf32>
    %161 = vector.extract_strided_slice %1 {offsets = [0, 0], sizes = [1, 124], strides = [1, 1]} : vector<1x1568xf32> to vector<1x124xf32>
    %162 = tpu.concatenate %160, %161 in 1 : vector<1x1444xf32>, vector<1x124xf32> -> vector<1x1568xf32>
    %163 = vector.broadcast %159 : vector<8x1xf32> to vector<8x1568xf32>
    %164 = vector.broadcast %162 : vector<1x1568xf32> to vector<8x1568xf32>
    %165 = arith.mulf %163, %164 : vector<8x1568xf32>
    %166 = arith.addf %158, %165 : vector<8x1568xf32>
    %167 = vector.extract_strided_slice %2 {offsets = [0, 21], sizes = [8, 1], strides = [1, 1]} : vector<8x49xf32> to vector<8x1xf32>
    %168 = vector.extract_strided_slice %1 {offsets = [0, 168], sizes = [1, 1400], strides = [1, 1]} : vector<1x1568xf32> to vector<1x1400xf32>
    %169 = vector.extract_strided_slice %1 {offsets = [0, 0], sizes = [1, 168], strides = [1, 1]} : vector<1x1568xf32> to vector<1x168xf32>
    %170 = tpu.concatenate %168, %169 in 1 : vector<1x1400xf32>, vector<1x168xf32> -> vector<1x1568xf32>
    %171 = vector.broadcast %167 : vector<8x1xf32> to vector<8x1568xf32>
    %172 = vector.broadcast %170 : vector<1x1568xf32> to vector<8x1568xf32>
    %173 = arith.mulf %171, %172 : vector<8x1568xf32>
    %174 = arith.addf %166, %173 : vector<8x1568xf32>
    %175 = vector.extract_strided_slice %2 {offsets = [0, 22], sizes = [8, 1], strides = [1, 1]} : vector<8x49xf32> to vector<8x1xf32>
    %176 = vector.extract_strided_slice %1 {offsets = [0, 170], sizes = [1, 1398], strides = [1, 1]} : vector<1x1568xf32> to vector<1x1398xf32>
    %177 = vector.extract_strided_slice %1 {offsets = [0, 0], sizes = [1, 170], strides = [1, 1]} : vector<1x1568xf32> to vector<1x170xf32>
    %178 = tpu.concatenate %176, %177 in 1 : vector<1x1398xf32>, vector<1x170xf32> -> vector<1x1568xf32>
    %179 = vector.broadcast %175 : vector<8x1xf32> to vector<8x1568xf32>
    %180 = vector.broadcast %178 : vector<1x1568xf32> to vector<8x1568xf32>
    %181 = arith.mulf %179, %180 : vector<8x1568xf32>
    %182 = arith.addf %174, %181 : vector<8x1568xf32>
    %183 = vector.extract_strided_slice %2 {offsets = [0, 23], sizes = [8, 1], strides = [1, 1]} : vector<8x49xf32> to vector<8x1xf32>
    %184 = vector.extract_strided_slice %1 {offsets = [0, 172], sizes = [1, 1396], strides = [1, 1]} : vector<1x1568xf32> to vector<1x1396xf32>
    %185 = vector.extract_strided_slice %1 {offsets = [0, 0], sizes = [1, 172], strides = [1, 1]} : vector<1x1568xf32> to vector<1x172xf32>
    %186 = tpu.concatenate %184, %185 in 1 : vector<1x1396xf32>, vector<1x172xf32> -> vector<1x1568xf32>
    %187 = vector.broadcast %183 : vector<8x1xf32> to vector<8x1568xf32>
    %188 = vector.broadcast %186 : vector<1x1568xf32> to vector<8x1568xf32>
    %189 = arith.mulf %187, %188 : vector<8x1568xf32>
    %190 = arith.addf %182, %189 : vector<8x1568xf32>
    %191 = vector.extract_strided_slice %2 {offsets = [0, 24], sizes = [8, 1], strides = [1, 1]} : vector<8x49xf32> to vector<8x1xf32>
    %192 = vector.extract_strided_slice %1 {offsets = [0, 174], sizes = [1, 1394], strides = [1, 1]} : vector<1x1568xf32> to vector<1x1394xf32>
    %193 = vector.extract_strided_slice %1 {offsets = [0, 0], sizes = [1, 174], strides = [1, 1]} : vector<1x1568xf32> to vector<1x174xf32>
    %194 = tpu.concatenate %192, %193 in 1 : vector<1x1394xf32>, vector<1x174xf32> -> vector<1x1568xf32>
    %195 = vector.broadcast %191 : vector<8x1xf32> to vector<8x1568xf32>
    %196 = vector.broadcast %194 : vector<1x1568xf32> to vector<8x1568xf32>
    %197 = arith.mulf %195, %196 : vector<8x1568xf32>
    %198 = arith.addf %190, %197 : vector<8x1568xf32>
    %199 = vector.extract_strided_slice %2 {offsets = [0, 25], sizes = [8, 1], strides = [1, 1]} : vector<8x49xf32> to vector<8x1xf32>
    %200 = vector.extract_strided_slice %1 {offsets = [0, 176], sizes = [1, 1392], strides = [1, 1]} : vector<1x1568xf32> to vector<1x1392xf32>
    %201 = vector.extract_strided_slice %1 {offsets = [0, 0], sizes = [1, 176], strides = [1, 1]} : vector<1x1568xf32> to vector<1x176xf32>
    %202 = tpu.concatenate %200, %201 in 1 : vector<1x1392xf32>, vector<1x176xf32> -> vector<1x1568xf32>
    %203 = vector.broadcast %199 : vector<8x1xf32> to vector<8x1568xf32>
    %204 = vector.broadcast %202 : vector<1x1568xf32> to vector<8x1568xf32>
    %205 = arith.mulf %203, %204 : vector<8x1568xf32>
    %206 = arith.addf %198, %205 : vector<8x1568xf32>
    %207 = vector.extract_strided_slice %2 {offsets = [0, 26], sizes = [8, 1], strides = [1, 1]} : vector<8x49xf32> to vector<8x1xf32>
    %208 = vector.extract_strided_slice %1 {offsets = [0, 178], sizes = [1, 1390], strides = [1, 1]} : vector<1x1568xf32> to vector<1x1390xf32>
    %209 = vector.extract_strided_slice %1 {offsets = [0, 0], sizes = [1, 178], strides = [1, 1]} : vector<1x1568xf32> to vector<1x178xf32>
    %210 = tpu.concatenate %208, %209 in 1 : vector<1x1390xf32>, vector<1x178xf32> -> vector<1x1568xf32>
    %211 = vector.broadcast %207 : vector<8x1xf32> to vector<8x1568xf32>
    %212 = vector.broadcast %210 : vector<1x1568xf32> to vector<8x1568xf32>
    %213 = arith.mulf %211, %212 : vector<8x1568xf32>
    %214 = arith.addf %206, %213 : vector<8x1568xf32>
    %215 = vector.extract_strided_slice %2 {offsets = [0, 27], sizes = [8, 1], strides = [1, 1]} : vector<8x49xf32> to vector<8x1xf32>
    %216 = vector.extract_strided_slice %1 {offsets = [0, 180], sizes = [1, 1388], strides = [1, 1]} : vector<1x1568xf32> to vector<1x1388xf32>
    %217 = vector.extract_strided_slice %1 {offsets = [0, 0], sizes = [1, 180], strides = [1, 1]} : vector<1x1568xf32> to vector<1x180xf32>
    %218 = tpu.concatenate %216, %217 in 1 : vector<1x1388xf32>, vector<1x180xf32> -> vector<1x1568xf32>
    %219 = vector.broadcast %215 : vector<8x1xf32> to vector<8x1568xf32>
    %220 = vector.broadcast %218 : vector<1x1568xf32> to vector<8x1568xf32>
    %221 = arith.mulf %219, %220 : vector<8x1568xf32>
    %222 = arith.addf %214, %221 : vector<8x1568xf32>
    %223 = vector.extract_strided_slice %2 {offsets = [0, 28], sizes = [8, 1], strides = [1, 1]} : vector<8x49xf32> to vector<8x1xf32>
    %224 = vector.extract_strided_slice %1 {offsets = [0, 224], sizes = [1, 1344], strides = [1, 1]} : vector<1x1568xf32> to vector<1x1344xf32>
    %225 = vector.extract_strided_slice %1 {offsets = [0, 0], sizes = [1, 224], strides = [1, 1]} : vector<1x1568xf32> to vector<1x224xf32>
    %226 = tpu.concatenate %224, %225 in 1 : vector<1x1344xf32>, vector<1x224xf32> -> vector<1x1568xf32>
    %227 = vector.broadcast %223 : vector<8x1xf32> to vector<8x1568xf32>
    %228 = vector.broadcast %226 : vector<1x1568xf32> to vector<8x1568xf32>
    %229 = arith.mulf %227, %228 : vector<8x1568xf32>
    %230 = arith.addf %222, %229 : vector<8x1568xf32>
    %231 = vector.extract_strided_slice %2 {offsets = [0, 29], sizes = [8, 1], strides = [1, 1]} : vector<8x49xf32> to vector<8x1xf32>
    %232 = vector.extract_strided_slice %1 {offsets = [0, 226], sizes = [1, 1342], strides = [1, 1]} : vector<1x1568xf32> to vector<1x1342xf32>
    %233 = vector.extract_strided_slice %1 {offsets = [0, 0], sizes = [1, 226], strides = [1, 1]} : vector<1x1568xf32> to vector<1x226xf32>
    %234 = tpu.concatenate %232, %233 in 1 : vector<1x1342xf32>, vector<1x226xf32> -> vector<1x1568xf32>
    %235 = vector.broadcast %231 : vector<8x1xf32> to vector<8x1568xf32>
    %236 = vector.broadcast %234 : vector<1x1568xf32> to vector<8x1568xf32>
    %237 = arith.mulf %235, %236 : vector<8x1568xf32>
    %238 = arith.addf %230, %237 : vector<8x1568xf32>
    %239 = vector.extract_strided_slice %2 {offsets = [0, 30], sizes = [8, 1], strides = [1, 1]} : vector<8x49xf32> to vector<8x1xf32>
    %240 = vector.extract_strided_slice %1 {offsets = [0, 228], sizes = [1, 1340], strides = [1, 1]} : vector<1x1568xf32> to vector<1x1340xf32>
    %241 = vector.extract_strided_slice %1 {offsets = [0, 0], sizes = [1, 228], strides = [1, 1]} : vector<1x1568xf32> to vector<1x228xf32>
    %242 = tpu.concatenate %240, %241 in 1 : vector<1x1340xf32>, vector<1x228xf32> -> vector<1x1568xf32>
    %243 = vector.broadcast %239 : vector<8x1xf32> to vector<8x1568xf32>
    %244 = vector.broadcast %242 : vector<1x1568xf32> to vector<8x1568xf32>
    %245 = arith.mulf %243, %244 : vector<8x1568xf32>
    %246 = arith.addf %238, %245 : vector<8x1568xf32>
    %247 = vector.extract_strided_slice %2 {offsets = [0, 31], sizes = [8, 1], strides = [1, 1]} : vector<8x49xf32> to vector<8x1xf32>
    %248 = vector.extract_strided_slice %1 {offsets = [0, 230], sizes = [1, 1338], strides = [1, 1]} : vector<1x1568xf32> to vector<1x1338xf32>
    %249 = vector.extract_strided_slice %1 {offsets = [0, 0], sizes = [1, 230], strides = [1, 1]} : vector<1x1568xf32> to vector<1x230xf32>
    %250 = tpu.concatenate %248, %249 in 1 : vector<1x1338xf32>, vector<1x230xf32> -> vector<1x1568xf32>
    %251 = vector.broadcast %247 : vector<8x1xf32> to vector<8x1568xf32>
    %252 = vector.broadcast %250 : vector<1x1568xf32> to vector<8x1568xf32>
    %253 = arith.mulf %251, %252 : vector<8x1568xf32>
    %254 = arith.addf %246, %253 : vector<8x1568xf32>
    %255 = vector.extract_strided_slice %2 {offsets = [0, 32], sizes = [8, 1], strides = [1, 1]} : vector<8x49xf32> to vector<8x1xf32>
    %256 = vector.extract_strided_slice %1 {offsets = [0, 232], sizes = [1, 1336], strides = [1, 1]} : vector<1x1568xf32> to vector<1x1336xf32>
    %257 = vector.extract_strided_slice %1 {offsets = [0, 0], sizes = [1, 232], strides = [1, 1]} : vector<1x1568xf32> to vector<1x232xf32>
    %258 = tpu.concatenate %256, %257 in 1 : vector<1x1336xf32>, vector<1x232xf32> -> vector<1x1568xf32>
    %259 = vector.broadcast %255 : vector<8x1xf32> to vector<8x1568xf32>
    %260 = vector.broadcast %258 : vector<1x1568xf32> to vector<8x1568xf32>
    %261 = arith.mulf %259, %260 : vector<8x1568xf32>
    %262 = arith.addf %254, %261 : vector<8x1568xf32>
    %263 = vector.extract_strided_slice %2 {offsets = [0, 33], sizes = [8, 1], strides = [1, 1]} : vector<8x49xf32> to vector<8x1xf32>
    %264 = vector.extract_strided_slice %1 {offsets = [0, 234], sizes = [1, 1334], strides = [1, 1]} : vector<1x1568xf32> to vector<1x1334xf32>
    %265 = vector.extract_strided_slice %1 {offsets = [0, 0], sizes = [1, 234], strides = [1, 1]} : vector<1x1568xf32> to vector<1x234xf32>
    %266 = tpu.concatenate %264, %265 in 1 : vector<1x1334xf32>, vector<1x234xf32> -> vector<1x1568xf32>
    %267 = vector.broadcast %263 : vector<8x1xf32> to vector<8x1568xf32>
    %268 = vector.broadcast %266 : vector<1x1568xf32> to vector<8x1568xf32>
    %269 = arith.mulf %267, %268 : vector<8x1568xf32>
    %270 = arith.addf %262, %269 : vector<8x1568xf32>
    %271 = vector.extract_strided_slice %2 {offsets = [0, 34], sizes = [8, 1], strides = [1, 1]} : vector<8x49xf32> to vector<8x1xf32>
    %272 = vector.extract_strided_slice %1 {offsets = [0, 236], sizes = [1, 1332], strides = [1, 1]} : vector<1x1568xf32> to vector<1x1332xf32>
    %273 = vector.extract_strided_slice %1 {offsets = [0, 0], sizes = [1, 236], strides = [1, 1]} : vector<1x1568xf32> to vector<1x236xf32>
    %274 = tpu.concatenate %272, %273 in 1 : vector<1x1332xf32>, vector<1x236xf32> -> vector<1x1568xf32>
    %275 = vector.broadcast %271 : vector<8x1xf32> to vector<8x1568xf32>
    %276 = vector.broadcast %274 : vector<1x1568xf32> to vector<8x1568xf32>
    %277 = arith.mulf %275, %276 : vector<8x1568xf32>
    %278 = arith.addf %270, %277 : vector<8x1568xf32>
    %279 = vector.extract_strided_slice %2 {offsets = [0, 35], sizes = [8, 1], strides = [1, 1]} : vector<8x49xf32> to vector<8x1xf32>
    %280 = vector.extract_strided_slice %1 {offsets = [0, 280], sizes = [1, 1288], strides = [1, 1]} : vector<1x1568xf32> to vector<1x1288xf32>
    %281 = vector.extract_strided_slice %1 {offsets = [0, 0], sizes = [1, 280], strides = [1, 1]} : vector<1x1568xf32> to vector<1x280xf32>
    %282 = tpu.concatenate %280, %281 in 1 : vector<1x1288xf32>, vector<1x280xf32> -> vector<1x1568xf32>
    %283 = vector.broadcast %279 : vector<8x1xf32> to vector<8x1568xf32>
    %284 = vector.broadcast %282 : vector<1x1568xf32> to vector<8x1568xf32>
    %285 = arith.mulf %283, %284 : vector<8x1568xf32>
    %286 = arith.addf %278, %285 : vector<8x1568xf32>
    %287 = vector.extract_strided_slice %2 {offsets = [0, 36], sizes = [8, 1], strides = [1, 1]} : vector<8x49xf32> to vector<8x1xf32>
    %288 = vector.extract_strided_slice %1 {offsets = [0, 282], sizes = [1, 1286], strides = [1, 1]} : vector<1x1568xf32> to vector<1x1286xf32>
    %289 = vector.extract_strided_slice %1 {offsets = [0, 0], sizes = [1, 282], strides = [1, 1]} : vector<1x1568xf32> to vector<1x282xf32>
    %290 = tpu.concatenate %288, %289 in 1 : vector<1x1286xf32>, vector<1x282xf32> -> vector<1x1568xf32>
    %291 = vector.broadcast %287 : vector<8x1xf32> to vector<8x1568xf32>
    %292 = vector.broadcast %290 : vector<1x1568xf32> to vector<8x1568xf32>
    %293 = arith.mulf %291, %292 : vector<8x1568xf32>
    %294 = arith.addf %286, %293 : vector<8x1568xf32>
    %295 = vector.extract_strided_slice %2 {offsets = [0, 37], sizes = [8, 1], strides = [1, 1]} : vector<8x49xf32> to vector<8x1xf32>
    %296 = vector.extract_strided_slice %1 {offsets = [0, 284], sizes = [1, 1284], strides = [1, 1]} : vector<1x1568xf32> to vector<1x1284xf32>
    %297 = vector.extract_strided_slice %1 {offsets = [0, 0], sizes = [1, 284], strides = [1, 1]} : vector<1x1568xf32> to vector<1x284xf32>
    %298 = tpu.concatenate %296, %297 in 1 : vector<1x1284xf32>, vector<1x284xf32> -> vector<1x1568xf32>
    %299 = vector.broadcast %295 : vector<8x1xf32> to vector<8x1568xf32>
    %300 = vector.broadcast %298 : vector<1x1568xf32> to vector<8x1568xf32>
    %301 = arith.mulf %299, %300 : vector<8x1568xf32>
    %302 = arith.addf %294, %301 : vector<8x1568xf32>
    %303 = vector.extract_strided_slice %2 {offsets = [0, 38], sizes = [8, 1], strides = [1, 1]} : vector<8x49xf32> to vector<8x1xf32>
    %304 = vector.extract_strided_slice %1 {offsets = [0, 286], sizes = [1, 1282], strides = [1, 1]} : vector<1x1568xf32> to vector<1x1282xf32>
    %305 = vector.extract_strided_slice %1 {offsets = [0, 0], sizes = [1, 286], strides = [1, 1]} : vector<1x1568xf32> to vector<1x286xf32>
    %306 = tpu.concatenate %304, %305 in 1 : vector<1x1282xf32>, vector<1x286xf32> -> vector<1x1568xf32>
    %307 = vector.broadcast %303 : vector<8x1xf32> to vector<8x1568xf32>
    %308 = vector.broadcast %306 : vector<1x1568xf32> to vector<8x1568xf32>
    %309 = arith.mulf %307, %308 : vector<8x1568xf32>
    %310 = arith.addf %302, %309 : vector<8x1568xf32>
    %311 = vector.extract_strided_slice %2 {offsets = [0, 39], sizes = [8, 1], strides = [1, 1]} : vector<8x49xf32> to vector<8x1xf32>
    %312 = vector.extract_strided_slice %1 {offsets = [0, 288], sizes = [1, 1280], strides = [1, 1]} : vector<1x1568xf32> to vector<1x1280xf32>
    %313 = vector.extract_strided_slice %1 {offsets = [0, 0], sizes = [1, 288], strides = [1, 1]} : vector<1x1568xf32> to vector<1x288xf32>
    %314 = tpu.concatenate %312, %313 in 1 : vector<1x1280xf32>, vector<1x288xf32> -> vector<1x1568xf32>
    %315 = vector.broadcast %311 : vector<8x1xf32> to vector<8x1568xf32>
    %316 = vector.broadcast %314 : vector<1x1568xf32> to vector<8x1568xf32>
    %317 = arith.mulf %315, %316 : vector<8x1568xf32>
    %318 = arith.addf %310, %317 : vector<8x1568xf32>
    %319 = vector.extract_strided_slice %2 {offsets = [0, 40], sizes = [8, 1], strides = [1, 1]} : vector<8x49xf32> to vector<8x1xf32>
    %320 = vector.extract_strided_slice %1 {offsets = [0, 290], sizes = [1, 1278], strides = [1, 1]} : vector<1x1568xf32> to vector<1x1278xf32>
    %321 = vector.extract_strided_slice %1 {offsets = [0, 0], sizes = [1, 290], strides = [1, 1]} : vector<1x1568xf32> to vector<1x290xf32>
    %322 = tpu.concatenate %320, %321 in 1 : vector<1x1278xf32>, vector<1x290xf32> -> vector<1x1568xf32>
    %323 = vector.broadcast %319 : vector<8x1xf32> to vector<8x1568xf32>
    %324 = vector.broadcast %322 : vector<1x1568xf32> to vector<8x1568xf32>
    %325 = arith.mulf %323, %324 : vector<8x1568xf32>
    %326 = arith.addf %318, %325 : vector<8x1568xf32>
    %327 = vector.extract_strided_slice %2 {offsets = [0, 41], sizes = [8, 1], strides = [1, 1]} : vector<8x49xf32> to vector<8x1xf32>
    %328 = vector.extract_strided_slice %1 {offsets = [0, 292], sizes = [1, 1276], strides = [1, 1]} : vector<1x1568xf32> to vector<1x1276xf32>
    %329 = vector.extract_strided_slice %1 {offsets = [0, 0], sizes = [1, 292], strides = [1, 1]} : vector<1x1568xf32> to vector<1x292xf32>
    %330 = tpu.concatenate %328, %329 in 1 : vector<1x1276xf32>, vector<1x292xf32> -> vector<1x1568xf32>
    %331 = vector.broadcast %327 : vector<8x1xf32> to vector<8x1568xf32>
    %332 = vector.broadcast %330 : vector<1x1568xf32> to vector<8x1568xf32>
    %333 = arith.mulf %331, %332 : vector<8x1568xf32>
    %334 = arith.addf %326, %333 : vector<8x1568xf32>
    %335 = vector.extract_strided_slice %2 {offsets = [0, 42], sizes = [8, 1], strides = [1, 1]} : vector<8x49xf32> to vector<8x1xf32>
    %336 = vector.extract_strided_slice %1 {offsets = [0, 336], sizes = [1, 1232], strides = [1, 1]} : vector<1x1568xf32> to vector<1x1232xf32>
    %337 = vector.extract_strided_slice %1 {offsets = [0, 0], sizes = [1, 336], strides = [1, 1]} : vector<1x1568xf32> to vector<1x336xf32>
    %338 = tpu.concatenate %336, %337 in 1 : vector<1x1232xf32>, vector<1x336xf32> -> vector<1x1568xf32>
    %339 = vector.broadcast %335 : vector<8x1xf32> to vector<8x1568xf32>
    %340 = vector.broadcast %338 : vector<1x1568xf32> to vector<8x1568xf32>
    %341 = arith.mulf %339, %340 : vector<8x1568xf32>
    %342 = arith.addf %334, %341 : vector<8x1568xf32>
    %343 = vector.extract_strided_slice %2 {offsets = [0, 43], sizes = [8, 1], strides = [1, 1]} : vector<8x49xf32> to vector<8x1xf32>
    %344 = vector.extract_strided_slice %1 {offsets = [0, 338], sizes = [1, 1230], strides = [1, 1]} : vector<1x1568xf32> to vector<1x1230xf32>
    %345 = vector.extract_strided_slice %1 {offsets = [0, 0], sizes = [1, 338], strides = [1, 1]} : vector<1x1568xf32> to vector<1x338xf32>
    %346 = tpu.concatenate %344, %345 in 1 : vector<1x1230xf32>, vector<1x338xf32> -> vector<1x1568xf32>
    %347 = vector.broadcast %343 : vector<8x1xf32> to vector<8x1568xf32>
    %348 = vector.broadcast %346 : vector<1x1568xf32> to vector<8x1568xf32>
    %349 = arith.mulf %347, %348 : vector<8x1568xf32>
    %350 = arith.addf %342, %349 : vector<8x1568xf32>
    %351 = vector.extract_strided_slice %2 {offsets = [0, 44], sizes = [8, 1], strides = [1, 1]} : vector<8x49xf32> to vector<8x1xf32>
    %352 = vector.extract_strided_slice %1 {offsets = [0, 340], sizes = [1, 1228], strides = [1, 1]} : vector<1x1568xf32> to vector<1x1228xf32>
    %353 = vector.extract_strided_slice %1 {offsets = [0, 0], sizes = [1, 340], strides = [1, 1]} : vector<1x1568xf32> to vector<1x340xf32>
    %354 = tpu.concatenate %352, %353 in 1 : vector<1x1228xf32>, vector<1x340xf32> -> vector<1x1568xf32>
    %355 = vector.broadcast %351 : vector<8x1xf32> to vector<8x1568xf32>
    %356 = vector.broadcast %354 : vector<1x1568xf32> to vector<8x1568xf32>
    %357 = arith.mulf %355, %356 : vector<8x1568xf32>
    %358 = arith.addf %350, %357 : vector<8x1568xf32>
    %359 = vector.extract_strided_slice %2 {offsets = [0, 45], sizes = [8, 1], strides = [1, 1]} : vector<8x49xf32> to vector<8x1xf32>
    %360 = vector.extract_strided_slice %1 {offsets = [0, 342], sizes = [1, 1226], strides = [1, 1]} : vector<1x1568xf32> to vector<1x1226xf32>
    %361 = vector.extract_strided_slice %1 {offsets = [0, 0], sizes = [1, 342], strides = [1, 1]} : vector<1x1568xf32> to vector<1x342xf32>
    %362 = tpu.concatenate %360, %361 in 1 : vector<1x1226xf32>, vector<1x342xf32> -> vector<1x1568xf32>
    %363 = vector.broadcast %359 : vector<8x1xf32> to vector<8x1568xf32>
    %364 = vector.broadcast %362 : vector<1x1568xf32> to vector<8x1568xf32>
    %365 = arith.mulf %363, %364 : vector<8x1568xf32>
    %366 = arith.addf %358, %365 : vector<8x1568xf32>
    %367 = vector.extract_strided_slice %2 {offsets = [0, 46], sizes = [8, 1], strides = [1, 1]} : vector<8x49xf32> to vector<8x1xf32>
    %368 = vector.extract_strided_slice %1 {offsets = [0, 344], sizes = [1, 1224], strides = [1, 1]} : vector<1x1568xf32> to vector<1x1224xf32>
    %369 = vector.extract_strided_slice %1 {offsets = [0, 0], sizes = [1, 344], strides = [1, 1]} : vector<1x1568xf32> to vector<1x344xf32>
    %370 = tpu.concatenate %368, %369 in 1 : vector<1x1224xf32>, vector<1x344xf32> -> vector<1x1568xf32>
    %371 = vector.broadcast %367 : vector<8x1xf32> to vector<8x1568xf32>
    %372 = vector.broadcast %370 : vector<1x1568xf32> to vector<8x1568xf32>
    %373 = arith.mulf %371, %372 : vector<8x1568xf32>
    %374 = arith.addf %366, %373 : vector<8x1568xf32>
    %375 = vector.extract_strided_slice %2 {offsets = [0, 47], sizes = [8, 1], strides = [1, 1]} : vector<8x49xf32> to vector<8x1xf32>
    %376 = vector.extract_strided_slice %1 {offsets = [0, 346], sizes = [1, 1222], strides = [1, 1]} : vector<1x1568xf32> to vector<1x1222xf32>
    %377 = vector.extract_strided_slice %1 {offsets = [0, 0], sizes = [1, 346], strides = [1, 1]} : vector<1x1568xf32> to vector<1x346xf32>
    %378 = tpu.concatenate %376, %377 in 1 : vector<1x1222xf32>, vector<1x346xf32> -> vector<1x1568xf32>
    %379 = vector.broadcast %375 : vector<8x1xf32> to vector<8x1568xf32>
    %380 = vector.broadcast %378 : vector<1x1568xf32> to vector<8x1568xf32>
    %381 = arith.mulf %379, %380 : vector<8x1568xf32>
    %382 = arith.addf %374, %381 : vector<8x1568xf32>
    %383 = vector.extract_strided_slice %2 {offsets = [0, 48], sizes = [8, 1], strides = [1, 1]} : vector<8x49xf32> to vector<8x1xf32>
    %384 = vector.extract_strided_slice %1 {offsets = [0, 348], sizes = [1, 1220], strides = [1, 1]} : vector<1x1568xf32> to vector<1x1220xf32>
    %385 = vector.extract_strided_slice %1 {offsets = [0, 0], sizes = [1, 348], strides = [1, 1]} : vector<1x1568xf32> to vector<1x348xf32>
    %386 = tpu.concatenate %384, %385 in 1 : vector<1x1220xf32>, vector<1x348xf32> -> vector<1x1568xf32>
    %387 = vector.broadcast %383 : vector<8x1xf32> to vector<8x1568xf32>
    %388 = vector.broadcast %386 : vector<1x1568xf32> to vector<8x1568xf32>
    %389 = arith.mulf %387, %388 : vector<8x1568xf32>
    %390 = arith.addf %382, %389 : vector<8x1568xf32>
    %391 = vector.extract_strided_slice %390 {offsets = [0, 1], sizes = [8, 1567], strides = [1, 1]} : vector<8x1568xf32> to vector<8x1567xf32>
    %392 = vector.extract_strided_slice %390 {offsets = [0, 0], sizes = [8, 1], strides = [1, 1]} : vector<8x1568xf32> to vector<8x1xf32>
    %393 = tpu.concatenate %391, %392 in 1 : vector<8x1567xf32>, vector<8x1xf32> -> vector<8x1568xf32>
    %394 = arith.maximumf %390, %393 : vector<8x1568xf32>
    %395 = vector.extract_strided_slice %390 {offsets = [0, 28], sizes = [8, 1540], strides = [1, 1]} : vector<8x1568xf32> to vector<8x1540xf32>
    %396 = vector.extract_strided_slice %390 {offsets = [0, 0], sizes = [8, 28], strides = [1, 1]} : vector<8x1568xf32> to vector<8x28xf32>
    %397 = tpu.concatenate %395, %396 in 1 : vector<8x1540xf32>, vector<8x28xf32> -> vector<8x1568xf32>
    %398 = vector.extract_strided_slice %390 {offsets = [0, 29], sizes = [8, 1539], strides = [1, 1]} : vector<8x1568xf32> to vector<8x1539xf32>
    %399 = vector.extract_strided_slice %390 {offsets = [0, 0], sizes = [8, 29], strides = [1, 1]} : vector<8x1568xf32> to vector<8x29xf32>
    %400 = tpu.concatenate %398, %399 in 1 : vector<8x1539xf32>, vector<8x29xf32> -> vector<8x1568xf32>
    %401 = arith.maximumf %397, %400 : vector<8x1568xf32>
    %402 = arith.maximumf %394, %401 : vector<8x1568xf32>
    %c0_4 = arith.constant 0 : index
    %c0_5 = arith.constant 0 : index
    %403 = vector.load %arg3[%c0_4, %c0_5] : memref<8x1xf32, #tpu.memory_space<vmem>>, vector<8x1xf32>
    %404 = vector.broadcast %403 : vector<8x1xf32> to vector<8x1568xf32>
    %405 = arith.addf %402, %404 : vector<8x1568xf32>
    %cst = arith.constant 0.000000e+00 : f32
    %406 = vector.broadcast %cst : f32 to vector<8x1568xf32>
    %407 = arith.maximumf %405, %406 : vector<8x1568xf32>
    %408 = vector.extract_strided_slice %407 {offsets = [0, 2], sizes = [8, 1566], strides = [1, 1]} : vector<8x1568xf32> to vector<8x1566xf32>
    %409 = vector.extract_strided_slice %407 {offsets = [0, 0], sizes = [8, 2], strides = [1, 1]} : vector<8x1568xf32> to vector<8x2xf32>
    %410 = tpu.concatenate %408, %409 in 1 : vector<8x1566xf32>, vector<8x2xf32> -> vector<8x1568xf32>
    %411 = vector.extract_strided_slice %407 {offsets = [0, 4], sizes = [8, 1564], strides = [1, 1]} : vector<8x1568xf32> to vector<8x1564xf32>
    %412 = vector.extract_strided_slice %407 {offsets = [0, 0], sizes = [8, 4], strides = [1, 1]} : vector<8x1568xf32> to vector<8x4xf32>
    %413 = tpu.concatenate %411, %412 in 1 : vector<8x1564xf32>, vector<8x4xf32> -> vector<8x1568xf32>
    %414 = vector.extract_strided_slice %407 {offsets = [0, 6], sizes = [8, 1562], strides = [1, 1]} : vector<8x1568xf32> to vector<8x1562xf32>
    %415 = vector.extract_strided_slice %407 {offsets = [0, 0], sizes = [8, 6], strides = [1, 1]} : vector<8x1568xf32> to vector<8x6xf32>
    %416 = tpu.concatenate %414, %415 in 1 : vector<8x1562xf32>, vector<8x6xf32> -> vector<8x1568xf32>
    %417 = vector.extract_strided_slice %407 {offsets = [0, 8], sizes = [8, 1560], strides = [1, 1]} : vector<8x1568xf32> to vector<8x1560xf32>
    %418 = vector.extract_strided_slice %407 {offsets = [0, 0], sizes = [8, 8], strides = [1, 1]} : vector<8x1568xf32> to vector<8x8xf32>
    %419 = tpu.concatenate %417, %418 in 1 : vector<8x1560xf32>, vector<8x8xf32> -> vector<8x1568xf32>
    %420 = vector.extract_strided_slice %407 {offsets = [0, 56], sizes = [8, 1512], strides = [1, 1]} : vector<8x1568xf32> to vector<8x1512xf32>
    %421 = vector.extract_strided_slice %407 {offsets = [0, 0], sizes = [8, 56], strides = [1, 1]} : vector<8x1568xf32> to vector<8x56xf32>
    %422 = tpu.concatenate %420, %421 in 1 : vector<8x1512xf32>, vector<8x56xf32> -> vector<8x1568xf32>
    %423 = vector.extract_strided_slice %407 {offsets = [0, 58], sizes = [8, 1510], strides = [1, 1]} : vector<8x1568xf32> to vector<8x1510xf32>
    %424 = vector.extract_strided_slice %407 {offsets = [0, 0], sizes = [8, 58], strides = [1, 1]} : vector<8x1568xf32> to vector<8x58xf32>
    %425 = tpu.concatenate %423, %424 in 1 : vector<8x1510xf32>, vector<8x58xf32> -> vector<8x1568xf32>
    %426 = vector.extract_strided_slice %407 {offsets = [0, 60], sizes = [8, 1508], strides = [1, 1]} : vector<8x1568xf32> to vector<8x1508xf32>
    %427 = vector.extract_strided_slice %407 {offsets = [0, 0], sizes = [8, 60], strides = [1, 1]} : vector<8x1568xf32> to vector<8x60xf32>
    %428 = tpu.concatenate %426, %427 in 1 : vector<8x1508xf32>, vector<8x60xf32> -> vector<8x1568xf32>
    %429 = vector.extract_strided_slice %407 {offsets = [0, 62], sizes = [8, 1506], strides = [1, 1]} : vector<8x1568xf32> to vector<8x1506xf32>
    %430 = vector.extract_strided_slice %407 {offsets = [0, 0], sizes = [8, 62], strides = [1, 1]} : vector<8x1568xf32> to vector<8x62xf32>
    %431 = tpu.concatenate %429, %430 in 1 : vector<8x1506xf32>, vector<8x62xf32> -> vector<8x1568xf32>
    %432 = vector.extract_strided_slice %407 {offsets = [0, 64], sizes = [8, 1504], strides = [1, 1]} : vector<8x1568xf32> to vector<8x1504xf32>
    %433 = vector.extract_strided_slice %407 {offsets = [0, 0], sizes = [8, 64], strides = [1, 1]} : vector<8x1568xf32> to vector<8x64xf32>
    %434 = tpu.concatenate %432, %433 in 1 : vector<8x1504xf32>, vector<8x64xf32> -> vector<8x1568xf32>
    %435 = vector.extract_strided_slice %407 {offsets = [0, 112], sizes = [8, 1456], strides = [1, 1]} : vector<8x1568xf32> to vector<8x1456xf32>
    %436 = vector.extract_strided_slice %407 {offsets = [0, 0], sizes = [8, 112], strides = [1, 1]} : vector<8x1568xf32> to vector<8x112xf32>
    %437 = tpu.concatenate %435, %436 in 1 : vector<8x1456xf32>, vector<8x112xf32> -> vector<8x1568xf32>
    %438 = vector.extract_strided_slice %407 {offsets = [0, 114], sizes = [8, 1454], strides = [1, 1]} : vector<8x1568xf32> to vector<8x1454xf32>
    %439 = vector.extract_strided_slice %407 {offsets = [0, 0], sizes = [8, 114], strides = [1, 1]} : vector<8x1568xf32> to vector<8x114xf32>
    %440 = tpu.concatenate %438, %439 in 1 : vector<8x1454xf32>, vector<8x114xf32> -> vector<8x1568xf32>
    %441 = vector.extract_strided_slice %407 {offsets = [0, 116], sizes = [8, 1452], strides = [1, 1]} : vector<8x1568xf32> to vector<8x1452xf32>
    %442 = vector.extract_strided_slice %407 {offsets = [0, 0], sizes = [8, 116], strides = [1, 1]} : vector<8x1568xf32> to vector<8x116xf32>
    %443 = tpu.concatenate %441, %442 in 1 : vector<8x1452xf32>, vector<8x116xf32> -> vector<8x1568xf32>
    %444 = vector.extract_strided_slice %407 {offsets = [0, 118], sizes = [8, 1450], strides = [1, 1]} : vector<8x1568xf32> to vector<8x1450xf32>
    %445 = vector.extract_strided_slice %407 {offsets = [0, 0], sizes = [8, 118], strides = [1, 1]} : vector<8x1568xf32> to vector<8x118xf32>
    %446 = tpu.concatenate %444, %445 in 1 : vector<8x1450xf32>, vector<8x118xf32> -> vector<8x1568xf32>
    %447 = vector.extract_strided_slice %407 {offsets = [0, 120], sizes = [8, 1448], strides = [1, 1]} : vector<8x1568xf32> to vector<8x1448xf32>
    %448 = vector.extract_strided_slice %407 {offsets = [0, 0], sizes = [8, 120], strides = [1, 1]} : vector<8x1568xf32> to vector<8x120xf32>
    %449 = tpu.concatenate %447, %448 in 1 : vector<8x1448xf32>, vector<8x120xf32> -> vector<8x1568xf32>
    %450 = vector.extract_strided_slice %407 {offsets = [0, 168], sizes = [8, 1400], strides = [1, 1]} : vector<8x1568xf32> to vector<8x1400xf32>
    %451 = vector.extract_strided_slice %407 {offsets = [0, 0], sizes = [8, 168], strides = [1, 1]} : vector<8x1568xf32> to vector<8x168xf32>
    %452 = tpu.concatenate %450, %451 in 1 : vector<8x1400xf32>, vector<8x168xf32> -> vector<8x1568xf32>
    %453 = vector.extract_strided_slice %407 {offsets = [0, 170], sizes = [8, 1398], strides = [1, 1]} : vector<8x1568xf32> to vector<8x1398xf32>
    %454 = vector.extract_strided_slice %407 {offsets = [0, 0], sizes = [8, 170], strides = [1, 1]} : vector<8x1568xf32> to vector<8x170xf32>
    %455 = tpu.concatenate %453, %454 in 1 : vector<8x1398xf32>, vector<8x170xf32> -> vector<8x1568xf32>
    %456 = vector.extract_strided_slice %407 {offsets = [0, 172], sizes = [8, 1396], strides = [1, 1]} : vector<8x1568xf32> to vector<8x1396xf32>
    %457 = vector.extract_strided_slice %407 {offsets = [0, 0], sizes = [8, 172], strides = [1, 1]} : vector<8x1568xf32> to vector<8x172xf32>
    %458 = tpu.concatenate %456, %457 in 1 : vector<8x1396xf32>, vector<8x172xf32> -> vector<8x1568xf32>
    %459 = vector.extract_strided_slice %407 {offsets = [0, 174], sizes = [8, 1394], strides = [1, 1]} : vector<8x1568xf32> to vector<8x1394xf32>
    %460 = vector.extract_strided_slice %407 {offsets = [0, 0], sizes = [8, 174], strides = [1, 1]} : vector<8x1568xf32> to vector<8x174xf32>
    %461 = tpu.concatenate %459, %460 in 1 : vector<8x1394xf32>, vector<8x174xf32> -> vector<8x1568xf32>
    %462 = vector.extract_strided_slice %407 {offsets = [0, 176], sizes = [8, 1392], strides = [1, 1]} : vector<8x1568xf32> to vector<8x1392xf32>
    %463 = vector.extract_strided_slice %407 {offsets = [0, 0], sizes = [8, 176], strides = [1, 1]} : vector<8x1568xf32> to vector<8x176xf32>
    %464 = tpu.concatenate %462, %463 in 1 : vector<8x1392xf32>, vector<8x176xf32> -> vector<8x1568xf32>
    %465 = vector.extract_strided_slice %407 {offsets = [0, 224], sizes = [8, 1344], strides = [1, 1]} : vector<8x1568xf32> to vector<8x1344xf32>
    %466 = vector.extract_strided_slice %407 {offsets = [0, 0], sizes = [8, 224], strides = [1, 1]} : vector<8x1568xf32> to vector<8x224xf32>
    %467 = tpu.concatenate %465, %466 in 1 : vector<8x1344xf32>, vector<8x224xf32> -> vector<8x1568xf32>
    %468 = vector.extract_strided_slice %407 {offsets = [0, 226], sizes = [8, 1342], strides = [1, 1]} : vector<8x1568xf32> to vector<8x1342xf32>
    %469 = vector.extract_strided_slice %407 {offsets = [0, 0], sizes = [8, 226], strides = [1, 1]} : vector<8x1568xf32> to vector<8x226xf32>
    %470 = tpu.concatenate %468, %469 in 1 : vector<8x1342xf32>, vector<8x226xf32> -> vector<8x1568xf32>
    %471 = vector.extract_strided_slice %407 {offsets = [0, 228], sizes = [8, 1340], strides = [1, 1]} : vector<8x1568xf32> to vector<8x1340xf32>
    %472 = vector.extract_strided_slice %407 {offsets = [0, 0], sizes = [8, 228], strides = [1, 1]} : vector<8x1568xf32> to vector<8x228xf32>
    %473 = tpu.concatenate %471, %472 in 1 : vector<8x1340xf32>, vector<8x228xf32> -> vector<8x1568xf32>
    %474 = vector.extract_strided_slice %407 {offsets = [0, 230], sizes = [8, 1338], strides = [1, 1]} : vector<8x1568xf32> to vector<8x1338xf32>
    %475 = vector.extract_strided_slice %407 {offsets = [0, 0], sizes = [8, 230], strides = [1, 1]} : vector<8x1568xf32> to vector<8x230xf32>
    %476 = tpu.concatenate %474, %475 in 1 : vector<8x1338xf32>, vector<8x230xf32> -> vector<8x1568xf32>
    %477 = vector.extract_strided_slice %407 {offsets = [0, 232], sizes = [8, 1336], strides = [1, 1]} : vector<8x1568xf32> to vector<8x1336xf32>
    %478 = vector.extract_strided_slice %407 {offsets = [0, 0], sizes = [8, 232], strides = [1, 1]} : vector<8x1568xf32> to vector<8x232xf32>
    %479 = tpu.concatenate %477, %478 in 1 : vector<8x1336xf32>, vector<8x232xf32> -> vector<8x1568xf32>
    %480 = tpu.concatenate %407, %410, %413, %416, %419, %422, %425, %428, %431, %434, %437, %440, %443, %446, %449, %452 in 0 : vector<8x1568xf32>, vector<8x1568xf32>, vector<8x1568xf32>, vector<8x1568xf32>, vector<8x1568xf32>, vector<8x1568xf32>, vector<8x1568xf32>, vector<8x1568xf32>, vector<8x1568xf32>, vector<8x1568xf32>, vector<8x1568xf32>, vector<8x1568xf32>, vector<8x1568xf32>, vector<8x1568xf32>, vector<8x1568xf32>, vector<8x1568xf32> -> vector<128x1568xf32>
    %481 = tpu.concatenate %455, %458, %461, %464, %467, %470, %473, %476, %479 in 0 : vector<8x1568xf32>, vector<8x1568xf32>, vector<8x1568xf32>, vector<8x1568xf32>, vector<8x1568xf32>, vector<8x1568xf32>, vector<8x1568xf32>, vector<8x1568xf32>, vector<8x1568xf32> -> vector<72x1568xf32>
    %482 = tpu.concatenate %480, %481 in 0 : vector<128x1568xf32>, vector<72x1568xf32> -> vector<200x1568xf32>
    %c0_6 = arith.constant 0 : index
    %c0_7 = arith.constant 0 : index
    %483 = vector.load %arg4[%c0_6, %c0_7] : memref<32x200xbf16, #tpu.memory_space<vmem>>, vector<32x200xbf16>
    %484 = arith.truncf %482 : vector<200x1568xf32> to vector<200x1568xbf16>
    %cst_8 = arith.constant dense<0.000000e+00> : vector<32x1568xf32>
    %485 = tpu.matmul %483, %484, %cst_8 {dimension_numbers = #tpu.dot_dimension_numbers<[1], [0], [0], [1], [0, 0, 1, 1], [], []>} : vector<32x200xbf16>, vector<200x1568xbf16>, vector<32x1568xf32> -> vector<32x1568xf32>
    %486 = vector.extract_strided_slice %485 {offsets = [0, 2], sizes = [32, 1566], strides = [1, 1]} : vector<32x1568xf32> to vector<32x1566xf32>
    %487 = vector.extract_strided_slice %485 {offsets = [0, 0], sizes = [32, 2], strides = [1, 1]} : vector<32x1568xf32> to vector<32x2xf32>
    %488 = tpu.concatenate %486, %487 in 1 : vector<32x1566xf32>, vector<32x2xf32> -> vector<32x1568xf32>
    %489 = arith.maximumf %485, %488 : vector<32x1568xf32>
    %490 = vector.extract_strided_slice %485 {offsets = [0, 56], sizes = [32, 1512], strides = [1, 1]} : vector<32x1568xf32> to vector<32x1512xf32>
    %491 = vector.extract_strided_slice %485 {offsets = [0, 0], sizes = [32, 56], strides = [1, 1]} : vector<32x1568xf32> to vector<32x56xf32>
    %492 = tpu.concatenate %490, %491 in 1 : vector<32x1512xf32>, vector<32x56xf32> -> vector<32x1568xf32>
    %493 = vector.extract_strided_slice %485 {offsets = [0, 58], sizes = [32, 1510], strides = [1, 1]} : vector<32x1568xf32> to vector<32x1510xf32>
    %494 = vector.extract_strided_slice %485 {offsets = [0, 0], sizes = [32, 58], strides = [1, 1]} : vector<32x1568xf32> to vector<32x58xf32>
    %495 = tpu.concatenate %493, %494 in 1 : vector<32x1510xf32>, vector<32x58xf32> -> vector<32x1568xf32>
    %496 = arith.maximumf %492, %495 : vector<32x1568xf32>
    %497 = arith.maximumf %489, %496 : vector<32x1568xf32>
    %c0_9 = arith.constant 0 : index
    %c0_10 = arith.constant 0 : index
    %498 = vector.load %arg5[%c0_9, %c0_10] : memref<32x1xf32, #tpu.memory_space<vmem>>, vector<32x1xf32>
    %499 = vector.broadcast %498 : vector<32x1xf32> to vector<32x1568xf32>
    %500 = arith.addf %497, %499 : vector<32x1568xf32>
    %cst_11 = arith.constant 0.000000e+00 : f32
    %501 = vector.broadcast %cst_11 : f32 to vector<32x1568xf32>
    %502 = arith.maximumf %500, %501 : vector<32x1568xf32>
    %503 = vector.extract_strided_slice %502 {offsets = [0, 4], sizes = [32, 1564], strides = [1, 1]} : vector<32x1568xf32> to vector<32x1564xf32>
    %504 = vector.extract_strided_slice %502 {offsets = [0, 0], sizes = [32, 4], strides = [1, 1]} : vector<32x1568xf32> to vector<32x4xf32>
    %505 = tpu.concatenate %503, %504 in 1 : vector<32x1564xf32>, vector<32x4xf32> -> vector<32x1568xf32>
    %506 = vector.extract_strided_slice %502 {offsets = [0, 112], sizes = [32, 1456], strides = [1, 1]} : vector<32x1568xf32> to vector<32x1456xf32>
    %507 = vector.extract_strided_slice %502 {offsets = [0, 0], sizes = [32, 112], strides = [1, 1]} : vector<32x1568xf32> to vector<32x112xf32>
    %508 = tpu.concatenate %506, %507 in 1 : vector<32x1456xf32>, vector<32x112xf32> -> vector<32x1568xf32>
    %509 = vector.extract_strided_slice %502 {offsets = [0, 116], sizes = [32, 1452], strides = [1, 1]} : vector<32x1568xf32> to vector<32x1452xf32>
    %510 = vector.extract_strided_slice %502 {offsets = [0, 0], sizes = [32, 116], strides = [1, 1]} : vector<32x1568xf32> to vector<32x116xf32>
    %511 = tpu.concatenate %509, %510 in 1 : vector<32x1452xf32>, vector<32x116xf32> -> vector<32x1568xf32>
    %512 = tpu.concatenate %502, %505, %508, %511 in 0 : vector<32x1568xf32>, vector<32x1568xf32>, vector<32x1568xf32>, vector<32x1568xf32> -> vector<128x1568xf32>
    %513 = tpu.iota {dimensions = array<i32: 0>} : vector<1568x2xi32>
    %514 = tpu.iota {dimensions = array<i32: 1>} : vector<1568x2xi32>
    %c784_i32 = arith.constant 784 : i32
    %515 = vector.broadcast %c784_i32 : i32 to vector<1568x2xi32>
    %516 = arith.muli %514, %515 : vector<1568x2xi32>
    %517 = arith.cmpi eq, %513, %516 : vector<1568x2xi32>
    %518 = arith.extui %517 : vector<1568x2xi1> to vector<1568x2xi32>
    %519 = arith.sitofp %518 : vector<1568x2xi32> to vector<1568x2xf32>
    %cst_12 = arith.constant dense<0.000000e+00> : vector<128x2xf32>
    %520 = tpu.matmul %512, %519, %cst_12 {dimension_numbers = #tpu.dot_dimension_numbers<[1], [0], [0], [1], [0, 0, 1, 1], [], []>} : vector<128x1568xf32>, vector<1568x2xf32>, vector<128x2xf32> -> vector<128x2xf32>
    %521 = tpu.transpose %520, [1, 0] : vector<128x2xf32> -> vector<2x128xf32>
    %522 = arith.truncf %521 : vector<2x128xf32> to vector<2x128xbf16>
    %c0_13 = arith.constant 0 : index
    %c0_14 = arith.constant 0 : index
    %523 = vector.load %arg6[%c0_13, %c0_14] : memref<128x50xbf16, #tpu.memory_space<vmem>>, vector<128x50xbf16>
    %cst_15 = arith.constant dense<0.000000e+00> : vector<2x50xf32>
    %524 = tpu.matmul %522, %523, %cst_15 {dimension_numbers = #tpu.dot_dimension_numbers<[1], [0], [0], [1], [0, 0, 1, 1], [], []>} : vector<2x128xbf16>, vector<128x50xbf16>, vector<2x50xf32> -> vector<2x50xf32>
    %c0_16 = arith.constant 0 : index
    %c0_17 = arith.constant 0 : index
    %525 = vector.load %arg7[%c0_16, %c0_17] : memref<1x50xf32, #tpu.memory_space<vmem>>, vector<1x50xf32>
    %526 = vector.broadcast %525 : vector<1x50xf32> to vector<2x50xf32>
    %527 = arith.addf %524, %526 : vector<2x50xf32>
    %cst_18 = arith.constant 0.000000e+00 : f32
    %528 = vector.broadcast %cst_18 : f32 to vector<2x50xf32>
    %529 = arith.maximumf %527, %528 : vector<2x50xf32>
    %530 = arith.truncf %529 : vector<2x50xf32> to vector<2x50xbf16>
    %c0_19 = arith.constant 0 : index
    %c0_20 = arith.constant 0 : index
    %531 = vector.load %arg8[%c0_19, %c0_20] : memref<50x10xbf16, #tpu.memory_space<vmem>>, vector<50x10xbf16>
    %cst_21 = arith.constant dense<0.000000e+00> : vector<2x10xf32>
    %532 = tpu.matmul %530, %531, %cst_21 {dimension_numbers = #tpu.dot_dimension_numbers<[1], [0], [0], [1], [0, 0, 1, 1], [], []>} : vector<2x50xbf16>, vector<50x10xbf16>, vector<2x10xf32> -> vector<2x10xf32>
    %c0_22 = arith.constant 0 : index
    %c0_23 = arith.constant 0 : index
    %533 = vector.load %arg9[%c0_22, %c0_23] : memref<1x10xf32, #tpu.memory_space<vmem>>, vector<1x10xf32>
    %534 = vector.broadcast %533 : vector<1x10xf32> to vector<2x10xf32>
    %535 = arith.addf %532, %534 : vector<2x10xf32>
    %cst_24 = arith.constant 0.000000e+00 : f32
    %536 = vector.broadcast %cst_24 : f32 to vector<2x10xf32>
    %537 = arith.maximumf %535, %536 : vector<2x10xf32>
    %cst_25 = arith.constant dense<0xFF800000> : vector<2xf32>
    %538 = vector.multi_reduction <maximumf>, %537, %cst_25 [1] : vector<2x10xf32> to vector<2xf32>
    %539 = vector.shape_cast %538 : vector<2xf32> to vector<2x1xf32>
    %540 = vector.broadcast %539 : vector<2x1xf32> to vector<2x10xf32>
    %541 = arith.subf %537, %540 : vector<2x10xf32>
    %542 = vector.broadcast %539 : vector<2x1xf32> to vector<2x10xf32>
    %543 = arith.subf %537, %542 : vector<2x10xf32>
    %544 = math.exp %543 : vector<2x10xf32>
    %cst_26 = arith.constant dense<0.000000e+00> : vector<2xf32>
    %545 = vector.multi_reduction <add>, %544, %cst_26 [1] : vector<2x10xf32> to vector<2xf32>
    %546 = vector.shape_cast %545 : vector<2xf32> to vector<2x1xf32>
    %547 = math.log %546 : vector<2x1xf32>
    %548 = vector.broadcast %547 : vector<2x1xf32> to vector<2x10xf32>
    %549 = arith.subf %541, %548 : vector<2x10xf32>
    %c0_27 = arith.constant 0 : index
    %c0_28 = arith.constant 0 : index
    %550 = vector.load %arg10[%c0_27, %c0_28] : memref<2x10xf32, #tpu.memory_space<vmem>>, vector<2x10xf32>
    tpu.vector_store %arg10[%c0_27, %c0_28], %549 {strides = array<i32>} : memref<2x10xf32, #tpu.memory_space<vmem>>, vector<2x10xf32>,
    return
  }
  func.func @transform_0(%arg0: i32) -> (i32, i32, i32) {
    %c0_i32 = arith.constant 0 : i32
    %c0_i32_0 = arith.constant 0 : i32
    %c0_i32_1 = arith.constant 0 : i32
    return %arg0, %c0_i32, %c0_i32_0 : i32, i32, i32
  }
  func.func @transform_1(%arg0: i32) -> (i32, i32) {
    %c0_i32 = arith.constant 0 : i32
    %c0_i32_0 = arith.constant 0 : i32
    %c0_i32_1 = arith.constant 0 : i32
    return %c0_i32, %c0_i32_0 : i32, i32
  }
  func.func @transform_2(%arg0: i32) -> (i32, i32) {
    %c0_i32 = arith.constant 0 : i32
    %c0_i32_0 = arith.constant 0 : i32
    %c0_i32_1 = arith.constant 0 : i32
    return %c0_i32, %c0_i32_0 : i32, i32
  }
  func.func @transform_3(%arg0: i32) -> (i32, i32) {
    %c0_i32 = arith.constant 0 : i32
    %c0_i32_0 = arith.constant 0 : i32
    %c0_i32_1 = arith.constant 0 : i32
    return %c0_i32, %c0_i32_0 : i32, i32
  }
  func.func @transform_4(%arg0: i32) -> (i32, i32) {
    %c0_i32 = arith.constant 0 : i32
    %c0_i32_0 = arith.constant 0 : i32
    %c0_i32_1 = arith.constant 0 : i32
    return %c0_i32, %c0_i32_0 : i32, i32
  }
  func.func @transform_5(%arg0: i32) -> (i32, i32) {
    %c0_i32 = arith.constant 0 : i32
    %c0_i32_0 = arith.constant 0 : i32
    %c0_i32_1 = arith.constant 0 : i32
    return %c0_i32, %c0_i32_0 : i32, i32
  }
  func.func @transform_6(%arg0: i32) -> (i32, i32) {
    %c0_i32 = arith.constant 0 : i32
    %c0_i32_0 = arith.constant 0 : i32
    %c0_i32_1 = arith.constant 0 : i32
    return %c0_i32, %c0_i32_0 : i32, i32
  }
  func.func @transform_7(%arg0: i32) -> (i32, i32) {
    %c0_i32 = arith.constant 0 : i32
    %c0_i32_0 = arith.constant 0 : i32
    %c0_i32_1 = arith.constant 0 : i32
    return %c0_i32, %c0_i32_0 : i32, i32
  }
  func.func @transform_8(%arg0: i32) -> (i32, i32) {
    %c0_i32 = arith.constant 0 : i32
    %c0_i32_0 = arith.constant 0 : i32
    %c0_i32_1 = arith.constant 0 : i32
    return %c0_i32, %c0_i32_0 : i32, i32
  }
  func.func @transform_9(%arg0: i32) -> (i32, i32) {
    %c0_i32 = arith.constant 0 : i32
    %c0_i32_0 = arith.constant 0 : i32
    return %arg0, %c0_i32 : i32, i32
  }
}

</mosaic_0001>

<llo_original>
// kernel: cnn_dilation_net_forward.1
$region0: #{cnn_dilation_net_forward.1}
  #allocation0 [shape = 'u32[]', space=smem, size = 0x4, offset = 0x4, fixed_abs, tag = 'smem constant byte address 0x4 - core index']
  #allocation1 [shape = 'u32[144,128]{1,0:T(1,128)}', space=vmem, size = 0x12000, scoped, tag = 'internal scratch']
  %s0 = inlined_call_operand.vmem [shape: f32[1,1,1568], index: 0, kind: input, shape index: {}]
  %s1 = inlined_call_operand.vmem [shape: f32[8,49], index: 1, kind: input, shape index: {}]
  %s2 = inlined_call_operand.vmem [shape: f32[8,1], index: 2, kind: input, shape index: {}]
  %s3 = inlined_call_operand.vmem [shape: bf16[32,200], index: 3, kind: input, shape index: {}]
  %s4 = inlined_call_operand.vmem [shape: f32[32,1], index: 4, kind: input, shape index: {}]
  %s5 = inlined_call_operand.vmem [shape: bf16[128,50], index: 5, kind: input, shape index: {}]
  %s6 = inlined_call_operand.vmem [shape: f32[1,50], index: 6, kind: input, shape index: {}]
  %s7 = inlined_call_operand.vmem [shape: bf16[50,10], index: 7, kind: input, shape index: {}]
  %s8 = inlined_call_operand.vmem [shape: f32[1,10], index: 8, kind: input, shape index: {}]
  %s9 = inlined_call_operand.hbm [shape: f32[2,10], index: 9, kind: output, shape index: {}]
  %s10 = sld [smem:[#allocation0]]
  $region46: #{cnn_dilation_net_forward.1} parent=0
    _
  %s12 = ssub.s32 1, %s10
  %s13 = scalar_select 0, %s12, %s10
  $region1: #{cnn_dilation_net_forward.1} parent=0
    #allocation2 [shape = 'u8[1024]{0}', space=vmem, size = 0x400, scoped, tag = 'output window, operand 0, single buffered']
    #allocation3 [shape = 's32[1]{0}', space=sflag, size = 0x4, scoped, tag = 'scoped memory for cnn_dilation_net_forward.1']
    %14 = vsyncpa [#allocation3], 0
    // Predicated region
    $region2: #{cnn_dilation_net_forward.1} parent=1 // pred_check
      _
    $region3: #{cnn_dilation_net_forward.1} parent=1 // pred_check_branch
      %16 = sbr.rel (0) target = $region5
    $region4: #{cnn_dilation_net_forward.1} parent=1 // pred_region
      _
    $region5: #{cnn_dilation_net_forward.1} parent=1 // pred_fallthru
      _
    // Predicated region
    $region6: #{cnn_dilation_net_forward.1} parent=1 // pred_check
      _
    $region7: #{cnn_dilation_net_forward.1} parent=1 // pred_check_branch
      %18 = sbr.rel (0) target = $region9
    $region8: #{cnn_dilation_net_forward.1} parent=1 // pred_region
      _
    $region9: #{cnn_dilation_net_forward.1} parent=1 // pred_fallthru
      _
    // Predicated region
    $region10: #{cnn_dilation_net_forward.1} parent=1 // pred_check
      _
    $region11: #{cnn_dilation_net_forward.1} parent=1 // pred_check_branch
      %20 = sbr.rel (0) target = $region13
    $region12: #{cnn_dilation_net_forward.1} parent=1 // pred_region
      _
    $region13: #{cnn_dilation_net_forward.1} parent=1 // pred_fallthru
      _
    // Predicated region
    $region14: #{cnn_dilation_net_forward.1} parent=1 // pred_check
      _
    $region15: #{cnn_dilation_net_forward.1} parent=1 // pred_check_branch
      %22 = sbr.rel (0) target = $region17
    $region16: #{cnn_dilation_net_forward.1} parent=1 // pred_region
      _
    $region17: #{cnn_dilation_net_forward.1} parent=1 // pred_fallthru
      _
    // Predicated region
    $region18: #{cnn_dilation_net_forward.1} parent=1 // pred_check
      _
    $region19: #{cnn_dilation_net_forward.1} parent=1 // pred_check_branch
      %24 = sbr.rel (0) target = $region21
    $region20: #{cnn_dilation_net_forward.1} parent=1 // pred_region
      _
    $region21: #{cnn_dilation_net_forward.1} parent=1 // pred_fallthru
      _
    // Predicated region
    $region22: #{cnn_dilation_net_forward.1} parent=1 // pred_check
      _
    $region23: #{cnn_dilation_net_forward.1} parent=1 // pred_check_branch
      %26 = sbr.rel (0) target = $region25
    $region24: #{cnn_dilation_net_forward.1} parent=1 // pred_region
      _
    $region25: #{cnn_dilation_net_forward.1} parent=1 // pred_fallthru
      _
    // Predicated region
    $region26: #{cnn_dilation_net_forward.1} parent=1 // pred_check
      _
    $region27: #{cnn_dilation_net_forward.1} parent=1 // pred_check_branch
      %28 = sbr.rel (0) target = $region29
    $region28: #{cnn_dilation_net_forward.1} parent=1 // pred_region
      _
    $region29: #{cnn_dilation_net_forward.1} parent=1 // pred_fallthru
      _
    // Predicated region
    $region30: #{cnn_dilation_net_forward.1} parent=1 // pred_check
      _
    $region31: #{cnn_dilation_net_forward.1} parent=1 // pred_check_branch
      %30 = sbr.rel (0) target = $region33
    $region32: #{cnn_dilation_net_forward.1} parent=1 // pred_region
      _
    $region33: #{cnn_dilation_net_forward.1} parent=1 // pred_fallthru
      _
    // Predicated region
    $region34: #{cnn_dilation_net_forward.1} parent=1 // pred_check
      _
    $region35: #{cnn_dilation_net_forward.1} parent=1 // pred_check_branch
      %32 = sbr.rel (0) target = $region37
    $region36: #{cnn_dilation_net_forward.1} parent=1 // pred_region
      _
    $region37: #{cnn_dilation_net_forward.1} parent=1 // pred_fallthru
      _
    %v34 = vld [vmem:[%s0] sm:$0xff]
    %v35 = vld [vmem:[%s0 + $0x8] sm:$0x1f]
    %v36 = vld [vmem:[%s1] sm:$0xff]
    %38 = vset.pattern.permute.xlu0 0
    %39 = vperm.xlu0 %38, %v36
    %v40 = vpop.permute.xlu0 %39
    %v44 = vlaneseq
    %v45 = vshrl.u32 %v44, 7
    %v46 = vsub.s32 0, %v45
    %v47 = vrot.slane %v34, %v46
    %v48 = vlaneseq
    %v49 = vshrl.u32 %v48, 7
    %v50 = vsub.s32 1, %v49
    %v51 = vrot.slane %v34, %v50
    %v52 = vlaneseq
    %v53 = vshrl.u32 %v52, 7
    %v54 = vsub.s32 2, %v53
    %v55 = vrot.slane %v34, %v54
    %v56 = vlaneseq
    %v57 = vshrl.u32 %v56, 7
    %v58 = vsub.s32 3, %v57
    %v59 = vrot.slane %v34, %v58
    %v60 = vlaneseq
    %v61 = vshrl.u32 %v60, 7
    %v62 = vsub.s32 4, %v61
    %v63 = vrot.slane %v34, %v62
    %v64 = vlaneseq
    %v65 = vshrl.u32 %v64, 7
    %v66 = vsub.s32 5, %v65
    %v67 = vrot.slane %v34, %v66
    %v68 = vlaneseq
    %v69 = vshrl.u32 %v68, 7
    %v70 = vsub.s32 6, %v69
    %v71 = vrot.slane %v34, %v70
    %v72 = vlaneseq
    %v73 = vshrl.u32 %v72, 7
    %v74 = vsub.s32 7, %v73
    %v75 = vrot.slane %v34, %v74
    %v76 = vlaneseq
    %v77 = vshrl.u32 %v76, 7
    %v78 = vsub.s32 0, %v77
    %v79 = vrot.slane %v35, %v78
    %v80 = vlaneseq
    %v81 = vshrl.u32 %v80, 7
    %v82 = vsub.s32 1, %v81
    %v83 = vrot.slane %v35, %v82
    %v84 = vlaneseq
    %v85 = vshrl.u32 %v84, 7
    %v86 = vsub.s32 2, %v85
    %v87 = vrot.slane %v35, %v86
    %v88 = vlaneseq
    %v89 = vshrl.u32 %v88, 7
    %v90 = vsub.s32 3, %v89
    %v91 = vrot.slane %v35, %v90
    %v92 = vlaneseq
    %v93 = vshrl.u32 %v92, 7
    %v94 = vsub.s32 4, %v93
    %v95 = vrot.slane %v35, %v94
    %v109 = vmul.f32 %v40, %v47
    %v110 = vmul.f32 %v40, %v51
    %v111 = vmul.f32 %v40, %v55
    %v112 = vmul.f32 %v40, %v59
    %v113 = vmul.f32 %v40, %v63
    %v114 = vmul.f32 %v40, %v67
    %v115 = vmul.f32 %v40, %v71
    %v116 = vmul.f32 %v40, %v75
    %v117 = vmul.f32 %v40, %v79
    %v118 = vmul.f32 %v40, %v83
    %v119 = vmul.f32 %v40, %v87
    %v120 = vmul.f32 %v40, %v91
    %v121 = vmul.f32 %v40, %v95
    %122 = vrot.lane.b32.xlu0 %v47, 126
    %v123 = vpop.permute.xlu0 %122
    %124 = vrot.lane.b32.xlu0 %v51, 126
    %v125 = vpop.permute.xlu0 %124
    %126 = vrot.lane.b32.xlu0 %v55, 126
    %v127 = vpop.permute.xlu0 %126
    %128 = vrot.lane.b32.xlu0 %v59, 126
    %v129 = vpop.permute.xlu0 %128
    %130 = vrot.lane.b32.xlu0 %v63, 126
    %v131 = vpop.permute.xlu0 %130
    %132 = vrot.lane.b32.xlu0 %v67, 126
    %v133 = vpop.permute.xlu0 %132
    %134 = vrot.lane.b32.xlu0 %v71, 126
    %v135 = vpop.permute.xlu0 %134
    %136 = vrot.lane.b32.xlu0 %v75, 126
    %v137 = vpop.permute.xlu0 %136
    %138 = vrot.lane.b32.xlu0 %v79, 126
    %v139 = vpop.permute.xlu0 %138
    %140 = vrot.lane.b32.xlu0 %v83, 126
    %v141 = vpop.permute.xlu0 %140
    %142 = vrot.lane.b32.xlu0 %v87, 126
    %v143 = vpop.permute.xlu0 %142
    %144 = vrot.lane.b32.xlu0 %v91, 126
    %v145 = vpop.permute.xlu0 %144
    %146 = vrot.lane.b32.xlu0 %v95, 126
    %v147 = vpop.permute.xlu0 %146
    %vm148 = vcmask 1031168
    %v149 = vsel %vm148, %v123, %v125
    %v150 = vsel %vm148, %v125, %v127
    %v151 = vsel %vm148, %v127, %v129
    %v152 = vsel %vm148, %v129, %v131
    %v153 = vsel %vm148, %v131, %v133
    %v154 = vsel %vm148, %v133, %v135
    %v155 = vsel %vm148, %v135, %v137
    %v156 = vsel %vm148, %v137, %v139
    %v157 = vsel %vm148, %v139, %v141
    %v158 = vsel %vm148, %v141, %v143
    %v159 = vsel %vm148, %v143, %v145
    %v160 = vsel %vm148, %v145, %v147
    %174 = vrot.lane.b32.xlu0 %v47, 30
    %v175 = vpop.permute.xlu0 %174
    %vm177 = vcmask 244736
    %v178 = vsel %vm177, %v147, %v175
    %179 = vset.pattern.permute.xlu0 1
    %180 = vperm.xlu0 %179, %v36
    %v181 = vpop.permute.xlu0 %180
    %v183 = vlaneseq
    %v184 = vshrl.u32 %v183, 7
    %v185 = vsub.s32 0, %v184
    %v186 = vrot.slane %v149, %v185
    %v187 = vlaneseq
    %v188 = vshrl.u32 %v187, 7
    %v189 = vsub.s32 0, %v188
    %v190 = vrot.slane %v150, %v189
    %v191 = vlaneseq
    %v192 = vshrl.u32 %v191, 7
    %v193 = vsub.s32 0, %v192
    %v194 = vrot.slane %v151, %v193
    %v195 = vlaneseq
    %v196 = vshrl.u32 %v195, 7
    %v197 = vsub.s32 0, %v196
    %v198 = vrot.slane %v152, %v197
    %v199 = vlaneseq
    %v200 = vshrl.u32 %v199, 7
    %v201 = vsub.s32 0, %v200
    %v202 = vrot.slane %v153, %v201
    %v203 = vlaneseq
    %v204 = vshrl.u32 %v203, 7
    %v205 = vsub.s32 0, %v204
    %v206 = vrot.slane %v154, %v205
    %v207 = vlaneseq
    %v208 = vshrl.u32 %v207, 7
    %v209 = vsub.s32 0, %v208
    %v210 = vrot.slane %v155, %v209
    %v211 = vlaneseq
    %v212 = vshrl.u32 %v211, 7
    %v213 = vsub.s32 0, %v212
    %v214 = vrot.slane %v156, %v213
    %v215 = vlaneseq
    %v216 = vshrl.u32 %v215, 7
    %v217 = vsub.s32 0, %v216
    %v218 = vrot.slane %v157, %v217
    %v219 = vlaneseq
    %v220 = vshrl.u32 %v219, 7
    %v221 = vsub.s32 0, %v220
    %v222 = vrot.slane %v158, %v221
    %v223 = vlaneseq
    %v224 = vshrl.u32 %v223, 7
    %v225 = vsub.s32 0, %v224
    %v226 = vrot.slane %v159, %v225
    %v227 = vlaneseq
    %v228 = vshrl.u32 %v227, 7
    %v229 = vsub.s32 0, %v228
    %v230 = vrot.slane %v160, %v229
    %v231 = vlaneseq
    %v232 = vshrl.u32 %v231, 7
    %v233 = vsub.s32 0, %v232
    %v234 = vrot.slane %v178, %v233
    %v235 = vmul.f32 %v181, %v186
    %v236 = vmul.f32 %v181, %v190
    %v237 = vmul.f32 %v181, %v194
    %v238 = vmul.f32 %v181, %v198
    %v239 = vmul.f32 %v181, %v202
    %v240 = vmul.f32 %v181, %v206
    %v241 = vmul.f32 %v181, %v210
    %v242 = vmul.f32 %v181, %v214
    %v243 = vmul.f32 %v181, %v218
    %v244 = vmul.f32 %v181, %v222
    %v245 = vmul.f32 %v181, %v226
    %v246 = vmul.f32 %v181, %v230
    %v247 = vmul.f32 %v181, %v234
    %v248 = vadd.f32 %v109, %v235
    %v249 = vadd.f32 %v110, %v236
    %v250 = vadd.f32 %v111, %v237
    %v251 = vadd.f32 %v112, %v238
    %v252 = vadd.f32 %v113, %v239
    %v253 = vadd.f32 %v114, %v240
    %v254 = vadd.f32 %v115, %v241
    %v255 = vadd.f32 %v116, %v242
    %v256 = vadd.f32 %v117, %v243
    %v257 = vadd.f32 %v118, %v244
    %v258 = vadd.f32 %v119, %v245
    %v259 = vadd.f32 %v120, %v246
    %v260 = vadd.f32 %v121, %v247
    %261 = vrot.lane.b32.xlu0 %v47, 124
    %v262 = vpop.permute.xlu0 %261
    %263 = vrot.lane.b32.xlu0 %v51, 124
    %v264 = vpop.permute.xlu0 %263
    %265 = vrot.lane.b32.xlu0 %v55, 124
    %v266 = vpop.permute.xlu0 %265
    %267 = vrot.lane.b32.xlu0 %v59, 124
    %v268 = vpop.permute.xlu0 %267
    %269 = vrot.lane.b32.xlu0 %v63, 124
    %v270 = vpop.permute.xlu0 %269
    %271 = vrot.lane.b32.xlu0 %v67, 124
    %v272 = vpop.permute.xlu0 %271
    %273 = vrot.lane.b32.xlu0 %v71, 124
    %v274 = vpop.permute.xlu0 %273
    %275 = vrot.lane.b32.xlu0 %v75, 124
    %v276 = vpop.permute.xlu0 %275
    %277 = vrot.lane.b32.xlu0 %v79, 124
    %v278 = vpop.permute.xlu0 %277
    %279 = vrot.lane.b32.xlu0 %v83, 124
    %v280 = vpop.permute.xlu0 %279
    %281 = vrot.lane.b32.xlu0 %v87, 124
    %v282 = vpop.permute.xlu0 %281
    %283 = vrot.lane.b32.xlu0 %v91, 124
    %v284 = vpop.permute.xlu0 %283
    %285 = vrot.lane.b32.xlu0 %v95, 124
    %v286 = vpop.permute.xlu0 %285
    %vm287 = vcmask 1014784
    %v288 = vsel %vm287, %v262, %v264
    %v289 = vsel %vm287, %v264, %v266
    %v290 = vsel %vm287, %v266, %v268
    %v291 = vsel %vm287, %v268, %v270
    %v292 = vsel %vm287, %v270, %v272
    %v293 = vsel %vm287, %v272, %v274
    %v294 = vsel %vm287, %v274, %v276
    %v295 = vsel %vm287, %v276, %v278
    %v296 = vsel %vm287, %v278, %v280
    %v297 = vsel %vm287, %v280, %v282
    %v298 = vsel %vm287, %v282, %v284
    %v299 = vsel %vm287, %v284, %v286
    %313 = vrot.lane.b32.xlu0 %v47, 28
    %v314 = vpop.permute.xlu0 %313
    %vm316 = vcmask 228352
    %v317 = vsel %vm316, %v286, %v314
    %318 = vset.pattern.permute.xlu0 2
    %319 = vperm.xlu0 %318, %v36
    %v320 = vpop.permute.xlu0 %319
    %v322 = vlaneseq
    %v323 = vshrl.u32 %v322, 7
    %v324 = vsub.s32 0, %v323
    %v325 = vrot.slane %v288, %v324
    %v326 = vlaneseq
    %v327 = vshrl.u32 %v326, 7
    %v328 = vsub.s32 0, %v327
    %v329 = vrot.slane %v289, %v328
    %v330 = vlaneseq
    %v331 = vshrl.u32 %v330, 7
    %v332 = vsub.s32 0, %v331
    %v333 = vrot.slane %v290, %v332
    %v334 = vlaneseq
    %v335 = vshrl.u32 %v334, 7
    %v336 = vsub.s32 0, %v335
    %v337 = vrot.slane %v291, %v336
    %v338 = vlaneseq
    %v339 = vshrl.u32 %v338, 7
    %v340 = vsub.s32 0, %v339
    %v341 = vrot.slane %v292, %v340
    %v342 = vlaneseq
    %v343 = vshrl.u32 %v342, 7
    %v344 = vsub.s32 0, %v343
    %v345 = vrot.slane %v293, %v344
    %v346 = vlaneseq
    %v347 = vshrl.u32 %v346, 7
    %v348 = vsub.s32 0, %v347
    %v349 = vrot.slane %v294, %v348
    %v350 = vlaneseq
    %v351 = vshrl.u32 %v350, 7
    %v352 = vsub.s32 0, %v351
    %v353 = vrot.slane %v295, %v352
    %v354 = vlaneseq
    %v355 = vshrl.u32 %v354, 7
    %v356 = vsub.s32 0, %v355
    %v357 = vrot.slane %v296, %v356
    %v358 = vlaneseq
    %v359 = vshrl.u32 %v358, 7
    %v360 = vsub.s32 0, %v359
    %v361 = vrot.slane %v297, %v360
    %v362 = vlaneseq
    %v363 = vshrl.u32 %v362, 7
    %v364 = vsub.s32 0, %v363
    %v365 = vrot.slane %v298, %v364
    %v366 = vlaneseq
    %v367 = vshrl.u32 %v366, 7
    %v368 = vsub.s32 0, %v367
    %v369 = vrot.slane %v299, %v368
    %v370 = vlaneseq
    %v371 = vshrl.u32 %v370, 7
    %v372 = vsub.s32 0, %v371
    %v373 = vrot.slane %v317, %v372
    %v374 = vmul.f32 %v320, %v325
    %v375 = vmul.f32 %v320, %v329
    %v376 = vmul.f32 %v320, %v333
    %v377 = vmul.f32 %v320, %v337
    %v378 = vmul.f32 %v320, %v341
    %v379 = vmul.f32 %v320, %v345
    %v380 = vmul.f32 %v320, %v349
    %v381 = vmul.f32 %v320, %v353
    %v382 = vmul.f32 %v320, %v357
    %v383 = vmul.f32 %v320, %v361
    %v384 = vmul.f32 %v320, %v365
    %v385 = vmul.f32 %v320, %v369
    %v386 = vmul.f32 %v320, %v373
    %v387 = vadd.f32 %v248, %v374
    %v388 = vadd.f32 %v249, %v375
    %v389 = vadd.f32 %v250, %v376
    %v390 = vadd.f32 %v251, %v377
    %v391 = vadd.f32 %v252, %v378
    %v392 = vadd.f32 %v253, %v379
    %v393 = vadd.f32 %v254, %v380
    %v394 = vadd.f32 %v255, %v381
    %v395 = vadd.f32 %v256, %v382
    %v396 = vadd.f32 %v257, %v383
    %v397 = vadd.f32 %v258, %v384
    %v398 = vadd.f32 %v259, %v385
    %v399 = vadd.f32 %v260, %v386
    %400 = vrot.lane.b32.xlu0 %v47, 122
    %v401 = vpop.permute.xlu0 %400
    %402 = vrot.lane.b32.xlu0 %v51, 122
    %v403 = vpop.permute.xlu0 %402
    %404 = vrot.lane.b32.xlu0 %v55, 122
    %v405 = vpop.permute.xlu0 %404
    %406 = vrot.lane.b32.xlu0 %v59, 122
    %v407 = vpop.permute.xlu0 %406
    %408 = vrot.lane.b32.xlu0 %v63, 122
    %v409 = vpop.permute.xlu0 %408
    %410 = vrot.lane.b32.xlu0 %v67, 122
    %v411 = vpop.permute.xlu0 %410
    %412 = vrot.lane.b32.xlu0 %v71, 122
    %v413 = vpop.permute.xlu0 %412
    %414 = vrot.lane.b32.xlu0 %v75, 122
    %v415 = vpop.permute.xlu0 %414
    %416 = vrot.lane.b32.xlu0 %v79, 122
    %v417 = vpop.permute.xlu0 %416
    %418 = vrot.lane.b32.xlu0 %v83, 122
    %v419 = vpop.permute.xlu0 %418
    %420 = vrot.lane.b32.xlu0 %v87, 122
    %v421 = vpop.permute.xlu0 %420
    %422 = vrot.lane.b32.xlu0 %v91, 122
    %v423 = vpop.permute.xlu0 %422
    %424 = vrot.lane.b32.xlu0 %v95, 122
    %v425 = vpop.permute.xlu0 %424
    %vm426 = vcmask 998400
    %v427 = vsel %vm426, %v401, %v403
    %v428 = vsel %vm426, %v403, %v405
    %v429 = vsel %vm426, %v405, %v407
    %v430 = vsel %vm426, %v407, %v409
    %v431 = vsel %vm426, %v409, %v411
    %v432 = vsel %vm426, %v411, %v413
    %v433 = vsel %vm426, %v413, %v415
    %v434 = vsel %vm426, %v415, %v417
    %v435 = vsel %vm426, %v417, %v419
    %v436 = vsel %vm426, %v419, %v421
    %v437 = vsel %vm426, %v421, %v423
    %v438 = vsel %vm426, %v423, %v425
    %452 = vrot.lane.b32.xlu0 %v47, 26
    %v453 = vpop.permute.xlu0 %452
    %vm455 = vcmask 211968
    %v456 = vsel %vm455, %v425, %v453
    %457 = vset.pattern.permute.xlu0 3
    %458 = vperm.xlu0 %457, %v36
    %v459 = vpop.permute.xlu0 %458
    %v461 = vlaneseq
    %v462 = vshrl.u32 %v461, 7
    %v463 = vsub.s32 0, %v462
    %v464 = vrot.slane %v427, %v463
    %v465 = vlaneseq
    %v466 = vshrl.u32 %v465, 7
    %v467 = vsub.s32 0, %v466
    %v468 = vrot.slane %v428, %v467
    %v469 = vlaneseq
    %v470 = vshrl.u32 %v469, 7
    %v471 = vsub.s32 0, %v470
    %v472 = vrot.slane %v429, %v471
    %v473 = vlaneseq
    %v474 = vshrl.u32 %v473, 7
    %v475 = vsub.s32 0, %v474
    %v476 = vrot.slane %v430, %v475
    %v477 = vlaneseq
    %v478 = vshrl.u32 %v477, 7
    %v479 = vsub.s32 0, %v478
    %v480 = vrot.slane %v431, %v479
    %v481 = vlaneseq
    %v482 = vshrl.u32 %v481, 7
    %v483 = vsub.s32 0, %v482
    %v484 = vrot.slane %v432, %v483
    %v485 = vlaneseq
    %v486 = vshrl.u32 %v485, 7
    %v487 = vsub.s32 0, %v486
    %v488 = vrot.slane %v433, %v487
    %v489 = vlaneseq
    %v490 = vshrl.u32 %v489, 7
    %v491 = vsub.s32 0, %v490
    %v492 = vrot.slane %v434, %v491
    %v493 = vlaneseq
    %v494 = vshrl.u32 %v493, 7
    %v495 = vsub.s32 0, %v494
    %v496 = vrot.slane %v435, %v495
    %v497 = vlaneseq
    %v498 = vshrl.u32 %v497, 7
    %v499 = vsub.s32 0, %v498
    %v500 = vrot.slane %v436, %v499
    %v501 = vlaneseq
    %v502 = vshrl.u32 %v501, 7
    %v503 = vsub.s32 0, %v502
    %v504 = vrot.slane %v437, %v503
    %v505 = vlaneseq
    %v506 = vshrl.u32 %v505, 7
    %v507 = vsub.s32 0, %v506
    %v508 = vrot.slane %v438, %v507
    %v509 = vlaneseq
    %v510 = vshrl.u32 %v509, 7
    %v511 = vsub.s32 0, %v510
    %v512 = vrot.slane %v456, %v511
    %v513 = vmul.f32 %v459, %v464
    %v514 = vmul.f32 %v459, %v468
    %v515 = vmul.f32 %v459, %v472
    %v516 = vmul.f32 %v459, %v476
    %v517 = vmul.f32 %v459, %v480
    %v518 = vmul.f32 %v459, %v484
    %v519 = vmul.f32 %v459, %v488
    %v520 = vmul.f32 %v459, %v492
    %v521 = vmul.f32 %v459, %v496
    %v522 = vmul.f32 %v459, %v500
    %v523 = vmul.f32 %v459, %v504
    %v524 = vmul.f32 %v459, %v508
    %v525 = vmul.f32 %v459, %v512
    %v526 = vadd.f32 %v387, %v513
    %v527 = vadd.f32 %v388, %v514
    %v528 = vadd.f32 %v389, %v515
    %v529 = vadd.f32 %v390, %v516
    %v530 = vadd.f32 %v391, %v517
    %v531 = vadd.f32 %v392, %v518
    %v532 = vadd.f32 %v393, %v519
    %v533 = vadd.f32 %v394, %v520
    %v534 = vadd.f32 %v395, %v521
    %v535 = vadd.f32 %v396, %v522
    %v536 = vadd.f32 %v397, %v523
    %v537 = vadd.f32 %v398, %v524
    %v538 = vadd.f32 %v399, %v525
    %539 = vrot.lane.b32.xlu0 %v47, 120
    %v540 = vpop.permute.xlu0 %539
    %541 = vrot.lane.b32.xlu0 %v51, 120
    %v542 = vpop.permute.xlu0 %541
    %543 = vrot.lane.b32.xlu0 %v55, 120
    %v544 = vpop.permute.xlu0 %543
    %545 = vrot.lane.b32.xlu0 %v59, 120
    %v546 = vpop.permute.xlu0 %545
    %547 = vrot.lane.b32.xlu0 %v63, 120
    %v548 = vpop.permute.xlu0 %547
    %549 = vrot.lane.b32.xlu0 %v67, 120
    %v550 = vpop.permute.xlu0 %549
    %551 = vrot.lane.b32.xlu0 %v71, 120
    %v552 = vpop.permute.xlu0 %551
    %553 = vrot.lane.b32.xlu0 %v75, 120
    %v554 = vpop.permute.xlu0 %553
    %555 = vrot.lane.b32.xlu0 %v79, 120
    %v556 = vpop.permute.xlu0 %555
    %557 = vrot.lane.b32.xlu0 %v83, 120
    %v558 = vpop.permute.xlu0 %557
    %559 = vrot.lane.b32.xlu0 %v87, 120
    %v560 = vpop.permute.xlu0 %559
    %561 = vrot.lane.b32.xlu0 %v91, 120
    %v562 = vpop.permute.xlu0 %561
    %563 = vrot.lane.b32.xlu0 %v95, 120
    %v564 = vpop.permute.xlu0 %563
    %vm565 = vcmask 982016
    %v566 = vsel %vm565, %v540, %v542
    %v567 = vsel %vm565, %v542, %v544
    %v568 = vsel %vm565, %v544, %v546
    %v569 = vsel %vm565, %v546, %v548
    %v570 = vsel %vm565, %v548, %v550
    %v571 = vsel %vm565, %v550, %v552
    %v572 = vsel %vm565, %v552, %v554
    %v573 = vsel %vm565, %v554, %v556
    %v574 = vsel %vm565, %v556, %v558
    %v575 = vsel %vm565, %v558, %v560
    %v576 = vsel %vm565, %v560, %v562
    %v577 = vsel %vm565, %v562, %v564
    %591 = vrot.lane.b32.xlu0 %v47, 24
    %v592 = vpop.permute.xlu0 %591
    %vm594 = vcmask 195584
    %v595 = vsel %vm594, %v564, %v592
    %596 = vset.pattern.permute.xlu0 4
    %597 = vperm.xlu0 %596, %v36
    %v598 = vpop.permute.xlu0 %597
    %v600 = vlaneseq
    %v601 = vshrl.u32 %v600, 7
    %v602 = vsub.s32 0, %v601
    %v603 = vrot.slane %v566, %v602
    %v604 = vlaneseq
    %v605 = vshrl.u32 %v604, 7
    %v606 = vsub.s32 0, %v605
    %v607 = vrot.slane %v567, %v606
    %v608 = vlaneseq
    %v609 = vshrl.u32 %v608, 7
    %v610 = vsub.s32 0, %v609
    %v611 = vrot.slane %v568, %v610
    %v612 = vlaneseq
    %v613 = vshrl.u32 %v612, 7
    %v614 = vsub.s32 0, %v613
    %v615 = vrot.slane %v569, %v614
    %v616 = vlaneseq
    %v617 = vshrl.u32 %v616, 7
    %v618 = vsub.s32 0, %v617
    %v619 = vrot.slane %v570, %v618
    %v620 = vlaneseq
    %v621 = vshrl.u32 %v620, 7
    %v622 = vsub.s32 0, %v621
    %v623 = vrot.slane %v571, %v622
    %v624 = vlaneseq
    %v625 = vshrl.u32 %v624, 7
    %v626 = vsub.s32 0, %v625
    %v627 = vrot.slane %v572, %v626
    %v628 = vlaneseq
    %v629 = vshrl.u32 %v628, 7
    %v630 = vsub.s32 0, %v629
    %v631 = vrot.slane %v573, %v630
    %v632 = vlaneseq
    %v633 = vshrl.u32 %v632, 7
    %v634 = vsub.s32 0, %v633
    %v635 = vrot.slane %v574, %v634
    %v636 = vlaneseq
    %v637 = vshrl.u32 %v636, 7
    %v638 = vsub.s32 0, %v637
    %v639 = vrot.slane %v575, %v638
    %v640 = vlaneseq
    %v641 = vshrl.u32 %v640, 7
    %v642 = vsub.s32 0, %v641
    %v643 = vrot.slane %v576, %v642
    %v644 = vlaneseq
    %v645 = vshrl.u32 %v644, 7
    %v646 = vsub.s32 0, %v645
    %v647 = vrot.slane %v577, %v646
    %v648 = vlaneseq
    %v649 = vshrl.u32 %v648, 7
    %v650 = vsub.s32 0, %v649
    %v651 = vrot.slane %v595, %v650
    %v652 = vmul.f32 %v598, %v603
    %v653 = vmul.f32 %v598, %v607
    %v654 = vmul.f32 %v598, %v611
    %v655 = vmul.f32 %v598, %v615
    %v656 = vmul.f32 %v598, %v619
    %v657 = vmul.f32 %v598, %v623
    %v658 = vmul.f32 %v598, %v627
    %v659 = vmul.f32 %v598, %v631
    %v660 = vmul.f32 %v598, %v635
    %v661 = vmul.f32 %v598, %v639
    %v662 = vmul.f32 %v598, %v643
    %v663 = vmul.f32 %v598, %v647
    %v664 = vmul.f32 %v598, %v651
    %v665 = vadd.f32 %v526, %v652
    %v666 = vadd.f32 %v527, %v653
    %v667 = vadd.f32 %v528, %v654
    %v668 = vadd.f32 %v529, %v655
    %v669 = vadd.f32 %v530, %v656
    %v670 = vadd.f32 %v531, %v657
    %v671 = vadd.f32 %v532, %v658
    %v672 = vadd.f32 %v533, %v659
    %v673 = vadd.f32 %v534, %v660
    %v674 = vadd.f32 %v535, %v661
    %v675 = vadd.f32 %v536, %v662
    %v676 = vadd.f32 %v537, %v663
    %v677 = vadd.f32 %v538, %v664
    %678 = vrot.lane.b32.xlu0 %v47, 118
    %v679 = vpop.permute.xlu0 %678
    %680 = vrot.lane.b32.xlu0 %v51, 118
    %v681 = vpop.permute.xlu0 %680
    %682 = vrot.lane.b32.xlu0 %v55, 118
    %v683 = vpop.permute.xlu0 %682
    %684 = vrot.lane.b32.xlu0 %v59, 118
    %v685 = vpop.permute.xlu0 %684
    %686 = vrot.lane.b32.xlu0 %v63, 118
    %v687 = vpop.permute.xlu0 %686
    %688 = vrot.lane.b32.xlu0 %v67, 118
    %v689 = vpop.permute.xlu0 %688
    %690 = vrot.lane.b32.xlu0 %v71, 118
    %v691 = vpop.permute.xlu0 %690
    %692 = vrot.lane.b32.xlu0 %v75, 118
    %v693 = vpop.permute.xlu0 %692
    %694 = vrot.lane.b32.xlu0 %v79, 118
    %v695 = vpop.permute.xlu0 %694
    %696 = vrot.lane.b32.xlu0 %v83, 118
    %v697 = vpop.permute.xlu0 %696
    %698 = vrot.lane.b32.xlu0 %v87, 118
    %v699 = vpop.permute.xlu0 %698
    %700 = vrot.lane.b32.xlu0 %v91, 118
    %v701 = vpop.permute.xlu0 %700
    %702 = vrot.lane.b32.xlu0 %v95, 118
    %v703 = vpop.permute.xlu0 %702
    %vm704 = vcmask 965632
    %v705 = vsel %vm704, %v679, %v681
    %v706 = vsel %vm704, %v681, %v683
    %v707 = vsel %vm704, %v683, %v685
    %v708 = vsel %vm704, %v685, %v687
    %v709 = vsel %vm704, %v687, %v689
    %v710 = vsel %vm704, %v689, %v691
    %v711 = vsel %vm704, %v691, %v693
    %v712 = vsel %vm704, %v693, %v695
    %v713 = vsel %vm704, %v695, %v697
    %v714 = vsel %vm704, %v697, %v699
    %v715 = vsel %vm704, %v699, %v701
    %v716 = vsel %vm704, %v701, %v703
    %730 = vrot.lane.b32.xlu0 %v47, 22
    %v731 = vpop.permute.xlu0 %730
    %vm733 = vcmask 179200
    %v734 = vsel %vm733, %v703, %v731
    %735 = vset.pattern.permute.xlu0 5
    %736 = vperm.xlu0 %735, %v36
    %v737 = vpop.permute.xlu0 %736
    %v739 = vlaneseq
    %v740 = vshrl.u32 %v739, 7
    %v741 = vsub.s32 0, %v740
    %v742 = vrot.slane %v705, %v741
    %v743 = vlaneseq
    %v744 = vshrl.u32 %v743, 7
    %v745 = vsub.s32 0, %v744
    %v746 = vrot.slane %v706, %v745
    %v747 = vlaneseq
    %v748 = vshrl.u32 %v747, 7
    %v749 = vsub.s32 0, %v748
    %v750 = vrot.slane %v707, %v749
    %v751 = vlaneseq
    %v752 = vshrl.u32 %v751, 7
    %v753 = vsub.s32 0, %v752
    %v754 = vrot.slane %v708, %v753
    %v755 = vlaneseq
    %v756 = vshrl.u32 %v755, 7
    %v757 = vsub.s32 0, %v756
    %v758 = vrot.slane %v709, %v757
    %v759 = vlaneseq
    %v760 = vshrl.u32 %v759, 7
    %v761 = vsub.s32 0, %v760
    %v762 = vrot.slane %v710, %v761
    %v763 = vlaneseq
    %v764 = vshrl.u32 %v763, 7
    %v765 = vsub.s32 0, %v764
    %v766 = vrot.slane %v711, %v765
    %v767 = vlaneseq
    %v768 = vshrl.u32 %v767, 7
    %v769 = vsub.s32 0, %v768
    %v770 = vrot.slane %v712, %v769
    %v771 = vlaneseq
    %v772 = vshrl.u32 %v771, 7
    %v773 = vsub.s32 0, %v772
    %v774 = vrot.slane %v713, %v773
    %v775 = vlaneseq
    %v776 = vshrl.u32 %v775, 7
    %v777 = vsub.s32 0, %v776
    %v778 = vrot.slane %v714, %v777
    %v779 = vlaneseq
    %v780 = vshrl.u32 %v779, 7
    %v781 = vsub.s32 0, %v780
    %v782 = vrot.slane %v715, %v781
    %v783 = vlaneseq
    %v784 = vshrl.u32 %v783, 7
    %v785 = vsub.s32 0, %v784
    %v786 = vrot.slane %v716, %v785
    %v787 = vlaneseq
    %v788 = vshrl.u32 %v787, 7
    %v789 = vsub.s32 0, %v788
    %v790 = vrot.slane %v734, %v789
    %v791 = vmul.f32 %v737, %v742
    %v792 = vmul.f32 %v737, %v746
    %v793 = vmul.f32 %v737, %v750
    %v794 = vmul.f32 %v737, %v754
    %v795 = vmul.f32 %v737, %v758
    %v796 = vmul.f32 %v737, %v762
    %v797 = vmul.f32 %v737, %v766
    %v798 = vmul.f32 %v737, %v770
    %v799 = vmul.f32 %v737, %v774
    %v800 = vmul.f32 %v737, %v778
    %v801 = vmul.f32 %v737, %v782
    %v802 = vmul.f32 %v737, %v786
    %v803 = vmul.f32 %v737, %v790
    %v804 = vadd.f32 %v665, %v791
    %v805 = vadd.f32 %v666, %v792
    %v806 = vadd.f32 %v667, %v793
    %v807 = vadd.f32 %v668, %v794
    %v808 = vadd.f32 %v669, %v795
    %v809 = vadd.f32 %v670, %v796
    %v810 = vadd.f32 %v671, %v797
    %v811 = vadd.f32 %v672, %v798
    %v812 = vadd.f32 %v673, %v799
    %v813 = vadd.f32 %v674, %v800
    %v814 = vadd.f32 %v675, %v801
    %v815 = vadd.f32 %v676, %v802
    %v816 = vadd.f32 %v677, %v803
    %817 = vrot.lane.b32.xlu0 %v47, 116
    %v818 = vpop.permute.xlu0 %817
    %819 = vrot.lane.b32.xlu0 %v51, 116
    %v820 = vpop.permute.xlu0 %819
    %821 = vrot.lane.b32.xlu0 %v55, 116
    %v822 = vpop.permute.xlu0 %821
    %823 = vrot.lane.b32.xlu0 %v59, 116
    %v824 = vpop.permute.xlu0 %823
    %825 = vrot.lane.b32.xlu0 %v63, 116
    %v826 = vpop.permute.xlu0 %825
    %827 = vrot.lane.b32.xlu0 %v67, 116
    %v828 = vpop.permute.xlu0 %827
    %829 = vrot.lane.b32.xlu0 %v71, 116
    %v830 = vpop.permute.xlu0 %829
    %831 = vrot.lane.b32.xlu0 %v75, 116
    %v832 = vpop.permute.xlu0 %831
    %833 = vrot.lane.b32.xlu0 %v79, 116
    %v834 = vpop.permute.xlu0 %833
    %835 = vrot.lane.b32.xlu0 %v83, 116
    %v836 = vpop.permute.xlu0 %835
    %837 = vrot.lane.b32.xlu0 %v87, 116
    %v838 = vpop.permute.xlu0 %837
    %839 = vrot.lane.b32.xlu0 %v91, 116
    %v840 = vpop.permute.xlu0 %839
    %841 = vrot.lane.b32.xlu0 %v95, 116
    %v842 = vpop.permute.xlu0 %841
    %vm843 = vcmask 949248
    %v844 = vsel %vm843, %v818, %v820
    %v845 = vsel %vm843, %v820, %v822
    %v846 = vsel %vm843, %v822, %v824
    %v847 = vsel %vm843, %v824, %v826
    %v848 = vsel %vm843, %v826, %v828
    %v849 = vsel %vm843, %v828, %v830
    %v850 = vsel %vm843, %v830, %v832
    %v851 = vsel %vm843, %v832, %v834
    %v852 = vsel %vm843, %v834, %v836
    %v853 = vsel %vm843, %v836, %v838
    %v854 = vsel %vm843, %v838, %v840
    %v855 = vsel %vm843, %v840, %v842
    %869 = vrot.lane.b32.xlu0 %v47, 20
    %v870 = vpop.permute.xlu0 %869
    %vm872 = vcmask 162816
    %v873 = vsel %vm872, %v842, %v870
    %874 = vset.pattern.permute.xlu0 6
    %875 = vperm.xlu0 %874, %v36
    %v876 = vpop.permute.xlu0 %875
    %v878 = vlaneseq
    %v879 = vshrl.u32 %v878, 7
    %v880 = vsub.s32 0, %v879
    %v881 = vrot.slane %v844, %v880
    %v882 = vlaneseq
    %v883 = vshrl.u32 %v882, 7
    %v884 = vsub.s32 0, %v883
    %v885 = vrot.slane %v845, %v884
    %v886 = vlaneseq
    %v887 = vshrl.u32 %v886, 7
    %v888 = vsub.s32 0, %v887
    %v889 = vrot.slane %v846, %v888
    %v890 = vlaneseq
    %v891 = vshrl.u32 %v890, 7
    %v892 = vsub.s32 0, %v891
    %v893 = vrot.slane %v847, %v892
    %v894 = vlaneseq
    %v895 = vshrl.u32 %v894, 7
    %v896 = vsub.s32 0, %v895
    %v897 = vrot.slane %v848, %v896
    %v898 = vlaneseq
    %v899 = vshrl.u32 %v898, 7
    %v900 = vsub.s32 0, %v899
    %v901 = vrot.slane %v849, %v900
    %v902 = vlaneseq
    %v903 = vshrl.u32 %v902, 7
    %v904 = vsub.s32 0, %v903
    %v905 = vrot.slane %v850, %v904
    %v906 = vlaneseq
    %v907 = vshrl.u32 %v906, 7
    %v908 = vsub.s32 0, %v907
    %v909 = vrot.slane %v851, %v908
    %v910 = vlaneseq
    %v911 = vshrl.u32 %v910, 7
    %v912 = vsub.s32 0, %v911
    %v913 = vrot.slane %v852, %v912
    %v914 = vlaneseq
    %v915 = vshrl.u32 %v914, 7
    %v916 = vsub.s32 0, %v915
    %v917 = vrot.slane %v853, %v916
    %v918 = vlaneseq
    %v919 = vshrl.u32 %v918, 7
    %v920 = vsub.s32 0, %v919
    %v921 = vrot.slane %v854, %v920
    %v922 = vlaneseq
    %v923 = vshrl.u32 %v922, 7
    %v924 = vsub.s32 0, %v923
    %v925 = vrot.slane %v855, %v924
    %v926 = vlaneseq
    %v927 = vshrl.u32 %v926, 7
    %v928 = vsub.s32 0, %v927
    %v929 = vrot.slane %v873, %v928
    %v930 = vmul.f32 %v876, %v881
    %v931 = vmul.f32 %v876, %v885
    %v932 = vmul.f32 %v876, %v889
    %v933 = vmul.f32 %v876, %v893
    %v934 = vmul.f32 %v876, %v897
    %v935 = vmul.f32 %v876, %v901
    %v936 = vmul.f32 %v876, %v905
    %v937 = vmul.f32 %v876, %v909
    %v938 = vmul.f32 %v876, %v913
    %v939 = vmul.f32 %v876, %v917
    %v940 = vmul.f32 %v876, %v921
    %v941 = vmul.f32 %v876, %v925
    %v942 = vmul.f32 %v876, %v929
    %v943 = vadd.f32 %v804, %v930
    %v944 = vadd.f32 %v805, %v931
    %v945 = vadd.f32 %v806, %v932
    %v946 = vadd.f32 %v807, %v933
    %v947 = vadd.f32 %v808, %v934
    %v948 = vadd.f32 %v809, %v935
    %v949 = vadd.f32 %v810, %v936
    %v950 = vadd.f32 %v811, %v937
    %v951 = vadd.f32 %v812, %v938
    %v952 = vadd.f32 %v813, %v939
    %v953 = vadd.f32 %v814, %v940
    %v954 = vadd.f32 %v815, %v941
    %v955 = vadd.f32 %v816, %v942
    %956 = vrot.lane.b32.xlu0 %v47, 72
    %v957 = vpop.permute.xlu0 %956
    %958 = vrot.lane.b32.xlu0 %v51, 72
    %v959 = vpop.permute.xlu0 %958
    %960 = vrot.lane.b32.xlu0 %v55, 72
    %v961 = vpop.permute.xlu0 %960
    %962 = vrot.lane.b32.xlu0 %v59, 72
    %v963 = vpop.permute.xlu0 %962
    %964 = vrot.lane.b32.xlu0 %v63, 72
    %v965 = vpop.permute.xlu0 %964
    %966 = vrot.lane.b32.xlu0 %v67, 72
    %v967 = vpop.permute.xlu0 %966
    %968 = vrot.lane.b32.xlu0 %v71, 72
    %v969 = vpop.permute.xlu0 %968
    %970 = vrot.lane.b32.xlu0 %v75, 72
    %v971 = vpop.permute.xlu0 %970
    %972 = vrot.lane.b32.xlu0 %v79, 72
    %v973 = vpop.permute.xlu0 %972
    %974 = vrot.lane.b32.xlu0 %v83, 72
    %v975 = vpop.permute.xlu0 %974
    %976 = vrot.lane.b32.xlu0 %v87, 72
    %v977 = vpop.permute.xlu0 %976
    %978 = vrot.lane.b32.xlu0 %v91, 72
    %v979 = vpop.permute.xlu0 %978
    %980 = vrot.lane.b32.xlu0 %v95, 72
    %v981 = vpop.permute.xlu0 %980
    %vm982 = vcmask 588800
    %v983 = vsel %vm982, %v957, %v959
    %v984 = vsel %vm982, %v959, %v961
    %v985 = vsel %vm982, %v961, %v963
    %v986 = vsel %vm982, %v963, %v965
    %v987 = vsel %vm982, %v965, %v967
    %v988 = vsel %vm982, %v967, %v969
    %v989 = vsel %vm982, %v969, %v971
    %v990 = vsel %vm982, %v971, %v973
    %v991 = vsel %vm982, %v973, %v975
    %v992 = vsel %vm982, %v975, %v977
    %v993 = vsel %vm982, %v977, %v979
    %v994 = vsel %vm982, %v979, %v981
    %1007 = vrot.lane.b32.xlu0 %v47, 104
    %v1008 = vpop.permute.xlu0 %1007
    %vm1010 = vcmask 850944
    %v1011 = vsel %vm1010, %v994, %v1008
    %1012 = vset.pattern.permute.xlu0 7
    %1013 = vperm.xlu0 %1012, %v36
    %v1014 = vpop.permute.xlu0 %1013
    %v1016 = vlaneseq
    %v1017 = vshrl.u32 %v1016, 7
    %v1018 = vsub.s32 0, %v1017
    %v1019 = vrot.slane %v983, %v1018
    %v1020 = vlaneseq
    %v1021 = vshrl.u32 %v1020, 7
    %v1022 = vsub.s32 0, %v1021
    %v1023 = vrot.slane %v984, %v1022
    %v1024 = vlaneseq
    %v1025 = vshrl.u32 %v1024, 7
    %v1026 = vsub.s32 0, %v1025
    %v1027 = vrot.slane %v985, %v1026
    %v1028 = vlaneseq
    %v1029 = vshrl.u32 %v1028, 7
    %v1030 = vsub.s32 0, %v1029
    %v1031 = vrot.slane %v986, %v1030
    %v1032 = vlaneseq
    %v1033 = vshrl.u32 %v1032, 7
    %v1034 = vsub.s32 0, %v1033
    %v1035 = vrot.slane %v987, %v1034
    %v1036 = vlaneseq
    %v1037 = vshrl.u32 %v1036, 7
    %v1038 = vsub.s32 0, %v1037
    %v1039 = vrot.slane %v988, %v1038
    %v1040 = vlaneseq
    %v1041 = vshrl.u32 %v1040, 7
    %v1042 = vsub.s32 0, %v1041
    %v1043 = vrot.slane %v989, %v1042
    %v1044 = vlaneseq
    %v1045 = vshrl.u32 %v1044, 7
    %v1046 = vsub.s32 0, %v1045
    %v1047 = vrot.slane %v990, %v1046
    %v1048 = vlaneseq
    %v1049 = vshrl.u32 %v1048, 7
    %v1050 = vsub.s32 0, %v1049
    %v1051 = vrot.slane %v991, %v1050
    %v1052 = vlaneseq
    %v1053 = vshrl.u32 %v1052, 7
    %v1054 = vsub.s32 0, %v1053
    %v1055 = vrot.slane %v992, %v1054
    %v1056 = vlaneseq
    %v1057 = vshrl.u32 %v1056, 7
    %v1058 = vsub.s32 0, %v1057
    %v1059 = vrot.slane %v993, %v1058
    %v1060 = vlaneseq
    %v1061 = vshrl.u32 %v1060, 7
    %v1062 = vsub.s32 0, %v1061
    %v1063 = vrot.slane %v1011, %v1062
    %v1064 = vlaneseq
    %v1065 = vshrl.u32 %v1064, 7
    %v1066 = vsub.s32 0, %v1065
    %v1067 = vrot.slane %v1008, %v1066
    %v1068 = vmul.f32 %v1014, %v1019
    %v1069 = vmul.f32 %v1014, %v1023
    %v1070 = vmul.f32 %v1014, %v1027
    %v1071 = vmul.f32 %v1014, %v1031
    %v1072 = vmul.f32 %v1014, %v1035
    %v1073 = vmul.f32 %v1014, %v1039
    %v1074 = vmul.f32 %v1014, %v1043
    %v1075 = vmul.f32 %v1014, %v1047
    %v1076 = vmul.f32 %v1014, %v1051
    %v1077 = vmul.f32 %v1014, %v1055
    %v1078 = vmul.f32 %v1014, %v1059
    %v1079 = vmul.f32 %v1014, %v1063
    %v1080 = vmul.f32 %v1014, %v1067
    %v1081 = vadd.f32 %v943, %v1068
    %v1082 = vadd.f32 %v944, %v1069
    %v1083 = vadd.f32 %v945, %v1070
    %v1084 = vadd.f32 %v946, %v1071
    %v1085 = vadd.f32 %v947, %v1072
    %v1086 = vadd.f32 %v948, %v1073
    %v1087 = vadd.f32 %v949, %v1074
    %v1088 = vadd.f32 %v950, %v1075
    %v1089 = vadd.f32 %v951, %v1076
    %v1090 = vadd.f32 %v952, %v1077
    %v1091 = vadd.f32 %v953, %v1078
    %v1092 = vadd.f32 %v954, %v1079
    %v1093 = vadd.f32 %v955, %v1080
    %1094 = vrot.lane.b32.xlu0 %v47, 70
    %v1095 = vpop.permute.xlu0 %1094
    %1096 = vrot.lane.b32.xlu0 %v51, 70
    %v1097 = vpop.permute.xlu0 %1096
    %1098 = vrot.lane.b32.xlu0 %v55, 70
    %v1099 = vpop.permute.xlu0 %1098
    %1100 = vrot.lane.b32.xlu0 %v59, 70
    %v1101 = vpop.permute.xlu0 %1100
    %1102 = vrot.lane.b32.xlu0 %v63, 70
    %v1103 = vpop.permute.xlu0 %1102
    %1104 = vrot.lane.b32.xlu0 %v67, 70
    %v1105 = vpop.permute.xlu0 %1104
    %1106 = vrot.lane.b32.xlu0 %v71, 70
    %v1107 = vpop.permute.xlu0 %1106
    %1108 = vrot.lane.b32.xlu0 %v75, 70
    %v1109 = vpop.permute.xlu0 %1108
    %1110 = vrot.lane.b32.xlu0 %v79, 70
    %v1111 = vpop.permute.xlu0 %1110
    %1112 = vrot.lane.b32.xlu0 %v83, 70
    %v1113 = vpop.permute.xlu0 %1112
    %1114 = vrot.lane.b32.xlu0 %v87, 70
    %v1115 = vpop.permute.xlu0 %1114
    %1116 = vrot.lane.b32.xlu0 %v91, 70
    %v1117 = vpop.permute.xlu0 %1116
    %1118 = vrot.lane.b32.xlu0 %v95, 70
    %v1119 = vpop.permute.xlu0 %1118
    %vm1120 = vcmask 572416
    %v1121 = vsel %vm1120, %v1095, %v1097
    %v1122 = vsel %vm1120, %v1097, %v1099
    %v1123 = vsel %vm1120, %v1099, %v1101
    %v1124 = vsel %vm1120, %v1101, %v1103
    %v1125 = vsel %vm1120, %v1103, %v1105
    %v1126 = vsel %vm1120, %v1105, %v1107
    %v1127 = vsel %vm1120, %v1107, %v1109
    %v1128 = vsel %vm1120, %v1109, %v1111
    %v1129 = vsel %vm1120, %v1111, %v1113
    %v1130 = vsel %vm1120, %v1113, %v1115
    %v1131 = vsel %vm1120, %v1115, %v1117
    %v1132 = vsel %vm1120, %v1117, %v1119
    %1145 = vrot.lane.b32.xlu0 %v47, 102
    %v1146 = vpop.permute.xlu0 %1145
    %vm1148 = vcmask 834560
    %v1149 = vsel %vm1148, %v1132, %v1146
    %1150 = vset.pattern.permute.xlu0 8
    %1151 = vperm.xlu0 %1150, %v36
    %v1152 = vpop.permute.xlu0 %1151
    %v1154 = vlaneseq
    %v1155 = vshrl.u32 %v1154, 7
    %v1156 = vsub.s32 0, %v1155
    %v1157 = vrot.slane %v1121, %v1156
    %v1158 = vlaneseq
    %v1159 = vshrl.u32 %v1158, 7
    %v1160 = vsub.s32 0, %v1159
    %v1161 = vrot.slane %v1122, %v1160
    %v1162 = vlaneseq
    %v1163 = vshrl.u32 %v1162, 7
    %v1164 = vsub.s32 0, %v1163
    %v1165 = vrot.slane %v1123, %v1164
    %v1166 = vlaneseq
    %v1167 = vshrl.u32 %v1166, 7
    %v1168 = vsub.s32 0, %v1167
    %v1169 = vrot.slane %v1124, %v1168
    %v1170 = vlaneseq
    %v1171 = vshrl.u32 %v1170, 7
    %v1172 = vsub.s32 0, %v1171
    %v1173 = vrot.slane %v1125, %v1172
    %v1174 = vlaneseq
    %v1175 = vshrl.u32 %v1174, 7
    %v1176 = vsub.s32 0, %v1175
    %v1177 = vrot.slane %v1126, %v1176
    %v1178 = vlaneseq
    %v1179 = vshrl.u32 %v1178, 7
    %v1180 = vsub.s32 0, %v1179
    %v1181 = vrot.slane %v1127, %v1180
    %v1182 = vlaneseq
    %v1183 = vshrl.u32 %v1182, 7
    %v1184 = vsub.s32 0, %v1183
    %v1185 = vrot.slane %v1128, %v1184
    %v1186 = vlaneseq
    %v1187 = vshrl.u32 %v1186, 7
    %v1188 = vsub.s32 0, %v1187
    %v1189 = vrot.slane %v1129, %v1188
    %v1190 = vlaneseq
    %v1191 = vshrl.u32 %v1190, 7
    %v1192 = vsub.s32 0, %v1191
    %v1193 = vrot.slane %v1130, %v1192
    %v1194 = vlaneseq
    %v1195 = vshrl.u32 %v1194, 7
    %v1196 = vsub.s32 0, %v1195
    %v1197 = vrot.slane %v1131, %v1196
    %v1198 = vlaneseq
    %v1199 = vshrl.u32 %v1198, 7
    %v1200 = vsub.s32 0, %v1199
    %v1201 = vrot.slane %v1149, %v1200
    %v1202 = vlaneseq
    %v1203 = vshrl.u32 %v1202, 7
    %v1204 = vsub.s32 0, %v1203
    %v1205 = vrot.slane %v1146, %v1204
    %v1206 = vmul.f32 %v1152, %v1157
    %v1207 = vmul.f32 %v1152, %v1161
    %v1208 = vmul.f32 %v1152, %v1165
    %v1209 = vmul.f32 %v1152, %v1169
    %v1210 = vmul.f32 %v1152, %v1173
    %v1211 = vmul.f32 %v1152, %v1177
    %v1212 = vmul.f32 %v1152, %v1181
    %v1213 = vmul.f32 %v1152, %v1185
    %v1214 = vmul.f32 %v1152, %v1189
    %v1215 = vmul.f32 %v1152, %v1193
    %v1216 = vmul.f32 %v1152, %v1197
    %v1217 = vmul.f32 %v1152, %v1201
    %v1218 = vmul.f32 %v1152, %v1205
    %v1219 = vadd.f32 %v1081, %v1206
    %v1220 = vadd.f32 %v1082, %v1207
    %v1221 = vadd.f32 %v1083, %v1208
    %v1222 = vadd.f32 %v1084, %v1209
    %v1223 = vadd.f32 %v1085, %v1210
    %v1224 = vadd.f32 %v1086, %v1211
    %v1225 = vadd.f32 %v1087, %v1212
    %v1226 = vadd.f32 %v1088, %v1213
    %v1227 = vadd.f32 %v1089, %v1214
    %v1228 = vadd.f32 %v1090, %v1215
    %v1229 = vadd.f32 %v1091, %v1216
    %v1230 = vadd.f32 %v1092, %v1217
    %v1231 = vadd.f32 %v1093, %v1218
    %1232 = vrot.lane.b32.xlu0 %v47, 68
    %v1233 = vpop.permute.xlu0 %1232
    %1234 = vrot.lane.b32.xlu0 %v51, 68
    %v1235 = vpop.permute.xlu0 %1234
    %1236 = vrot.lane.b32.xlu0 %v55, 68
    %v1237 = vpop.permute.xlu0 %1236
    %1238 = vrot.lane.b32.xlu0 %v59, 68
    %v1239 = vpop.permute.xlu0 %1238
    %1240 = vrot.lane.b32.xlu0 %v63, 68
    %v1241 = vpop.permute.xlu0 %1240
    %1242 = vrot.lane.b32.xlu0 %v67, 68
    %v1243 = vpop.permute.xlu0 %1242
    %1244 = vrot.lane.b32.xlu0 %v71, 68
    %v1245 = vpop.permute.xlu0 %1244
    %1246 = vrot.lane.b32.xlu0 %v75, 68
    %v1247 = vpop.permute.xlu0 %1246
    %1248 = vrot.lane.b32.xlu0 %v79, 68
    %v1249 = vpop.permute.xlu0 %1248
    %1250 = vrot.lane.b32.xlu0 %v83, 68
    %v1251 = vpop.permute.xlu0 %1250
    %1252 = vrot.lane.b32.xlu0 %v87, 68
    %v1253 = vpop.permute.xlu0 %1252
    %1254 = vrot.lane.b32.xlu0 %v91, 68
    %v1255 = vpop.permute.xlu0 %1254
    %1256 = vrot.lane.b32.xlu0 %v95, 68
    %v1257 = vpop.permute.xlu0 %1256
    %vm1258 = vcmask 556032
    %v1259 = vsel %vm1258, %v1233, %v1235
    %v1260 = vsel %vm1258, %v1235, %v1237
    %v1261 = vsel %vm1258, %v1237, %v1239
    %v1262 = vsel %vm1258, %v1239, %v1241
    %v1263 = vsel %vm1258, %v1241, %v1243
    %v1264 = vsel %vm1258, %v1243, %v1245
    %v1265 = vsel %vm1258, %v1245, %v1247
    %v1266 = vsel %vm1258, %v1247, %v1249
    %v1267 = vsel %vm1258, %v1249, %v1251
    %v1268 = vsel %vm1258, %v1251, %v1253
    %v1269 = vsel %vm1258, %v1253, %v1255
    %v1270 = vsel %vm1258, %v1255, %v1257
    %1283 = vrot.lane.b32.xlu0 %v47, 100
    %v1284 = vpop.permute.xlu0 %1283
    %vm1286 = vcmask 818176
    %v1287 = vsel %vm1286, %v1270, %v1284
    %1288 = vset.pattern.permute.xlu0 9
    %1289 = vperm.xlu0 %1288, %v36
    %v1290 = vpop.permute.xlu0 %1289
    %v1292 = vlaneseq
    %v1293 = vshrl.u32 %v1292, 7
    %v1294 = vsub.s32 0, %v1293
    %v1295 = vrot.slane %v1259, %v1294
    %v1296 = vlaneseq
    %v1297 = vshrl.u32 %v1296, 7
    %v1298 = vsub.s32 0, %v1297
    %v1299 = vrot.slane %v1260, %v1298
    %v1300 = vlaneseq
    %v1301 = vshrl.u32 %v1300, 7
    %v1302 = vsub.s32 0, %v1301
    %v1303 = vrot.slane %v1261, %v1302
    %v1304 = vlaneseq
    %v1305 = vshrl.u32 %v1304, 7
    %v1306 = vsub.s32 0, %v1305
    %v1307 = vrot.slane %v1262, %v1306
    %v1308 = vlaneseq
    %v1309 = vshrl.u32 %v1308, 7
    %v1310 = vsub.s32 0, %v1309
    %v1311 = vrot.slane %v1263, %v1310
    %v1312 = vlaneseq
    %v1313 = vshrl.u32 %v1312, 7
    %v1314 = vsub.s32 0, %v1313
    %v1315 = vrot.slane %v1264, %v1314
    %v1316 = vlaneseq
    %v1317 = vshrl.u32 %v1316, 7
    %v1318 = vsub.s32 0, %v1317
    %v1319 = vrot.slane %v1265, %v1318
    %v1320 = vlaneseq
    %v1321 = vshrl.u32 %v1320, 7
    %v1322 = vsub.s32 0, %v1321
    %v1323 = vrot.slane %v1266, %v1322
    %v1324 = vlaneseq
    %v1325 = vshrl.u32 %v1324, 7
    %v1326 = vsub.s32 0, %v1325
    %v1327 = vrot.slane %v1267, %v1326
    %v1328 = vlaneseq
    %v1329 = vshrl.u32 %v1328, 7
    %v1330 = vsub.s32 0, %v1329
    %v1331 = vrot.slane %v1268, %v1330
    %v1332 = vlaneseq
    %v1333 = vshrl.u32 %v1332, 7
    %v1334 = vsub.s32 0, %v1333
    %v1335 = vrot.slane %v1269, %v1334
    %v1336 = vlaneseq
    %v1337 = vshrl.u32 %v1336, 7
    %v1338 = vsub.s32 0, %v1337
    %v1339 = vrot.slane %v1287, %v1338
    %v1340 = vlaneseq
    %v1341 = vshrl.u32 %v1340, 7
    %v1342 = vsub.s32 0, %v1341
    %v1343 = vrot.slane %v1284, %v1342
    %v1344 = vmul.f32 %v1290, %v1295
    %v1345 = vmul.f32 %v1290, %v1299
    %v1346 = vmul.f32 %v1290, %v1303
    %v1347 = vmul.f32 %v1290, %v1307
    %v1348 = vmul.f32 %v1290, %v1311
    %v1349 = vmul.f32 %v1290, %v1315
    %v1350 = vmul.f32 %v1290, %v1319
    %v1351 = vmul.f32 %v1290, %v1323
    %v1352 = vmul.f32 %v1290, %v1327
    %v1353 = vmul.f32 %v1290, %v1331
    %v1354 = vmul.f32 %v1290, %v1335
    %v1355 = vmul.f32 %v1290, %v1339
    %v1356 = vmul.f32 %v1290, %v1343
    %v1357 = vadd.f32 %v1219, %v1344
    %v1358 = vadd.f32 %v1220, %v1345
    %v1359 = vadd.f32 %v1221, %v1346
    %v1360 = vadd.f32 %v1222, %v1347
    %v1361 = vadd.f32 %v1223, %v1348
    %v1362 = vadd.f32 %v1224, %v1349
    %v1363 = vadd.f32 %v1225, %v1350
    %v1364 = vadd.f32 %v1226, %v1351
    %v1365 = vadd.f32 %v1227, %v1352
    %v1366 = vadd.f32 %v1228, %v1353
    %v1367 = vadd.f32 %v1229, %v1354
    %v1368 = vadd.f32 %v1230, %v1355
    %v1369 = vadd.f32 %v1231, %v1356
    %1370 = vrot.lane.b32.xlu0 %v47, 66
    %v1371 = vpop.permute.xlu0 %1370
    %1372 = vrot.lane.b32.xlu0 %v51, 66
    %v1373 = vpop.permute.xlu0 %1372
    %1374 = vrot.lane.b32.xlu0 %v55, 66
    %v1375 = vpop.permute.xlu0 %1374
    %1376 = vrot.lane.b32.xlu0 %v59, 66
    %v1377 = vpop.permute.xlu0 %1376
    %1378 = vrot.lane.b32.xlu0 %v63, 66
    %v1379 = vpop.permute.xlu0 %1378
    %1380 = vrot.lane.b32.xlu0 %v67, 66
    %v1381 = vpop.permute.xlu0 %1380
    %1382 = vrot.lane.b32.xlu0 %v71, 66
    %v1383 = vpop.permute.xlu0 %1382
    %1384 = vrot.lane.b32.xlu0 %v75, 66
    %v1385 = vpop.permute.xlu0 %1384
    %1386 = vrot.lane.b32.xlu0 %v79, 66
    %v1387 = vpop.permute.xlu0 %1386
    %1388 = vrot.lane.b32.xlu0 %v83, 66
    %v1389 = vpop.permute.xlu0 %1388
    %1390 = vrot.lane.b32.xlu0 %v87, 66
    %v1391 = vpop.permute.xlu0 %1390
    %1392 = vrot.lane.b32.xlu0 %v91, 66
    %v1393 = vpop.permute.xlu0 %1392
    %1394 = vrot.lane.b32.xlu0 %v95, 66
    %v1395 = vpop.permute.xlu0 %1394
    %vm1396 = vcmask 539648
    %v1397 = vsel %vm1396, %v1371, %v1373
    %v1398 = vsel %vm1396, %v1373, %v1375
    %v1399 = vsel %vm1396, %v1375, %v1377
    %v1400 = vsel %vm1396, %v1377, %v1379
    %v1401 = vsel %vm1396, %v1379, %v1381
    %v1402 = vsel %vm1396, %v1381, %v1383
    %v1403 = vsel %vm1396, %v1383, %v1385
    %v1404 = vsel %vm1396, %v1385, %v1387
    %v1405 = vsel %vm1396, %v1387, %v1389
    %v1406 = vsel %vm1396, %v1389, %v1391
    %v1407 = vsel %vm1396, %v1391, %v1393
    %v1408 = vsel %vm1396, %v1393, %v1395
    %1421 = vrot.lane.b32.xlu0 %v47, 98
    %v1422 = vpop.permute.xlu0 %1421
    %vm1424 = vcmask 801792
    %v1425 = vsel %vm1424, %v1408, %v1422
    %1426 = vset.pattern.permute.xlu0 10
    %1427 = vperm.xlu0 %1426, %v36
    %v1428 = vpop.permute.xlu0 %1427
    %v1430 = vlaneseq
    %v1431 = vshrl.u32 %v1430, 7
    %v1432 = vsub.s32 0, %v1431
    %v1433 = vrot.slane %v1397, %v1432
    %v1434 = vlaneseq
    %v1435 = vshrl.u32 %v1434, 7
    %v1436 = vsub.s32 0, %v1435
    %v1437 = vrot.slane %v1398, %v1436
    %v1438 = vlaneseq
    %v1439 = vshrl.u32 %v1438, 7
    %v1440 = vsub.s32 0, %v1439
    %v1441 = vrot.slane %v1399, %v1440
    %v1442 = vlaneseq
    %v1443 = vshrl.u32 %v1442, 7
    %v1444 = vsub.s32 0, %v1443
    %v1445 = vrot.slane %v1400, %v1444
    %v1446 = vlaneseq
    %v1447 = vshrl.u32 %v1446, 7
    %v1448 = vsub.s32 0, %v1447
    %v1449 = vrot.slane %v1401, %v1448
    %v1450 = vlaneseq
    %v1451 = vshrl.u32 %v1450, 7
    %v1452 = vsub.s32 0, %v1451
    %v1453 = vrot.slane %v1402, %v1452
    %v1454 = vlaneseq
    %v1455 = vshrl.u32 %v1454, 7
    %v1456 = vsub.s32 0, %v1455
    %v1457 = vrot.slane %v1403, %v1456
    %v1458 = vlaneseq
    %v1459 = vshrl.u32 %v1458, 7
    %v1460 = vsub.s32 0, %v1459
    %v1461 = vrot.slane %v1404, %v1460
    %v1462 = vlaneseq
    %v1463 = vshrl.u32 %v1462, 7
    %v1464 = vsub.s32 0, %v1463
    %v1465 = vrot.slane %v1405, %v1464
    %v1466 = vlaneseq
    %v1467 = vshrl.u32 %v1466, 7
    %v1468 = vsub.s32 0, %v1467
    %v1469 = vrot.slane %v1406, %v1468
    %v1470 = vlaneseq
    %v1471 = vshrl.u32 %v1470, 7
    %v1472 = vsub.s32 0, %v1471
    %v1473 = vrot.slane %v1407, %v1472
    %v1474 = vlaneseq
    %v1475 = vshrl.u32 %v1474, 7
    %v1476 = vsub.s32 0, %v1475
    %v1477 = vrot.slane %v1425, %v1476
    %v1478 = vlaneseq
    %v1479 = vshrl.u32 %v1478, 7
    %v1480 = vsub.s32 0, %v1479
    %v1481 = vrot.slane %v1422, %v1480
    %v1482 = vmul.f32 %v1428, %v1433
    %v1483 = vmul.f32 %v1428, %v1437
    %v1484 = vmul.f32 %v1428, %v1441
    %v1485 = vmul.f32 %v1428, %v1445
    %v1486 = vmul.f32 %v1428, %v1449
    %v1487 = vmul.f32 %v1428, %v1453
    %v1488 = vmul.f32 %v1428, %v1457
    %v1489 = vmul.f32 %v1428, %v1461
    %v1490 = vmul.f32 %v1428, %v1465
    %v1491 = vmul.f32 %v1428, %v1469
    %v1492 = vmul.f32 %v1428, %v1473
    %v1493 = vmul.f32 %v1428, %v1477
    %v1494 = vmul.f32 %v1428, %v1481
    %v1495 = vadd.f32 %v1357, %v1482
    %v1496 = vadd.f32 %v1358, %v1483
    %v1497 = vadd.f32 %v1359, %v1484
    %v1498 = vadd.f32 %v1360, %v1485
    %v1499 = vadd.f32 %v1361, %v1486
    %v1500 = vadd.f32 %v1362, %v1487
    %v1501 = vadd.f32 %v1363, %v1488
    %v1502 = vadd.f32 %v1364, %v1489
    %v1503 = vadd.f32 %v1365, %v1490
    %v1504 = vadd.f32 %v1366, %v1491
    %v1505 = vadd.f32 %v1367, %v1492
    %v1506 = vadd.f32 %v1368, %v1493
    %v1507 = vadd.f32 %v1369, %v1494
    %1508 = vrot.lane.b32.xlu0 %v47, 64
    %v1509 = vpop.permute.xlu0 %1508
    %1510 = vrot.lane.b32.xlu0 %v51, 64
    %v1511 = vpop.permute.xlu0 %1510
    %1512 = vrot.lane.b32.xlu0 %v55, 64
    %v1513 = vpop.permute.xlu0 %1512
    %1514 = vrot.lane.b32.xlu0 %v59, 64
    %v1515 = vpop.permute.xlu0 %1514
    %1516 = vrot.lane.b32.xlu0 %v63, 64
    %v1517 = vpop.permute.xlu0 %1516
    %1518 = vrot.lane.b32.xlu0 %v67, 64
    %v1519 = vpop.permute.xlu0 %1518
    %1520 = vrot.lane.b32.xlu0 %v71, 64
    %v1521 = vpop.permute.xlu0 %1520
    %1522 = vrot.lane.b32.xlu0 %v75, 64
    %v1523 = vpop.permute.xlu0 %1522
    %1524 = vrot.lane.b32.xlu0 %v79, 64
    %v1525 = vpop.permute.xlu0 %1524
    %1526 = vrot.lane.b32.xlu0 %v83, 64
    %v1527 = vpop.permute.xlu0 %1526
    %1528 = vrot.lane.b32.xlu0 %v87, 64
    %v1529 = vpop.permute.xlu0 %1528
    %1530 = vrot.lane.b32.xlu0 %v91, 64
    %v1531 = vpop.permute.xlu0 %1530
    %1532 = vrot.lane.b32.xlu0 %v95, 64
    %v1533 = vpop.permute.xlu0 %1532
    %vm1534 = vcmask 523264
    %v1535 = vsel %vm1534, %v1509, %v1511
    %v1536 = vsel %vm1534, %v1511, %v1513
    %v1537 = vsel %vm1534, %v1513, %v1515
    %v1538 = vsel %vm1534, %v1515, %v1517
    %v1539 = vsel %vm1534, %v1517, %v1519
    %v1540 = vsel %vm1534, %v1519, %v1521
    %v1541 = vsel %vm1534, %v1521, %v1523
    %v1542 = vsel %vm1534, %v1523, %v1525
    %v1543 = vsel %vm1534, %v1525, %v1527
    %v1544 = vsel %vm1534, %v1527, %v1529
    %v1545 = vsel %vm1534, %v1529, %v1531
    %v1546 = vsel %vm1534, %v1531, %v1533
    %1559 = vrot.lane.b32.xlu0 %v47, 96
    %v1560 = vpop.permute.xlu0 %1559
    %vm1562 = vcmask 785408
    %v1563 = vsel %vm1562, %v1546, %v1560
    %1564 = vset.pattern.permute.xlu0 11
    %1565 = vperm.xlu0 %1564, %v36
    %v1566 = vpop.permute.xlu0 %1565
    %v1568 = vlaneseq
    %v1569 = vshrl.u32 %v1568, 7
    %v1570 = vsub.s32 0, %v1569
    %v1571 = vrot.slane %v1535, %v1570
    %v1572 = vlaneseq
    %v1573 = vshrl.u32 %v1572, 7
    %v1574 = vsub.s32 0, %v1573
    %v1575 = vrot.slane %v1536, %v1574
    %v1576 = vlaneseq
    %v1577 = vshrl.u32 %v1576, 7
    %v1578 = vsub.s32 0, %v1577
    %v1579 = vrot.slane %v1537, %v1578
    %v1580 = vlaneseq
    %v1581 = vshrl.u32 %v1580, 7
    %v1582 = vsub.s32 0, %v1581
    %v1583 = vrot.slane %v1538, %v1582
    %v1584 = vlaneseq
    %v1585 = vshrl.u32 %v1584, 7
    %v1586 = vsub.s32 0, %v1585
    %v1587 = vrot.slane %v1539, %v1586
    %v1588 = vlaneseq
    %v1589 = vshrl.u32 %v1588, 7
    %v1590 = vsub.s32 0, %v1589
    %v1591 = vrot.slane %v1540, %v1590
    %v1592 = vlaneseq
    %v1593 = vshrl.u32 %v1592, 7
    %v1594 = vsub.s32 0, %v1593
    %v1595 = vrot.slane %v1541, %v1594
    %v1596 = vlaneseq
    %v1597 = vshrl.u32 %v1596, 7
    %v1598 = vsub.s32 0, %v1597
    %v1599 = vrot.slane %v1542, %v1598
    %v1600 = vlaneseq
    %v1601 = vshrl.u32 %v1600, 7
    %v1602 = vsub.s32 0, %v1601
    %v1603 = vrot.slane %v1543, %v1602
    %v1604 = vlaneseq
    %v1605 = vshrl.u32 %v1604, 7
    %v1606 = vsub.s32 0, %v1605
    %v1607 = vrot.slane %v1544, %v1606
    %v1608 = vlaneseq
    %v1609 = vshrl.u32 %v1608, 7
    %v1610 = vsub.s32 0, %v1609
    %v1611 = vrot.slane %v1545, %v1610
    %v1612 = vlaneseq
    %v1613 = vshrl.u32 %v1612, 7
    %v1614 = vsub.s32 0, %v1613
    %v1615 = vrot.slane %v1563, %v1614
    %v1616 = vlaneseq
    %v1617 = vshrl.u32 %v1616, 7
    %v1618 = vsub.s32 0, %v1617
    %v1619 = vrot.slane %v1560, %v1618
    %v1620 = vmul.f32 %v1566, %v1571
    %v1621 = vmul.f32 %v1566, %v1575
    %v1622 = vmul.f32 %v1566, %v1579
    %v1623 = vmul.f32 %v1566, %v1583
    %v1624 = vmul.f32 %v1566, %v1587
    %v1625 = vmul.f32 %v1566, %v1591
    %v1626 = vmul.f32 %v1566, %v1595
    %v1627 = vmul.f32 %v1566, %v1599
    %v1628 = vmul.f32 %v1566, %v1603
    %v1629 = vmul.f32 %v1566, %v1607
    %v1630 = vmul.f32 %v1566, %v1611
    %v1631 = vmul.f32 %v1566, %v1615
    %v1632 = vmul.f32 %v1566, %v1619
    %v1633 = vadd.f32 %v1495, %v1620
    %v1634 = vadd.f32 %v1496, %v1621
    %v1635 = vadd.f32 %v1497, %v1622
    %v1636 = vadd.f32 %v1498, %v1623
    %v1637 = vadd.f32 %v1499, %v1624
    %v1638 = vadd.f32 %v1500, %v1625
    %v1639 = vadd.f32 %v1501, %v1626
    %v1640 = vadd.f32 %v1502, %v1627
    %v1641 = vadd.f32 %v1503, %v1628
    %v1642 = vadd.f32 %v1504, %v1629
    %v1643 = vadd.f32 %v1505, %v1630
    %v1644 = vadd.f32 %v1506, %v1631
    %v1645 = vadd.f32 %v1507, %v1632
    %1646 = vrot.lane.b32.xlu0 %v47, 62
    %v1647 = vpop.permute.xlu0 %1646
    %1648 = vrot.lane.b32.xlu0 %v51, 62
    %v1649 = vpop.permute.xlu0 %1648
    %1650 = vrot.lane.b32.xlu0 %v55, 62
    %v1651 = vpop.permute.xlu0 %1650
    %1652 = vrot.lane.b32.xlu0 %v59, 62
    %v1653 = vpop.permute.xlu0 %1652
    %1654 = vrot.lane.b32.xlu0 %v63, 62
    %v1655 = vpop.permute.xlu0 %1654
    %1656 = vrot.lane.b32.xlu0 %v67, 62
    %v1657 = vpop.permute.xlu0 %1656
    %1658 = vrot.lane.b32.xlu0 %v71, 62
    %v1659 = vpop.permute.xlu0 %1658
    %1660 = vrot.lane.b32.xlu0 %v75, 62
    %v1661 = vpop.permute.xlu0 %1660
    %1662 = vrot.lane.b32.xlu0 %v79, 62
    %v1663 = vpop.permute.xlu0 %1662
    %1664 = vrot.lane.b32.xlu0 %v83, 62
    %v1665 = vpop.permute.xlu0 %1664
    %1666 = vrot.lane.b32.xlu0 %v87, 62
    %v1667 = vpop.permute.xlu0 %1666
    %1668 = vrot.lane.b32.xlu0 %v91, 62
    %v1669 = vpop.permute.xlu0 %1668
    %1670 = vrot.lane.b32.xlu0 %v95, 62
    %v1671 = vpop.permute.xlu0 %1670
    %vm1672 = vcmask 506880
    %v1673 = vsel %vm1672, %v1647, %v1649
    %v1674 = vsel %vm1672, %v1649, %v1651
    %v1675 = vsel %vm1672, %v1651, %v1653
    %v1676 = vsel %vm1672, %v1653, %v1655
    %v1677 = vsel %vm1672, %v1655, %v1657
    %v1678 = vsel %vm1672, %v1657, %v1659
    %v1679 = vsel %vm1672, %v1659, %v1661
    %v1680 = vsel %vm1672, %v1661, %v1663
    %v1681 = vsel %vm1672, %v1663, %v1665
    %v1682 = vsel %vm1672, %v1665, %v1667
    %v1683 = vsel %vm1672, %v1667, %v1669
    %v1684 = vsel %vm1672, %v1669, %v1671
    %1697 = vrot.lane.b32.xlu0 %v47, 94
    %v1698 = vpop.permute.xlu0 %1697
    %vm1700 = vcmask 769024
    %v1701 = vsel %vm1700, %v1684, %v1698
    %1702 = vset.pattern.permute.xlu0 12
    %1703 = vperm.xlu0 %1702, %v36
    %v1704 = vpop.permute.xlu0 %1703
    %v1706 = vlaneseq
    %v1707 = vshrl.u32 %v1706, 7
    %v1708 = vsub.s32 0, %v1707
    %v1709 = vrot.slane %v1673, %v1708
    %v1710 = vlaneseq
    %v1711 = vshrl.u32 %v1710, 7
    %v1712 = vsub.s32 0, %v1711
    %v1713 = vrot.slane %v1674, %v1712
    %v1714 = vlaneseq
    %v1715 = vshrl.u32 %v1714, 7
    %v1716 = vsub.s32 0, %v1715
    %v1717 = vrot.slane %v1675, %v1716
    %v1718 = vlaneseq
    %v1719 = vshrl.u32 %v1718, 7
    %v1720 = vsub.s32 0, %v1719
    %v1721 = vrot.slane %v1676, %v1720
    %v1722 = vlaneseq
    %v1723 = vshrl.u32 %v1722, 7
    %v1724 = vsub.s32 0, %v1723
    %v1725 = vrot.slane %v1677, %v1724
    %v1726 = vlaneseq
    %v1727 = vshrl.u32 %v1726, 7
    %v1728 = vsub.s32 0, %v1727
    %v1729 = vrot.slane %v1678, %v1728
    %v1730 = vlaneseq
    %v1731 = vshrl.u32 %v1730, 7
    %v1732 = vsub.s32 0, %v1731
    %v1733 = vrot.slane %v1679, %v1732
    %v1734 = vlaneseq
    %v1735 = vshrl.u32 %v1734, 7
    %v1736 = vsub.s32 0, %v1735
    %v1737 = vrot.slane %v1680, %v1736
    %v1738 = vlaneseq
    %v1739 = vshrl.u32 %v1738, 7
    %v1740 = vsub.s32 0, %v1739
    %v1741 = vrot.slane %v1681, %v1740
    %v1742 = vlaneseq
    %v1743 = vshrl.u32 %v1742, 7
    %v1744 = vsub.s32 0, %v1743
    %v1745 = vrot.slane %v1682, %v1744
    %v1746 = vlaneseq
    %v1747 = vshrl.u32 %v1746, 7
    %v1748 = vsub.s32 0, %v1747
    %v1749 = vrot.slane %v1683, %v1748
    %v1750 = vlaneseq
    %v1751 = vshrl.u32 %v1750, 7
    %v1752 = vsub.s32 0, %v1751
    %v1753 = vrot.slane %v1701, %v1752
    %v1754 = vlaneseq
    %v1755 = vshrl.u32 %v1754, 7
    %v1756 = vsub.s32 0, %v1755
    %v1757 = vrot.slane %v1698, %v1756
    %v1758 = vmul.f32 %v1704, %v1709
    %v1759 = vmul.f32 %v1704, %v1713
    %v1760 = vmul.f32 %v1704, %v1717
    %v1761 = vmul.f32 %v1704, %v1721
    %v1762 = vmul.f32 %v1704, %v1725
    %v1763 = vmul.f32 %v1704, %v1729
    %v1764 = vmul.f32 %v1704, %v1733
    %v1765 = vmul.f32 %v1704, %v1737
    %v1766 = vmul.f32 %v1704, %v1741
    %v1767 = vmul.f32 %v1704, %v1745
    %v1768 = vmul.f32 %v1704, %v1749
    %v1769 = vmul.f32 %v1704, %v1753
    %v1770 = vmul.f32 %v1704, %v1757
    %v1771 = vadd.f32 %v1633, %v1758
    %v1772 = vadd.f32 %v1634, %v1759
    %v1773 = vadd.f32 %v1635, %v1760
    %v1774 = vadd.f32 %v1636, %v1761
    %v1775 = vadd.f32 %v1637, %v1762
    %v1776 = vadd.f32 %v1638, %v1763
    %v1777 = vadd.f32 %v1639, %v1764
    %v1778 = vadd.f32 %v1640, %v1765
    %v1779 = vadd.f32 %v1641, %v1766
    %v1780 = vadd.f32 %v1642, %v1767
    %v1781 = vadd.f32 %v1643, %v1768
    %v1782 = vadd.f32 %v1644, %v1769
    %v1783 = vadd.f32 %v1645, %v1770
    %1784 = vrot.lane.b32.xlu0 %v47, 60
    %v1785 = vpop.permute.xlu0 %1784
    %1786 = vrot.lane.b32.xlu0 %v51, 60
    %v1787 = vpop.permute.xlu0 %1786
    %1788 = vrot.lane.b32.xlu0 %v55, 60
    %v1789 = vpop.permute.xlu0 %1788
    %1790 = vrot.lane.b32.xlu0 %v59, 60
    %v1791 = vpop.permute.xlu0 %1790
    %1792 = vrot.lane.b32.xlu0 %v63, 60
    %v1793 = vpop.permute.xlu0 %1792
    %1794 = vrot.lane.b32.xlu0 %v67, 60
    %v1795 = vpop.permute.xlu0 %1794
    %1796 = vrot.lane.b32.xlu0 %v71, 60
    %v1797 = vpop.permute.xlu0 %1796
    %1798 = vrot.lane.b32.xlu0 %v75, 60
    %v1799 = vpop.permute.xlu0 %1798
    %1800 = vrot.lane.b32.xlu0 %v79, 60
    %v1801 = vpop.permute.xlu0 %1800
    %1802 = vrot.lane.b32.xlu0 %v83, 60
    %v1803 = vpop.permute.xlu0 %1802
    %1804 = vrot.lane.b32.xlu0 %v87, 60
    %v1805 = vpop.permute.xlu0 %1804
    %1806 = vrot.lane.b32.xlu0 %v91, 60
    %v1807 = vpop.permute.xlu0 %1806
    %1808 = vrot.lane.b32.xlu0 %v95, 60
    %v1809 = vpop.permute.xlu0 %1808
    %vm1810 = vcmask 490496
    %v1811 = vsel %vm1810, %v1785, %v1787
    %v1812 = vsel %vm1810, %v1787, %v1789
    %v1813 = vsel %vm1810, %v1789, %v1791
    %v1814 = vsel %vm1810, %v1791, %v1793
    %v1815 = vsel %vm1810, %v1793, %v1795
    %v1816 = vsel %vm1810, %v1795, %v1797
    %v1817 = vsel %vm1810, %v1797, %v1799
    %v1818 = vsel %vm1810, %v1799, %v1801
    %v1819 = vsel %vm1810, %v1801, %v1803
    %v1820 = vsel %vm1810, %v1803, %v1805
    %v1821 = vsel %vm1810, %v1805, %v1807
    %v1822 = vsel %vm1810, %v1807, %v1809
    %1835 = vrot.lane.b32.xlu0 %v47, 92
    %v1836 = vpop.permute.xlu0 %1835
    %vm1838 = vcmask 752640
    %v1839 = vsel %vm1838, %v1822, %v1836
    %1840 = vset.pattern.permute.xlu0 13
    %1841 = vperm.xlu0 %1840, %v36
    %v1842 = vpop.permute.xlu0 %1841
    %v1844 = vlaneseq
    %v1845 = vshrl.u32 %v1844, 7
    %v1846 = vsub.s32 0, %v1845
    %v1847 = vrot.slane %v1811, %v1846
    %v1848 = vlaneseq
    %v1849 = vshrl.u32 %v1848, 7
    %v1850 = vsub.s32 0, %v1849
    %v1851 = vrot.slane %v1812, %v1850
    %v1852 = vlaneseq
    %v1853 = vshrl.u32 %v1852, 7
    %v1854 = vsub.s32 0, %v1853
    %v1855 = vrot.slane %v1813, %v1854
    %v1856 = vlaneseq
    %v1857 = vshrl.u32 %v1856, 7
    %v1858 = vsub.s32 0, %v1857
    %v1859 = vrot.slane %v1814, %v1858
    %v1860 = vlaneseq
    %v1861 = vshrl.u32 %v1860, 7
    %v1862 = vsub.s32 0, %v1861
    %v1863 = vrot.slane %v1815, %v1862
    %v1864 = vlaneseq
    %v1865 = vshrl.u32 %v1864, 7
    %v1866 = vsub.s32 0, %v1865
    %v1867 = vrot.slane %v1816, %v1866
    %v1868 = vlaneseq
    %v1869 = vshrl.u32 %v1868, 7
    %v1870 = vsub.s32 0, %v1869
    %v1871 = vrot.slane %v1817, %v1870
    %v1872 = vlaneseq
    %v1873 = vshrl.u32 %v1872, 7
    %v1874 = vsub.s32 0, %v1873
    %v1875 = vrot.slane %v1818, %v1874
    %v1876 = vlaneseq
    %v1877 = vshrl.u32 %v1876, 7
    %v1878 = vsub.s32 0, %v1877
    %v1879 = vrot.slane %v1819, %v1878
    %v1880 = vlaneseq
    %v1881 = vshrl.u32 %v1880, 7
    %v1882 = vsub.s32 0, %v1881
    %v1883 = vrot.slane %v1820, %v1882
    %v1884 = vlaneseq
    %v1885 = vshrl.u32 %v1884, 7
    %v1886 = vsub.s32 0, %v1885
    %v1887 = vrot.slane %v1821, %v1886
    %v1888 = vlaneseq
    %v1889 = vshrl.u32 %v1888, 7
    %v1890 = vsub.s32 0, %v1889
    %v1891 = vrot.slane %v1839, %v1890
    %v1892 = vlaneseq
    %v1893 = vshrl.u32 %v1892, 7
    %v1894 = vsub.s32 0, %v1893
    %v1895 = vrot.slane %v1836, %v1894
    %v1896 = vmul.f32 %v1842, %v1847
    %v1897 = vmul.f32 %v1842, %v1851
    %v1898 = vmul.f32 %v1842, %v1855
    %v1899 = vmul.f32 %v1842, %v1859
    %v1900 = vmul.f32 %v1842, %v1863
    %v1901 = vmul.f32 %v1842, %v1867
    %v1902 = vmul.f32 %v1842, %v1871
    %v1903 = vmul.f32 %v1842, %v1875
    %v1904 = vmul.f32 %v1842, %v1879
    %v1905 = vmul.f32 %v1842, %v1883
    %v1906 = vmul.f32 %v1842, %v1887
    %v1907 = vmul.f32 %v1842, %v1891
    %v1908 = vmul.f32 %v1842, %v1895
    %v1909 = vadd.f32 %v1771, %v1896
    %v1910 = vadd.f32 %v1772, %v1897
    %v1911 = vadd.f32 %v1773, %v1898
    %v1912 = vadd.f32 %v1774, %v1899
    %v1913 = vadd.f32 %v1775, %v1900
    %v1914 = vadd.f32 %v1776, %v1901
    %v1915 = vadd.f32 %v1777, %v1902
    %v1916 = vadd.f32 %v1778, %v1903
    %v1917 = vadd.f32 %v1779, %v1904
    %v1918 = vadd.f32 %v1780, %v1905
    %v1919 = vadd.f32 %v1781, %v1906
    %v1920 = vadd.f32 %v1782, %v1907
    %v1921 = vadd.f32 %v1783, %v1908
    %1922 = vrot.lane.b32.xlu0 %v47, 16
    %v1923 = vpop.permute.xlu0 %1922
    %1924 = vrot.lane.b32.xlu0 %v51, 16
    %v1925 = vpop.permute.xlu0 %1924
    %1926 = vrot.lane.b32.xlu0 %v55, 16
    %v1927 = vpop.permute.xlu0 %1926
    %1928 = vrot.lane.b32.xlu0 %v59, 16
    %v1929 = vpop.permute.xlu0 %1928
    %1930 = vrot.lane.b32.xlu0 %v63, 16
    %v1931 = vpop.permute.xlu0 %1930
    %1932 = vrot.lane.b32.xlu0 %v67, 16
    %v1933 = vpop.permute.xlu0 %1932
    %1934 = vrot.lane.b32.xlu0 %v71, 16
    %v1935 = vpop.permute.xlu0 %1934
    %1936 = vrot.lane.b32.xlu0 %v75, 16
    %v1937 = vpop.permute.xlu0 %1936
    %1938 = vrot.lane.b32.xlu0 %v79, 16
    %v1939 = vpop.permute.xlu0 %1938
    %1940 = vrot.lane.b32.xlu0 %v83, 16
    %v1941 = vpop.permute.xlu0 %1940
    %1942 = vrot.lane.b32.xlu0 %v87, 16
    %v1943 = vpop.permute.xlu0 %1942
    %1944 = vrot.lane.b32.xlu0 %v91, 16
    %v1945 = vpop.permute.xlu0 %1944
    %1946 = vrot.lane.b32.xlu0 %v95, 16
    %v1947 = vpop.permute.xlu0 %1946
    %vm1948 = vcmask 130048
    %v1949 = vsel %vm1948, %v1923, %v1925
    %v1950 = vsel %vm1948, %v1925, %v1927
    %v1951 = vsel %vm1948, %v1927, %v1929
    %v1952 = vsel %vm1948, %v1929, %v1931
    %v1953 = vsel %vm1948, %v1931, %v1933
    %v1954 = vsel %vm1948, %v1933, %v1935
    %v1955 = vsel %vm1948, %v1935, %v1937
    %v1956 = vsel %vm1948, %v1937, %v1939
    %v1957 = vsel %vm1948, %v1939, %v1941
    %v1958 = vsel %vm1948, %v1941, %v1943
    %v1959 = vsel %vm1948, %v1943, %v1945
    %v1960 = vsel %vm1948, %v1945, %v1947
    %1973 = vrot.lane.b32.xlu0 %v47, 48
    %v1974 = vpop.permute.xlu0 %1973
    %vm1976 = vcmask 392192
    %v1977 = vsel %vm1976, %v1960, %v1974
    %1978 = vset.pattern.permute.xlu0 14
    %1979 = vperm.xlu0 %1978, %v36
    %v1980 = vpop.permute.xlu0 %1979
    %v1982 = vlaneseq
    %v1983 = vshrl.u32 %v1982, 7
    %v1984 = vsub.s32 0, %v1983
    %v1985 = vrot.slane %v1949, %v1984
    %v1986 = vlaneseq
    %v1987 = vshrl.u32 %v1986, 7
    %v1988 = vsub.s32 0, %v1987
    %v1989 = vrot.slane %v1950, %v1988
    %v1990 = vlaneseq
    %v1991 = vshrl.u32 %v1990, 7
    %v1992 = vsub.s32 0, %v1991
    %v1993 = vrot.slane %v1951, %v1992
    %v1994 = vlaneseq
    %v1995 = vshrl.u32 %v1994, 7
    %v1996 = vsub.s32 0, %v1995
    %v1997 = vrot.slane %v1952, %v1996
    %v1998 = vlaneseq
    %v1999 = vshrl.u32 %v1998, 7
    %v2000 = vsub.s32 0, %v1999
    %v2001 = vrot.slane %v1953, %v2000
    %v2002 = vlaneseq
    %v2003 = vshrl.u32 %v2002, 7
    %v2004 = vsub.s32 0, %v2003
    %v2005 = vrot.slane %v1954, %v2004
    %v2006 = vlaneseq
    %v2007 = vshrl.u32 %v2006, 7
    %v2008 = vsub.s32 0, %v2007
    %v2009 = vrot.slane %v1955, %v2008
    %v2010 = vlaneseq
    %v2011 = vshrl.u32 %v2010, 7
    %v2012 = vsub.s32 0, %v2011
    %v2013 = vrot.slane %v1956, %v2012
    %v2014 = vlaneseq
    %v2015 = vshrl.u32 %v2014, 7
    %v2016 = vsub.s32 0, %v2015
    %v2017 = vrot.slane %v1957, %v2016
    %v2018 = vlaneseq
    %v2019 = vshrl.u32 %v2018, 7
    %v2020 = vsub.s32 0, %v2019
    %v2021 = vrot.slane %v1958, %v2020
    %v2022 = vlaneseq
    %v2023 = vshrl.u32 %v2022, 7
    %v2024 = vsub.s32 0, %v2023
    %v2025 = vrot.slane %v1959, %v2024
    %v2026 = vlaneseq
    %v2027 = vshrl.u32 %v2026, 7
    %v2028 = vsub.s32 0, %v2027
    %v2029 = vrot.slane %v1977, %v2028
    %v2030 = vlaneseq
    %v2031 = vshrl.u32 %v2030, 7
    %v2032 = vsub.s32 0, %v2031
    %v2033 = vrot.slane %v1974, %v2032
    %v2034 = vmul.f32 %v1980, %v1985
    %v2035 = vmul.f32 %v1980, %v1989
    %v2036 = vmul.f32 %v1980, %v1993
    %v2037 = vmul.f32 %v1980, %v1997
    %v2038 = vmul.f32 %v1980, %v2001
    %v2039 = vmul.f32 %v1980, %v2005
    %v2040 = vmul.f32 %v1980, %v2009
    %v2041 = vmul.f32 %v1980, %v2013
    %v2042 = vmul.f32 %v1980, %v2017
    %v2043 = vmul.f32 %v1980, %v2021
    %v2044 = vmul.f32 %v1980, %v2025
    %v2045 = vmul.f32 %v1980, %v2029
    %v2046 = vmul.f32 %v1980, %v2033
    %v2047 = vadd.f32 %v1909, %v2034
    %v2048 = vadd.f32 %v1910, %v2035
    %v2049 = vadd.f32 %v1911, %v2036
    %v2050 = vadd.f32 %v1912, %v2037
    %v2051 = vadd.f32 %v1913, %v2038
    %v2052 = vadd.f32 %v1914, %v2039
    %v2053 = vadd.f32 %v1915, %v2040
    %v2054 = vadd.f32 %v1916, %v2041
    %v2055 = vadd.f32 %v1917, %v2042
    %v2056 = vadd.f32 %v1918, %v2043
    %v2057 = vadd.f32 %v1919, %v2044
    %v2058 = vadd.f32 %v1920, %v2045
    %v2059 = vadd.f32 %v1921, %v2046
    %2060 = vrot.lane.b32.xlu0 %v47, 14
    %v2061 = vpop.permute.xlu0 %2060
    %2062 = vrot.lane.b32.xlu0 %v51, 14
    %v2063 = vpop.permute.xlu0 %2062
    %2064 = vrot.lane.b32.xlu0 %v55, 14
    %v2065 = vpop.permute.xlu0 %2064
    %2066 = vrot.lane.b32.xlu0 %v59, 14
    %v2067 = vpop.permute.xlu0 %2066
    %2068 = vrot.lane.b32.xlu0 %v63, 14
    %v2069 = vpop.permute.xlu0 %2068
    %2070 = vrot.lane.b32.xlu0 %v67, 14
    %v2071 = vpop.permute.xlu0 %2070
    %2072 = vrot.lane.b32.xlu0 %v71, 14
    %v2073 = vpop.permute.xlu0 %2072
    %2074 = vrot.lane.b32.xlu0 %v75, 14
    %v2075 = vpop.permute.xlu0 %2074
    %2076 = vrot.lane.b32.xlu0 %v79, 14
    %v2077 = vpop.permute.xlu0 %2076
    %2078 = vrot.lane.b32.xlu0 %v83, 14
    %v2079 = vpop.permute.xlu0 %2078
    %2080 = vrot.lane.b32.xlu0 %v87, 14
    %v2081 = vpop.permute.xlu0 %2080
    %2082 = vrot.lane.b32.xlu0 %v91, 14
    %v2083 = vpop.permute.xlu0 %2082
    %2084 = vrot.lane.b32.xlu0 %v95, 14
    %v2085 = vpop.permute.xlu0 %2084
    %vm2086 = vcmask 113664
    %v2087 = vsel %vm2086, %v2061, %v2063
    %v2088 = vsel %vm2086, %v2063, %v2065
    %v2089 = vsel %vm2086, %v2065, %v2067
    %v2090 = vsel %vm2086, %v2067, %v2069
    %v2091 = vsel %vm2086, %v2069, %v2071
    %v2092 = vsel %vm2086, %v2071, %v2073
    %v2093 = vsel %vm2086, %v2073, %v2075
    %v2094 = vsel %vm2086, %v2075, %v2077
    %v2095 = vsel %vm2086, %v2077, %v2079
    %v2096 = vsel %vm2086, %v2079, %v2081
    %v2097 = vsel %vm2086, %v2081, %v2083
    %v2098 = vsel %vm2086, %v2083, %v2085
    %2111 = vrot.lane.b32.xlu0 %v47, 46
    %v2112 = vpop.permute.xlu0 %2111
    %vm2114 = vcmask 375808
    %v2115 = vsel %vm2114, %v2098, %v2112
    %2116 = vset.pattern.permute.xlu0 15
    %2117 = vperm.xlu0 %2116, %v36
    %v2118 = vpop.permute.xlu0 %2117
    %v2120 = vlaneseq
    %v2121 = vshrl.u32 %v2120, 7
    %v2122 = vsub.s32 0, %v2121
    %v2123 = vrot.slane %v2087, %v2122
    %v2124 = vlaneseq
    %v2125 = vshrl.u32 %v2124, 7
    %v2126 = vsub.s32 0, %v2125
    %v2127 = vrot.slane %v2088, %v2126
    %v2128 = vlaneseq
    %v2129 = vshrl.u32 %v2128, 7
    %v2130 = vsub.s32 0, %v2129
    %v2131 = vrot.slane %v2089, %v2130
    %v2132 = vlaneseq
    %v2133 = vshrl.u32 %v2132, 7
    %v2134 = vsub.s32 0, %v2133
    %v2135 = vrot.slane %v2090, %v2134
    %v2136 = vlaneseq
    %v2137 = vshrl.u32 %v2136, 7
    %v2138 = vsub.s32 0, %v2137
    %v2139 = vrot.slane %v2091, %v2138
    %v2140 = vlaneseq
    %v2141 = vshrl.u32 %v2140, 7
    %v2142 = vsub.s32 0, %v2141
    %v2143 = vrot.slane %v2092, %v2142
    %v2144 = vlaneseq
    %v2145 = vshrl.u32 %v2144, 7
    %v2146 = vsub.s32 0, %v2145
    %v2147 = vrot.slane %v2093, %v2146
    %v2148 = vlaneseq
    %v2149 = vshrl.u32 %v2148, 7
    %v2150 = vsub.s32 0, %v2149
    %v2151 = vrot.slane %v2094, %v2150
    %v2152 = vlaneseq
    %v2153 = vshrl.u32 %v2152, 7
    %v2154 = vsub.s32 0, %v2153
    %v2155 = vrot.slane %v2095, %v2154
    %v2156 = vlaneseq
    %v2157 = vshrl.u32 %v2156, 7
    %v2158 = vsub.s32 0, %v2157
    %v2159 = vrot.slane %v2096, %v2158
    %v2160 = vlaneseq
    %v2161 = vshrl.u32 %v2160, 7
    %v2162 = vsub.s32 0, %v2161
    %v2163 = vrot.slane %v2097, %v2162
    %v2164 = vlaneseq
    %v2165 = vshrl.u32 %v2164, 7
    %v2166 = vsub.s32 0, %v2165
    %v2167 = vrot.slane %v2115, %v2166
    %v2168 = vlaneseq
    %v2169 = vshrl.u32 %v2168, 7
    %v2170 = vsub.s32 0, %v2169
    %v2171 = vrot.slane %v2112, %v2170
    %v2172 = vmul.f32 %v2118, %v2123
    %v2173 = vmul.f32 %v2118, %v2127
    %v2174 = vmul.f32 %v2118, %v2131
    %v2175 = vmul.f32 %v2118, %v2135
    %v2176 = vmul.f32 %v2118, %v2139
    %v2177 = vmul.f32 %v2118, %v2143
    %v2178 = vmul.f32 %v2118, %v2147
    %v2179 = vmul.f32 %v2118, %v2151
    %v2180 = vmul.f32 %v2118, %v2155
    %v2181 = vmul.f32 %v2118, %v2159
    %v2182 = vmul.f32 %v2118, %v2163
    %v2183 = vmul.f32 %v2118, %v2167
    %v2184 = vmul.f32 %v2118, %v2171
    %v2185 = vadd.f32 %v2047, %v2172
    %v2186 = vadd.f32 %v2048, %v2173
    %v2187 = vadd.f32 %v2049, %v2174
    %v2188 = vadd.f32 %v2050, %v2175
    %v2189 = vadd.f32 %v2051, %v2176
    %v2190 = vadd.f32 %v2052, %v2177
    %v2191 = vadd.f32 %v2053, %v2178
    %v2192 = vadd.f32 %v2054, %v2179
    %v2193 = vadd.f32 %v2055, %v2180
    %v2194 = vadd.f32 %v2056, %v2181
    %v2195 = vadd.f32 %v2057, %v2182
    %v2196 = vadd.f32 %v2058, %v2183
    %v2197 = vadd.f32 %v2059, %v2184
    %2198 = vrot.lane.b32.xlu0 %v47, 12
    %v2199 = vpop.permute.xlu0 %2198
    %2200 = vrot.lane.b32.xlu0 %v51, 12
    %v2201 = vpop.permute.xlu0 %2200
    %2202 = vrot.lane.b32.xlu0 %v55, 12
    %v2203 = vpop.permute.xlu0 %2202
    %2204 = vrot.lane.b32.xlu0 %v59, 12
    %v2205 = vpop.permute.xlu0 %2204
    %2206 = vrot.lane.b32.xlu0 %v63, 12
    %v2207 = vpop.permute.xlu0 %2206
    %2208 = vrot.lane.b32.xlu0 %v67, 12
    %v2209 = vpop.permute.xlu0 %2208
    %2210 = vrot.lane.b32.xlu0 %v71, 12
    %v2211 = vpop.permute.xlu0 %2210
    %2212 = vrot.lane.b32.xlu0 %v75, 12
    %v2213 = vpop.permute.xlu0 %2212
    %2214 = vrot.lane.b32.xlu0 %v79, 12
    %v2215 = vpop.permute.xlu0 %2214
    %2216 = vrot.lane.b32.xlu0 %v83, 12
    %v2217 = vpop.permute.xlu0 %2216
    %2218 = vrot.lane.b32.xlu0 %v87, 12
    %v2219 = vpop.permute.xlu0 %2218
    %2220 = vrot.lane.b32.xlu0 %v91, 12
    %v2221 = vpop.permute.xlu0 %2220
    %2222 = vrot.lane.b32.xlu0 %v95, 12
    %v2223 = vpop.permute.xlu0 %2222
    %vm2224 = vcmask 97280
    %v2225 = vsel %vm2224, %v2199, %v2201
    %v2226 = vsel %vm2224, %v2201, %v2203
    %v2227 = vsel %vm2224, %v2203, %v2205
    %v2228 = vsel %vm2224, %v2205, %v2207
    %v2229 = vsel %vm2224, %v2207, %v2209
    %v2230 = vsel %vm2224, %v2209, %v2211
    %v2231 = vsel %vm2224, %v2211, %v2213
    %v2232 = vsel %vm2224, %v2213, %v2215
    %v2233 = vsel %vm2224, %v2215, %v2217
    %v2234 = vsel %vm2224, %v2217, %v2219
    %v2235 = vsel %vm2224, %v2219, %v2221
    %v2236 = vsel %vm2224, %v2221, %v2223
    %2249 = vrot.lane.b32.xlu0 %v47, 44
    %v2250 = vpop.permute.xlu0 %2249
    %vm2252 = vcmask 359424
    %v2253 = vsel %vm2252, %v2236, %v2250
    %2254 = vset.pattern.permute.xlu0 16
    %2255 = vperm.xlu0 %2254, %v36
    %v2256 = vpop.permute.xlu0 %2255
    %v2258 = vlaneseq
    %v2259 = vshrl.u32 %v2258, 7
    %v2260 = vsub.s32 0, %v2259
    %v2261 = vrot.slane %v2225, %v2260
    %v2262 = vlaneseq
    %v2263 = vshrl.u32 %v2262, 7
    %v2264 = vsub.s32 0, %v2263
    %v2265 = vrot.slane %v2226, %v2264
    %v2266 = vlaneseq
    %v2267 = vshrl.u32 %v2266, 7
    %v2268 = vsub.s32 0, %v2267
    %v2269 = vrot.slane %v2227, %v2268
    %v2270 = vlaneseq
    %v2271 = vshrl.u32 %v2270, 7
    %v2272 = vsub.s32 0, %v2271
    %v2273 = vrot.slane %v2228, %v2272
    %v2274 = vlaneseq
    %v2275 = vshrl.u32 %v2274, 7
    %v2276 = vsub.s32 0, %v2275
    %v2277 = vrot.slane %v2229, %v2276
    %v2278 = vlaneseq
    %v2279 = vshrl.u32 %v2278, 7
    %v2280 = vsub.s32 0, %v2279
    %v2281 = vrot.slane %v2230, %v2280
    %v2282 = vlaneseq
    %v2283 = vshrl.u32 %v2282, 7
    %v2284 = vsub.s32 0, %v2283
    %v2285 = vrot.slane %v2231, %v2284
    %v2286 = vlaneseq
    %v2287 = vshrl.u32 %v2286, 7
    %v2288 = vsub.s32 0, %v2287
    %v2289 = vrot.slane %v2232, %v2288
    %v2290 = vlaneseq
    %v2291 = vshrl.u32 %v2290, 7
    %v2292 = vsub.s32 0, %v2291
    %v2293 = vrot.slane %v2233, %v2292
    %v2294 = vlaneseq
    %v2295 = vshrl.u32 %v2294, 7
    %v2296 = vsub.s32 0, %v2295
    %v2297 = vrot.slane %v2234, %v2296
    %v2298 = vlaneseq
    %v2299 = vshrl.u32 %v2298, 7
    %v2300 = vsub.s32 0, %v2299
    %v2301 = vrot.slane %v2235, %v2300
    %v2302 = vlaneseq
    %v2303 = vshrl.u32 %v2302, 7
    %v2304 = vsub.s32 0, %v2303
    %v2305 = vrot.slane %v2253, %v2304
    %v2306 = vlaneseq
    %v2307 = vshrl.u32 %v2306, 7
    %v2308 = vsub.s32 0, %v2307
    %v2309 = vrot.slane %v2250, %v2308
    %v2310 = vmul.f32 %v2256, %v2261
    %v2311 = vmul.f32 %v2256, %v2265
    %v2312 = vmul.f32 %v2256, %v2269
    %v2313 = vmul.f32 %v2256, %v2273
    %v2314 = vmul.f32 %v2256, %v2277
    %v2315 = vmul.f32 %v2256, %v2281
    %v2316 = vmul.f32 %v2256, %v2285
    %v2317 = vmul.f32 %v2256, %v2289
    %v2318 = vmul.f32 %v2256, %v2293
    %v2319 = vmul.f32 %v2256, %v2297
    %v2320 = vmul.f32 %v2256, %v2301
    %v2321 = vmul.f32 %v2256, %v2305
    %v2322 = vmul.f32 %v2256, %v2309
    %v2323 = vadd.f32 %v2185, %v2310
    %v2324 = vadd.f32 %v2186, %v2311
    %v2325 = vadd.f32 %v2187, %v2312
    %v2326 = vadd.f32 %v2188, %v2313
    %v2327 = vadd.f32 %v2189, %v2314
    %v2328 = vadd.f32 %v2190, %v2315
    %v2329 = vadd.f32 %v2191, %v2316
    %v2330 = vadd.f32 %v2192, %v2317
    %v2331 = vadd.f32 %v2193, %v2318
    %v2332 = vadd.f32 %v2194, %v2319
    %v2333 = vadd.f32 %v2195, %v2320
    %v2334 = vadd.f32 %v2196, %v2321
    %v2335 = vadd.f32 %v2197, %v2322
    %2336 = vrot.lane.b32.xlu0 %v47, 10
    %v2337 = vpop.permute.xlu0 %2336
    %2338 = vrot.lane.b32.xlu0 %v51, 10
    %v2339 = vpop.permute.xlu0 %2338
    %2340 = vrot.lane.b32.xlu0 %v55, 10
    %v2341 = vpop.permute.xlu0 %2340
    %2342 = vrot.lane.b32.xlu0 %v59, 10
    %v2343 = vpop.permute.xlu0 %2342
    %2344 = vrot.lane.b32.xlu0 %v63, 10
    %v2345 = vpop.permute.xlu0 %2344
    %2346 = vrot.lane.b32.xlu0 %v67, 10
    %v2347 = vpop.permute.xlu0 %2346
    %2348 = vrot.lane.b32.xlu0 %v71, 10
    %v2349 = vpop.permute.xlu0 %2348
    %2350 = vrot.lane.b32.xlu0 %v75, 10
    %v2351 = vpop.permute.xlu0 %2350
    %2352 = vrot.lane.b32.xlu0 %v79, 10
    %v2353 = vpop.permute.xlu0 %2352
    %2354 = vrot.lane.b32.xlu0 %v83, 10
    %v2355 = vpop.permute.xlu0 %2354
    %2356 = vrot.lane.b32.xlu0 %v87, 10
    %v2357 = vpop.permute.xlu0 %2356
    %2358 = vrot.lane.b32.xlu0 %v91, 10
    %v2359 = vpop.permute.xlu0 %2358
    %2360 = vrot.lane.b32.xlu0 %v95, 10
    %v2361 = vpop.permute.xlu0 %2360
    %vm2362 = vcmask 80896
    %v2363 = vsel %vm2362, %v2337, %v2339
    %v2364 = vsel %vm2362, %v2339, %v2341
    %v2365 = vsel %vm2362, %v2341, %v2343
    %v2366 = vsel %vm2362, %v2343, %v2345
    %v2367 = vsel %vm2362, %v2345, %v2347
    %v2368 = vsel %vm2362, %v2347, %v2349
    %v2369 = vsel %vm2362, %v2349, %v2351
    %v2370 = vsel %vm2362, %v2351, %v2353
    %v2371 = vsel %vm2362, %v2353, %v2355
    %v2372 = vsel %vm2362, %v2355, %v2357
    %v2373 = vsel %vm2362, %v2357, %v2359
    %v2374 = vsel %vm2362, %v2359, %v2361
    %2387 = vrot.lane.b32.xlu0 %v47, 42
    %v2388 = vpop.permute.xlu0 %2387
    %vm2390 = vcmask 343040
    %v2391 = vsel %vm2390, %v2374, %v2388
    %2392 = vset.pattern.permute.xlu0 17
    %2393 = vperm.xlu0 %2392, %v36
    %v2394 = vpop.permute.xlu0 %2393
    %v2396 = vlaneseq
    %v2397 = vshrl.u32 %v2396, 7
    %v2398 = vsub.s32 0, %v2397
    %v2399 = vrot.slane %v2363, %v2398
    %v2400 = vlaneseq
    %v2401 = vshrl.u32 %v2400, 7
    %v2402 = vsub.s32 0, %v2401
    %v2403 = vrot.slane %v2364, %v2402
    %v2404 = vlaneseq
    %v2405 = vshrl.u32 %v2404, 7
    %v2406 = vsub.s32 0, %v2405
    %v2407 = vrot.slane %v2365, %v2406
    %v2408 = vlaneseq
    %v2409 = vshrl.u32 %v2408, 7
    %v2410 = vsub.s32 0, %v2409
    %v2411 = vrot.slane %v2366, %v2410
    %v2412 = vlaneseq
    %v2413 = vshrl.u32 %v2412, 7
    %v2414 = vsub.s32 0, %v2413
    %v2415 = vrot.slane %v2367, %v2414
    %v2416 = vlaneseq
    %v2417 = vshrl.u32 %v2416, 7
    %v2418 = vsub.s32 0, %v2417
    %v2419 = vrot.slane %v2368, %v2418
    %v2420 = vlaneseq
    %v2421 = vshrl.u32 %v2420, 7
    %v2422 = vsub.s32 0, %v2421
    %v2423 = vrot.slane %v2369, %v2422
    %v2424 = vlaneseq
    %v2425 = vshrl.u32 %v2424, 7
    %v2426 = vsub.s32 0, %v2425
    %v2427 = vrot.slane %v2370, %v2426
    %v2428 = vlaneseq
    %v2429 = vshrl.u32 %v2428, 7
    %v2430 = vsub.s32 0, %v2429
    %v2431 = vrot.slane %v2371, %v2430
    %v2432 = vlaneseq
    %v2433 = vshrl.u32 %v2432, 7
    %v2434 = vsub.s32 0, %v2433
    %v2435 = vrot.slane %v2372, %v2434
    %v2436 = vlaneseq
    %v2437 = vshrl.u32 %v2436, 7
    %v2438 = vsub.s32 0, %v2437
    %v2439 = vrot.slane %v2373, %v2438
    %v2440 = vlaneseq
    %v2441 = vshrl.u32 %v2440, 7
    %v2442 = vsub.s32 0, %v2441
    %v2443 = vrot.slane %v2391, %v2442
    %v2444 = vlaneseq
    %v2445 = vshrl.u32 %v2444, 7
    %v2446 = vsub.s32 0, %v2445
    %v2447 = vrot.slane %v2388, %v2446
    %v2448 = vmul.f32 %v2394, %v2399
    %v2449 = vmul.f32 %v2394, %v2403
    %v2450 = vmul.f32 %v2394, %v2407
    %v2451 = vmul.f32 %v2394, %v2411
    %v2452 = vmul.f32 %v2394, %v2415
    %v2453 = vmul.f32 %v2394, %v2419
    %v2454 = vmul.f32 %v2394, %v2423
    %v2455 = vmul.f32 %v2394, %v2427
    %v2456 = vmul.f32 %v2394, %v2431
    %v2457 = vmul.f32 %v2394, %v2435
    %v2458 = vmul.f32 %v2394, %v2439
    %v2459 = vmul.f32 %v2394, %v2443
    %v2460 = vmul.f32 %v2394, %v2447
    %v2461 = vadd.f32 %v2323, %v2448
    %v2462 = vadd.f32 %v2324, %v2449
    %v2463 = vadd.f32 %v2325, %v2450
    %v2464 = vadd.f32 %v2326, %v2451
    %v2465 = vadd.f32 %v2327, %v2452
    %v2466 = vadd.f32 %v2328, %v2453
    %v2467 = vadd.f32 %v2329, %v2454
    %v2468 = vadd.f32 %v2330, %v2455
    %v2469 = vadd.f32 %v2331, %v2456
    %v2470 = vadd.f32 %v2332, %v2457
    %v2471 = vadd.f32 %v2333, %v2458
    %v2472 = vadd.f32 %v2334, %v2459
    %v2473 = vadd.f32 %v2335, %v2460
    %2474 = vrot.lane.b32.xlu0 %v47, 8
    %v2475 = vpop.permute.xlu0 %2474
    %2476 = vrot.lane.b32.xlu0 %v51, 8
    %v2477 = vpop.permute.xlu0 %2476
    %2478 = vrot.lane.b32.xlu0 %v55, 8
    %v2479 = vpop.permute.xlu0 %2478
    %2480 = vrot.lane.b32.xlu0 %v59, 8
    %v2481 = vpop.permute.xlu0 %2480
    %2482 = vrot.lane.b32.xlu0 %v63, 8
    %v2483 = vpop.permute.xlu0 %2482
    %2484 = vrot.lane.b32.xlu0 %v67, 8
    %v2485 = vpop.permute.xlu0 %2484
    %2486 = vrot.lane.b32.xlu0 %v71, 8
    %v2487 = vpop.permute.xlu0 %2486
    %2488 = vrot.lane.b32.xlu0 %v75, 8
    %v2489 = vpop.permute.xlu0 %2488
    %2490 = vrot.lane.b32.xlu0 %v79, 8
    %v2491 = vpop.permute.xlu0 %2490
    %2492 = vrot.lane.b32.xlu0 %v83, 8
    %v2493 = vpop.permute.xlu0 %2492
    %2494 = vrot.lane.b32.xlu0 %v87, 8
    %v2495 = vpop.permute.xlu0 %2494
    %2496 = vrot.lane.b32.xlu0 %v91, 8
    %v2497 = vpop.permute.xlu0 %2496
    %2498 = vrot.lane.b32.xlu0 %v95, 8
    %v2499 = vpop.permute.xlu0 %2498
    %vm2500 = vcmask 64512
    %v2501 = vsel %vm2500, %v2475, %v2477
    %v2502 = vsel %vm2500, %v2477, %v2479
    %v2503 = vsel %vm2500, %v2479, %v2481
    %v2504 = vsel %vm2500, %v2481, %v2483
    %v2505 = vsel %vm2500, %v2483, %v2485
    %v2506 = vsel %vm2500, %v2485, %v2487
    %v2507 = vsel %vm2500, %v2487, %v2489
    %v2508 = vsel %vm2500, %v2489, %v2491
    %v2509 = vsel %vm2500, %v2491, %v2493
    %v2510 = vsel %vm2500, %v2493, %v2495
    %v2511 = vsel %vm2500, %v2495, %v2497
    %v2512 = vsel %vm2500, %v2497, %v2499
    %2525 = vrot.lane.b32.xlu0 %v47, 40
    %v2526 = vpop.permute.xlu0 %2525
    %vm2528 = vcmask 326656
    %v2529 = vsel %vm2528, %v2512, %v2526
    %2530 = vset.pattern.permute.xlu0 18
    %2531 = vperm.xlu0 %2530, %v36
    %v2532 = vpop.permute.xlu0 %2531
    %v2534 = vlaneseq
    %v2535 = vshrl.u32 %v2534, 7
    %v2536 = vsub.s32 0, %v2535
    %v2537 = vrot.slane %v2501, %v2536
    %v2538 = vlaneseq
    %v2539 = vshrl.u32 %v2538, 7
    %v2540 = vsub.s32 0, %v2539
    %v2541 = vrot.slane %v2502, %v2540
    %v2542 = vlaneseq
    %v2543 = vshrl.u32 %v2542, 7
    %v2544 = vsub.s32 0, %v2543
    %v2545 = vrot.slane %v2503, %v2544
    %v2546 = vlaneseq
    %v2547 = vshrl.u32 %v2546, 7
    %v2548 = vsub.s32 0, %v2547
    %v2549 = vrot.slane %v2504, %v2548
    %v2550 = vlaneseq
    %v2551 = vshrl.u32 %v2550, 7
    %v2552 = vsub.s32 0, %v2551
    %v2553 = vrot.slane %v2505, %v2552
    %v2554 = vlaneseq
    %v2555 = vshrl.u32 %v2554, 7
    %v2556 = vsub.s32 0, %v2555
    %v2557 = vrot.slane %v2506, %v2556
    %v2558 = vlaneseq
    %v2559 = vshrl.u32 %v2558, 7
    %v2560 = vsub.s32 0, %v2559
    %v2561 = vrot.slane %v2507, %v2560
    %v2562 = vlaneseq
    %v2563 = vshrl.u32 %v2562, 7
    %v2564 = vsub.s32 0, %v2563
    %v2565 = vrot.slane %v2508, %v2564
    %v2566 = vlaneseq
    %v2567 = vshrl.u32 %v2566, 7
    %v2568 = vsub.s32 0, %v2567
    %v2569 = vrot.slane %v2509, %v2568
    %v2570 = vlaneseq
    %v2571 = vshrl.u32 %v2570, 7
    %v2572 = vsub.s32 0, %v2571
    %v2573 = vrot.slane %v2510, %v2572
    %v2574 = vlaneseq
    %v2575 = vshrl.u32 %v2574, 7
    %v2576 = vsub.s32 0, %v2575
    %v2577 = vrot.slane %v2511, %v2576
    %v2578 = vlaneseq
    %v2579 = vshrl.u32 %v2578, 7
    %v2580 = vsub.s32 0, %v2579
    %v2581 = vrot.slane %v2529, %v2580
    %v2582 = vlaneseq
    %v2583 = vshrl.u32 %v2582, 7
    %v2584 = vsub.s32 0, %v2583
    %v2585 = vrot.slane %v2526, %v2584
    %v2586 = vmul.f32 %v2532, %v2537
    %v2587 = vmul.f32 %v2532, %v2541
    %v2588 = vmul.f32 %v2532, %v2545
    %v2589 = vmul.f32 %v2532, %v2549
    %v2590 = vmul.f32 %v2532, %v2553
    %v2591 = vmul.f32 %v2532, %v2557
    %v2592 = vmul.f32 %v2532, %v2561
    %v2593 = vmul.f32 %v2532, %v2565
    %v2594 = vmul.f32 %v2532, %v2569
    %v2595 = vmul.f32 %v2532, %v2573
    %v2596 = vmul.f32 %v2532, %v2577
    %v2597 = vmul.f32 %v2532, %v2581
    %v2598 = vmul.f32 %v2532, %v2585
    %v2599 = vadd.f32 %v2461, %v2586
    %v2600 = vadd.f32 %v2462, %v2587
    %v2601 = vadd.f32 %v2463, %v2588
    %v2602 = vadd.f32 %v2464, %v2589
    %v2603 = vadd.f32 %v2465, %v2590
    %v2604 = vadd.f32 %v2466, %v2591
    %v2605 = vadd.f32 %v2467, %v2592
    %v2606 = vadd.f32 %v2468, %v2593
    %v2607 = vadd.f32 %v2469, %v2594
    %v2608 = vadd.f32 %v2470, %v2595
    %v2609 = vadd.f32 %v2471, %v2596
    %v2610 = vadd.f32 %v2472, %v2597
    %v2611 = vadd.f32 %v2473, %v2598
    %2612 = vrot.lane.b32.xlu0 %v47, 6
    %v2613 = vpop.permute.xlu0 %2612
    %2614 = vrot.lane.b32.xlu0 %v51, 6
    %v2615 = vpop.permute.xlu0 %2614
    %2616 = vrot.lane.b32.xlu0 %v55, 6
    %v2617 = vpop.permute.xlu0 %2616
    %2618 = vrot.lane.b32.xlu0 %v59, 6
    %v2619 = vpop.permute.xlu0 %2618
    %2620 = vrot.lane.b32.xlu0 %v63, 6
    %v2621 = vpop.permute.xlu0 %2620
    %2622 = vrot.lane.b32.xlu0 %v67, 6
    %v2623 = vpop.permute.xlu0 %2622
    %2624 = vrot.lane.b32.xlu0 %v71, 6
    %v2625 = vpop.permute.xlu0 %2624
    %2626 = vrot.lane.b32.xlu0 %v75, 6
    %v2627 = vpop.permute.xlu0 %2626
    %2628 = vrot.lane.b32.xlu0 %v79, 6
    %v2629 = vpop.permute.xlu0 %2628
    %2630 = vrot.lane.b32.xlu0 %v83, 6
    %v2631 = vpop.permute.xlu0 %2630
    %2632 = vrot.lane.b32.xlu0 %v87, 6
    %v2633 = vpop.permute.xlu0 %2632
    %2634 = vrot.lane.b32.xlu0 %v91, 6
    %v2635 = vpop.permute.xlu0 %2634
    %2636 = vrot.lane.b32.xlu0 %v95, 6
    %v2637 = vpop.permute.xlu0 %2636
    %vm2638 = vcmask 48128
    %v2639 = vsel %vm2638, %v2613, %v2615
    %v2640 = vsel %vm2638, %v2615, %v2617
    %v2641 = vsel %vm2638, %v2617, %v2619
    %v2642 = vsel %vm2638, %v2619, %v2621
    %v2643 = vsel %vm2638, %v2621, %v2623
    %v2644 = vsel %vm2638, %v2623, %v2625
    %v2645 = vsel %vm2638, %v2625, %v2627
    %v2646 = vsel %vm2638, %v2627, %v2629
    %v2647 = vsel %vm2638, %v2629, %v2631
    %v2648 = vsel %vm2638, %v2631, %v2633
    %v2649 = vsel %vm2638, %v2633, %v2635
    %v2650 = vsel %vm2638, %v2635, %v2637
    %2663 = vrot.lane.b32.xlu0 %v47, 38
    %v2664 = vpop.permute.xlu0 %2663
    %vm2666 = vcmask 310272
    %v2667 = vsel %vm2666, %v2650, %v2664
    %2668 = vset.pattern.permute.xlu0 19
    %2669 = vperm.xlu0 %2668, %v36
    %v2670 = vpop.permute.xlu0 %2669
    %v2672 = vlaneseq
    %v2673 = vshrl.u32 %v2672, 7
    %v2674 = vsub.s32 0, %v2673
    %v2675 = vrot.slane %v2639, %v2674
    %v2676 = vlaneseq
    %v2677 = vshrl.u32 %v2676, 7
    %v2678 = vsub.s32 0, %v2677
    %v2679 = vrot.slane %v2640, %v2678
    %v2680 = vlaneseq
    %v2681 = vshrl.u32 %v2680, 7
    %v2682 = vsub.s32 0, %v2681
    %v2683 = vrot.slane %v2641, %v2682
    %v2684 = vlaneseq
    %v2685 = vshrl.u32 %v2684, 7
    %v2686 = vsub.s32 0, %v2685
    %v2687 = vrot.slane %v2642, %v2686
    %v2688 = vlaneseq
    %v2689 = vshrl.u32 %v2688, 7
    %v2690 = vsub.s32 0, %v2689
    %v2691 = vrot.slane %v2643, %v2690
    %v2692 = vlaneseq
    %v2693 = vshrl.u32 %v2692, 7
    %v2694 = vsub.s32 0, %v2693
    %v2695 = vrot.slane %v2644, %v2694
    %v2696 = vlaneseq
    %v2697 = vshrl.u32 %v2696, 7
    %v2698 = vsub.s32 0, %v2697
    %v2699 = vrot.slane %v2645, %v2698
    %v2700 = vlaneseq
    %v2701 = vshrl.u32 %v2700, 7
    %v2702 = vsub.s32 0, %v2701
    %v2703 = vrot.slane %v2646, %v2702
    %v2704 = vlaneseq
    %v2705 = vshrl.u32 %v2704, 7
    %v2706 = vsub.s32 0, %v2705
    %v2707 = vrot.slane %v2647, %v2706
    %v2708 = vlaneseq
    %v2709 = vshrl.u32 %v2708, 7
    %v2710 = vsub.s32 0, %v2709
    %v2711 = vrot.slane %v2648, %v2710
    %v2712 = vlaneseq
    %v2713 = vshrl.u32 %v2712, 7
    %v2714 = vsub.s32 0, %v2713
    %v2715 = vrot.slane %v2649, %v2714
    %v2716 = vlaneseq
    %v2717 = vshrl.u32 %v2716, 7
    %v2718 = vsub.s32 0, %v2717
    %v2719 = vrot.slane %v2667, %v2718
    %v2720 = vlaneseq
    %v2721 = vshrl.u32 %v2720, 7
    %v2722 = vsub.s32 0, %v2721
    %v2723 = vrot.slane %v2664, %v2722
    %v2724 = vmul.f32 %v2670, %v2675
    %v2725 = vmul.f32 %v2670, %v2679
    %v2726 = vmul.f32 %v2670, %v2683
    %v2727 = vmul.f32 %v2670, %v2687
    %v2728 = vmul.f32 %v2670, %v2691
    %v2729 = vmul.f32 %v2670, %v2695
    %v2730 = vmul.f32 %v2670, %v2699
    %v2731 = vmul.f32 %v2670, %v2703
    %v2732 = vmul.f32 %v2670, %v2707
    %v2733 = vmul.f32 %v2670, %v2711
    %v2734 = vmul.f32 %v2670, %v2715
    %v2735 = vmul.f32 %v2670, %v2719
    %v2736 = vmul.f32 %v2670, %v2723
    %v2737 = vadd.f32 %v2599, %v2724
    %v2738 = vadd.f32 %v2600, %v2725
    %v2739 = vadd.f32 %v2601, %v2726
    %v2740 = vadd.f32 %v2602, %v2727
    %v2741 = vadd.f32 %v2603, %v2728
    %v2742 = vadd.f32 %v2604, %v2729
    %v2743 = vadd.f32 %v2605, %v2730
    %v2744 = vadd.f32 %v2606, %v2731
    %v2745 = vadd.f32 %v2607, %v2732
    %v2746 = vadd.f32 %v2608, %v2733
    %v2747 = vadd.f32 %v2609, %v2734
    %v2748 = vadd.f32 %v2610, %v2735
    %v2749 = vadd.f32 %v2611, %v2736
    %2750 = vrot.lane.b32.xlu0 %v47, 4
    %v2751 = vpop.permute.xlu0 %2750
    %2752 = vrot.lane.b32.xlu0 %v51, 4
    %v2753 = vpop.permute.xlu0 %2752
    %2754 = vrot.lane.b32.xlu0 %v55, 4
    %v2755 = vpop.permute.xlu0 %2754
    %2756 = vrot.lane.b32.xlu0 %v59, 4
    %v2757 = vpop.permute.xlu0 %2756
    %2758 = vrot.lane.b32.xlu0 %v63, 4
    %v2759 = vpop.permute.xlu0 %2758
    %2760 = vrot.lane.b32.xlu0 %v67, 4
    %v2761 = vpop.permute.xlu0 %2760
    %2762 = vrot.lane.b32.xlu0 %v71, 4
    %v2763 = vpop.permute.xlu0 %2762
    %2764 = vrot.lane.b32.xlu0 %v75, 4
    %v2765 = vpop.permute.xlu0 %2764
    %2766 = vrot.lane.b32.xlu0 %v79, 4
    %v2767 = vpop.permute.xlu0 %2766
    %2768 = vrot.lane.b32.xlu0 %v83, 4
    %v2769 = vpop.permute.xlu0 %2768
    %2770 = vrot.lane.b32.xlu0 %v87, 4
    %v2771 = vpop.permute.xlu0 %2770
    %2772 = vrot.lane.b32.xlu0 %v91, 4
    %v2773 = vpop.permute.xlu0 %2772
    %2774 = vrot.lane.b32.xlu0 %v95, 4
    %v2775 = vpop.permute.xlu0 %2774
    %vm2776 = vcmask 31744
    %v2777 = vsel %vm2776, %v2751, %v2753
    %v2778 = vsel %vm2776, %v2753, %v2755
    %v2779 = vsel %vm2776, %v2755, %v2757
    %v2780 = vsel %vm2776, %v2757, %v2759
    %v2781 = vsel %vm2776, %v2759, %v2761
    %v2782 = vsel %vm2776, %v2761, %v2763
    %v2783 = vsel %vm2776, %v2763, %v2765
    %v2784 = vsel %vm2776, %v2765, %v2767
    %v2785 = vsel %vm2776, %v2767, %v2769
    %v2786 = vsel %vm2776, %v2769, %v2771
    %v2787 = vsel %vm2776, %v2771, %v2773
    %v2788 = vsel %vm2776, %v2773, %v2775
    %2801 = vrot.lane.b32.xlu0 %v47, 36
    %v2802 = vpop.permute.xlu0 %2801
    %vm2804 = vcmask 293888
    %v2805 = vsel %vm2804, %v2788, %v2802
    %2806 = vset.pattern.permute.xlu0 20
    %2807 = vperm.xlu0 %2806, %v36
    %v2808 = vpop.permute.xlu0 %2807
    %v2810 = vlaneseq
    %v2811 = vshrl.u32 %v2810, 7
    %v2812 = vsub.s32 0, %v2811
    %v2813 = vrot.slane %v2777, %v2812
    %v2814 = vlaneseq
    %v2815 = vshrl.u32 %v2814, 7
    %v2816 = vsub.s32 0, %v2815
    %v2817 = vrot.slane %v2778, %v2816
    %v2818 = vlaneseq
    %v2819 = vshrl.u32 %v2818, 7
    %v2820 = vsub.s32 0, %v2819
    %v2821 = vrot.slane %v2779, %v2820
    %v2822 = vlaneseq
    %v2823 = vshrl.u32 %v2822, 7
    %v2824 = vsub.s32 0, %v2823
    %v2825 = vrot.slane %v2780, %v2824
    %v2826 = vlaneseq
    %v2827 = vshrl.u32 %v2826, 7
    %v2828 = vsub.s32 0, %v2827
    %v2829 = vrot.slane %v2781, %v2828
    %v2830 = vlaneseq
    %v2831 = vshrl.u32 %v2830, 7
    %v2832 = vsub.s32 0, %v2831
    %v2833 = vrot.slane %v2782, %v2832
    %v2834 = vlaneseq
    %v2835 = vshrl.u32 %v2834, 7
    %v2836 = vsub.s32 0, %v2835
    %v2837 = vrot.slane %v2783, %v2836
    %v2838 = vlaneseq
    %v2839 = vshrl.u32 %v2838, 7
    %v2840 = vsub.s32 0, %v2839
    %v2841 = vrot.slane %v2784, %v2840
    %v2842 = vlaneseq
    %v2843 = vshrl.u32 %v2842, 7
    %v2844 = vsub.s32 0, %v2843
    %v2845 = vrot.slane %v2785, %v2844
    %v2846 = vlaneseq
    %v2847 = vshrl.u32 %v2846, 7
    %v2848 = vsub.s32 0, %v2847
    %v2849 = vrot.slane %v2786, %v2848
    %v2850 = vlaneseq
    %v2851 = vshrl.u32 %v2850, 7
    %v2852 = vsub.s32 0, %v2851
    %v2853 = vrot.slane %v2787, %v2852
    %v2854 = vlaneseq
    %v2855 = vshrl.u32 %v2854, 7
    %v2856 = vsub.s32 0, %v2855
    %v2857 = vrot.slane %v2805, %v2856
    %v2858 = vlaneseq
    %v2859 = vshrl.u32 %v2858, 7
    %v2860 = vsub.s32 0, %v2859
    %v2861 = vrot.slane %v2802, %v2860
    %v2862 = vmul.f32 %v2808, %v2813
    %v2863 = vmul.f32 %v2808, %v2817
    %v2864 = vmul.f32 %v2808, %v2821
    %v2865 = vmul.f32 %v2808, %v2825
    %v2866 = vmul.f32 %v2808, %v2829
    %v2867 = vmul.f32 %v2808, %v2833
    %v2868 = vmul.f32 %v2808, %v2837
    %v2869 = vmul.f32 %v2808, %v2841
    %v2870 = vmul.f32 %v2808, %v2845
    %v2871 = vmul.f32 %v2808, %v2849
    %v2872 = vmul.f32 %v2808, %v2853
    %v2873 = vmul.f32 %v2808, %v2857
    %v2874 = vmul.f32 %v2808, %v2861
    %v2875 = vadd.f32 %v2737, %v2862
    %v2876 = vadd.f32 %v2738, %v2863
    %v2877 = vadd.f32 %v2739, %v2864
    %v2878 = vadd.f32 %v2740, %v2865
    %v2879 = vadd.f32 %v2741, %v2866
    %v2880 = vadd.f32 %v2742, %v2867
    %v2881 = vadd.f32 %v2743, %v2868
    %v2882 = vadd.f32 %v2744, %v2869
    %v2883 = vadd.f32 %v2745, %v2870
    %v2884 = vadd.f32 %v2746, %v2871
    %v2885 = vadd.f32 %v2747, %v2872
    %v2886 = vadd.f32 %v2748, %v2873
    %v2887 = vadd.f32 %v2749, %v2874
    %2888 = vrot.lane.b32.xlu0 %v51, 88
    %v2889 = vpop.permute.xlu0 %2888
    %2890 = vrot.lane.b32.xlu0 %v55, 88
    %v2891 = vpop.permute.xlu0 %2890
    %2892 = vrot.lane.b32.xlu0 %v59, 88
    %v2893 = vpop.permute.xlu0 %2892
    %2894 = vrot.lane.b32.xlu0 %v63, 88
    %v2895 = vpop.permute.xlu0 %2894
    %2896 = vrot.lane.b32.xlu0 %v67, 88
    %v2897 = vpop.permute.xlu0 %2896
    %2898 = vrot.lane.b32.xlu0 %v71, 88
    %v2899 = vpop.permute.xlu0 %2898
    %2900 = vrot.lane.b32.xlu0 %v75, 88
    %v2901 = vpop.permute.xlu0 %2900
    %2902 = vrot.lane.b32.xlu0 %v79, 88
    %v2903 = vpop.permute.xlu0 %2902
    %2904 = vrot.lane.b32.xlu0 %v83, 88
    %v2905 = vpop.permute.xlu0 %2904
    %2906 = vrot.lane.b32.xlu0 %v87, 88
    %v2907 = vpop.permute.xlu0 %2906
    %2908 = vrot.lane.b32.xlu0 %v91, 88
    %v2909 = vpop.permute.xlu0 %2908
    %2910 = vrot.lane.b32.xlu0 %v95, 88
    %v2911 = vpop.permute.xlu0 %2910
    %vm2912 = vcmask 719872
    %v2913 = vsel %vm2912, %v2889, %v2891
    %v2914 = vsel %vm2912, %v2891, %v2893
    %v2915 = vsel %vm2912, %v2893, %v2895
    %v2916 = vsel %vm2912, %v2895, %v2897
    %v2917 = vsel %vm2912, %v2897, %v2899
    %v2918 = vsel %vm2912, %v2899, %v2901
    %v2919 = vsel %vm2912, %v2901, %v2903
    %v2920 = vsel %vm2912, %v2903, %v2905
    %v2921 = vsel %vm2912, %v2905, %v2907
    %v2922 = vsel %vm2912, %v2907, %v2909
    %v2923 = vsel %vm2912, %v2909, %v2911
    %v2937 = vsel %vm565, %v2923, %v540
    %2938 = vset.pattern.permute.xlu0 21
    %2939 = vperm.xlu0 %2938, %v36
    %v2940 = vpop.permute.xlu0 %2939
    %v2942 = vlaneseq
    %v2943 = vshrl.u32 %v2942, 7
    %v2944 = vsub.s32 0, %v2943
    %v2945 = vrot.slane %v2913, %v2944
    %v2946 = vlaneseq
    %v2947 = vshrl.u32 %v2946, 7
    %v2948 = vsub.s32 0, %v2947
    %v2949 = vrot.slane %v2914, %v2948
    %v2950 = vlaneseq
    %v2951 = vshrl.u32 %v2950, 7
    %v2952 = vsub.s32 0, %v2951
    %v2953 = vrot.slane %v2915, %v2952
    %v2954 = vlaneseq
    %v2955 = vshrl.u32 %v2954, 7
    %v2956 = vsub.s32 0, %v2955
    %v2957 = vrot.slane %v2916, %v2956
    %v2958 = vlaneseq
    %v2959 = vshrl.u32 %v2958, 7
    %v2960 = vsub.s32 0, %v2959
    %v2961 = vrot.slane %v2917, %v2960
    %v2962 = vlaneseq
    %v2963 = vshrl.u32 %v2962, 7
    %v2964 = vsub.s32 0, %v2963
    %v2965 = vrot.slane %v2918, %v2964
    %v2966 = vlaneseq
    %v2967 = vshrl.u32 %v2966, 7
    %v2968 = vsub.s32 0, %v2967
    %v2969 = vrot.slane %v2919, %v2968
    %v2970 = vlaneseq
    %v2971 = vshrl.u32 %v2970, 7
    %v2972 = vsub.s32 0, %v2971
    %v2973 = vrot.slane %v2920, %v2972
    %v2974 = vlaneseq
    %v2975 = vshrl.u32 %v2974, 7
    %v2976 = vsub.s32 0, %v2975
    %v2977 = vrot.slane %v2921, %v2976
    %v2978 = vlaneseq
    %v2979 = vshrl.u32 %v2978, 7
    %v2980 = vsub.s32 0, %v2979
    %v2981 = vrot.slane %v2922, %v2980
    %v2982 = vlaneseq
    %v2983 = vshrl.u32 %v2982, 7
    %v2984 = vsub.s32 0, %v2983
    %v2985 = vrot.slane %v2937, %v2984
    %v2986 = vlaneseq
    %v2987 = vshrl.u32 %v2986, 7
    %v2988 = vsub.s32 0, %v2987
    %v2989 = vrot.slane %v542, %v2988
    %v2990 = vmul.f32 %v2940, %v2945
    %v2991 = vmul.f32 %v2940, %v2949
    %v2992 = vmul.f32 %v2940, %v2953
    %v2993 = vmul.f32 %v2940, %v2957
    %v2994 = vmul.f32 %v2940, %v2961
    %v2995 = vmul.f32 %v2940, %v2965
    %v2996 = vmul.f32 %v2940, %v2969
    %v2997 = vmul.f32 %v2940, %v2973
    %v2998 = vmul.f32 %v2940, %v2977
    %v2999 = vmul.f32 %v2940, %v2981
    %v3000 = vmul.f32 %v2940, %v2985
    %v3001 = vmul.f32 %v2940, %v603
    %v3002 = vmul.f32 %v2940, %v2989
    %v3003 = vadd.f32 %v2875, %v2990
    %v3004 = vadd.f32 %v2876, %v2991
    %v3005 = vadd.f32 %v2877, %v2992
    %v3006 = vadd.f32 %v2878, %v2993
    %v3007 = vadd.f32 %v2879, %v2994
    %v3008 = vadd.f32 %v2880, %v2995
    %v3009 = vadd.f32 %v2881, %v2996
    %v3010 = vadd.f32 %v2882, %v2997
    %v3011 = vadd.f32 %v2883, %v2998
    %v3012 = vadd.f32 %v2884, %v2999
    %v3013 = vadd.f32 %v2885, %v3000
    %v3014 = vadd.f32 %v2886, %v3001
    %v3015 = vadd.f32 %v2887, %v3002
    %3016 = vrot.lane.b32.xlu0 %v51, 86
    %v3017 = vpop.permute.xlu0 %3016
    %3018 = vrot.lane.b32.xlu0 %v55, 86
    %v3019 = vpop.permute.xlu0 %3018
    %3020 = vrot.lane.b32.xlu0 %v59, 86
    %v3021 = vpop.permute.xlu0 %3020
    %3022 = vrot.lane.b32.xlu0 %v63, 86
    %v3023 = vpop.permute.xlu0 %3022
    %3024 = vrot.lane.b32.xlu0 %v67, 86
    %v3025 = vpop.permute.xlu0 %3024
    %3026 = vrot.lane.b32.xlu0 %v71, 86
    %v3027 = vpop.permute.xlu0 %3026
    %3028 = vrot.lane.b32.xlu0 %v75, 86
    %v3029 = vpop.permute.xlu0 %3028
    %3030 = vrot.lane.b32.xlu0 %v79, 86
    %v3031 = vpop.permute.xlu0 %3030
    %3032 = vrot.lane.b32.xlu0 %v83, 86
    %v3033 = vpop.permute.xlu0 %3032
    %3034 = vrot.lane.b32.xlu0 %v87, 86
    %v3035 = vpop.permute.xlu0 %3034
    %3036 = vrot.lane.b32.xlu0 %v91, 86
    %v3037 = vpop.permute.xlu0 %3036
    %3038 = vrot.lane.b32.xlu0 %v95, 86
    %v3039 = vpop.permute.xlu0 %3038
    %vm3040 = vcmask 703488
    %v3041 = vsel %vm3040, %v3017, %v3019
    %v3042 = vsel %vm3040, %v3019, %v3021
    %v3043 = vsel %vm3040, %v3021, %v3023
    %v3044 = vsel %vm3040, %v3023, %v3025
    %v3045 = vsel %vm3040, %v3025, %v3027
    %v3046 = vsel %vm3040, %v3027, %v3029
    %v3047 = vsel %vm3040, %v3029, %v3031
    %v3048 = vsel %vm3040, %v3031, %v3033
    %v3049 = vsel %vm3040, %v3033, %v3035
    %v3050 = vsel %vm3040, %v3035, %v3037
    %v3051 = vsel %vm3040, %v3037, %v3039
    %v3065 = vsel %vm704, %v3051, %v679
    %3066 = vset.pattern.permute.xlu0 22
    %3067 = vperm.xlu0 %3066, %v36
    %v3068 = vpop.permute.xlu0 %3067
    %v3070 = vlaneseq
    %v3071 = vshrl.u32 %v3070, 7
    %v3072 = vsub.s32 0, %v3071
    %v3073 = vrot.slane %v3041, %v3072
    %v3074 = vlaneseq
    %v3075 = vshrl.u32 %v3074, 7
    %v3076 = vsub.s32 0, %v3075
    %v3077 = vrot.slane %v3042, %v3076
    %v3078 = vlaneseq
    %v3079 = vshrl.u32 %v3078, 7
    %v3080 = vsub.s32 0, %v3079
    %v3081 = vrot.slane %v3043, %v3080
    %v3082 = vlaneseq
    %v3083 = vshrl.u32 %v3082, 7
    %v3084 = vsub.s32 0, %v3083
    %v3085 = vrot.slane %v3044, %v3084
    %v3086 = vlaneseq
    %v3087 = vshrl.u32 %v3086, 7
    %v3088 = vsub.s32 0, %v3087
    %v3089 = vrot.slane %v3045, %v3088
    %v3090 = vlaneseq
    %v3091 = vshrl.u32 %v3090, 7
    %v3092 = vsub.s32 0, %v3091
    %v3093 = vrot.slane %v3046, %v3092
    %v3094 = vlaneseq
    %v3095 = vshrl.u32 %v3094, 7
    %v3096 = vsub.s32 0, %v3095
    %v3097 = vrot.slane %v3047, %v3096
    %v3098 = vlaneseq
    %v3099 = vshrl.u32 %v3098, 7
    %v3100 = vsub.s32 0, %v3099
    %v3101 = vrot.slane %v3048, %v3100
    %v3102 = vlaneseq
    %v3103 = vshrl.u32 %v3102, 7
    %v3104 = vsub.s32 0, %v3103
    %v3105 = vrot.slane %v3049, %v3104
    %v3106 = vlaneseq
    %v3107 = vshrl.u32 %v3106, 7
    %v3108 = vsub.s32 0, %v3107
    %v3109 = vrot.slane %v3050, %v3108
    %v3110 = vlaneseq
    %v3111 = vshrl.u32 %v3110, 7
    %v3112 = vsub.s32 0, %v3111
    %v3113 = vrot.slane %v3065, %v3112
    %v3114 = vlaneseq
    %v3115 = vshrl.u32 %v3114, 7
    %v3116 = vsub.s32 0, %v3115
    %v3117 = vrot.slane %v681, %v3116
    %v3118 = vmul.f32 %v3068, %v3073
    %v3119 = vmul.f32 %v3068, %v3077
    %v3120 = vmul.f32 %v3068, %v3081
    %v3121 = vmul.f32 %v3068, %v3085
    %v3122 = vmul.f32 %v3068, %v3089
    %v3123 = vmul.f32 %v3068, %v3093
    %v3124 = vmul.f32 %v3068, %v3097
    %v3125 = vmul.f32 %v3068, %v3101
    %v3126 = vmul.f32 %v3068, %v3105
    %v3127 = vmul.f32 %v3068, %v3109
    %v3128 = vmul.f32 %v3068, %v3113
    %v3129 = vmul.f32 %v3068, %v742
    %v3130 = vmul.f32 %v3068, %v3117
    %v3131 = vadd.f32 %v3003, %v3118
    %v3132 = vadd.f32 %v3004, %v3119
    %v3133 = vadd.f32 %v3005, %v3120
    %v3134 = vadd.f32 %v3006, %v3121
    %v3135 = vadd.f32 %v3007, %v3122
    %v3136 = vadd.f32 %v3008, %v3123
    %v3137 = vadd.f32 %v3009, %v3124
    %v3138 = vadd.f32 %v3010, %v3125
    %v3139 = vadd.f32 %v3011, %v3126
    %v3140 = vadd.f32 %v3012, %v3127
    %v3141 = vadd.f32 %v3013, %v3128
    %v3142 = vadd.f32 %v3014, %v3129
    %v3143 = vadd.f32 %v3015, %v3130
    %3144 = vrot.lane.b32.xlu0 %v51, 84
    %v3145 = vpop.permute.xlu0 %3144
    %3146 = vrot.lane.b32.xlu0 %v55, 84
    %v3147 = vpop.permute.xlu0 %3146
    %3148 = vrot.lane.b32.xlu0 %v59, 84
    %v3149 = vpop.permute.xlu0 %3148
    %3150 = vrot.lane.b32.xlu0 %v63, 84
    %v3151 = vpop.permute.xlu0 %3150
    %3152 = vrot.lane.b32.xlu0 %v67, 84
    %v3153 = vpop.permute.xlu0 %3152
    %3154 = vrot.lane.b32.xlu0 %v71, 84
    %v3155 = vpop.permute.xlu0 %3154
    %3156 = vrot.lane.b32.xlu0 %v75, 84
    %v3157 = vpop.permute.xlu0 %3156
    %3158 = vrot.lane.b32.xlu0 %v79, 84
    %v3159 = vpop.permute.xlu0 %3158
    %3160 = vrot.lane.b32.xlu0 %v83, 84
    %v3161 = vpop.permute.xlu0 %3160
    %3162 = vrot.lane.b32.xlu0 %v87, 84
    %v3163 = vpop.permute.xlu0 %3162
    %3164 = vrot.lane.b32.xlu0 %v91, 84
    %v3165 = vpop.permute.xlu0 %3164
    %3166 = vrot.lane.b32.xlu0 %v95, 84
    %v3167 = vpop.permute.xlu0 %3166
    %vm3168 = vcmask 687104
    %v3169 = vsel %vm3168, %v3145, %v3147
    %v3170 = vsel %vm3168, %v3147, %v3149
    %v3171 = vsel %vm3168, %v3149, %v3151
    %v3172 = vsel %vm3168, %v3151, %v3153
    %v3173 = vsel %vm3168, %v3153, %v3155
    %v3174 = vsel %vm3168, %v3155, %v3157
    %v3175 = vsel %vm3168, %v3157, %v3159
    %v3176 = vsel %vm3168, %v3159, %v3161
    %v3177 = vsel %vm3168, %v3161, %v3163
    %v3178 = vsel %vm3168, %v3163, %v3165
    %v3179 = vsel %vm3168, %v3165, %v3167
    %v3193 = vsel %vm843, %v3179, %v818
    %3194 = vset.pattern.permute.xlu0 23
    %3195 = vperm.xlu0 %3194, %v36
    %v3196 = vpop.permute.xlu0 %3195
    %v3198 = vlaneseq
    %v3199 = vshrl.u32 %v3198, 7
    %v3200 = vsub.s32 0, %v3199
    %v3201 = vrot.slane %v3169, %v3200
    %v3202 = vlaneseq
    %v3203 = vshrl.u32 %v3202, 7
    %v3204 = vsub.s32 0, %v3203
    %v3205 = vrot.slane %v3170, %v3204
    %v3206 = vlaneseq
    %v3207 = vshrl.u32 %v3206, 7
    %v3208 = vsub.s32 0, %v3207
    %v3209 = vrot.slane %v3171, %v3208
    %v3210 = vlaneseq
    %v3211 = vshrl.u32 %v3210, 7
    %v3212 = vsub.s32 0, %v3211
    %v3213 = vrot.slane %v3172, %v3212
    %v3214 = vlaneseq
    %v3215 = vshrl.u32 %v3214, 7
    %v3216 = vsub.s32 0, %v3215
    %v3217 = vrot.slane %v3173, %v3216
    %v3218 = vlaneseq
    %v3219 = vshrl.u32 %v3218, 7
    %v3220 = vsub.s32 0, %v3219
    %v3221 = vrot.slane %v3174, %v3220
    %v3222 = vlaneseq
    %v3223 = vshrl.u32 %v3222, 7
    %v3224 = vsub.s32 0, %v3223
    %v3225 = vrot.slane %v3175, %v3224
    %v3226 = vlaneseq
    %v3227 = vshrl.u32 %v3226, 7
    %v3228 = vsub.s32 0, %v3227
    %v3229 = vrot.slane %v3176, %v3228
    %v3230 = vlaneseq
    %v3231 = vshrl.u32 %v3230, 7
    %v3232 = vsub.s32 0, %v3231
    %v3233 = vrot.slane %v3177, %v3232
    %v3234 = vlaneseq
    %v3235 = vshrl.u32 %v3234, 7
    %v3236 = vsub.s32 0, %v3235
    %v3237 = vrot.slane %v3178, %v3236
    %v3238 = vlaneseq
    %v3239 = vshrl.u32 %v3238, 7
    %v3240 = vsub.s32 0, %v3239
    %v3241 = vrot.slane %v3193, %v3240
    %v3242 = vlaneseq
    %v3243 = vshrl.u32 %v3242, 7
    %v3244 = vsub.s32 0, %v3243
    %v3245 = vrot.slane %v820, %v3244
    %v3246 = vmul.f32 %v3196, %v3201
    %v3247 = vmul.f32 %v3196, %v3205
    %v3248 = vmul.f32 %v3196, %v3209
    %v3249 = vmul.f32 %v3196, %v3213
    %v3250 = vmul.f32 %v3196, %v3217
    %v3251 = vmul.f32 %v3196, %v3221
    %v3252 = vmul.f32 %v3196, %v3225
    %v3253 = vmul.f32 %v3196, %v3229
    %v3254 = vmul.f32 %v3196, %v3233
    %v3255 = vmul.f32 %v3196, %v3237
    %v3256 = vmul.f32 %v3196, %v3241
    %v3257 = vmul.f32 %v3196, %v881
    %v3258 = vmul.f32 %v3196, %v3245
    %v3259 = vadd.f32 %v3131, %v3246
    %v3260 = vadd.f32 %v3132, %v3247
    %v3261 = vadd.f32 %v3133, %v3248
    %v3262 = vadd.f32 %v3134, %v3249
    %v3263 = vadd.f32 %v3135, %v3250
    %v3264 = vadd.f32 %v3136, %v3251
    %v3265 = vadd.f32 %v3137, %v3252
    %v3266 = vadd.f32 %v3138, %v3253
    %v3267 = vadd.f32 %v3139, %v3254
    %v3268 = vadd.f32 %v3140, %v3255
    %v3269 = vadd.f32 %v3141, %v3256
    %v3270 = vadd.f32 %v3142, %v3257
    %v3271 = vadd.f32 %v3143, %v3258
    %3272 = vrot.lane.b32.xlu0 %v51, 82
    %v3273 = vpop.permute.xlu0 %3272
    %3274 = vrot.lane.b32.xlu0 %v55, 82
    %v3275 = vpop.permute.xlu0 %3274
    %3276 = vrot.lane.b32.xlu0 %v59, 82
    %v3277 = vpop.permute.xlu0 %3276
    %3278 = vrot.lane.b32.xlu0 %v63, 82
    %v3279 = vpop.permute.xlu0 %3278
    %3280 = vrot.lane.b32.xlu0 %v67, 82
    %v3281 = vpop.permute.xlu0 %3280
    %3282 = vrot.lane.b32.xlu0 %v71, 82
    %v3283 = vpop.permute.xlu0 %3282
    %3284 = vrot.lane.b32.xlu0 %v75, 82
    %v3285 = vpop.permute.xlu0 %3284
    %3286 = vrot.lane.b32.xlu0 %v79, 82
    %v3287 = vpop.permute.xlu0 %3286
    %3288 = vrot.lane.b32.xlu0 %v83, 82
    %v3289 = vpop.permute.xlu0 %3288
    %3290 = vrot.lane.b32.xlu0 %v87, 82
    %v3291 = vpop.permute.xlu0 %3290
    %3292 = vrot.lane.b32.xlu0 %v91, 82
    %v3293 = vpop.permute.xlu0 %3292
    %3294 = vrot.lane.b32.xlu0 %v95, 82
    %v3295 = vpop.permute.xlu0 %3294
    %vm3296 = vcmask 670720
    %v3297 = vsel %vm3296, %v3273, %v3275
    %v3298 = vsel %vm3296, %v3275, %v3277
    %v3299 = vsel %vm3296, %v3277, %v3279
    %v3300 = vsel %vm3296, %v3279, %v3281
    %v3301 = vsel %vm3296, %v3281, %v3283
    %v3302 = vsel %vm3296, %v3283, %v3285
    %v3303 = vsel %vm3296, %v3285, %v3287
    %v3304 = vsel %vm3296, %v3287, %v3289
    %v3305 = vsel %vm3296, %v3289, %v3291
    %v3306 = vsel %vm3296, %v3291, %v3293
    %v3307 = vsel %vm3296, %v3293, %v3295
    %3319 = vrot.lane.b32.xlu0 %v47, 114
    %v3320 = vpop.permute.xlu0 %3319
    %3321 = vrot.lane.b32.xlu0 %v51, 114
    %v3322 = vpop.permute.xlu0 %3321
    %vm3323 = vcmask 932864
    %v3324 = vsel %vm3323, %v3320, %v3322
    %v3328 = vsel %vm3323, %v3307, %v3320
    %3329 = vset.pattern.permute.xlu0 24
    %3330 = vperm.xlu0 %3329, %v36
    %v3331 = vpop.permute.xlu0 %3330
    %v3333 = vlaneseq
    %v3334 = vshrl.u32 %v3333, 7
    %v3335 = vsub.s32 0, %v3334
    %v3336 = vrot.slane %v3297, %v3335
    %v3337 = vlaneseq
    %v3338 = vshrl.u32 %v3337, 7
    %v3339 = vsub.s32 0, %v3338
    %v3340 = vrot.slane %v3298, %v3339
    %v3341 = vlaneseq
    %v3342 = vshrl.u32 %v3341, 7
    %v3343 = vsub.s32 0, %v3342
    %v3344 = vrot.slane %v3299, %v3343
    %v3345 = vlaneseq
    %v3346 = vshrl.u32 %v3345, 7
    %v3347 = vsub.s32 0, %v3346
    %v3348 = vrot.slane %v3300, %v3347
    %v3349 = vlaneseq
    %v3350 = vshrl.u32 %v3349, 7
    %v3351 = vsub.s32 0, %v3350
    %v3352 = vrot.slane %v3301, %v3351
    %v3353 = vlaneseq
    %v3354 = vshrl.u32 %v3353, 7
    %v3355 = vsub.s32 0, %v3354
    %v3356 = vrot.slane %v3302, %v3355
    %v3357 = vlaneseq
    %v3358 = vshrl.u32 %v3357, 7
    %v3359 = vsub.s32 0, %v3358
    %v3360 = vrot.slane %v3303, %v3359
    %v3361 = vlaneseq
    %v3362 = vshrl.u32 %v3361, 7
    %v3363 = vsub.s32 0, %v3362
    %v3364 = vrot.slane %v3304, %v3363
    %v3365 = vlaneseq
    %v3366 = vshrl.u32 %v3365, 7
    %v3367 = vsub.s32 0, %v3366
    %v3368 = vrot.slane %v3305, %v3367
    %v3369 = vlaneseq
    %v3370 = vshrl.u32 %v3369, 7
    %v3371 = vsub.s32 0, %v3370
    %v3372 = vrot.slane %v3306, %v3371
    %v3373 = vlaneseq
    %v3374 = vshrl.u32 %v3373, 7
    %v3375 = vsub.s32 0, %v3374
    %v3376 = vrot.slane %v3328, %v3375
    %v3377 = vlaneseq
    %v3378 = vshrl.u32 %v3377, 7
    %v3379 = vsub.s32 0, %v3378
    %v3380 = vrot.slane %v3324, %v3379
    %v3381 = vlaneseq
    %v3382 = vshrl.u32 %v3381, 7
    %v3383 = vsub.s32 0, %v3382
    %v3384 = vrot.slane %v3322, %v3383
    %v3385 = vmul.f32 %v3331, %v3336
    %v3386 = vmul.f32 %v3331, %v3340
    %v3387 = vmul.f32 %v3331, %v3344
    %v3388 = vmul.f32 %v3331, %v3348
    %v3389 = vmul.f32 %v3331, %v3352
    %v3390 = vmul.f32 %v3331, %v3356
    %v3391 = vmul.f32 %v3331, %v3360
    %v3392 = vmul.f32 %v3331, %v3364
    %v3393 = vmul.f32 %v3331, %v3368
    %v3394 = vmul.f32 %v3331, %v3372
    %v3395 = vmul.f32 %v3331, %v3376
    %v3396 = vmul.f32 %v3331, %v3380
    %v3397 = vmul.f32 %v3331, %v3384
    %v3398 = vadd.f32 %v3259, %v3385
    %v3399 = vadd.f32 %v3260, %v3386
    %v3400 = vadd.f32 %v3261, %v3387
    %v3401 = vadd.f32 %v3262, %v3388
    %v3402 = vadd.f32 %v3263, %v3389
    %v3403 = vadd.f32 %v3264, %v3390
    %v3404 = vadd.f32 %v3265, %v3391
    %v3405 = vadd.f32 %v3266, %v3392
    %v3406 = vadd.f32 %v3267, %v3393
    %v3407 = vadd.f32 %v3268, %v3394
    %v3408 = vadd.f32 %v3269, %v3395
    %v3409 = vadd.f32 %v3270, %v3396
    %v3410 = vadd.f32 %v3271, %v3397
    %3411 = vrot.lane.b32.xlu0 %v51, 80
    %v3412 = vpop.permute.xlu0 %3411
    %3413 = vrot.lane.b32.xlu0 %v55, 80
    %v3414 = vpop.permute.xlu0 %3413
    %3415 = vrot.lane.b32.xlu0 %v59, 80
    %v3416 = vpop.permute.xlu0 %3415
    %3417 = vrot.lane.b32.xlu0 %v63, 80
    %v3418 = vpop.permute.xlu0 %3417
    %3419 = vrot.lane.b32.xlu0 %v67, 80
    %v3420 = vpop.permute.xlu0 %3419
    %3421 = vrot.lane.b32.xlu0 %v71, 80
    %v3422 = vpop.permute.xlu0 %3421
    %3423 = vrot.lane.b32.xlu0 %v75, 80
    %v3424 = vpop.permute.xlu0 %3423
    %3425 = vrot.lane.b32.xlu0 %v79, 80
    %v3426 = vpop.permute.xlu0 %3425
    %3427 = vrot.lane.b32.xlu0 %v83, 80
    %v3428 = vpop.permute.xlu0 %3427
    %3429 = vrot.lane.b32.xlu0 %v87, 80
    %v3430 = vpop.permute.xlu0 %3429
    %3431 = vrot.lane.b32.xlu0 %v91, 80
    %v3432 = vpop.permute.xlu0 %3431
    %3433 = vrot.lane.b32.xlu0 %v95, 80
    %v3434 = vpop.permute.xlu0 %3433
    %vm3435 = vcmask 654336
    %v3436 = vsel %vm3435, %v3412, %v3414
    %v3437 = vsel %vm3435, %v3414, %v3416
    %v3438 = vsel %vm3435, %v3416, %v3418
    %v3439 = vsel %vm3435, %v3418, %v3420
    %v3440 = vsel %vm3435, %v3420, %v3422
    %v3441 = vsel %vm3435, %v3422, %v3424
    %v3442 = vsel %vm3435, %v3424, %v3426
    %v3443 = vsel %vm3435, %v3426, %v3428
    %v3444 = vsel %vm3435, %v3428, %v3430
    %v3445 = vsel %vm3435, %v3430, %v3432
    %v3446 = vsel %vm3435, %v3432, %v3434
    %3458 = vrot.lane.b32.xlu0 %v47, 112
    %v3459 = vpop.permute.xlu0 %3458
    %3460 = vrot.lane.b32.xlu0 %v51, 112
    %v3461 = vpop.permute.xlu0 %3460
    %vm3462 = vcmask 916480
    %v3463 = vsel %vm3462, %v3459, %v3461
    %v3467 = vsel %vm3462, %v3446, %v3459
    %3468 = vset.pattern.permute.xlu0 25
    %3469 = vperm.xlu0 %3468, %v36
    %v3470 = vpop.permute.xlu0 %3469
    %v3472 = vlaneseq
    %v3473 = vshrl.u32 %v3472, 7
    %v3474 = vsub.s32 0, %v3473
    %v3475 = vrot.slane %v3436, %v3474
    %v3476 = vlaneseq
    %v3477 = vshrl.u32 %v3476, 7
    %v3478 = vsub.s32 0, %v3477
    %v3479 = vrot.slane %v3437, %v3478
    %v3480 = vlaneseq
    %v3481 = vshrl.u32 %v3480, 7
    %v3482 = vsub.s32 0, %v3481
    %v3483 = vrot.slane %v3438, %v3482
    %v3484 = vlaneseq
    %v3485 = vshrl.u32 %v3484, 7
    %v3486 = vsub.s32 0, %v3485
    %v3487 = vrot.slane %v3439, %v3486
    %v3488 = vlaneseq
    %v3489 = vshrl.u32 %v3488, 7
    %v3490 = vsub.s32 0, %v3489
    %v3491 = vrot.slane %v3440, %v3490
    %v3492 = vlaneseq
    %v3493 = vshrl.u32 %v3492, 7
    %v3494 = vsub.s32 0, %v3493
    %v3495 = vrot.slane %v3441, %v3494
    %v3496 = vlaneseq
    %v3497 = vshrl.u32 %v3496, 7
    %v3498 = vsub.s32 0, %v3497
    %v3499 = vrot.slane %v3442, %v3498
    %v3500 = vlaneseq
    %v3501 = vshrl.u32 %v3500, 7
    %v3502 = vsub.s32 0, %v3501
    %v3503 = vrot.slane %v3443, %v3502
    %v3504 = vlaneseq
    %v3505 = vshrl.u32 %v3504, 7
    %v3506 = vsub.s32 0, %v3505
    %v3507 = vrot.slane %v3444, %v3506
    %v3508 = vlaneseq
    %v3509 = vshrl.u32 %v3508, 7
    %v3510 = vsub.s32 0, %v3509
    %v3511 = vrot.slane %v3445, %v3510
    %v3512 = vlaneseq
    %v3513 = vshrl.u32 %v3512, 7
    %v3514 = vsub.s32 0, %v3513
    %v3515 = vrot.slane %v3467, %v3514
    %v3516 = vlaneseq
    %v3517 = vshrl.u32 %v3516, 7
    %v3518 = vsub.s32 0, %v3517
    %v3519 = vrot.slane %v3463, %v3518
    %v3520 = vlaneseq
    %v3521 = vshrl.u32 %v3520, 7
    %v3522 = vsub.s32 0, %v3521
    %v3523 = vrot.slane %v3461, %v3522
    %v3524 = vmul.f32 %v3470, %v3475
    %v3525 = vmul.f32 %v3470, %v3479
    %v3526 = vmul.f32 %v3470, %v3483
    %v3527 = vmul.f32 %v3470, %v3487
    %v3528 = vmul.f32 %v3470, %v3491
    %v3529 = vmul.f32 %v3470, %v3495
    %v3530 = vmul.f32 %v3470, %v3499
    %v3531 = vmul.f32 %v3470, %v3503
    %v3532 = vmul.f32 %v3470, %v3507
    %v3533 = vmul.f32 %v3470, %v3511
    %v3534 = vmul.f32 %v3470, %v3515
    %v3535 = vmul.f32 %v3470, %v3519
    %v3536 = vmul.f32 %v3470, %v3523
    %v3537 = vadd.f32 %v3398, %v3524
    %v3538 = vadd.f32 %v3399, %v3525
    %v3539 = vadd.f32 %v3400, %v3526
    %v3540 = vadd.f32 %v3401, %v3527
    %v3541 = vadd.f32 %v3402, %v3528
    %v3542 = vadd.f32 %v3403, %v3529
    %v3543 = vadd.f32 %v3404, %v3530
    %v3544 = vadd.f32 %v3405, %v3531
    %v3545 = vadd.f32 %v3406, %v3532
    %v3546 = vadd.f32 %v3407, %v3533
    %v3547 = vadd.f32 %v3408, %v3534
    %v3548 = vadd.f32 %v3409, %v3535
    %v3549 = vadd.f32 %v3410, %v3536
    %3550 = vrot.lane.b32.xlu0 %v51, 78
    %v3551 = vpop.permute.xlu0 %3550
    %3552 = vrot.lane.b32.xlu0 %v55, 78
    %v3553 = vpop.permute.xlu0 %3552
    %3554 = vrot.lane.b32.xlu0 %v59, 78
    %v3555 = vpop.permute.xlu0 %3554
    %3556 = vrot.lane.b32.xlu0 %v63, 78
    %v3557 = vpop.permute.xlu0 %3556
    %3558 = vrot.lane.b32.xlu0 %v67, 78
    %v3559 = vpop.permute.xlu0 %3558
    %3560 = vrot.lane.b32.xlu0 %v71, 78
    %v3561 = vpop.permute.xlu0 %3560
    %3562 = vrot.lane.b32.xlu0 %v75, 78
    %v3563 = vpop.permute.xlu0 %3562
    %3564 = vrot.lane.b32.xlu0 %v79, 78
    %v3565 = vpop.permute.xlu0 %3564
    %3566 = vrot.lane.b32.xlu0 %v83, 78
    %v3567 = vpop.permute.xlu0 %3566
    %3568 = vrot.lane.b32.xlu0 %v87, 78
    %v3569 = vpop.permute.xlu0 %3568
    %3570 = vrot.lane.b32.xlu0 %v91, 78
    %v3571 = vpop.permute.xlu0 %3570
    %3572 = vrot.lane.b32.xlu0 %v95, 78
    %v3573 = vpop.permute.xlu0 %3572
    %vm3574 = vcmask 637952
    %v3575 = vsel %vm3574, %v3551, %v3553
    %v3576 = vsel %vm3574, %v3553, %v3555
    %v3577 = vsel %vm3574, %v3555, %v3557
    %v3578 = vsel %vm3574, %v3557, %v3559
    %v3579 = vsel %vm3574, %v3559, %v3561
    %v3580 = vsel %vm3574, %v3561, %v3563
    %v3581 = vsel %vm3574, %v3563, %v3565
    %v3582 = vsel %vm3574, %v3565, %v3567
    %v3583 = vsel %vm3574, %v3567, %v3569
    %v3584 = vsel %vm3574, %v3569, %v3571
    %v3585 = vsel %vm3574, %v3571, %v3573
    %3597 = vrot.lane.b32.xlu0 %v47, 110
    %v3598 = vpop.permute.xlu0 %3597
    %3599 = vrot.lane.b32.xlu0 %v51, 110
    %v3600 = vpop.permute.xlu0 %3599
    %vm3601 = vcmask 900096
    %v3602 = vsel %vm3601, %v3598, %v3600
    %v3606 = vsel %vm3601, %v3585, %v3598
    %3607 = vset.pattern.permute.xlu0 26
    %3608 = vperm.xlu0 %3607, %v36
    %v3609 = vpop.permute.xlu0 %3608
    %v3611 = vlaneseq
    %v3612 = vshrl.u32 %v3611, 7
    %v3613 = vsub.s32 0, %v3612
    %v3614 = vrot.slane %v3575, %v3613
    %v3615 = vlaneseq
    %v3616 = vshrl.u32 %v3615, 7
    %v3617 = vsub.s32 0, %v3616
    %v3618 = vrot.slane %v3576, %v3617
    %v3619 = vlaneseq
    %v3620 = vshrl.u32 %v3619, 7
    %v3621 = vsub.s32 0, %v3620
    %v3622 = vrot.slane %v3577, %v3621
    %v3623 = vlaneseq
    %v3624 = vshrl.u32 %v3623, 7
    %v3625 = vsub.s32 0, %v3624
    %v3626 = vrot.slane %v3578, %v3625
    %v3627 = vlaneseq
    %v3628 = vshrl.u32 %v3627, 7
    %v3629 = vsub.s32 0, %v3628
    %v3630 = vrot.slane %v3579, %v3629
    %v3631 = vlaneseq
    %v3632 = vshrl.u32 %v3631, 7
    %v3633 = vsub.s32 0, %v3632
    %v3634 = vrot.slane %v3580, %v3633
    %v3635 = vlaneseq
    %v3636 = vshrl.u32 %v3635, 7
    %v3637 = vsub.s32 0, %v3636
    %v3638 = vrot.slane %v3581, %v3637
    %v3639 = vlaneseq
    %v3640 = vshrl.u32 %v3639, 7
    %v3641 = vsub.s32 0, %v3640
    %v3642 = vrot.slane %v3582, %v3641
    %v3643 = vlaneseq
    %v3644 = vshrl.u32 %v3643, 7
    %v3645 = vsub.s32 0, %v3644
    %v3646 = vrot.slane %v3583, %v3645
    %v3647 = vlaneseq
    %v3648 = vshrl.u32 %v3647, 7
    %v3649 = vsub.s32 0, %v3648
    %v3650 = vrot.slane %v3584, %v3649
    %v3651 = vlaneseq
    %v3652 = vshrl.u32 %v3651, 7
    %v3653 = vsub.s32 0, %v3652
    %v3654 = vrot.slane %v3606, %v3653
    %v3655 = vlaneseq
    %v3656 = vshrl.u32 %v3655, 7
    %v3657 = vsub.s32 0, %v3656
    %v3658 = vrot.slane %v3602, %v3657
    %v3659 = vlaneseq
    %v3660 = vshrl.u32 %v3659, 7
    %v3661 = vsub.s32 0, %v3660
    %v3662 = vrot.slane %v3600, %v3661
    %v3663 = vmul.f32 %v3609, %v3614
    %v3664 = vmul.f32 %v3609, %v3618
    %v3665 = vmul.f32 %v3609, %v3622
    %v3666 = vmul.f32 %v3609, %v3626
    %v3667 = vmul.f32 %v3609, %v3630
    %v3668 = vmul.f32 %v3609, %v3634
    %v3669 = vmul.f32 %v3609, %v3638
    %v3670 = vmul.f32 %v3609, %v3642
    %v3671 = vmul.f32 %v3609, %v3646
    %v3672 = vmul.f32 %v3609, %v3650
    %v3673 = vmul.f32 %v3609, %v3654
    %v3674 = vmul.f32 %v3609, %v3658
    %v3675 = vmul.f32 %v3609, %v3662
    %v3676 = vadd.f32 %v3537, %v3663
    %v3677 = vadd.f32 %v3538, %v3664
    %v3678 = vadd.f32 %v3539, %v3665
    %v3679 = vadd.f32 %v3540, %v3666
    %v3680 = vadd.f32 %v3541, %v3667
    %v3681 = vadd.f32 %v3542, %v3668
    %v3682 = vadd.f32 %v3543, %v3669
    %v3683 = vadd.f32 %v3544, %v3670
    %v3684 = vadd.f32 %v3545, %v3671
    %v3685 = vadd.f32 %v3546, %v3672
    %v3686 = vadd.f32 %v3547, %v3673
    %v3687 = vadd.f32 %v3548, %v3674
    %v3688 = vadd.f32 %v3549, %v3675
    %3689 = vrot.lane.b32.xlu0 %v51, 76
    %v3690 = vpop.permute.xlu0 %3689
    %3691 = vrot.lane.b32.xlu0 %v55, 76
    %v3692 = vpop.permute.xlu0 %3691
    %3693 = vrot.lane.b32.xlu0 %v59, 76
    %v3694 = vpop.permute.xlu0 %3693
    %3695 = vrot.lane.b32.xlu0 %v63, 76
    %v3696 = vpop.permute.xlu0 %3695
    %3697 = vrot.lane.b32.xlu0 %v67, 76
    %v3698 = vpop.permute.xlu0 %3697
    %3699 = vrot.lane.b32.xlu0 %v71, 76
    %v3700 = vpop.permute.xlu0 %3699
    %3701 = vrot.lane.b32.xlu0 %v75, 76
    %v3702 = vpop.permute.xlu0 %3701
    %3703 = vrot.lane.b32.xlu0 %v79, 76
    %v3704 = vpop.permute.xlu0 %3703
    %3705 = vrot.lane.b32.xlu0 %v83, 76
    %v3706 = vpop.permute.xlu0 %3705
    %3707 = vrot.lane.b32.xlu0 %v87, 76
    %v3708 = vpop.permute.xlu0 %3707
    %3709 = vrot.lane.b32.xlu0 %v91, 76
    %v3710 = vpop.permute.xlu0 %3709
    %3711 = vrot.lane.b32.xlu0 %v95, 76
    %v3712 = vpop.permute.xlu0 %3711
    %vm3713 = vcmask 621568
    %v3714 = vsel %vm3713, %v3690, %v3692
    %v3715 = vsel %vm3713, %v3692, %v3694
    %v3716 = vsel %vm3713, %v3694, %v3696
    %v3717 = vsel %vm3713, %v3696, %v3698
    %v3718 = vsel %vm3713, %v3698, %v3700
    %v3719 = vsel %vm3713, %v3700, %v3702
    %v3720 = vsel %vm3713, %v3702, %v3704
    %v3721 = vsel %vm3713, %v3704, %v3706
    %v3722 = vsel %vm3713, %v3706, %v3708
    %v3723 = vsel %vm3713, %v3708, %v3710
    %v3724 = vsel %vm3713, %v3710, %v3712
    %3736 = vrot.lane.b32.xlu0 %v47, 108
    %v3737 = vpop.permute.xlu0 %3736
    %3738 = vrot.lane.b32.xlu0 %v51, 108
    %v3739 = vpop.permute.xlu0 %3738
    %vm3740 = vcmask 883712
    %v3741 = vsel %vm3740, %v3737, %v3739
    %v3745 = vsel %vm3740, %v3724, %v3737
    %3746 = vset.pattern.permute.xlu0 27
    %3747 = vperm.xlu0 %3746, %v36
    %v3748 = vpop.permute.xlu0 %3747
    %v3750 = vlaneseq
    %v3751 = vshrl.u32 %v3750, 7
    %v3752 = vsub.s32 0, %v3751
    %v3753 = vrot.slane %v3714, %v3752
    %v3754 = vlaneseq
    %v3755 = vshrl.u32 %v3754, 7
    %v3756 = vsub.s32 0, %v3755
    %v3757 = vrot.slane %v3715, %v3756
    %v3758 = vlaneseq
    %v3759 = vshrl.u32 %v3758, 7
    %v3760 = vsub.s32 0, %v3759
    %v3761 = vrot.slane %v3716, %v3760
    %v3762 = vlaneseq
    %v3763 = vshrl.u32 %v3762, 7
    %v3764 = vsub.s32 0, %v3763
    %v3765 = vrot.slane %v3717, %v3764
    %v3766 = vlaneseq
    %v3767 = vshrl.u32 %v3766, 7
    %v3768 = vsub.s32 0, %v3767
    %v3769 = vrot.slane %v3718, %v3768
    %v3770 = vlaneseq
    %v3771 = vshrl.u32 %v3770, 7
    %v3772 = vsub.s32 0, %v3771
    %v3773 = vrot.slane %v3719, %v3772
    %v3774 = vlaneseq
    %v3775 = vshrl.u32 %v3774, 7
    %v3776 = vsub.s32 0, %v3775
    %v3777 = vrot.slane %v3720, %v3776
    %v3778 = vlaneseq
    %v3779 = vshrl.u32 %v3778, 7
    %v3780 = vsub.s32 0, %v3779
    %v3781 = vrot.slane %v3721, %v3780
    %v3782 = vlaneseq
    %v3783 = vshrl.u32 %v3782, 7
    %v3784 = vsub.s32 0, %v3783
    %v3785 = vrot.slane %v3722, %v3784
    %v3786 = vlaneseq
    %v3787 = vshrl.u32 %v3786, 7
    %v3788 = vsub.s32 0, %v3787
    %v3789 = vrot.slane %v3723, %v3788
    %v3790 = vlaneseq
    %v3791 = vshrl.u32 %v3790, 7
    %v3792 = vsub.s32 0, %v3791
    %v3793 = vrot.slane %v3745, %v3792
    %v3794 = vlaneseq
    %v3795 = vshrl.u32 %v3794, 7
    %v3796 = vsub.s32 0, %v3795
    %v3797 = vrot.slane %v3741, %v3796
    %v3798 = vlaneseq
    %v3799 = vshrl.u32 %v3798, 7
    %v3800 = vsub.s32 0, %v3799
    %v3801 = vrot.slane %v3739, %v3800
    %v3802 = vmul.f32 %v3748, %v3753
    %v3803 = vmul.f32 %v3748, %v3757
    %v3804 = vmul.f32 %v3748, %v3761
    %v3805 = vmul.f32 %v3748, %v3765
    %v3806 = vmul.f32 %v3748, %v3769
    %v3807 = vmul.f32 %v3748, %v3773
    %v3808 = vmul.f32 %v3748, %v3777
    %v3809 = vmul.f32 %v3748, %v3781
    %v3810 = vmul.f32 %v3748, %v3785
    %v3811 = vmul.f32 %v3748, %v3789
    %v3812 = vmul.f32 %v3748, %v3793
    %v3813 = vmul.f32 %v3748, %v3797
    %v3814 = vmul.f32 %v3748, %v3801
    %v3815 = vadd.f32 %v3676, %v3802
    %v3816 = vadd.f32 %v3677, %v3803
    %v3817 = vadd.f32 %v3678, %v3804
    %v3818 = vadd.f32 %v3679, %v3805
    %v3819 = vadd.f32 %v3680, %v3806
    %v3820 = vadd.f32 %v3681, %v3807
    %v3821 = vadd.f32 %v3682, %v3808
    %v3822 = vadd.f32 %v3683, %v3809
    %v3823 = vadd.f32 %v3684, %v3810
    %v3824 = vadd.f32 %v3685, %v3811
    %v3825 = vadd.f32 %v3686, %v3812
    %v3826 = vadd.f32 %v3687, %v3813
    %v3827 = vadd.f32 %v3688, %v3814
    %3828 = vrot.lane.b32.xlu0 %v51, 32
    %v3829 = vpop.permute.xlu0 %3828
    %3830 = vrot.lane.b32.xlu0 %v55, 32
    %v3831 = vpop.permute.xlu0 %3830
    %3832 = vrot.lane.b32.xlu0 %v59, 32
    %v3833 = vpop.permute.xlu0 %3832
    %3834 = vrot.lane.b32.xlu0 %v63, 32
    %v3835 = vpop.permute.xlu0 %3834
    %3836 = vrot.lane.b32.xlu0 %v67, 32
    %v3837 = vpop.permute.xlu0 %3836
    %3838 = vrot.lane.b32.xlu0 %v71, 32
    %v3839 = vpop.permute.xlu0 %3838
    %3840 = vrot.lane.b32.xlu0 %v75, 32
    %v3841 = vpop.permute.xlu0 %3840
    %3842 = vrot.lane.b32.xlu0 %v79, 32
    %v3843 = vpop.permute.xlu0 %3842
    %3844 = vrot.lane.b32.xlu0 %v83, 32
    %v3845 = vpop.permute.xlu0 %3844
    %3846 = vrot.lane.b32.xlu0 %v87, 32
    %v3847 = vpop.permute.xlu0 %3846
    %3848 = vrot.lane.b32.xlu0 %v91, 32
    %v3849 = vpop.permute.xlu0 %3848
    %3850 = vrot.lane.b32.xlu0 %v95, 32
    %v3851 = vpop.permute.xlu0 %3850
    %vm3852 = vcmask 261120
    %v3853 = vsel %vm3852, %v3829, %v3831
    %v3854 = vsel %vm3852, %v3831, %v3833
    %v3855 = vsel %vm3852, %v3833, %v3835
    %v3856 = vsel %vm3852, %v3835, %v3837
    %v3857 = vsel %vm3852, %v3837, %v3839
    %v3858 = vsel %vm3852, %v3839, %v3841
    %v3859 = vsel %vm3852, %v3841, %v3843
    %v3860 = vsel %vm3852, %v3843, %v3845
    %v3861 = vsel %vm3852, %v3845, %v3847
    %v3862 = vsel %vm3852, %v3847, %v3849
    %v3863 = vsel %vm3852, %v3849, %v3851
    %v3877 = vsel %vm1534, %v3863, %v1509
    %3878 = vset.pattern.permute.xlu0 28
    %3879 = vperm.xlu0 %3878, %v36
    %v3880 = vpop.permute.xlu0 %3879
    %v3882 = vlaneseq
    %v3883 = vshrl.u32 %v3882, 7
    %v3884 = vsub.s32 0, %v3883
    %v3885 = vrot.slane %v3853, %v3884
    %v3886 = vlaneseq
    %v3887 = vshrl.u32 %v3886, 7
    %v3888 = vsub.s32 0, %v3887
    %v3889 = vrot.slane %v3854, %v3888
    %v3890 = vlaneseq
    %v3891 = vshrl.u32 %v3890, 7
    %v3892 = vsub.s32 0, %v3891
    %v3893 = vrot.slane %v3855, %v3892
    %v3894 = vlaneseq
    %v3895 = vshrl.u32 %v3894, 7
    %v3896 = vsub.s32 0, %v3895
    %v3897 = vrot.slane %v3856, %v3896
    %v3898 = vlaneseq
    %v3899 = vshrl.u32 %v3898, 7
    %v3900 = vsub.s32 0, %v3899
    %v3901 = vrot.slane %v3857, %v3900
    %v3902 = vlaneseq
    %v3903 = vshrl.u32 %v3902, 7
    %v3904 = vsub.s32 0, %v3903
    %v3905 = vrot.slane %v3858, %v3904
    %v3906 = vlaneseq
    %v3907 = vshrl.u32 %v3906, 7
    %v3908 = vsub.s32 0, %v3907
    %v3909 = vrot.slane %v3859, %v3908
    %v3910 = vlaneseq
    %v3911 = vshrl.u32 %v3910, 7
    %v3912 = vsub.s32 0, %v3911
    %v3913 = vrot.slane %v3860, %v3912
    %v3914 = vlaneseq
    %v3915 = vshrl.u32 %v3914, 7
    %v3916 = vsub.s32 0, %v3915
    %v3917 = vrot.slane %v3861, %v3916
    %v3918 = vlaneseq
    %v3919 = vshrl.u32 %v3918, 7
    %v3920 = vsub.s32 0, %v3919
    %v3921 = vrot.slane %v3862, %v3920
    %v3922 = vlaneseq
    %v3923 = vshrl.u32 %v3922, 7
    %v3924 = vsub.s32 0, %v3923
    %v3925 = vrot.slane %v3877, %v3924
    %v3926 = vlaneseq
    %v3927 = vshrl.u32 %v3926, 7
    %v3928 = vsub.s32 0, %v3927
    %v3929 = vrot.slane %v1511, %v3928
    %v3930 = vmul.f32 %v3880, %v3885
    %v3931 = vmul.f32 %v3880, %v3889
    %v3932 = vmul.f32 %v3880, %v3893
    %v3933 = vmul.f32 %v3880, %v3897
    %v3934 = vmul.f32 %v3880, %v3901
    %v3935 = vmul.f32 %v3880, %v3905
    %v3936 = vmul.f32 %v3880, %v3909
    %v3937 = vmul.f32 %v3880, %v3913
    %v3938 = vmul.f32 %v3880, %v3917
    %v3939 = vmul.f32 %v3880, %v3921
    %v3940 = vmul.f32 %v3880, %v3925
    %v3941 = vmul.f32 %v3880, %v1571
    %v3942 = vmul.f32 %v3880, %v3929
    %v3943 = vadd.f32 %v3815, %v3930
    %v3944 = vadd.f32 %v3816, %v3931
    %v3945 = vadd.f32 %v3817, %v3932
    %v3946 = vadd.f32 %v3818, %v3933
    %v3947 = vadd.f32 %v3819, %v3934
    %v3948 = vadd.f32 %v3820, %v3935
    %v3949 = vadd.f32 %v3821, %v3936
    %v3950 = vadd.f32 %v3822, %v3937
    %v3951 = vadd.f32 %v3823, %v3938
    %v3952 = vadd.f32 %v3824, %v3939
    %v3953 = vadd.f32 %v3825, %v3940
    %v3954 = vadd.f32 %v3826, %v3941
    %v3955 = vadd.f32 %v3827, %v3942
    %3956 = vrot.lane.b32.xlu0 %v51, 30
    %v3957 = vpop.permute.xlu0 %3956
    %3958 = vrot.lane.b32.xlu0 %v55, 30
    %v3959 = vpop.permute.xlu0 %3958
    %3960 = vrot.lane.b32.xlu0 %v59, 30
    %v3961 = vpop.permute.xlu0 %3960
    %3962 = vrot.lane.b32.xlu0 %v63, 30
    %v3963 = vpop.permute.xlu0 %3962
    %3964 = vrot.lane.b32.xlu0 %v67, 30
    %v3965 = vpop.permute.xlu0 %3964
    %3966 = vrot.lane.b32.xlu0 %v71, 30
    %v3967 = vpop.permute.xlu0 %3966
    %3968 = vrot.lane.b32.xlu0 %v75, 30
    %v3969 = vpop.permute.xlu0 %3968
    %3970 = vrot.lane.b32.xlu0 %v79, 30
    %v3971 = vpop.permute.xlu0 %3970
    %3972 = vrot.lane.b32.xlu0 %v83, 30
    %v3973 = vpop.permute.xlu0 %3972
    %3974 = vrot.lane.b32.xlu0 %v87, 30
    %v3975 = vpop.permute.xlu0 %3974
    %3976 = vrot.lane.b32.xlu0 %v91, 30
    %v3977 = vpop.permute.xlu0 %3976
    %3978 = vrot.lane.b32.xlu0 %v95, 30
    %v3979 = vpop.permute.xlu0 %3978
    %v3980 = vsel %vm177, %v3957, %v3959
    %v3981 = vsel %vm177, %v3959, %v3961
    %v3982 = vsel %vm177, %v3961, %v3963
    %v3983 = vsel %vm177, %v3963, %v3965
    %v3984 = vsel %vm177, %v3965, %v3967
    %v3985 = vsel %vm177, %v3967, %v3969
    %v3986 = vsel %vm177, %v3969, %v3971
    %v3987 = vsel %vm177, %v3971, %v3973
    %v3988 = vsel %vm177, %v3973, %v3975
    %v3989 = vsel %vm177, %v3975, %v3977
    %v3990 = vsel %vm177, %v3977, %v3979
    %v4004 = vsel %vm1672, %v3990, %v1647
    %4005 = vset.pattern.permute.xlu0 29
    %4006 = vperm.xlu0 %4005, %v36
    %v4007 = vpop.permute.xlu0 %4006
    %v4009 = vlaneseq
    %v4010 = vshrl.u32 %v4009, 7
    %v4011 = vsub.s32 0, %v4010
    %v4012 = vrot.slane %v3980, %v4011
    %v4013 = vlaneseq
    %v4014 = vshrl.u32 %v4013, 7
    %v4015 = vsub.s32 0, %v4014
    %v4016 = vrot.slane %v3981, %v4015
    %v4017 = vlaneseq
    %v4018 = vshrl.u32 %v4017, 7
    %v4019 = vsub.s32 0, %v4018
    %v4020 = vrot.slane %v3982, %v4019
    %v4021 = vlaneseq
    %v4022 = vshrl.u32 %v4021, 7
    %v4023 = vsub.s32 0, %v4022
    %v4024 = vrot.slane %v3983, %v4023
    %v4025 = vlaneseq
    %v4026 = vshrl.u32 %v4025, 7
    %v4027 = vsub.s32 0, %v4026
    %v4028 = vrot.slane %v3984, %v4027
    %v4029 = vlaneseq
    %v4030 = vshrl.u32 %v4029, 7
    %v4031 = vsub.s32 0, %v4030
    %v4032 = vrot.slane %v3985, %v4031
    %v4033 = vlaneseq
    %v4034 = vshrl.u32 %v4033, 7
    %v4035 = vsub.s32 0, %v4034
    %v4036 = vrot.slane %v3986, %v4035
    %v4037 = vlaneseq
    %v4038 = vshrl.u32 %v4037, 7
    %v4039 = vsub.s32 0, %v4038
    %v4040 = vrot.slane %v3987, %v4039
    %v4041 = vlaneseq
    %v4042 = vshrl.u32 %v4041, 7
    %v4043 = vsub.s32 0, %v4042
    %v4044 = vrot.slane %v3988, %v4043
    %v4045 = vlaneseq
    %v4046 = vshrl.u32 %v4045, 7
    %v4047 = vsub.s32 0, %v4046
    %v4048 = vrot.slane %v3989, %v4047
    %v4049 = vlaneseq
    %v4050 = vshrl.u32 %v4049, 7
    %v4051 = vsub.s32 0, %v4050
    %v4052 = vrot.slane %v4004, %v4051
    %v4053 = vlaneseq
    %v4054 = vshrl.u32 %v4053, 7
    %v4055 = vsub.s32 0, %v4054
    %v4056 = vrot.slane %v1649, %v4055
    %v4057 = vmul.f32 %v4007, %v4012
    %v4058 = vmul.f32 %v4007, %v4016
    %v4059 = vmul.f32 %v4007, %v4020
    %v4060 = vmul.f32 %v4007, %v4024
    %v4061 = vmul.f32 %v4007, %v4028
    %v4062 = vmul.f32 %v4007, %v4032
    %v4063 = vmul.f32 %v4007, %v4036
    %v4064 = vmul.f32 %v4007, %v4040
    %v4065 = vmul.f32 %v4007, %v4044
    %v4066 = vmul.f32 %v4007, %v4048
    %v4067 = vmul.f32 %v4007, %v4052
    %v4068 = vmul.f32 %v4007, %v1709
    %v4069 = vmul.f32 %v4007, %v4056
    %v4070 = vadd.f32 %v3943, %v4057
    %v4071 = vadd.f32 %v3944, %v4058
    %v4072 = vadd.f32 %v3945, %v4059
    %v4073 = vadd.f32 %v3946, %v4060
    %v4074 = vadd.f32 %v3947, %v4061
    %v4075 = vadd.f32 %v3948, %v4062
    %v4076 = vadd.f32 %v3949, %v4063
    %v4077 = vadd.f32 %v3950, %v4064
    %v4078 = vadd.f32 %v3951, %v4065
    %v4079 = vadd.f32 %v3952, %v4066
    %v4080 = vadd.f32 %v3953, %v4067
    %v4081 = vadd.f32 %v3954, %v4068
    %v4082 = vadd.f32 %v3955, %v4069
    %4083 = vrot.lane.b32.xlu0 %v51, 28
    %v4084 = vpop.permute.xlu0 %4083
    %4085 = vrot.lane.b32.xlu0 %v55, 28
    %v4086 = vpop.permute.xlu0 %4085
    %4087 = vrot.lane.b32.xlu0 %v59, 28
    %v4088 = vpop.permute.xlu0 %4087
    %4089 = vrot.lane.b32.xlu0 %v63, 28
    %v4090 = vpop.permute.xlu0 %4089
    %4091 = vrot.lane.b32.xlu0 %v67, 28
    %v4092 = vpop.permute.xlu0 %4091
    %4093 = vrot.lane.b32.xlu0 %v71, 28
    %v4094 = vpop.permute.xlu0 %4093
    %4095 = vrot.lane.b32.xlu0 %v75, 28
    %v4096 = vpop.permute.xlu0 %4095
    %4097 = vrot.lane.b32.xlu0 %v79, 28
    %v4098 = vpop.permute.xlu0 %4097
    %4099 = vrot.lane.b32.xlu0 %v83, 28
    %v4100 = vpop.permute.xlu0 %4099
    %4101 = vrot.lane.b32.xlu0 %v87, 28
    %v4102 = vpop.permute.xlu0 %4101
    %4103 = vrot.lane.b32.xlu0 %v91, 28
    %v4104 = vpop.permute.xlu0 %4103
    %4105 = vrot.lane.b32.xlu0 %v95, 28
    %v4106 = vpop.permute.xlu0 %4105
    %v4107 = vsel %vm316, %v4084, %v4086
    %v4108 = vsel %vm316, %v4086, %v4088
    %v4109 = vsel %vm316, %v4088, %v4090
    %v4110 = vsel %vm316, %v4090, %v4092
    %v4111 = vsel %vm316, %v4092, %v4094
    %v4112 = vsel %vm316, %v4094, %v4096
    %v4113 = vsel %vm316, %v4096, %v4098
    %v4114 = vsel %vm316, %v4098, %v4100
    %v4115 = vsel %vm316, %v4100, %v4102
    %v4116 = vsel %vm316, %v4102, %v4104
    %v4117 = vsel %vm316, %v4104, %v4106
    %v4131 = vsel %vm1810, %v4117, %v1785
    %4132 = vset.pattern.permute.xlu0 30
    %4133 = vperm.xlu0 %4132, %v36
    %v4134 = vpop.permute.xlu0 %4133
    %v4136 = vlaneseq
    %v4137 = vshrl.u32 %v4136, 7
    %v4138 = vsub.s32 0, %v4137
    %v4139 = vrot.slane %v4107, %v4138
    %v4140 = vlaneseq
    %v4141 = vshrl.u32 %v4140, 7
    %v4142 = vsub.s32 0, %v4141
    %v4143 = vrot.slane %v4108, %v4142
    %v4144 = vlaneseq
    %v4145 = vshrl.u32 %v4144, 7
    %v4146 = vsub.s32 0, %v4145
    %v4147 = vrot.slane %v4109, %v4146
    %v4148 = vlaneseq
    %v4149 = vshrl.u32 %v4148, 7
    %v4150 = vsub.s32 0, %v4149
    %v4151 = vrot.slane %v4110, %v4150
    %v4152 = vlaneseq
    %v4153 = vshrl.u32 %v4152, 7
    %v4154 = vsub.s32 0, %v4153
    %v4155 = vrot.slane %v4111, %v4154
    %v4156 = vlaneseq
    %v4157 = vshrl.u32 %v4156, 7
    %v4158 = vsub.s32 0, %v4157
    %v4159 = vrot.slane %v4112, %v4158
    %v4160 = vlaneseq
    %v4161 = vshrl.u32 %v4160, 7
    %v4162 = vsub.s32 0, %v4161
    %v4163 = vrot.slane %v4113, %v4162
    %v4164 = vlaneseq
    %v4165 = vshrl.u32 %v4164, 7
    %v4166 = vsub.s32 0, %v4165
    %v4167 = vrot.slane %v4114, %v4166
    %v4168 = vlaneseq
    %v4169 = vshrl.u32 %v4168, 7
    %v4170 = vsub.s32 0, %v4169
    %v4171 = vrot.slane %v4115, %v4170
    %v4172 = vlaneseq
    %v4173 = vshrl.u32 %v4172, 7
    %v4174 = vsub.s32 0, %v4173
    %v4175 = vrot.slane %v4116, %v4174
    %v4176 = vlaneseq
    %v4177 = vshrl.u32 %v4176, 7
    %v4178 = vsub.s32 0, %v4177
    %v4179 = vrot.slane %v4131, %v4178
    %v4180 = vlaneseq
    %v4181 = vshrl.u32 %v4180, 7
    %v4182 = vsub.s32 0, %v4181
    %v4183 = vrot.slane %v1787, %v4182
    %v4184 = vmul.f32 %v4134, %v4139
    %v4185 = vmul.f32 %v4134, %v4143
    %v4186 = vmul.f32 %v4134, %v4147
    %v4187 = vmul.f32 %v4134, %v4151
    %v4188 = vmul.f32 %v4134, %v4155
    %v4189 = vmul.f32 %v4134, %v4159
    %v4190 = vmul.f32 %v4134, %v4163
    %v4191 = vmul.f32 %v4134, %v4167
    %v4192 = vmul.f32 %v4134, %v4171
    %v4193 = vmul.f32 %v4134, %v4175
    %v4194 = vmul.f32 %v4134, %v4179
    %v4195 = vmul.f32 %v4134, %v1847
    %v4196 = vmul.f32 %v4134, %v4183
    %v4197 = vadd.f32 %v4070, %v4184
    %v4198 = vadd.f32 %v4071, %v4185
    %v4199 = vadd.f32 %v4072, %v4186
    %v4200 = vadd.f32 %v4073, %v4187
    %v4201 = vadd.f32 %v4074, %v4188
    %v4202 = vadd.f32 %v4075, %v4189
    %v4203 = vadd.f32 %v4076, %v4190
    %v4204 = vadd.f32 %v4077, %v4191
    %v4205 = vadd.f32 %v4078, %v4192
    %v4206 = vadd.f32 %v4079, %v4193
    %v4207 = vadd.f32 %v4080, %v4194
    %v4208 = vadd.f32 %v4081, %v4195
    %v4209 = vadd.f32 %v4082, %v4196
    %4210 = vrot.lane.b32.xlu0 %v51, 26
    %v4211 = vpop.permute.xlu0 %4210
    %4212 = vrot.lane.b32.xlu0 %v55, 26
    %v4213 = vpop.permute.xlu0 %4212
    %4214 = vrot.lane.b32.xlu0 %v59, 26
    %v4215 = vpop.permute.xlu0 %4214
    %4216 = vrot.lane.b32.xlu0 %v63, 26
    %v4217 = vpop.permute.xlu0 %4216
    %4218 = vrot.lane.b32.xlu0 %v67, 26
    %v4219 = vpop.permute.xlu0 %4218
    %4220 = vrot.lane.b32.xlu0 %v71, 26
    %v4221 = vpop.permute.xlu0 %4220
    %4222 = vrot.lane.b32.xlu0 %v75, 26
    %v4223 = vpop.permute.xlu0 %4222
    %4224 = vrot.lane.b32.xlu0 %v79, 26
    %v4225 = vpop.permute.xlu0 %4224
    %4226 = vrot.lane.b32.xlu0 %v83, 26
    %v4227 = vpop.permute.xlu0 %4226
    %4228 = vrot.lane.b32.xlu0 %v87, 26
    %v4229 = vpop.permute.xlu0 %4228
    %4230 = vrot.lane.b32.xlu0 %v91, 26
    %v4231 = vpop.permute.xlu0 %4230
    %4232 = vrot.lane.b32.xlu0 %v95, 26
    %v4233 = vpop.permute.xlu0 %4232
    %v4234 = vsel %vm455, %v4211, %v4213
    %v4235 = vsel %vm455, %v4213, %v4215
    %v4236 = vsel %vm455, %v4215, %v4217
    %v4237 = vsel %vm455, %v4217, %v4219
    %v4238 = vsel %vm455, %v4219, %v4221
    %v4239 = vsel %vm455, %v4221, %v4223
    %v4240 = vsel %vm455, %v4223, %v4225
    %v4241 = vsel %vm455, %v4225, %v4227
    %v4242 = vsel %vm455, %v4227, %v4229
    %v4243 = vsel %vm455, %v4229, %v4231
    %v4244 = vsel %vm455, %v4231, %v4233
    %4256 = vrot.lane.b32.xlu0 %v47, 58
    %v4257 = vpop.permute.xlu0 %4256
    %4258 = vrot.lane.b32.xlu0 %v51, 58
    %v4259 = vpop.permute.xlu0 %4258
    %vm4260 = vcmask 474112
    %v4261 = vsel %vm4260, %v4257, %v4259
    %v4265 = vsel %vm4260, %v4244, %v4257
    %4266 = vset.pattern.permute.xlu0 31
    %4267 = vperm.xlu0 %4266, %v36
    %v4268 = vpop.permute.xlu0 %4267
    %v4270 = vlaneseq
    %v4271 = vshrl.u32 %v4270, 7
    %v4272 = vsub.s32 0, %v4271
    %v4273 = vrot.slane %v4234, %v4272
    %v4274 = vlaneseq
    %v4275 = vshrl.u32 %v4274, 7
    %v4276 = vsub.s32 0, %v4275
    %v4277 = vrot.slane %v4235, %v4276
    %v4278 = vlaneseq
    %v4279 = vshrl.u32 %v4278, 7
    %v4280 = vsub.s32 0, %v4279
    %v4281 = vrot.slane %v4236, %v4280
    %v4282 = vlaneseq
    %v4283 = vshrl.u32 %v4282, 7
    %v4284 = vsub.s32 0, %v4283
    %v4285 = vrot.slane %v4237, %v4284
    %v4286 = vlaneseq
    %v4287 = vshrl.u32 %v4286, 7
    %v4288 = vsub.s32 0, %v4287
    %v4289 = vrot.slane %v4238, %v4288
    %v4290 = vlaneseq
    %v4291 = vshrl.u32 %v4290, 7
    %v4292 = vsub.s32 0, %v4291
    %v4293 = vrot.slane %v4239, %v4292
    %v4294 = vlaneseq
    %v4295 = vshrl.u32 %v4294, 7
    %v4296 = vsub.s32 0, %v4295
    %v4297 = vrot.slane %v4240, %v4296
    %v4298 = vlaneseq
    %v4299 = vshrl.u32 %v4298, 7
    %v4300 = vsub.s32 0, %v4299
    %v4301 = vrot.slane %v4241, %v4300
    %v4302 = vlaneseq
    %v4303 = vshrl.u32 %v4302, 7
    %v4304 = vsub.s32 0, %v4303
    %v4305 = vrot.slane %v4242, %v4304
    %v4306 = vlaneseq
    %v4307 = vshrl.u32 %v4306, 7
    %v4308 = vsub.s32 0, %v4307
    %v4309 = vrot.slane %v4243, %v4308
    %v4310 = vlaneseq
    %v4311 = vshrl.u32 %v4310, 7
    %v4312 = vsub.s32 0, %v4311
    %v4313 = vrot.slane %v4265, %v4312
    %v4314 = vlaneseq
    %v4315 = vshrl.u32 %v4314, 7
    %v4316 = vsub.s32 0, %v4315
    %v4317 = vrot.slane %v4261, %v4316
    %v4318 = vlaneseq
    %v4319 = vshrl.u32 %v4318, 7
    %v4320 = vsub.s32 0, %v4319
    %v4321 = vrot.slane %v4259, %v4320
    %v4322 = vmul.f32 %v4268, %v4273
    %v4323 = vmul.f32 %v4268, %v4277
    %v4324 = vmul.f32 %v4268, %v4281
    %v4325 = vmul.f32 %v4268, %v4285
    %v4326 = vmul.f32 %v4268, %v4289
    %v4327 = vmul.f32 %v4268, %v4293
    %v4328 = vmul.f32 %v4268, %v4297
    %v4329 = vmul.f32 %v4268, %v4301
    %v4330 = vmul.f32 %v4268, %v4305
    %v4331 = vmul.f32 %v4268, %v4309
    %v4332 = vmul.f32 %v4268, %v4313
    %v4333 = vmul.f32 %v4268, %v4317
    %v4334 = vmul.f32 %v4268, %v4321
    %v4335 = vadd.f32 %v4197, %v4322
    %v4336 = vadd.f32 %v4198, %v4323
    %v4337 = vadd.f32 %v4199, %v4324
    %v4338 = vadd.f32 %v4200, %v4325
    %v4339 = vadd.f32 %v4201, %v4326
    %v4340 = vadd.f32 %v4202, %v4327
    %v4341 = vadd.f32 %v4203, %v4328
    %v4342 = vadd.f32 %v4204, %v4329
    %v4343 = vadd.f32 %v4205, %v4330
    %v4344 = vadd.f32 %v4206, %v4331
    %v4345 = vadd.f32 %v4207, %v4332
    %v4346 = vadd.f32 %v4208, %v4333
    %v4347 = vadd.f32 %v4209, %v4334
    %4348 = vrot.lane.b32.xlu0 %v51, 24
    %v4349 = vpop.permute.xlu0 %4348
    %4350 = vrot.lane.b32.xlu0 %v55, 24
    %v4351 = vpop.permute.xlu0 %4350
    %4352 = vrot.lane.b32.xlu0 %v59, 24
    %v4353 = vpop.permute.xlu0 %4352
    %4354 = vrot.lane.b32.xlu0 %v63, 24
    %v4355 = vpop.permute.xlu0 %4354
    %4356 = vrot.lane.b32.xlu0 %v67, 24
    %v4357 = vpop.permute.xlu0 %4356
    %4358 = vrot.lane.b32.xlu0 %v71, 24
    %v4359 = vpop.permute.xlu0 %4358
    %4360 = vrot.lane.b32.xlu0 %v75, 24
    %v4361 = vpop.permute.xlu0 %4360
    %4362 = vrot.lane.b32.xlu0 %v79, 24
    %v4363 = vpop.permute.xlu0 %4362
    %4364 = vrot.lane.b32.xlu0 %v83, 24
    %v4365 = vpop.permute.xlu0 %4364
    %4366 = vrot.lane.b32.xlu0 %v87, 24
    %v4367 = vpop.permute.xlu0 %4366
    %4368 = vrot.lane.b32.xlu0 %v91, 24
    %v4369 = vpop.permute.xlu0 %4368
    %4370 = vrot.lane.b32.xlu0 %v95, 24
    %v4371 = vpop.permute.xlu0 %4370
    %v4372 = vsel %vm594, %v4349, %v4351
    %v4373 = vsel %vm594, %v4351, %v4353
    %v4374 = vsel %vm594, %v4353, %v4355
    %v4375 = vsel %vm594, %v4355, %v4357
    %v4376 = vsel %vm594, %v4357, %v4359
    %v4377 = vsel %vm594, %v4359, %v4361
    %v4378 = vsel %vm594, %v4361, %v4363
    %v4379 = vsel %vm594, %v4363, %v4365
    %v4380 = vsel %vm594, %v4365, %v4367
    %v4381 = vsel %vm594, %v4367, %v4369
    %v4382 = vsel %vm594, %v4369, %v4371
    %4394 = vrot.lane.b32.xlu0 %v47, 56
    %v4395 = vpop.permute.xlu0 %4394
    %4396 = vrot.lane.b32.xlu0 %v51, 56
    %v4397 = vpop.permute.xlu0 %4396
    %vm4398 = vcmask 457728
    %v4399 = vsel %vm4398, %v4395, %v4397
    %v4403 = vsel %vm4398, %v4382, %v4395
    %4404 = vset.pattern.permute.xlu0 32
    %4405 = vperm.xlu0 %4404, %v36
    %v4406 = vpop.permute.xlu0 %4405
    %v4408 = vlaneseq
    %v4409 = vshrl.u32 %v4408, 7
    %v4410 = vsub.s32 0, %v4409
    %v4411 = vrot.slane %v4372, %v4410
    %v4412 = vlaneseq
    %v4413 = vshrl.u32 %v4412, 7
    %v4414 = vsub.s32 0, %v4413
    %v4415 = vrot.slane %v4373, %v4414
    %v4416 = vlaneseq
    %v4417 = vshrl.u32 %v4416, 7
    %v4418 = vsub.s32 0, %v4417
    %v4419 = vrot.slane %v4374, %v4418
    %v4420 = vlaneseq
    %v4421 = vshrl.u32 %v4420, 7
    %v4422 = vsub.s32 0, %v4421
    %v4423 = vrot.slane %v4375, %v4422
    %v4424 = vlaneseq
    %v4425 = vshrl.u32 %v4424, 7
    %v4426 = vsub.s32 0, %v4425
    %v4427 = vrot.slane %v4376, %v4426
    %v4428 = vlaneseq
    %v4429 = vshrl.u32 %v4428, 7
    %v4430 = vsub.s32 0, %v4429
    %v4431 = vrot.slane %v4377, %v4430
    %v4432 = vlaneseq
    %v4433 = vshrl.u32 %v4432, 7
    %v4434 = vsub.s32 0, %v4433
    %v4435 = vrot.slane %v4378, %v4434
    %v4436 = vlaneseq
    %v4437 = vshrl.u32 %v4436, 7
    %v4438 = vsub.s32 0, %v4437
    %v4439 = vrot.slane %v4379, %v4438
    %v4440 = vlaneseq
    %v4441 = vshrl.u32 %v4440, 7
    %v4442 = vsub.s32 0, %v4441
    %v4443 = vrot.slane %v4380, %v4442
    %v4444 = vlaneseq
    %v4445 = vshrl.u32 %v4444, 7
    %v4446 = vsub.s32 0, %v4445
    %v4447 = vrot.slane %v4381, %v4446
    %v4448 = vlaneseq
    %v4449 = vshrl.u32 %v4448, 7
    %v4450 = vsub.s32 0, %v4449
    %v4451 = vrot.slane %v4403, %v4450
    %v4452 = vlaneseq
    %v4453 = vshrl.u32 %v4452, 7
    %v4454 = vsub.s32 0, %v4453
    %v4455 = vrot.slane %v4399, %v4454
    %v4456 = vlaneseq
    %v4457 = vshrl.u32 %v4456, 7
    %v4458 = vsub.s32 0, %v4457
    %v4459 = vrot.slane %v4397, %v4458
    %v4460 = vmul.f32 %v4406, %v4411
    %v4461 = vmul.f32 %v4406, %v4415
    %v4462 = vmul.f32 %v4406, %v4419
    %v4463 = vmul.f32 %v4406, %v4423
    %v4464 = vmul.f32 %v4406, %v4427
    %v4465 = vmul.f32 %v4406, %v4431
    %v4466 = vmul.f32 %v4406, %v4435
    %v4467 = vmul.f32 %v4406, %v4439
    %v4468 = vmul.f32 %v4406, %v4443
    %v4469 = vmul.f32 %v4406, %v4447
    %v4470 = vmul.f32 %v4406, %v4451
    %v4471 = vmul.f32 %v4406, %v4455
    %v4472 = vmul.f32 %v4406, %v4459
    %v4473 = vadd.f32 %v4335, %v4460
    %v4474 = vadd.f32 %v4336, %v4461
    %v4475 = vadd.f32 %v4337, %v4462
    %v4476 = vadd.f32 %v4338, %v4463
    %v4477 = vadd.f32 %v4339, %v4464
    %v4478 = vadd.f32 %v4340, %v4465
    %v4479 = vadd.f32 %v4341, %v4466
    %v4480 = vadd.f32 %v4342, %v4467
    %v4481 = vadd.f32 %v4343, %v4468
    %v4482 = vadd.f32 %v4344, %v4469
    %v4483 = vadd.f32 %v4345, %v4470
    %v4484 = vadd.f32 %v4346, %v4471
    %v4485 = vadd.f32 %v4347, %v4472
    %4486 = vrot.lane.b32.xlu0 %v51, 22
    %v4487 = vpop.permute.xlu0 %4486
    %4488 = vrot.lane.b32.xlu0 %v55, 22
    %v4489 = vpop.permute.xlu0 %4488
    %4490 = vrot.lane.b32.xlu0 %v59, 22
    %v4491 = vpop.permute.xlu0 %4490
    %4492 = vrot.lane.b32.xlu0 %v63, 22
    %v4493 = vpop.permute.xlu0 %4492
    %4494 = vrot.lane.b32.xlu0 %v67, 22
    %v4495 = vpop.permute.xlu0 %4494
    %4496 = vrot.lane.b32.xlu0 %v71, 22
    %v4497 = vpop.permute.xlu0 %4496
    %4498 = vrot.lane.b32.xlu0 %v75, 22
    %v4499 = vpop.permute.xlu0 %4498
    %4500 = vrot.lane.b32.xlu0 %v79, 22
    %v4501 = vpop.permute.xlu0 %4500
    %4502 = vrot.lane.b32.xlu0 %v83, 22
    %v4503 = vpop.permute.xlu0 %4502
    %4504 = vrot.lane.b32.xlu0 %v87, 22
    %v4505 = vpop.permute.xlu0 %4504
    %4506 = vrot.lane.b32.xlu0 %v91, 22
    %v4507 = vpop.permute.xlu0 %4506
    %4508 = vrot.lane.b32.xlu0 %v95, 22
    %v4509 = vpop.permute.xlu0 %4508
    %v4510 = vsel %vm733, %v4487, %v4489
    %v4511 = vsel %vm733, %v4489, %v4491
    %v4512 = vsel %vm733, %v4491, %v4493
    %v4513 = vsel %vm733, %v4493, %v4495
    %v4514 = vsel %vm733, %v4495, %v4497
    %v4515 = vsel %vm733, %v4497, %v4499
    %v4516 = vsel %vm733, %v4499, %v4501
    %v4517 = vsel %vm733, %v4501, %v4503
    %v4518 = vsel %vm733, %v4503, %v4505
    %v4519 = vsel %vm733, %v4505, %v4507
    %v4520 = vsel %vm733, %v4507, %v4509
    %4532 = vrot.lane.b32.xlu0 %v47, 54
    %v4533 = vpop.permute.xlu0 %4532
    %4534 = vrot.lane.b32.xlu0 %v51, 54
    %v4535 = vpop.permute.xlu0 %4534
    %vm4536 = vcmask 441344
    %v4537 = vsel %vm4536, %v4533, %v4535
    %v4541 = vsel %vm4536, %v4520, %v4533
    %4542 = vset.pattern.permute.xlu0 33
    %4543 = vperm.xlu0 %4542, %v36
    %v4544 = vpop.permute.xlu0 %4543
    %v4546 = vlaneseq
    %v4547 = vshrl.u32 %v4546, 7
    %v4548 = vsub.s32 0, %v4547
    %v4549 = vrot.slane %v4510, %v4548
    %v4550 = vlaneseq
    %v4551 = vshrl.u32 %v4550, 7
    %v4552 = vsub.s32 0, %v4551
    %v4553 = vrot.slane %v4511, %v4552
    %v4554 = vlaneseq
    %v4555 = vshrl.u32 %v4554, 7
    %v4556 = vsub.s32 0, %v4555
    %v4557 = vrot.slane %v4512, %v4556
    %v4558 = vlaneseq
    %v4559 = vshrl.u32 %v4558, 7
    %v4560 = vsub.s32 0, %v4559
    %v4561 = vrot.slane %v4513, %v4560
    %v4562 = vlaneseq
    %v4563 = vshrl.u32 %v4562, 7
    %v4564 = vsub.s32 0, %v4563
    %v4565 = vrot.slane %v4514, %v4564
    %v4566 = vlaneseq
    %v4567 = vshrl.u32 %v4566, 7
    %v4568 = vsub.s32 0, %v4567
    %v4569 = vrot.slane %v4515, %v4568
    %v4570 = vlaneseq
    %v4571 = vshrl.u32 %v4570, 7
    %v4572 = vsub.s32 0, %v4571
    %v4573 = vrot.slane %v4516, %v4572
    %v4574 = vlaneseq
    %v4575 = vshrl.u32 %v4574, 7
    %v4576 = vsub.s32 0, %v4575
    %v4577 = vrot.slane %v4517, %v4576
    %v4578 = vlaneseq
    %v4579 = vshrl.u32 %v4578, 7
    %v4580 = vsub.s32 0, %v4579
    %v4581 = vrot.slane %v4518, %v4580
    %v4582 = vlaneseq
    %v4583 = vshrl.u32 %v4582, 7
    %v4584 = vsub.s32 0, %v4583
    %v4585 = vrot.slane %v4519, %v4584
    %v4586 = vlaneseq
    %v4587 = vshrl.u32 %v4586, 7
    %v4588 = vsub.s32 0, %v4587
    %v4589 = vrot.slane %v4541, %v4588
    %v4590 = vlaneseq
    %v4591 = vshrl.u32 %v4590, 7
    %v4592 = vsub.s32 0, %v4591
    %v4593 = vrot.slane %v4537, %v4592
    %v4594 = vlaneseq
    %v4595 = vshrl.u32 %v4594, 7
    %v4596 = vsub.s32 0, %v4595
    %v4597 = vrot.slane %v4535, %v4596
    %v4598 = vmul.f32 %v4544, %v4549
    %v4599 = vmul.f32 %v4544, %v4553
    %v4600 = vmul.f32 %v4544, %v4557
    %v4601 = vmul.f32 %v4544, %v4561
    %v4602 = vmul.f32 %v4544, %v4565
    %v4603 = vmul.f32 %v4544, %v4569
    %v4604 = vmul.f32 %v4544, %v4573
    %v4605 = vmul.f32 %v4544, %v4577
    %v4606 = vmul.f32 %v4544, %v4581
    %v4607 = vmul.f32 %v4544, %v4585
    %v4608 = vmul.f32 %v4544, %v4589
    %v4609 = vmul.f32 %v4544, %v4593
    %v4610 = vmul.f32 %v4544, %v4597
    %v4611 = vadd.f32 %v4473, %v4598
    %v4612 = vadd.f32 %v4474, %v4599
    %v4613 = vadd.f32 %v4475, %v4600
    %v4614 = vadd.f32 %v4476, %v4601
    %v4615 = vadd.f32 %v4477, %v4602
    %v4616 = vadd.f32 %v4478, %v4603
    %v4617 = vadd.f32 %v4479, %v4604
    %v4618 = vadd.f32 %v4480, %v4605
    %v4619 = vadd.f32 %v4481, %v4606
    %v4620 = vadd.f32 %v4482, %v4607
    %v4621 = vadd.f32 %v4483, %v4608
    %v4622 = vadd.f32 %v4484, %v4609
    %v4623 = vadd.f32 %v4485, %v4610
    %4624 = vrot.lane.b32.xlu0 %v51, 20
    %v4625 = vpop.permute.xlu0 %4624
    %4626 = vrot.lane.b32.xlu0 %v55, 20
    %v4627 = vpop.permute.xlu0 %4626
    %4628 = vrot.lane.b32.xlu0 %v59, 20
    %v4629 = vpop.permute.xlu0 %4628
    %4630 = vrot.lane.b32.xlu0 %v63, 20
    %v4631 = vpop.permute.xlu0 %4630
    %4632 = vrot.lane.b32.xlu0 %v67, 20
    %v4633 = vpop.permute.xlu0 %4632
    %4634 = vrot.lane.b32.xlu0 %v71, 20
    %v4635 = vpop.permute.xlu0 %4634
    %4636 = vrot.lane.b32.xlu0 %v75, 20
    %v4637 = vpop.permute.xlu0 %4636
    %4638 = vrot.lane.b32.xlu0 %v79, 20
    %v4639 = vpop.permute.xlu0 %4638
    %4640 = vrot.lane.b32.xlu0 %v83, 20
    %v4641 = vpop.permute.xlu0 %4640
    %4642 = vrot.lane.b32.xlu0 %v87, 20
    %v4643 = vpop.permute.xlu0 %4642
    %4644 = vrot.lane.b32.xlu0 %v91, 20
    %v4645 = vpop.permute.xlu0 %4644
    %4646 = vrot.lane.b32.xlu0 %v95, 20
    %v4647 = vpop.permute.xlu0 %4646
    %v4648 = vsel %vm872, %v4625, %v4627
    %v4649 = vsel %vm872, %v4627, %v4629
    %v4650 = vsel %vm872, %v4629, %v4631
    %v4651 = vsel %vm872, %v4631, %v4633
    %v4652 = vsel %vm872, %v4633, %v4635
    %v4653 = vsel %vm872, %v4635, %v4637
    %v4654 = vsel %vm872, %v4637, %v4639
    %v4655 = vsel %vm872, %v4639, %v4641
    %v4656 = vsel %vm872, %v4641, %v4643
    %v4657 = vsel %vm872, %v4643, %v4645
    %v4658 = vsel %vm872, %v4645, %v4647
    %4670 = vrot.lane.b32.xlu0 %v47, 52
    %v4671 = vpop.permute.xlu0 %4670
    %4672 = vrot.lane.b32.xlu0 %v51, 52
    %v4673 = vpop.permute.xlu0 %4672
    %vm4674 = vcmask 424960
    %v4675 = vsel %vm4674, %v4671, %v4673
    %v4679 = vsel %vm4674, %v4658, %v4671
    %4680 = vset.pattern.permute.xlu0 34
    %4681 = vperm.xlu0 %4680, %v36
    %v4682 = vpop.permute.xlu0 %4681
    %v4684 = vlaneseq
    %v4685 = vshrl.u32 %v4684, 7
    %v4686 = vsub.s32 0, %v4685
    %v4687 = vrot.slane %v4648, %v4686
    %v4688 = vlaneseq
    %v4689 = vshrl.u32 %v4688, 7
    %v4690 = vsub.s32 0, %v4689
    %v4691 = vrot.slane %v4649, %v4690
    %v4692 = vlaneseq
    %v4693 = vshrl.u32 %v4692, 7
    %v4694 = vsub.s32 0, %v4693
    %v4695 = vrot.slane %v4650, %v4694
    %v4696 = vlaneseq
    %v4697 = vshrl.u32 %v4696, 7
    %v4698 = vsub.s32 0, %v4697
    %v4699 = vrot.slane %v4651, %v4698
    %v4700 = vlaneseq
    %v4701 = vshrl.u32 %v4700, 7
    %v4702 = vsub.s32 0, %v4701
    %v4703 = vrot.slane %v4652, %v4702
    %v4704 = vlaneseq
    %v4705 = vshrl.u32 %v4704, 7
    %v4706 = vsub.s32 0, %v4705
    %v4707 = vrot.slane %v4653, %v4706
    %v4708 = vlaneseq
    %v4709 = vshrl.u32 %v4708, 7
    %v4710 = vsub.s32 0, %v4709
    %v4711 = vrot.slane %v4654, %v4710
    %v4712 = vlaneseq
    %v4713 = vshrl.u32 %v4712, 7
    %v4714 = vsub.s32 0, %v4713
    %v4715 = vrot.slane %v4655, %v4714
    %v4716 = vlaneseq
    %v4717 = vshrl.u32 %v4716, 7
    %v4718 = vsub.s32 0, %v4717
    %v4719 = vrot.slane %v4656, %v4718
    %v4720 = vlaneseq
    %v4721 = vshrl.u32 %v4720, 7
    %v4722 = vsub.s32 0, %v4721
    %v4723 = vrot.slane %v4657, %v4722
    %v4724 = vlaneseq
    %v4725 = vshrl.u32 %v4724, 7
    %v4726 = vsub.s32 0, %v4725
    %v4727 = vrot.slane %v4679, %v4726
    %v4728 = vlaneseq
    %v4729 = vshrl.u32 %v4728, 7
    %v4730 = vsub.s32 0, %v4729
    %v4731 = vrot.slane %v4675, %v4730
    %v4732 = vlaneseq
    %v4733 = vshrl.u32 %v4732, 7
    %v4734 = vsub.s32 0, %v4733
    %v4735 = vrot.slane %v4673, %v4734
    %v4736 = vmul.f32 %v4682, %v4687
    %v4737 = vmul.f32 %v4682, %v4691
    %v4738 = vmul.f32 %v4682, %v4695
    %v4739 = vmul.f32 %v4682, %v4699
    %v4740 = vmul.f32 %v4682, %v4703
    %v4741 = vmul.f32 %v4682, %v4707
    %v4742 = vmul.f32 %v4682, %v4711
    %v4743 = vmul.f32 %v4682, %v4715
    %v4744 = vmul.f32 %v4682, %v4719
    %v4745 = vmul.f32 %v4682, %v4723
    %v4746 = vmul.f32 %v4682, %v4727
    %v4747 = vmul.f32 %v4682, %v4731
    %v4748 = vmul.f32 %v4682, %v4735
    %v4749 = vadd.f32 %v4611, %v4736
    %v4750 = vadd.f32 %v4612, %v4737
    %v4751 = vadd.f32 %v4613, %v4738
    %v4752 = vadd.f32 %v4614, %v4739
    %v4753 = vadd.f32 %v4615, %v4740
    %v4754 = vadd.f32 %v4616, %v4741
    %v4755 = vadd.f32 %v4617, %v4742
    %v4756 = vadd.f32 %v4618, %v4743
    %v4757 = vadd.f32 %v4619, %v4744
    %v4758 = vadd.f32 %v4620, %v4745
    %v4759 = vadd.f32 %v4621, %v4746
    %v4760 = vadd.f32 %v4622, %v4747
    %v4761 = vadd.f32 %v4623, %v4748
    %4762 = vrot.lane.b32.xlu0 %v55, 104
    %v4763 = vpop.permute.xlu0 %4762
    %4764 = vrot.lane.b32.xlu0 %v59, 104
    %v4765 = vpop.permute.xlu0 %4764
    %4766 = vrot.lane.b32.xlu0 %v63, 104
    %v4767 = vpop.permute.xlu0 %4766
    %4768 = vrot.lane.b32.xlu0 %v67, 104
    %v4769 = vpop.permute.xlu0 %4768
    %4770 = vrot.lane.b32.xlu0 %v71, 104
    %v4771 = vpop.permute.xlu0 %4770
    %4772 = vrot.lane.b32.xlu0 %v75, 104
    %v4773 = vpop.permute.xlu0 %4772
    %4774 = vrot.lane.b32.xlu0 %v79, 104
    %v4775 = vpop.permute.xlu0 %4774
    %4776 = vrot.lane.b32.xlu0 %v83, 104
    %v4777 = vpop.permute.xlu0 %4776
    %4778 = vrot.lane.b32.xlu0 %v87, 104
    %v4779 = vpop.permute.xlu0 %4778
    %4780 = vrot.lane.b32.xlu0 %v91, 104
    %v4781 = vpop.permute.xlu0 %4780
    %4782 = vrot.lane.b32.xlu0 %v95, 104
    %v4783 = vpop.permute.xlu0 %4782
    %v4784 = vsel %vm1010, %v4763, %v4765
    %v4785 = vsel %vm1010, %v4765, %v4767
    %v4786 = vsel %vm1010, %v4767, %v4769
    %v4787 = vsel %vm1010, %v4769, %v4771
    %v4788 = vsel %vm1010, %v4771, %v4773
    %v4789 = vsel %vm1010, %v4773, %v4775
    %v4790 = vsel %vm1010, %v4775, %v4777
    %v4791 = vsel %vm1010, %v4777, %v4779
    %v4792 = vsel %vm1010, %v4779, %v4781
    %v4793 = vsel %vm1010, %v4781, %v4783
    %v4806 = vsel %vm2500, %v4783, %v2475
    %4807 = vset.pattern.permute.xlu0 35
    %4808 = vperm.xlu0 %4807, %v36
    %v4809 = vpop.permute.xlu0 %4808
    %v4811 = vlaneseq
    %v4812 = vshrl.u32 %v4811, 7
    %v4813 = vsub.s32 0, %v4812
    %v4814 = vrot.slane %v4784, %v4813
    %v4815 = vlaneseq
    %v4816 = vshrl.u32 %v4815, 7
    %v4817 = vsub.s32 0, %v4816
    %v4818 = vrot.slane %v4785, %v4817
    %v4819 = vlaneseq
    %v4820 = vshrl.u32 %v4819, 7
    %v4821 = vsub.s32 0, %v4820
    %v4822 = vrot.slane %v4786, %v4821
    %v4823 = vlaneseq
    %v4824 = vshrl.u32 %v4823, 7
    %v4825 = vsub.s32 0, %v4824
    %v4826 = vrot.slane %v4787, %v4825
    %v4827 = vlaneseq
    %v4828 = vshrl.u32 %v4827, 7
    %v4829 = vsub.s32 0, %v4828
    %v4830 = vrot.slane %v4788, %v4829
    %v4831 = vlaneseq
    %v4832 = vshrl.u32 %v4831, 7
    %v4833 = vsub.s32 0, %v4832
    %v4834 = vrot.slane %v4789, %v4833
    %v4835 = vlaneseq
    %v4836 = vshrl.u32 %v4835, 7
    %v4837 = vsub.s32 0, %v4836
    %v4838 = vrot.slane %v4790, %v4837
    %v4839 = vlaneseq
    %v4840 = vshrl.u32 %v4839, 7
    %v4841 = vsub.s32 0, %v4840
    %v4842 = vrot.slane %v4791, %v4841
    %v4843 = vlaneseq
    %v4844 = vshrl.u32 %v4843, 7
    %v4845 = vsub.s32 0, %v4844
    %v4846 = vrot.slane %v4792, %v4845
    %v4847 = vlaneseq
    %v4848 = vshrl.u32 %v4847, 7
    %v4849 = vsub.s32 0, %v4848
    %v4850 = vrot.slane %v4793, %v4849
    %v4851 = vlaneseq
    %v4852 = vshrl.u32 %v4851, 7
    %v4853 = vsub.s32 0, %v4852
    %v4854 = vrot.slane %v4806, %v4853
    %v4855 = vmul.f32 %v4809, %v4814
    %v4856 = vmul.f32 %v4809, %v4818
    %v4857 = vmul.f32 %v4809, %v4822
    %v4858 = vmul.f32 %v4809, %v4826
    %v4859 = vmul.f32 %v4809, %v4830
    %v4860 = vmul.f32 %v4809, %v4834
    %v4861 = vmul.f32 %v4809, %v4838
    %v4862 = vmul.f32 %v4809, %v4842
    %v4863 = vmul.f32 %v4809, %v4846
    %v4864 = vmul.f32 %v4809, %v4850
    %v4865 = vmul.f32 %v4809, %v4854
    %v4866 = vmul.f32 %v4809, %v2537
    %v4867 = vmul.f32 %v4809, %v2541
    %v4868 = vadd.f32 %v4749, %v4855
    %v4869 = vadd.f32 %v4750, %v4856
    %v4870 = vadd.f32 %v4751, %v4857
    %v4871 = vadd.f32 %v4752, %v4858
    %v4872 = vadd.f32 %v4753, %v4859
    %v4873 = vadd.f32 %v4754, %v4860
    %v4874 = vadd.f32 %v4755, %v4861
    %v4875 = vadd.f32 %v4756, %v4862
    %v4876 = vadd.f32 %v4757, %v4863
    %v4877 = vadd.f32 %v4758, %v4864
    %v4878 = vadd.f32 %v4759, %v4865
    %v4879 = vadd.f32 %v4760, %v4866
    %v4880 = vadd.f32 %v4761, %v4867
    %4881 = vrot.lane.b32.xlu0 %v55, 102
    %v4882 = vpop.permute.xlu0 %4881
    %4883 = vrot.lane.b32.xlu0 %v59, 102
    %v4884 = vpop.permute.xlu0 %4883
    %4885 = vrot.lane.b32.xlu0 %v63, 102
    %v4886 = vpop.permute.xlu0 %4885
    %4887 = vrot.lane.b32.xlu0 %v67, 102
    %v4888 = vpop.permute.xlu0 %4887
    %4889 = vrot.lane.b32.xlu0 %v71, 102
    %v4890 = vpop.permute.xlu0 %4889
    %4891 = vrot.lane.b32.xlu0 %v75, 102
    %v4892 = vpop.permute.xlu0 %4891
    %4893 = vrot.lane.b32.xlu0 %v79, 102
    %v4894 = vpop.permute.xlu0 %4893
    %4895 = vrot.lane.b32.xlu0 %v83, 102
    %v4896 = vpop.permute.xlu0 %4895
    %4897 = vrot.lane.b32.xlu0 %v87, 102
    %v4898 = vpop.permute.xlu0 %4897
    %4899 = vrot.lane.b32.xlu0 %v91, 102
    %v4900 = vpop.permute.xlu0 %4899
    %4901 = vrot.lane.b32.xlu0 %v95, 102
    %v4902 = vpop.permute.xlu0 %4901
    %v4903 = vsel %vm1148, %v4882, %v4884
    %v4904 = vsel %vm1148, %v4884, %v4886
    %v4905 = vsel %vm1148, %v4886, %v4888
    %v4906 = vsel %vm1148, %v4888, %v4890
    %v4907 = vsel %vm1148, %v4890, %v4892
    %v4908 = vsel %vm1148, %v4892, %v4894
    %v4909 = vsel %vm1148, %v4894, %v4896
    %v4910 = vsel %vm1148, %v4896, %v4898
    %v4911 = vsel %vm1148, %v4898, %v4900
    %v4912 = vsel %vm1148, %v4900, %v4902
    %v4925 = vsel %vm2638, %v4902, %v2613
    %4926 = vset.pattern.permute.xlu0 36
    %4927 = vperm.xlu0 %4926, %v36
    %v4928 = vpop.permute.xlu0 %4927
    %v4930 = vlaneseq
    %v4931 = vshrl.u32 %v4930, 7
    %v4932 = vsub.s32 0, %v4931
    %v4933 = vrot.slane %v4903, %v4932
    %v4934 = vlaneseq
    %v4935 = vshrl.u32 %v4934, 7
    %v4936 = vsub.s32 0, %v4935
    %v4937 = vrot.slane %v4904, %v4936
    %v4938 = vlaneseq
    %v4939 = vshrl.u32 %v4938, 7
    %v4940 = vsub.s32 0, %v4939
    %v4941 = vrot.slane %v4905, %v4940
    %v4942 = vlaneseq
    %v4943 = vshrl.u32 %v4942, 7
    %v4944 = vsub.s32 0, %v4943
    %v4945 = vrot.slane %v4906, %v4944
    %v4946 = vlaneseq
    %v4947 = vshrl.u32 %v4946, 7
    %v4948 = vsub.s32 0, %v4947
    %v4949 = vrot.slane %v4907, %v4948
    %v4950 = vlaneseq
    %v4951 = vshrl.u32 %v4950, 7
    %v4952 = vsub.s32 0, %v4951
    %v4953 = vrot.slane %v4908, %v4952
    %v4954 = vlaneseq
    %v4955 = vshrl.u32 %v4954, 7
    %v4956 = vsub.s32 0, %v4955
    %v4957 = vrot.slane %v4909, %v4956
    %v4958 = vlaneseq
    %v4959 = vshrl.u32 %v4958, 7
    %v4960 = vsub.s32 0, %v4959
    %v4961 = vrot.slane %v4910, %v4960
    %v4962 = vlaneseq
    %v4963 = vshrl.u32 %v4962, 7
    %v4964 = vsub.s32 0, %v4963
    %v4965 = vrot.slane %v4911, %v4964
    %v4966 = vlaneseq
    %v4967 = vshrl.u32 %v4966, 7
    %v4968 = vsub.s32 0, %v4967
    %v4969 = vrot.slane %v4912, %v4968
    %v4970 = vlaneseq
    %v4971 = vshrl.u32 %v4970, 7
    %v4972 = vsub.s32 0, %v4971
    %v4973 = vrot.slane %v4925, %v4972
    %v4974 = vmul.f32 %v4928, %v4933
    %v4975 = vmul.f32 %v4928, %v4937
    %v4976 = vmul.f32 %v4928, %v4941
    %v4977 = vmul.f32 %v4928, %v4945
    %v4978 = vmul.f32 %v4928, %v4949
    %v4979 = vmul.f32 %v4928, %v4953
    %v4980 = vmul.f32 %v4928, %v4957
    %v4981 = vmul.f32 %v4928, %v4961
    %v4982 = vmul.f32 %v4928, %v4965
    %v4983 = vmul.f32 %v4928, %v4969
    %v4984 = vmul.f32 %v4928, %v4973
    %v4985 = vmul.f32 %v4928, %v2675
    %v4986 = vmul.f32 %v4928, %v2679
    %v4987 = vadd.f32 %v4868, %v4974
    %v4988 = vadd.f32 %v4869, %v4975
    %v4989 = vadd.f32 %v4870, %v4976
    %v4990 = vadd.f32 %v4871, %v4977
    %v4991 = vadd.f32 %v4872, %v4978
    %v4992 = vadd.f32 %v4873, %v4979
    %v4993 = vadd.f32 %v4874, %v4980
    %v4994 = vadd.f32 %v4875, %v4981
    %v4995 = vadd.f32 %v4876, %v4982
    %v4996 = vadd.f32 %v4877, %v4983
    %v4997 = vadd.f32 %v4878, %v4984
    %v4998 = vadd.f32 %v4879, %v4985
    %v4999 = vadd.f32 %v4880, %v4986
    %5000 = vrot.lane.b32.xlu0 %v55, 100
    %v5001 = vpop.permute.xlu0 %5000
    %5002 = vrot.lane.b32.xlu0 %v59, 100
    %v5003 = vpop.permute.xlu0 %5002
    %5004 = vrot.lane.b32.xlu0 %v63, 100
    %v5005 = vpop.permute.xlu0 %5004
    %5006 = vrot.lane.b32.xlu0 %v67, 100
    %v5007 = vpop.permute.xlu0 %5006
    %5008 = vrot.lane.b32.xlu0 %v71, 100
    %v5009 = vpop.permute.xlu0 %5008
    %5010 = vrot.lane.b32.xlu0 %v75, 100
    %v5011 = vpop.permute.xlu0 %5010
    %5012 = vrot.lane.b32.xlu0 %v79, 100
    %v5013 = vpop.permute.xlu0 %5012
    %5014 = vrot.lane.b32.xlu0 %v83, 100
    %v5015 = vpop.permute.xlu0 %5014
    %5016 = vrot.lane.b32.xlu0 %v87, 100
    %v5017 = vpop.permute.xlu0 %5016
    %5018 = vrot.lane.b32.xlu0 %v91, 100
    %v5019 = vpop.permute.xlu0 %5018
    %5020 = vrot.lane.b32.xlu0 %v95, 100
    %v5021 = vpop.permute.xlu0 %5020
    %v5022 = vsel %vm1286, %v5001, %v5003
    %v5023 = vsel %vm1286, %v5003, %v5005
    %v5024 = vsel %vm1286, %v5005, %v5007
    %v5025 = vsel %vm1286, %v5007, %v5009
    %v5026 = vsel %vm1286, %v5009, %v5011
    %v5027 = vsel %vm1286, %v5011, %v5013
    %v5028 = vsel %vm1286, %v5013, %v5015
    %v5029 = vsel %vm1286, %v5015, %v5017
    %v5030 = vsel %vm1286, %v5017, %v5019
    %v5031 = vsel %vm1286, %v5019, %v5021
    %v5044 = vsel %vm2776, %v5021, %v2751
    %5045 = vset.pattern.permute.xlu0 37
    %5046 = vperm.xlu0 %5045, %v36
    %v5047 = vpop.permute.xlu0 %5046
    %v5049 = vlaneseq
    %v5050 = vshrl.u32 %v5049, 7
    %v5051 = vsub.s32 0, %v5050
    %v5052 = vrot.slane %v5022, %v5051
    %v5053 = vlaneseq
    %v5054 = vshrl.u32 %v5053, 7
    %v5055 = vsub.s32 0, %v5054
    %v5056 = vrot.slane %v5023, %v5055
    %v5057 = vlaneseq
    %v5058 = vshrl.u32 %v5057, 7
    %v5059 = vsub.s32 0, %v5058
    %v5060 = vrot.slane %v5024, %v5059
    %v5061 = vlaneseq
    %v5062 = vshrl.u32 %v5061, 7
    %v5063 = vsub.s32 0, %v5062
    %v5064 = vrot.slane %v5025, %v5063
    %v5065 = vlaneseq
    %v5066 = vshrl.u32 %v5065, 7
    %v5067 = vsub.s32 0, %v5066
    %v5068 = vrot.slane %v5026, %v5067
    %v5069 = vlaneseq
    %v5070 = vshrl.u32 %v5069, 7
    %v5071 = vsub.s32 0, %v5070
    %v5072 = vrot.slane %v5027, %v5071
    %v5073 = vlaneseq
    %v5074 = vshrl.u32 %v5073, 7
    %v5075 = vsub.s32 0, %v5074
    %v5076 = vrot.slane %v5028, %v5075
    %v5077 = vlaneseq
    %v5078 = vshrl.u32 %v5077, 7
    %v5079 = vsub.s32 0, %v5078
    %v5080 = vrot.slane %v5029, %v5079
    %v5081 = vlaneseq
    %v5082 = vshrl.u32 %v5081, 7
    %v5083 = vsub.s32 0, %v5082
    %v5084 = vrot.slane %v5030, %v5083
    %v5085 = vlaneseq
    %v5086 = vshrl.u32 %v5085, 7
    %v5087 = vsub.s32 0, %v5086
    %v5088 = vrot.slane %v5031, %v5087
    %v5089 = vlaneseq
    %v5090 = vshrl.u32 %v5089, 7
    %v5091 = vsub.s32 0, %v5090
    %v5092 = vrot.slane %v5044, %v5091
    %v5093 = vmul.f32 %v5047, %v5052
    %v5094 = vmul.f32 %v5047, %v5056
    %v5095 = vmul.f32 %v5047, %v5060
    %v5096 = vmul.f32 %v5047, %v5064
    %v5097 = vmul.f32 %v5047, %v5068
    %v5098 = vmul.f32 %v5047, %v5072
    %v5099 = vmul.f32 %v5047, %v5076
    %v5100 = vmul.f32 %v5047, %v5080
    %v5101 = vmul.f32 %v5047, %v5084
    %v5102 = vmul.f32 %v5047, %v5088
    %v5103 = vmul.f32 %v5047, %v5092
    %v5104 = vmul.f32 %v5047, %v2813
    %v5105 = vmul.f32 %v5047, %v2817
    %v5106 = vadd.f32 %v4987, %v5093
    %v5107 = vadd.f32 %v4988, %v5094
    %v5108 = vadd.f32 %v4989, %v5095
    %v5109 = vadd.f32 %v4990, %v5096
    %v5110 = vadd.f32 %v4991, %v5097
    %v5111 = vadd.f32 %v4992, %v5098
    %v5112 = vadd.f32 %v4993, %v5099
    %v5113 = vadd.f32 %v4994, %v5100
    %v5114 = vadd.f32 %v4995, %v5101
    %v5115 = vadd.f32 %v4996, %v5102
    %v5116 = vadd.f32 %v4997, %v5103
    %v5117 = vadd.f32 %v4998, %v5104
    %v5118 = vadd.f32 %v4999, %v5105
    %5119 = vrot.lane.b32.xlu0 %v55, 98
    %v5120 = vpop.permute.xlu0 %5119
    %5121 = vrot.lane.b32.xlu0 %v59, 98
    %v5122 = vpop.permute.xlu0 %5121
    %5123 = vrot.lane.b32.xlu0 %v63, 98
    %v5124 = vpop.permute.xlu0 %5123
    %5125 = vrot.lane.b32.xlu0 %v67, 98
    %v5126 = vpop.permute.xlu0 %5125
    %5127 = vrot.lane.b32.xlu0 %v71, 98
    %v5128 = vpop.permute.xlu0 %5127
    %5129 = vrot.lane.b32.xlu0 %v75, 98
    %v5130 = vpop.permute.xlu0 %5129
    %5131 = vrot.lane.b32.xlu0 %v79, 98
    %v5132 = vpop.permute.xlu0 %5131
    %5133 = vrot.lane.b32.xlu0 %v83, 98
    %v5134 = vpop.permute.xlu0 %5133
    %5135 = vrot.lane.b32.xlu0 %v87, 98
    %v5136 = vpop.permute.xlu0 %5135
    %5137 = vrot.lane.b32.xlu0 %v91, 98
    %v5138 = vpop.permute.xlu0 %5137
    %5139 = vrot.lane.b32.xlu0 %v95, 98
    %v5140 = vpop.permute.xlu0 %5139
    %v5141 = vsel %vm1424, %v5120, %v5122
    %v5142 = vsel %vm1424, %v5122, %v5124
    %v5143 = vsel %vm1424, %v5124, %v5126
    %v5144 = vsel %vm1424, %v5126, %v5128
    %v5145 = vsel %vm1424, %v5128, %v5130
    %v5146 = vsel %vm1424, %v5130, %v5132
    %v5147 = vsel %vm1424, %v5132, %v5134
    %v5148 = vsel %vm1424, %v5134, %v5136
    %v5149 = vsel %vm1424, %v5136, %v5138
    %v5150 = vsel %vm1424, %v5138, %v5140
    %5162 = vrot.lane.b32.xlu0 %v47, 2
    %v5163 = vpop.permute.xlu0 %5162
    %5164 = vrot.lane.b32.xlu0 %v51, 2
    %v5165 = vpop.permute.xlu0 %5164
    %5166 = vrot.lane.b32.xlu0 %v55, 2
    %v5167 = vpop.permute.xlu0 %5166
    %vm5168 = vcmask 15360
    %v5169 = vsel %vm5168, %v5163, %v5165
    %v5170 = vsel %vm5168, %v5165, %v5167
    %v5174 = vsel %vm5168, %v5140, %v5163
    %5175 = vset.pattern.permute.xlu0 38
    %5176 = vperm.xlu0 %5175, %v36
    %v5177 = vpop.permute.xlu0 %5176
    %v5179 = vlaneseq
    %v5180 = vshrl.u32 %v5179, 7
    %v5181 = vsub.s32 0, %v5180
    %v5182 = vrot.slane %v5141, %v5181
    %v5183 = vlaneseq
    %v5184 = vshrl.u32 %v5183, 7
    %v5185 = vsub.s32 0, %v5184
    %v5186 = vrot.slane %v5142, %v5185
    %v5187 = vlaneseq
    %v5188 = vshrl.u32 %v5187, 7
    %v5189 = vsub.s32 0, %v5188
    %v5190 = vrot.slane %v5143, %v5189
    %v5191 = vlaneseq
    %v5192 = vshrl.u32 %v5191, 7
    %v5193 = vsub.s32 0, %v5192
    %v5194 = vrot.slane %v5144, %v5193
    %v5195 = vlaneseq
    %v5196 = vshrl.u32 %v5195, 7
    %v5197 = vsub.s32 0, %v5196
    %v5198 = vrot.slane %v5145, %v5197
    %v5199 = vlaneseq
    %v5200 = vshrl.u32 %v5199, 7
    %v5201 = vsub.s32 0, %v5200
    %v5202 = vrot.slane %v5146, %v5201
    %v5203 = vlaneseq
    %v5204 = vshrl.u32 %v5203, 7
    %v5205 = vsub.s32 0, %v5204
    %v5206 = vrot.slane %v5147, %v5205
    %v5207 = vlaneseq
    %v5208 = vshrl.u32 %v5207, 7
    %v5209 = vsub.s32 0, %v5208
    %v5210 = vrot.slane %v5148, %v5209
    %v5211 = vlaneseq
    %v5212 = vshrl.u32 %v5211, 7
    %v5213 = vsub.s32 0, %v5212
    %v5214 = vrot.slane %v5149, %v5213
    %v5215 = vlaneseq
    %v5216 = vshrl.u32 %v5215, 7
    %v5217 = vsub.s32 0, %v5216
    %v5218 = vrot.slane %v5150, %v5217
    %v5219 = vlaneseq
    %v5220 = vshrl.u32 %v5219, 7
    %v5221 = vsub.s32 0, %v5220
    %v5222 = vrot.slane %v5174, %v5221
    %v5223 = vlaneseq
    %v5224 = vshrl.u32 %v5223, 7
    %v5225 = vsub.s32 0, %v5224
    %v5226 = vrot.slane %v5169, %v5225
    %v5227 = vlaneseq
    %v5228 = vshrl.u32 %v5227, 7
    %v5229 = vsub.s32 0, %v5228
    %v5230 = vrot.slane %v5170, %v5229
    %v5231 = vmul.f32 %v5177, %v5182
    %v5232 = vmul.f32 %v5177, %v5186
    %v5233 = vmul.f32 %v5177, %v5190
    %v5234 = vmul.f32 %v5177, %v5194
    %v5235 = vmul.f32 %v5177, %v5198
    %v5236 = vmul.f32 %v5177, %v5202
    %v5237 = vmul.f32 %v5177, %v5206
    %v5238 = vmul.f32 %v5177, %v5210
    %v5239 = vmul.f32 %v5177, %v5214
    %v5240 = vmul.f32 %v5177, %v5218
    %v5241 = vmul.f32 %v5177, %v5222
    %v5242 = vmul.f32 %v5177, %v5226
    %v5243 = vmul.f32 %v5177, %v5230
    %v5244 = vadd.f32 %v5106, %v5231
    %v5245 = vadd.f32 %v5107, %v5232
    %v5246 = vadd.f32 %v5108, %v5233
    %v5247 = vadd.f32 %v5109, %v5234
    %v5248 = vadd.f32 %v5110, %v5235
    %v5249 = vadd.f32 %v5111, %v5236
    %v5250 = vadd.f32 %v5112, %v5237
    %v5251 = vadd.f32 %v5113, %v5238
    %v5252 = vadd.f32 %v5114, %v5239
    %v5253 = vadd.f32 %v5115, %v5240
    %v5254 = vadd.f32 %v5116, %v5241
    %v5255 = vadd.f32 %v5117, %v5242
    %v5256 = vadd.f32 %v5118, %v5243
    %5257 = vrot.lane.b32.xlu0 %v55, 96
    %v5258 = vpop.permute.xlu0 %5257
    %5259 = vrot.lane.b32.xlu0 %v59, 96
    %v5260 = vpop.permute.xlu0 %5259
    %5261 = vrot.lane.b32.xlu0 %v63, 96
    %v5262 = vpop.permute.xlu0 %5261
    %5263 = vrot.lane.b32.xlu0 %v67, 96
    %v5264 = vpop.permute.xlu0 %5263
    %5265 = vrot.lane.b32.xlu0 %v71, 96
    %v5266 = vpop.permute.xlu0 %5265
    %5267 = vrot.lane.b32.xlu0 %v75, 96
    %v5268 = vpop.permute.xlu0 %5267
    %5269 = vrot.lane.b32.xlu0 %v79, 96
    %v5270 = vpop.permute.xlu0 %5269
    %5271 = vrot.lane.b32.xlu0 %v83, 96
    %v5272 = vpop.permute.xlu0 %5271
    %5273 = vrot.lane.b32.xlu0 %v87, 96
    %v5274 = vpop.permute.xlu0 %5273
    %5275 = vrot.lane.b32.xlu0 %v91, 96
    %v5276 = vpop.permute.xlu0 %5275
    %5277 = vrot.lane.b32.xlu0 %v95, 96
    %v5278 = vpop.permute.xlu0 %5277
    %v5279 = vsel %vm1562, %v5258, %v5260
    %v5280 = vsel %vm1562, %v5260, %v5262
    %v5281 = vsel %vm1562, %v5262, %v5264
    %v5282 = vsel %vm1562, %v5264, %v5266
    %v5283 = vsel %vm1562, %v5266, %v5268
    %v5284 = vsel %vm1562, %v5268, %v5270
    %v5285 = vsel %vm1562, %v5270, %v5272
    %v5286 = vsel %vm1562, %v5272, %v5274
    %v5287 = vsel %vm1562, %v5274, %v5276
    %v5288 = vsel %vm1562, %v5276, %v5278
    %5299 = vset.pattern.permute.xlu0 39
    %5300 = vperm.xlu0 %5299, %v36
    %v5301 = vpop.permute.xlu0 %5300
    %v5303 = vlaneseq
    %v5304 = vshrl.u32 %v5303, 7
    %v5305 = vsub.s32 0, %v5304
    %v5306 = vrot.slane %v5279, %v5305
    %v5307 = vlaneseq
    %v5308 = vshrl.u32 %v5307, 7
    %v5309 = vsub.s32 0, %v5308
    %v5310 = vrot.slane %v5280, %v5309
    %v5311 = vlaneseq
    %v5312 = vshrl.u32 %v5311, 7
    %v5313 = vsub.s32 0, %v5312
    %v5314 = vrot.slane %v5281, %v5313
    %v5315 = vlaneseq
    %v5316 = vshrl.u32 %v5315, 7
    %v5317 = vsub.s32 0, %v5316
    %v5318 = vrot.slane %v5282, %v5317
    %v5319 = vlaneseq
    %v5320 = vshrl.u32 %v5319, 7
    %v5321 = vsub.s32 0, %v5320
    %v5322 = vrot.slane %v5283, %v5321
    %v5323 = vlaneseq
    %v5324 = vshrl.u32 %v5323, 7
    %v5325 = vsub.s32 0, %v5324
    %v5326 = vrot.slane %v5284, %v5325
    %v5327 = vlaneseq
    %v5328 = vshrl.u32 %v5327, 7
    %v5329 = vsub.s32 0, %v5328
    %v5330 = vrot.slane %v5285, %v5329
    %v5331 = vlaneseq
    %v5332 = vshrl.u32 %v5331, 7
    %v5333 = vsub.s32 0, %v5332
    %v5334 = vrot.slane %v5286, %v5333
    %v5335 = vlaneseq
    %v5336 = vshrl.u32 %v5335, 7
    %v5337 = vsub.s32 0, %v5336
    %v5338 = vrot.slane %v5287, %v5337
    %v5339 = vlaneseq
    %v5340 = vshrl.u32 %v5339, 7
    %v5341 = vsub.s32 0, %v5340
    %v5342 = vrot.slane %v5288, %v5341
    %v5343 = vlaneseq
    %v5344 = vshrl.u32 %v5343, 7
    %v5345 = vsub.s32 0, %v5344
    %v5346 = vrot.slane %v47, %v5345
    %v5347 = vlaneseq
    %v5348 = vshrl.u32 %v5347, 7
    %v5349 = vsub.s32 0, %v5348
    %v5350 = vrot.slane %v51, %v5349
    %v5351 = vlaneseq
    %v5352 = vshrl.u32 %v5351, 7
    %v5353 = vsub.s32 0, %v5352
    %v5354 = vrot.slane %v55, %v5353
    %v5355 = vmul.f32 %v5301, %v5306
    %v5356 = vmul.f32 %v5301, %v5310
    %v5357 = vmul.f32 %v5301, %v5314
    %v5358 = vmul.f32 %v5301, %v5318
    %v5359 = vmul.f32 %v5301, %v5322
    %v5360 = vmul.f32 %v5301, %v5326
    %v5361 = vmul.f32 %v5301, %v5330
    %v5362 = vmul.f32 %v5301, %v5334
    %v5363 = vmul.f32 %v5301, %v5338
    %v5364 = vmul.f32 %v5301, %v5342
    %v5365 = vmul.f32 %v5301, %v5346
    %v5366 = vmul.f32 %v5301, %v5350
    %v5367 = vmul.f32 %v5301, %v5354
    %v5368 = vadd.f32 %v5244, %v5355
    %v5369 = vadd.f32 %v5245, %v5356
    %v5370 = vadd.f32 %v5246, %v5357
    %v5371 = vadd.f32 %v5247, %v5358
    %v5372 = vadd.f32 %v5248, %v5359
    %v5373 = vadd.f32 %v5249, %v5360
    %v5374 = vadd.f32 %v5250, %v5361
    %v5375 = vadd.f32 %v5251, %v5362
    %v5376 = vadd.f32 %v5252, %v5363
    %v5377 = vadd.f32 %v5253, %v5364
    %v5378 = vadd.f32 %v5254, %v5365
    %v5379 = vadd.f32 %v5255, %v5366
    %v5380 = vadd.f32 %v5256, %v5367
    %5381 = vrot.lane.b32.xlu0 %v55, 94
    %v5382 = vpop.permute.xlu0 %5381
    %5383 = vrot.lane.b32.xlu0 %v59, 94
    %v5384 = vpop.permute.xlu0 %5383
    %5385 = vrot.lane.b32.xlu0 %v63, 94
    %v5386 = vpop.permute.xlu0 %5385
    %5387 = vrot.lane.b32.xlu0 %v67, 94
    %v5388 = vpop.permute.xlu0 %5387
    %5389 = vrot.lane.b32.xlu0 %v71, 94
    %v5390 = vpop.permute.xlu0 %5389
    %5391 = vrot.lane.b32.xlu0 %v75, 94
    %v5392 = vpop.permute.xlu0 %5391
    %5393 = vrot.lane.b32.xlu0 %v79, 94
    %v5394 = vpop.permute.xlu0 %5393
    %5395 = vrot.lane.b32.xlu0 %v83, 94
    %v5396 = vpop.permute.xlu0 %5395
    %5397 = vrot.lane.b32.xlu0 %v87, 94
    %v5398 = vpop.permute.xlu0 %5397
    %5399 = vrot.lane.b32.xlu0 %v91, 94
    %v5400 = vpop.permute.xlu0 %5399
    %5401 = vrot.lane.b32.xlu0 %v95, 94
    %v5402 = vpop.permute.xlu0 %5401
    %v5403 = vsel %vm1700, %v5382, %v5384
    %v5404 = vsel %vm1700, %v5384, %v5386
    %v5405 = vsel %vm1700, %v5386, %v5388
    %v5406 = vsel %vm1700, %v5388, %v5390
    %v5407 = vsel %vm1700, %v5390, %v5392
    %v5408 = vsel %vm1700, %v5392, %v5394
    %v5409 = vsel %vm1700, %v5394, %v5396
    %v5410 = vsel %vm1700, %v5396, %v5398
    %v5411 = vsel %vm1700, %v5398, %v5400
    %v5412 = vsel %vm1700, %v5400, %v5402
    %v5425 = vsel %vm148, %v5412, %v123
    %5426 = vset.pattern.permute.xlu0 40
    %5427 = vperm.xlu0 %5426, %v36
    %v5428 = vpop.permute.xlu0 %5427
    %v5430 = vlaneseq
    %v5431 = vshrl.u32 %v5430, 7
    %v5432 = vsub.s32 0, %v5431
    %v5433 = vrot.slane %v5403, %v5432
    %v5434 = vlaneseq
    %v5435 = vshrl.u32 %v5434, 7
    %v5436 = vsub.s32 0, %v5435
    %v5437 = vrot.slane %v5404, %v5436
    %v5438 = vlaneseq
    %v5439 = vshrl.u32 %v5438, 7
    %v5440 = vsub.s32 0, %v5439
    %v5441 = vrot.slane %v5405, %v5440
    %v5442 = vlaneseq
    %v5443 = vshrl.u32 %v5442, 7
    %v5444 = vsub.s32 0, %v5443
    %v5445 = vrot.slane %v5406, %v5444
    %v5446 = vlaneseq
    %v5447 = vshrl.u32 %v5446, 7
    %v5448 = vsub.s32 0, %v5447
    %v5449 = vrot.slane %v5407, %v5448
    %v5450 = vlaneseq
    %v5451 = vshrl.u32 %v5450, 7
    %v5452 = vsub.s32 0, %v5451
    %v5453 = vrot.slane %v5408, %v5452
    %v5454 = vlaneseq
    %v5455 = vshrl.u32 %v5454, 7
    %v5456 = vsub.s32 0, %v5455
    %v5457 = vrot.slane %v5409, %v5456
    %v5458 = vlaneseq
    %v5459 = vshrl.u32 %v5458, 7
    %v5460 = vsub.s32 0, %v5459
    %v5461 = vrot.slane %v5410, %v5460
    %v5462 = vlaneseq
    %v5463 = vshrl.u32 %v5462, 7
    %v5464 = vsub.s32 0, %v5463
    %v5465 = vrot.slane %v5411, %v5464
    %v5466 = vlaneseq
    %v5467 = vshrl.u32 %v5466, 7
    %v5468 = vsub.s32 0, %v5467
    %v5469 = vrot.slane %v5425, %v5468
    %v5470 = vlaneseq
    %v5471 = vshrl.u32 %v5470, 7
    %v5472 = vsub.s32 0, %v5471
    %v5473 = vrot.slane %v127, %v5472
    %v5474 = vmul.f32 %v5428, %v5433
    %v5475 = vmul.f32 %v5428, %v5437
    %v5476 = vmul.f32 %v5428, %v5441
    %v5477 = vmul.f32 %v5428, %v5445
    %v5478 = vmul.f32 %v5428, %v5449
    %v5479 = vmul.f32 %v5428, %v5453
    %v5480 = vmul.f32 %v5428, %v5457
    %v5481 = vmul.f32 %v5428, %v5461
    %v5482 = vmul.f32 %v5428, %v5465
    %v5483 = vmul.f32 %v5428, %v5469
    %v5484 = vmul.f32 %v5428, %v186
    %v5485 = vmul.f32 %v5428, %v190
    %v5486 = vmul.f32 %v5428, %v5473
    %v5487 = vadd.f32 %v5368, %v5474
    %v5488 = vadd.f32 %v5369, %v5475
    %v5489 = vadd.f32 %v5370, %v5476
    %v5490 = vadd.f32 %v5371, %v5477
    %v5491 = vadd.f32 %v5372, %v5478
    %v5492 = vadd.f32 %v5373, %v5479
    %v5493 = vadd.f32 %v5374, %v5480
    %v5494 = vadd.f32 %v5375, %v5481
    %v5495 = vadd.f32 %v5376, %v5482
    %v5496 = vadd.f32 %v5377, %v5483
    %v5497 = vadd.f32 %v5378, %v5484
    %v5498 = vadd.f32 %v5379, %v5485
    %v5499 = vadd.f32 %v5380, %v5486
    %5500 = vrot.lane.b32.xlu0 %v55, 92
    %v5501 = vpop.permute.xlu0 %5500
    %5502 = vrot.lane.b32.xlu0 %v59, 92
    %v5503 = vpop.permute.xlu0 %5502
    %5504 = vrot.lane.b32.xlu0 %v63, 92
    %v5505 = vpop.permute.xlu0 %5504
    %5506 = vrot.lane.b32.xlu0 %v67, 92
    %v5507 = vpop.permute.xlu0 %5506
    %5508 = vrot.lane.b32.xlu0 %v71, 92
    %v5509 = vpop.permute.xlu0 %5508
    %5510 = vrot.lane.b32.xlu0 %v75, 92
    %v5511 = vpop.permute.xlu0 %5510
    %5512 = vrot.lane.b32.xlu0 %v79, 92
    %v5513 = vpop.permute.xlu0 %5512
    %5514 = vrot.lane.b32.xlu0 %v83, 92
    %v5515 = vpop.permute.xlu0 %5514
    %5516 = vrot.lane.b32.xlu0 %v87, 92
    %v5517 = vpop.permute.xlu0 %5516
    %5518 = vrot.lane.b32.xlu0 %v91, 92
    %v5519 = vpop.permute.xlu0 %5518
    %5520 = vrot.lane.b32.xlu0 %v95, 92
    %v5521 = vpop.permute.xlu0 %5520
    %v5522 = vsel %vm1838, %v5501, %v5503
    %v5523 = vsel %vm1838, %v5503, %v5505
    %v5524 = vsel %vm1838, %v5505, %v5507
    %v5525 = vsel %vm1838, %v5507, %v5509
    %v5526 = vsel %vm1838, %v5509, %v5511
    %v5527 = vsel %vm1838, %v5511, %v5513
    %v5528 = vsel %vm1838, %v5513, %v5515
    %v5529 = vsel %vm1838, %v5515, %v5517
    %v5530 = vsel %vm1838, %v5517, %v5519
    %v5531 = vsel %vm1838, %v5519, %v5521
    %v5544 = vsel %vm287, %v5531, %v262
    %5545 = vset.pattern.permute.xlu0 41
    %5546 = vperm.xlu0 %5545, %v36
    %v5547 = vpop.permute.xlu0 %5546
    %v5549 = vlaneseq
    %v5550 = vshrl.u32 %v5549, 7
    %v5551 = vsub.s32 0, %v5550
    %v5552 = vrot.slane %v5522, %v5551
    %v5553 = vlaneseq
    %v5554 = vshrl.u32 %v5553, 7
    %v5555 = vsub.s32 0, %v5554
    %v5556 = vrot.slane %v5523, %v5555
    %v5557 = vlaneseq
    %v5558 = vshrl.u32 %v5557, 7
    %v5559 = vsub.s32 0, %v5558
    %v5560 = vrot.slane %v5524, %v5559
    %v5561 = vlaneseq
    %v5562 = vshrl.u32 %v5561, 7
    %v5563 = vsub.s32 0, %v5562
    %v5564 = vrot.slane %v5525, %v5563
    %v5565 = vlaneseq
    %v5566 = vshrl.u32 %v5565, 7
    %v5567 = vsub.s32 0, %v5566
    %v5568 = vrot.slane %v5526, %v5567
    %v5569 = vlaneseq
    %v5570 = vshrl.u32 %v5569, 7
    %v5571 = vsub.s32 0, %v5570
    %v5572 = vrot.slane %v5527, %v5571
    %v5573 = vlaneseq
    %v5574 = vshrl.u32 %v5573, 7
    %v5575 = vsub.s32 0, %v5574
    %v5576 = vrot.slane %v5528, %v5575
    %v5577 = vlaneseq
    %v5578 = vshrl.u32 %v5577, 7
    %v5579 = vsub.s32 0, %v5578
    %v5580 = vrot.slane %v5529, %v5579
    %v5581 = vlaneseq
    %v5582 = vshrl.u32 %v5581, 7
    %v5583 = vsub.s32 0, %v5582
    %v5584 = vrot.slane %v5530, %v5583
    %v5585 = vlaneseq
    %v5586 = vshrl.u32 %v5585, 7
    %v5587 = vsub.s32 0, %v5586
    %v5588 = vrot.slane %v5544, %v5587
    %v5589 = vlaneseq
    %v5590 = vshrl.u32 %v5589, 7
    %v5591 = vsub.s32 0, %v5590
    %v5592 = vrot.slane %v266, %v5591
    %v5593 = vmul.f32 %v5547, %v5552
    %v5594 = vmul.f32 %v5547, %v5556
    %v5595 = vmul.f32 %v5547, %v5560
    %v5596 = vmul.f32 %v5547, %v5564
    %v5597 = vmul.f32 %v5547, %v5568
    %v5598 = vmul.f32 %v5547, %v5572
    %v5599 = vmul.f32 %v5547, %v5576
    %v5600 = vmul.f32 %v5547, %v5580
    %v5601 = vmul.f32 %v5547, %v5584
    %v5602 = vmul.f32 %v5547, %v5588
    %v5603 = vmul.f32 %v5547, %v325
    %v5604 = vmul.f32 %v5547, %v329
    %v5605 = vmul.f32 %v5547, %v5592
    %v5606 = vadd.f32 %v5487, %v5593
    %v5607 = vadd.f32 %v5488, %v5594
    %v5608 = vadd.f32 %v5489, %v5595
    %v5609 = vadd.f32 %v5490, %v5596
    %v5610 = vadd.f32 %v5491, %v5597
    %v5611 = vadd.f32 %v5492, %v5598
    %v5612 = vadd.f32 %v5493, %v5599
    %v5613 = vadd.f32 %v5494, %v5600
    %v5614 = vadd.f32 %v5495, %v5601
    %v5615 = vadd.f32 %v5496, %v5602
    %v5616 = vadd.f32 %v5497, %v5603
    %v5617 = vadd.f32 %v5498, %v5604
    %v5618 = vadd.f32 %v5499, %v5605
    %5619 = vrot.lane.b32.xlu0 %v55, 48
    %v5620 = vpop.permute.xlu0 %5619
    %5621 = vrot.lane.b32.xlu0 %v59, 48
    %v5622 = vpop.permute.xlu0 %5621
    %5623 = vrot.lane.b32.xlu0 %v63, 48
    %v5624 = vpop.permute.xlu0 %5623
    %5625 = vrot.lane.b32.xlu0 %v67, 48
    %v5626 = vpop.permute.xlu0 %5625
    %5627 = vrot.lane.b32.xlu0 %v71, 48
    %v5628 = vpop.permute.xlu0 %5627
    %5629 = vrot.lane.b32.xlu0 %v75, 48
    %v5630 = vpop.permute.xlu0 %5629
    %5631 = vrot.lane.b32.xlu0 %v79, 48
    %v5632 = vpop.permute.xlu0 %5631
    %5633 = vrot.lane.b32.xlu0 %v83, 48
    %v5634 = vpop.permute.xlu0 %5633
    %5635 = vrot.lane.b32.xlu0 %v87, 48
    %v5636 = vpop.permute.xlu0 %5635
    %5637 = vrot.lane.b32.xlu0 %v91, 48
    %v5638 = vpop.permute.xlu0 %5637
    %5639 = vrot.lane.b32.xlu0 %v95, 48
    %v5640 = vpop.permute.xlu0 %5639
    %v5641 = vsel %vm1976, %v5620, %v5622
    %v5642 = vsel %vm1976, %v5622, %v5624
    %v5643 = vsel %vm1976, %v5624, %v5626
    %v5644 = vsel %vm1976, %v5626, %v5628
    %v5645 = vsel %vm1976, %v5628, %v5630
    %v5646 = vsel %vm1976, %v5630, %v5632
    %v5647 = vsel %vm1976, %v5632, %v5634
    %v5648 = vsel %vm1976, %v5634, %v5636
    %v5649 = vsel %vm1976, %v5636, %v5638
    %v5650 = vsel %vm1976, %v5638, %v5640
    %5661 = vrot.lane.b32.xlu0 %v47, 80
    %v5662 = vpop.permute.xlu0 %5661
    %v5663 = vsel %vm3435, %v5662, %v3412
    %v5667 = vsel %vm3435, %v5650, %v5662
    %5668 = vset.pattern.permute.xlu0 42
    %5669 = vperm.xlu0 %5668, %v36
    %v5670 = vpop.permute.xlu0 %5669
    %v5672 = vlaneseq
    %v5673 = vshrl.u32 %v5672, 7
    %v5674 = vsub.s32 0, %v5673
    %v5675 = vrot.slane %v5641, %v5674
    %v5676 = vlaneseq
    %v5677 = vshrl.u32 %v5676, 7
    %v5678 = vsub.s32 0, %v5677
    %v5679 = vrot.slane %v5642, %v5678
    %v5680 = vlaneseq
    %v5681 = vshrl.u32 %v5680, 7
    %v5682 = vsub.s32 0, %v5681
    %v5683 = vrot.slane %v5643, %v5682
    %v5684 = vlaneseq
    %v5685 = vshrl.u32 %v5684, 7
    %v5686 = vsub.s32 0, %v5685
    %v5687 = vrot.slane %v5644, %v5686
    %v5688 = vlaneseq
    %v5689 = vshrl.u32 %v5688, 7
    %v5690 = vsub.s32 0, %v5689
    %v5691 = vrot.slane %v5645, %v5690
    %v5692 = vlaneseq
    %v5693 = vshrl.u32 %v5692, 7
    %v5694 = vsub.s32 0, %v5693
    %v5695 = vrot.slane %v5646, %v5694
    %v5696 = vlaneseq
    %v5697 = vshrl.u32 %v5696, 7
    %v5698 = vsub.s32 0, %v5697
    %v5699 = vrot.slane %v5647, %v5698
    %v5700 = vlaneseq
    %v5701 = vshrl.u32 %v5700, 7
    %v5702 = vsub.s32 0, %v5701
    %v5703 = vrot.slane %v5648, %v5702
    %v5704 = vlaneseq
    %v5705 = vshrl.u32 %v5704, 7
    %v5706 = vsub.s32 0, %v5705
    %v5707 = vrot.slane %v5649, %v5706
    %v5708 = vlaneseq
    %v5709 = vshrl.u32 %v5708, 7
    %v5710 = vsub.s32 0, %v5709
    %v5711 = vrot.slane %v5667, %v5710
    %v5712 = vlaneseq
    %v5713 = vshrl.u32 %v5712, 7
    %v5714 = vsub.s32 0, %v5713
    %v5715 = vrot.slane %v5663, %v5714
    %v5716 = vlaneseq
    %v5717 = vshrl.u32 %v5716, 7
    %v5718 = vsub.s32 0, %v5717
    %v5719 = vrot.slane %v3414, %v5718
    %v5720 = vmul.f32 %v5670, %v5675
    %v5721 = vmul.f32 %v5670, %v5679
    %v5722 = vmul.f32 %v5670, %v5683
    %v5723 = vmul.f32 %v5670, %v5687
    %v5724 = vmul.f32 %v5670, %v5691
    %v5725 = vmul.f32 %v5670, %v5695
    %v5726 = vmul.f32 %v5670, %v5699
    %v5727 = vmul.f32 %v5670, %v5703
    %v5728 = vmul.f32 %v5670, %v5707
    %v5729 = vmul.f32 %v5670, %v5711
    %v5730 = vmul.f32 %v5670, %v5715
    %v5731 = vmul.f32 %v5670, %v3475
    %v5732 = vmul.f32 %v5670, %v5719
    %v5733 = vadd.f32 %v5606, %v5720
    %v5734 = vadd.f32 %v5607, %v5721
    %v5735 = vadd.f32 %v5608, %v5722
    %v5736 = vadd.f32 %v5609, %v5723
    %v5737 = vadd.f32 %v5610, %v5724
    %v5738 = vadd.f32 %v5611, %v5725
    %v5739 = vadd.f32 %v5612, %v5726
    %v5740 = vadd.f32 %v5613, %v5727
    %v5741 = vadd.f32 %v5614, %v5728
    %v5742 = vadd.f32 %v5615, %v5729
    %v5743 = vadd.f32 %v5616, %v5730
    %v5744 = vadd.f32 %v5617, %v5731
    %v5745 = vadd.f32 %v5618, %v5732
    %5746 = vrot.lane.b32.xlu0 %v55, 46
    %v5747 = vpop.permute.xlu0 %5746
    %5748 = vrot.lane.b32.xlu0 %v59, 46
    %v5749 = vpop.permute.xlu0 %5748
    %5750 = vrot.lane.b32.xlu0 %v63, 46
    %v5751 = vpop.permute.xlu0 %5750
    %5752 = vrot.lane.b32.xlu0 %v67, 46
    %v5753 = vpop.permute.xlu0 %5752
    %5754 = vrot.lane.b32.xlu0 %v71, 46
    %v5755 = vpop.permute.xlu0 %5754
    %5756 = vrot.lane.b32.xlu0 %v75, 46
    %v5757 = vpop.permute.xlu0 %5756
    %5758 = vrot.lane.b32.xlu0 %v79, 46
    %v5759 = vpop.permute.xlu0 %5758
    %5760 = vrot.lane.b32.xlu0 %v83, 46
    %v5761 = vpop.permute.xlu0 %5760
    %5762 = vrot.lane.b32.xlu0 %v87, 46
    %v5763 = vpop.permute.xlu0 %5762
    %5764 = vrot.lane.b32.xlu0 %v91, 46
    %v5765 = vpop.permute.xlu0 %5764
    %5766 = vrot.lane.b32.xlu0 %v95, 46
    %v5767 = vpop.permute.xlu0 %5766
    %v5768 = vsel %vm2114, %v5747, %v5749
    %v5769 = vsel %vm2114, %v5749, %v5751
    %v5770 = vsel %vm2114, %v5751, %v5753
    %v5771 = vsel %vm2114, %v5753, %v5755
    %v5772 = vsel %vm2114, %v5755, %v5757
    %v5773 = vsel %vm2114, %v5757, %v5759
    %v5774 = vsel %vm2114, %v5759, %v5761
    %v5775 = vsel %vm2114, %v5761, %v5763
    %v5776 = vsel %vm2114, %v5763, %v5765
    %v5777 = vsel %vm2114, %v5765, %v5767
    %5788 = vrot.lane.b32.xlu0 %v47, 78
    %v5789 = vpop.permute.xlu0 %5788
    %v5790 = vsel %vm3574, %v5789, %v3551
    %v5794 = vsel %vm3574, %v5777, %v5789
    %5795 = vset.pattern.permute.xlu0 43
    %5796 = vperm.xlu0 %5795, %v36
    %v5797 = vpop.permute.xlu0 %5796
    %v5799 = vlaneseq
    %v5800 = vshrl.u32 %v5799, 7
    %v5801 = vsub.s32 0, %v5800
    %v5802 = vrot.slane %v5768, %v5801
    %v5803 = vlaneseq
    %v5804 = vshrl.u32 %v5803, 7
    %v5805 = vsub.s32 0, %v5804
    %v5806 = vrot.slane %v5769, %v5805
    %v5807 = vlaneseq
    %v5808 = vshrl.u32 %v5807, 7
    %v5809 = vsub.s32 0, %v5808
    %v5810 = vrot.slane %v5770, %v5809
    %v5811 = vlaneseq
    %v5812 = vshrl.u32 %v5811, 7
    %v5813 = vsub.s32 0, %v5812
    %v5814 = vrot.slane %v5771, %v5813
    %v5815 = vlaneseq
    %v5816 = vshrl.u32 %v5815, 7
    %v5817 = vsub.s32 0, %v5816
    %v5818 = vrot.slane %v5772, %v5817
    %v5819 = vlaneseq
    %v5820 = vshrl.u32 %v5819, 7
    %v5821 = vsub.s32 0, %v5820
    %v5822 = vrot.slane %v5773, %v5821
    %v5823 = vlaneseq
    %v5824 = vshrl.u32 %v5823, 7
    %v5825 = vsub.s32 0, %v5824
    %v5826 = vrot.slane %v5774, %v5825
    %v5827 = vlaneseq
    %v5828 = vshrl.u32 %v5827, 7
    %v5829 = vsub.s32 0, %v5828
    %v5830 = vrot.slane %v5775, %v5829
    %v5831 = vlaneseq
    %v5832 = vshrl.u32 %v5831, 7
    %v5833 = vsub.s32 0, %v5832
    %v5834 = vrot.slane %v5776, %v5833
    %v5835 = vlaneseq
    %v5836 = vshrl.u32 %v5835, 7
    %v5837 = vsub.s32 0, %v5836
    %v5838 = vrot.slane %v5794, %v5837
    %v5839 = vlaneseq
    %v5840 = vshrl.u32 %v5839, 7
    %v5841 = vsub.s32 0, %v5840
    %v5842 = vrot.slane %v5790, %v5841
    %v5843 = vlaneseq
    %v5844 = vshrl.u32 %v5843, 7
    %v5845 = vsub.s32 0, %v5844
    %v5846 = vrot.slane %v3553, %v5845
    %v5847 = vmul.f32 %v5797, %v5802
    %v5848 = vmul.f32 %v5797, %v5806
    %v5849 = vmul.f32 %v5797, %v5810
    %v5850 = vmul.f32 %v5797, %v5814
    %v5851 = vmul.f32 %v5797, %v5818
    %v5852 = vmul.f32 %v5797, %v5822
    %v5853 = vmul.f32 %v5797, %v5826
    %v5854 = vmul.f32 %v5797, %v5830
    %v5855 = vmul.f32 %v5797, %v5834
    %v5856 = vmul.f32 %v5797, %v5838
    %v5857 = vmul.f32 %v5797, %v5842
    %v5858 = vmul.f32 %v5797, %v3614
    %v5859 = vmul.f32 %v5797, %v5846
    %v5860 = vadd.f32 %v5733, %v5847
    %v5861 = vadd.f32 %v5734, %v5848
    %v5862 = vadd.f32 %v5735, %v5849
    %v5863 = vadd.f32 %v5736, %v5850
    %v5864 = vadd.f32 %v5737, %v5851
    %v5865 = vadd.f32 %v5738, %v5852
    %v5866 = vadd.f32 %v5739, %v5853
    %v5867 = vadd.f32 %v5740, %v5854
    %v5868 = vadd.f32 %v5741, %v5855
    %v5869 = vadd.f32 %v5742, %v5856
    %v5870 = vadd.f32 %v5743, %v5857
    %v5871 = vadd.f32 %v5744, %v5858
    %v5872 = vadd.f32 %v5745, %v5859
    %5873 = vrot.lane.b32.xlu0 %v55, 44
    %v5874 = vpop.permute.xlu0 %5873
    %5875 = vrot.lane.b32.xlu0 %v59, 44
    %v5876 = vpop.permute.xlu0 %5875
    %5877 = vrot.lane.b32.xlu0 %v63, 44
    %v5878 = vpop.permute.xlu0 %5877
    %5879 = vrot.lane.b32.xlu0 %v67, 44
    %v5880 = vpop.permute.xlu0 %5879
    %5881 = vrot.lane.b32.xlu0 %v71, 44
    %v5882 = vpop.permute.xlu0 %5881
    %5883 = vrot.lane.b32.xlu0 %v75, 44
    %v5884 = vpop.permute.xlu0 %5883
    %5885 = vrot.lane.b32.xlu0 %v79, 44
    %v5886 = vpop.permute.xlu0 %5885
    %5887 = vrot.lane.b32.xlu0 %v83, 44
    %v5888 = vpop.permute.xlu0 %5887
    %5889 = vrot.lane.b32.xlu0 %v87, 44
    %v5890 = vpop.permute.xlu0 %5889
    %5891 = vrot.lane.b32.xlu0 %v91, 44
    %v5892 = vpop.permute.xlu0 %5891
    %5893 = vrot.lane.b32.xlu0 %v95, 44
    %v5894 = vpop.permute.xlu0 %5893
    %v5895 = vsel %vm2252, %v5874, %v5876
    %v5896 = vsel %vm2252, %v5876, %v5878
    %v5897 = vsel %vm2252, %v5878, %v5880
    %v5898 = vsel %vm2252, %v5880, %v5882
    %v5899 = vsel %vm2252, %v5882, %v5884
    %v5900 = vsel %vm2252, %v5884, %v5886
    %v5901 = vsel %vm2252, %v5886, %v5888
    %v5902 = vsel %vm2252, %v5888, %v5890
    %v5903 = vsel %vm2252, %v5890, %v5892
    %v5904 = vsel %vm2252, %v5892, %v5894
    %5915 = vrot.lane.b32.xlu0 %v47, 76
    %v5916 = vpop.permute.xlu0 %5915
    %v5917 = vsel %vm3713, %v5916, %v3690
    %v5921 = vsel %vm3713, %v5904, %v5916
    %5922 = vset.pattern.permute.xlu0 44
    %5923 = vperm.xlu0 %5922, %v36
    %v5924 = vpop.permute.xlu0 %5923
    %v5926 = vlaneseq
    %v5927 = vshrl.u32 %v5926, 7
    %v5928 = vsub.s32 0, %v5927
    %v5929 = vrot.slane %v5895, %v5928
    %v5930 = vlaneseq
    %v5931 = vshrl.u32 %v5930, 7
    %v5932 = vsub.s32 0, %v5931
    %v5933 = vrot.slane %v5896, %v5932
    %v5934 = vlaneseq
    %v5935 = vshrl.u32 %v5934, 7
    %v5936 = vsub.s32 0, %v5935
    %v5937 = vrot.slane %v5897, %v5936
    %v5938 = vlaneseq
    %v5939 = vshrl.u32 %v5938, 7
    %v5940 = vsub.s32 0, %v5939
    %v5941 = vrot.slane %v5898, %v5940
    %v5942 = vlaneseq
    %v5943 = vshrl.u32 %v5942, 7
    %v5944 = vsub.s32 0, %v5943
    %v5945 = vrot.slane %v5899, %v5944
    %v5946 = vlaneseq
    %v5947 = vshrl.u32 %v5946, 7
    %v5948 = vsub.s32 0, %v5947
    %v5949 = vrot.slane %v5900, %v5948
    %v5950 = vlaneseq
    %v5951 = vshrl.u32 %v5950, 7
    %v5952 = vsub.s32 0, %v5951
    %v5953 = vrot.slane %v5901, %v5952
    %v5954 = vlaneseq
    %v5955 = vshrl.u32 %v5954, 7
    %v5956 = vsub.s32 0, %v5955
    %v5957 = vrot.slane %v5902, %v5956
    %v5958 = vlaneseq
    %v5959 = vshrl.u32 %v5958, 7
    %v5960 = vsub.s32 0, %v5959
    %v5961 = vrot.slane %v5903, %v5960
    %v5962 = vlaneseq
    %v5963 = vshrl.u32 %v5962, 7
    %v5964 = vsub.s32 0, %v5963
    %v5965 = vrot.slane %v5921, %v5964
    %v5966 = vlaneseq
    %v5967 = vshrl.u32 %v5966, 7
    %v5968 = vsub.s32 0, %v5967
    %v5969 = vrot.slane %v5917, %v5968
    %v5970 = vlaneseq
    %v5971 = vshrl.u32 %v5970, 7
    %v5972 = vsub.s32 0, %v5971
    %v5973 = vrot.slane %v3692, %v5972
    %v5974 = vmul.f32 %v5924, %v5929
    %v5975 = vmul.f32 %v5924, %v5933
    %v5976 = vmul.f32 %v5924, %v5937
    %v5977 = vmul.f32 %v5924, %v5941
    %v5978 = vmul.f32 %v5924, %v5945
    %v5979 = vmul.f32 %v5924, %v5949
    %v5980 = vmul.f32 %v5924, %v5953
    %v5981 = vmul.f32 %v5924, %v5957
    %v5982 = vmul.f32 %v5924, %v5961
    %v5983 = vmul.f32 %v5924, %v5965
    %v5984 = vmul.f32 %v5924, %v5969
    %v5985 = vmul.f32 %v5924, %v3753
    %v5986 = vmul.f32 %v5924, %v5973
    %v5987 = vadd.f32 %v5860, %v5974
    %v5988 = vadd.f32 %v5861, %v5975
    %v5989 = vadd.f32 %v5862, %v5976
    %v5990 = vadd.f32 %v5863, %v5977
    %v5991 = vadd.f32 %v5864, %v5978
    %v5992 = vadd.f32 %v5865, %v5979
    %v5993 = vadd.f32 %v5866, %v5980
    %v5994 = vadd.f32 %v5867, %v5981
    %v5995 = vadd.f32 %v5868, %v5982
    %v5996 = vadd.f32 %v5869, %v5983
    %v5997 = vadd.f32 %v5870, %v5984
    %v5998 = vadd.f32 %v5871, %v5985
    %v5999 = vadd.f32 %v5872, %v5986
    %6000 = vrot.lane.b32.xlu0 %v55, 42
    %v6001 = vpop.permute.xlu0 %6000
    %6002 = vrot.lane.b32.xlu0 %v59, 42
    %v6003 = vpop.permute.xlu0 %6002
    %6004 = vrot.lane.b32.xlu0 %v63, 42
    %v6005 = vpop.permute.xlu0 %6004
    %6006 = vrot.lane.b32.xlu0 %v67, 42
    %v6007 = vpop.permute.xlu0 %6006
    %6008 = vrot.lane.b32.xlu0 %v71, 42
    %v6009 = vpop.permute.xlu0 %6008
    %6010 = vrot.lane.b32.xlu0 %v75, 42
    %v6011 = vpop.permute.xlu0 %6010
    %6012 = vrot.lane.b32.xlu0 %v79, 42
    %v6013 = vpop.permute.xlu0 %6012
    %6014 = vrot.lane.b32.xlu0 %v83, 42
    %v6015 = vpop.permute.xlu0 %6014
    %6016 = vrot.lane.b32.xlu0 %v87, 42
    %v6017 = vpop.permute.xlu0 %6016
    %6018 = vrot.lane.b32.xlu0 %v91, 42
    %v6019 = vpop.permute.xlu0 %6018
    %6020 = vrot.lane.b32.xlu0 %v95, 42
    %v6021 = vpop.permute.xlu0 %6020
    %v6022 = vsel %vm2390, %v6001, %v6003
    %v6023 = vsel %vm2390, %v6003, %v6005
    %v6024 = vsel %vm2390, %v6005, %v6007
    %v6025 = vsel %vm2390, %v6007, %v6009
    %v6026 = vsel %vm2390, %v6009, %v6011
    %v6027 = vsel %vm2390, %v6011, %v6013
    %v6028 = vsel %vm2390, %v6013, %v6015
    %v6029 = vsel %vm2390, %v6015, %v6017
    %v6030 = vsel %vm2390, %v6017, %v6019
    %v6031 = vsel %vm2390, %v6019, %v6021
    %6042 = vrot.lane.b32.xlu0 %v47, 74
    %v6043 = vpop.permute.xlu0 %6042
    %6044 = vrot.lane.b32.xlu0 %v51, 74
    %v6045 = vpop.permute.xlu0 %6044
    %6046 = vrot.lane.b32.xlu0 %v55, 74
    %v6047 = vpop.permute.xlu0 %6046
    %vm6048 = vcmask 605184
    %v6049 = vsel %vm6048, %v6043, %v6045
    %v6050 = vsel %vm6048, %v6045, %v6047
    %v6055 = vsel %vm6048, %v6031, %v6043
    %6056 = vset.pattern.permute.xlu0 45
    %6057 = vperm.xlu0 %6056, %v36
    %v6058 = vpop.permute.xlu0 %6057
    %v6060 = vlaneseq
    %v6061 = vshrl.u32 %v6060, 7
    %v6062 = vsub.s32 0, %v6061
    %v6063 = vrot.slane %v6022, %v6062
    %v6064 = vlaneseq
    %v6065 = vshrl.u32 %v6064, 7
    %v6066 = vsub.s32 0, %v6065
    %v6067 = vrot.slane %v6023, %v6066
    %v6068 = vlaneseq
    %v6069 = vshrl.u32 %v6068, 7
    %v6070 = vsub.s32 0, %v6069
    %v6071 = vrot.slane %v6024, %v6070
    %v6072 = vlaneseq
    %v6073 = vshrl.u32 %v6072, 7
    %v6074 = vsub.s32 0, %v6073
    %v6075 = vrot.slane %v6025, %v6074
    %v6076 = vlaneseq
    %v6077 = vshrl.u32 %v6076, 7
    %v6078 = vsub.s32 0, %v6077
    %v6079 = vrot.slane %v6026, %v6078
    %v6080 = vlaneseq
    %v6081 = vshrl.u32 %v6080, 7
    %v6082 = vsub.s32 0, %v6081
    %v6083 = vrot.slane %v6027, %v6082
    %v6084 = vlaneseq
    %v6085 = vshrl.u32 %v6084, 7
    %v6086 = vsub.s32 0, %v6085
    %v6087 = vrot.slane %v6028, %v6086
    %v6088 = vlaneseq
    %v6089 = vshrl.u32 %v6088, 7
    %v6090 = vsub.s32 0, %v6089
    %v6091 = vrot.slane %v6029, %v6090
    %v6092 = vlaneseq
    %v6093 = vshrl.u32 %v6092, 7
    %v6094 = vsub.s32 0, %v6093
    %v6095 = vrot.slane %v6030, %v6094
    %v6096 = vlaneseq
    %v6097 = vshrl.u32 %v6096, 7
    %v6098 = vsub.s32 0, %v6097
    %v6099 = vrot.slane %v6055, %v6098
    %v6100 = vlaneseq
    %v6101 = vshrl.u32 %v6100, 7
    %v6102 = vsub.s32 0, %v6101
    %v6103 = vrot.slane %v6049, %v6102
    %v6104 = vlaneseq
    %v6105 = vshrl.u32 %v6104, 7
    %v6106 = vsub.s32 0, %v6105
    %v6107 = vrot.slane %v6050, %v6106
    %v6108 = vlaneseq
    %v6109 = vshrl.u32 %v6108, 7
    %v6110 = vsub.s32 0, %v6109
    %v6111 = vrot.slane %v6047, %v6110
    %v6112 = vmul.f32 %v6058, %v6063
    %v6113 = vmul.f32 %v6058, %v6067
    %v6114 = vmul.f32 %v6058, %v6071
    %v6115 = vmul.f32 %v6058, %v6075
    %v6116 = vmul.f32 %v6058, %v6079
    %v6117 = vmul.f32 %v6058, %v6083
    %v6118 = vmul.f32 %v6058, %v6087
    %v6119 = vmul.f32 %v6058, %v6091
    %v6120 = vmul.f32 %v6058, %v6095
    %v6121 = vmul.f32 %v6058, %v6099
    %v6122 = vmul.f32 %v6058, %v6103
    %v6123 = vmul.f32 %v6058, %v6107
    %v6124 = vmul.f32 %v6058, %v6111
    %v6125 = vadd.f32 %v5987, %v6112
    %v6126 = vadd.f32 %v5988, %v6113
    %v6127 = vadd.f32 %v5989, %v6114
    %v6128 = vadd.f32 %v5990, %v6115
    %v6129 = vadd.f32 %v5991, %v6116
    %v6130 = vadd.f32 %v5992, %v6117
    %v6131 = vadd.f32 %v5993, %v6118
    %v6132 = vadd.f32 %v5994, %v6119
    %v6133 = vadd.f32 %v5995, %v6120
    %v6134 = vadd.f32 %v5996, %v6121
    %v6135 = vadd.f32 %v5997, %v6122
    %v6136 = vadd.f32 %v5998, %v6123
    %v6137 = vadd.f32 %v5999, %v6124
    %6138 = vrot.lane.b32.xlu0 %v55, 40
    %v6139 = vpop.permute.xlu0 %6138
    %6140 = vrot.lane.b32.xlu0 %v59, 40
    %v6141 = vpop.permute.xlu0 %6140
    %6142 = vrot.lane.b32.xlu0 %v63, 40
    %v6143 = vpop.permute.xlu0 %6142
    %6144 = vrot.lane.b32.xlu0 %v67, 40
    %v6145 = vpop.permute.xlu0 %6144
    %6146 = vrot.lane.b32.xlu0 %v71, 40
    %v6147 = vpop.permute.xlu0 %6146
    %6148 = vrot.lane.b32.xlu0 %v75, 40
    %v6149 = vpop.permute.xlu0 %6148
    %6150 = vrot.lane.b32.xlu0 %v79, 40
    %v6151 = vpop.permute.xlu0 %6150
    %6152 = vrot.lane.b32.xlu0 %v83, 40
    %v6153 = vpop.permute.xlu0 %6152
    %6154 = vrot.lane.b32.xlu0 %v87, 40
    %v6155 = vpop.permute.xlu0 %6154
    %6156 = vrot.lane.b32.xlu0 %v91, 40
    %v6157 = vpop.permute.xlu0 %6156
    %6158 = vrot.lane.b32.xlu0 %v95, 40
    %v6159 = vpop.permute.xlu0 %6158
    %v6160 = vsel %vm2528, %v6139, %v6141
    %v6161 = vsel %vm2528, %v6141, %v6143
    %v6162 = vsel %vm2528, %v6143, %v6145
    %v6163 = vsel %vm2528, %v6145, %v6147
    %v6164 = vsel %vm2528, %v6147, %v6149
    %v6165 = vsel %vm2528, %v6149, %v6151
    %v6166 = vsel %vm2528, %v6151, %v6153
    %v6167 = vsel %vm2528, %v6153, %v6155
    %v6168 = vsel %vm2528, %v6155, %v6157
    %v6169 = vsel %vm2528, %v6157, %v6159
    %v6182 = vsel %vm982, %v6169, %v957
    %6183 = vset.pattern.permute.xlu0 46
    %6184 = vperm.xlu0 %6183, %v36
    %v6185 = vpop.permute.xlu0 %6184
    %v6187 = vlaneseq
    %v6188 = vshrl.u32 %v6187, 7
    %v6189 = vsub.s32 0, %v6188
    %v6190 = vrot.slane %v6160, %v6189
    %v6191 = vlaneseq
    %v6192 = vshrl.u32 %v6191, 7
    %v6193 = vsub.s32 0, %v6192
    %v6194 = vrot.slane %v6161, %v6193
    %v6195 = vlaneseq
    %v6196 = vshrl.u32 %v6195, 7
    %v6197 = vsub.s32 0, %v6196
    %v6198 = vrot.slane %v6162, %v6197
    %v6199 = vlaneseq
    %v6200 = vshrl.u32 %v6199, 7
    %v6201 = vsub.s32 0, %v6200
    %v6202 = vrot.slane %v6163, %v6201
    %v6203 = vlaneseq
    %v6204 = vshrl.u32 %v6203, 7
    %v6205 = vsub.s32 0, %v6204
    %v6206 = vrot.slane %v6164, %v6205
    %v6207 = vlaneseq
    %v6208 = vshrl.u32 %v6207, 7
    %v6209 = vsub.s32 0, %v6208
    %v6210 = vrot.slane %v6165, %v6209
    %v6211 = vlaneseq
    %v6212 = vshrl.u32 %v6211, 7
    %v6213 = vsub.s32 0, %v6212
    %v6214 = vrot.slane %v6166, %v6213
    %v6215 = vlaneseq
    %v6216 = vshrl.u32 %v6215, 7
    %v6217 = vsub.s32 0, %v6216
    %v6218 = vrot.slane %v6167, %v6217
    %v6219 = vlaneseq
    %v6220 = vshrl.u32 %v6219, 7
    %v6221 = vsub.s32 0, %v6220
    %v6222 = vrot.slane %v6168, %v6221
    %v6223 = vlaneseq
    %v6224 = vshrl.u32 %v6223, 7
    %v6225 = vsub.s32 0, %v6224
    %v6226 = vrot.slane %v6182, %v6225
    %v6227 = vlaneseq
    %v6228 = vshrl.u32 %v6227, 7
    %v6229 = vsub.s32 0, %v6228
    %v6230 = vrot.slane %v961, %v6229
    %v6231 = vmul.f32 %v6185, %v6190
    %v6232 = vmul.f32 %v6185, %v6194
    %v6233 = vmul.f32 %v6185, %v6198
    %v6234 = vmul.f32 %v6185, %v6202
    %v6235 = vmul.f32 %v6185, %v6206
    %v6236 = vmul.f32 %v6185, %v6210
    %v6237 = vmul.f32 %v6185, %v6214
    %v6238 = vmul.f32 %v6185, %v6218
    %v6239 = vmul.f32 %v6185, %v6222
    %v6240 = vmul.f32 %v6185, %v6226
    %v6241 = vmul.f32 %v6185, %v1019
    %v6242 = vmul.f32 %v6185, %v1023
    %v6243 = vmul.f32 %v6185, %v6230
    %v6244 = vadd.f32 %v6125, %v6231
    %v6245 = vadd.f32 %v6126, %v6232
    %v6246 = vadd.f32 %v6127, %v6233
    %v6247 = vadd.f32 %v6128, %v6234
    %v6248 = vadd.f32 %v6129, %v6235
    %v6249 = vadd.f32 %v6130, %v6236
    %v6250 = vadd.f32 %v6131, %v6237
    %v6251 = vadd.f32 %v6132, %v6238
    %v6252 = vadd.f32 %v6133, %v6239
    %v6253 = vadd.f32 %v6134, %v6240
    %v6254 = vadd.f32 %v6135, %v6241
    %v6255 = vadd.f32 %v6136, %v6242
    %v6256 = vadd.f32 %v6137, %v6243
    %6257 = vrot.lane.b32.xlu0 %v55, 38
    %v6258 = vpop.permute.xlu0 %6257
    %6259 = vrot.lane.b32.xlu0 %v59, 38
    %v6260 = vpop.permute.xlu0 %6259
    %6261 = vrot.lane.b32.xlu0 %v63, 38
    %v6262 = vpop.permute.xlu0 %6261
    %6263 = vrot.lane.b32.xlu0 %v67, 38
    %v6264 = vpop.permute.xlu0 %6263
    %6265 = vrot.lane.b32.xlu0 %v71, 38
    %v6266 = vpop.permute.xlu0 %6265
    %6267 = vrot.lane.b32.xlu0 %v75, 38
    %v6268 = vpop.permute.xlu0 %6267
    %6269 = vrot.lane.b32.xlu0 %v79, 38
    %v6270 = vpop.permute.xlu0 %6269
    %6271 = vrot.lane.b32.xlu0 %v83, 38
    %v6272 = vpop.permute.xlu0 %6271
    %6273 = vrot.lane.b32.xlu0 %v87, 38
    %v6274 = vpop.permute.xlu0 %6273
    %6275 = vrot.lane.b32.xlu0 %v91, 38
    %v6276 = vpop.permute.xlu0 %6275
    %6277 = vrot.lane.b32.xlu0 %v95, 38
    %v6278 = vpop.permute.xlu0 %6277
    %v6279 = vsel %vm2666, %v6258, %v6260
    %v6280 = vsel %vm2666, %v6260, %v6262
    %v6281 = vsel %vm2666, %v6262, %v6264
    %v6282 = vsel %vm2666, %v6264, %v6266
    %v6283 = vsel %vm2666, %v6266, %v6268
    %v6284 = vsel %vm2666, %v6268, %v6270
    %v6285 = vsel %vm2666, %v6270, %v6272
    %v6286 = vsel %vm2666, %v6272, %v6274
    %v6287 = vsel %vm2666, %v6274, %v6276
    %v6288 = vsel %vm2666, %v6276, %v6278
    %v6301 = vsel %vm1120, %v6288, %v1095
    %6302 = vset.pattern.permute.xlu0 47
    %6303 = vperm.xlu0 %6302, %v36
    %v6304 = vpop.permute.xlu0 %6303
    %v6306 = vlaneseq
    %v6307 = vshrl.u32 %v6306, 7
    %v6308 = vsub.s32 0, %v6307
    %v6309 = vrot.slane %v6279, %v6308
    %v6310 = vlaneseq
    %v6311 = vshrl.u32 %v6310, 7
    %v6312 = vsub.s32 0, %v6311
    %v6313 = vrot.slane %v6280, %v6312
    %v6314 = vlaneseq
    %v6315 = vshrl.u32 %v6314, 7
    %v6316 = vsub.s32 0, %v6315
    %v6317 = vrot.slane %v6281, %v6316
    %v6318 = vlaneseq
    %v6319 = vshrl.u32 %v6318, 7
    %v6320 = vsub.s32 0, %v6319
    %v6321 = vrot.slane %v6282, %v6320
    %v6322 = vlaneseq
    %v6323 = vshrl.u32 %v6322, 7
    %v6324 = vsub.s32 0, %v6323
    %v6325 = vrot.slane %v6283, %v6324
    %v6326 = vlaneseq
    %v6327 = vshrl.u32 %v6326, 7
    %v6328 = vsub.s32 0, %v6327
    %v6329 = vrot.slane %v6284, %v6328
    %v6330 = vlaneseq
    %v6331 = vshrl.u32 %v6330, 7
    %v6332 = vsub.s32 0, %v6331
    %v6333 = vrot.slane %v6285, %v6332
    %v6334 = vlaneseq
    %v6335 = vshrl.u32 %v6334, 7
    %v6336 = vsub.s32 0, %v6335
    %v6337 = vrot.slane %v6286, %v6336
    %v6338 = vlaneseq
    %v6339 = vshrl.u32 %v6338, 7
    %v6340 = vsub.s32 0, %v6339
    %v6341 = vrot.slane %v6287, %v6340
    %v6342 = vlaneseq
    %v6343 = vshrl.u32 %v6342, 7
    %v6344 = vsub.s32 0, %v6343
    %v6345 = vrot.slane %v6301, %v6344
    %v6346 = vlaneseq
    %v6347 = vshrl.u32 %v6346, 7
    %v6348 = vsub.s32 0, %v6347
    %v6349 = vrot.slane %v1099, %v6348
    %v6350 = vmul.f32 %v6304, %v6309
    %v6351 = vmul.f32 %v6304, %v6313
    %v6352 = vmul.f32 %v6304, %v6317
    %v6353 = vmul.f32 %v6304, %v6321
    %v6354 = vmul.f32 %v6304, %v6325
    %v6355 = vmul.f32 %v6304, %v6329
    %v6356 = vmul.f32 %v6304, %v6333
    %v6357 = vmul.f32 %v6304, %v6337
    %v6358 = vmul.f32 %v6304, %v6341
    %v6359 = vmul.f32 %v6304, %v6345
    %v6360 = vmul.f32 %v6304, %v1157
    %v6361 = vmul.f32 %v6304, %v1161
    %v6362 = vmul.f32 %v6304, %v6349
    %v6363 = vadd.f32 %v6244, %v6350
    %v6364 = vadd.f32 %v6245, %v6351
    %v6365 = vadd.f32 %v6246, %v6352
    %v6366 = vadd.f32 %v6247, %v6353
    %v6367 = vadd.f32 %v6248, %v6354
    %v6368 = vadd.f32 %v6249, %v6355
    %v6369 = vadd.f32 %v6250, %v6356
    %v6370 = vadd.f32 %v6251, %v6357
    %v6371 = vadd.f32 %v6252, %v6358
    %v6372 = vadd.f32 %v6253, %v6359
    %v6373 = vadd.f32 %v6254, %v6360
    %v6374 = vadd.f32 %v6255, %v6361
    %v6375 = vadd.f32 %v6256, %v6362
    %6376 = vrot.lane.b32.xlu0 %v55, 36
    %v6377 = vpop.permute.xlu0 %6376
    %6378 = vrot.lane.b32.xlu0 %v59, 36
    %v6379 = vpop.permute.xlu0 %6378
    %6380 = vrot.lane.b32.xlu0 %v63, 36
    %v6381 = vpop.permute.xlu0 %6380
    %6382 = vrot.lane.b32.xlu0 %v67, 36
    %v6383 = vpop.permute.xlu0 %6382
    %6384 = vrot.lane.b32.xlu0 %v71, 36
    %v6385 = vpop.permute.xlu0 %6384
    %6386 = vrot.lane.b32.xlu0 %v75, 36
    %v6387 = vpop.permute.xlu0 %6386
    %6388 = vrot.lane.b32.xlu0 %v79, 36
    %v6389 = vpop.permute.xlu0 %6388
    %6390 = vrot.lane.b32.xlu0 %v83, 36
    %v6391 = vpop.permute.xlu0 %6390
    %6392 = vrot.lane.b32.xlu0 %v87, 36
    %v6393 = vpop.permute.xlu0 %6392
    %6394 = vrot.lane.b32.xlu0 %v91, 36
    %v6395 = vpop.permute.xlu0 %6394
    %6396 = vrot.lane.b32.xlu0 %v95, 36
    %v6397 = vpop.permute.xlu0 %6396
    %v6398 = vsel %vm2804, %v6377, %v6379
    %v6399 = vsel %vm2804, %v6379, %v6381
    %v6400 = vsel %vm2804, %v6381, %v6383
    %v6401 = vsel %vm2804, %v6383, %v6385
    %v6402 = vsel %vm2804, %v6385, %v6387
    %v6403 = vsel %vm2804, %v6387, %v6389
    %v6404 = vsel %vm2804, %v6389, %v6391
    %v6405 = vsel %vm2804, %v6391, %v6393
    %v6406 = vsel %vm2804, %v6393, %v6395
    %v6407 = vsel %vm2804, %v6395, %v6397
    %v6420 = vsel %vm1258, %v6407, %v1233
    %6421 = vset.pattern.permute.xlu0 48
    %6422 = vperm.xlu0 %6421, %v36
    %v6423 = vpop.permute.xlu0 %6422
    %v6425 = vlaneseq
    %v6426 = vshrl.u32 %v6425, 7
    %v6427 = vsub.s32 0, %v6426
    %v6428 = vrot.slane %v6398, %v6427
    %v6429 = vlaneseq
    %v6430 = vshrl.u32 %v6429, 7
    %v6431 = vsub.s32 0, %v6430
    %v6432 = vrot.slane %v6399, %v6431
    %v6433 = vlaneseq
    %v6434 = vshrl.u32 %v6433, 7
    %v6435 = vsub.s32 0, %v6434
    %v6436 = vrot.slane %v6400, %v6435
    %v6437 = vlaneseq
    %v6438 = vshrl.u32 %v6437, 7
    %v6439 = vsub.s32 0, %v6438
    %v6440 = vrot.slane %v6401, %v6439
    %v6441 = vlaneseq
    %v6442 = vshrl.u32 %v6441, 7
    %v6443 = vsub.s32 0, %v6442
    %v6444 = vrot.slane %v6402, %v6443
    %v6445 = vlaneseq
    %v6446 = vshrl.u32 %v6445, 7
    %v6447 = vsub.s32 0, %v6446
    %v6448 = vrot.slane %v6403, %v6447
    %v6449 = vlaneseq
    %v6450 = vshrl.u32 %v6449, 7
    %v6451 = vsub.s32 0, %v6450
    %v6452 = vrot.slane %v6404, %v6451
    %v6453 = vlaneseq
    %v6454 = vshrl.u32 %v6453, 7
    %v6455 = vsub.s32 0, %v6454
    %v6456 = vrot.slane %v6405, %v6455
    %v6457 = vlaneseq
    %v6458 = vshrl.u32 %v6457, 7
    %v6459 = vsub.s32 0, %v6458
    %v6460 = vrot.slane %v6406, %v6459
    %v6461 = vlaneseq
    %v6462 = vshrl.u32 %v6461, 7
    %v6463 = vsub.s32 0, %v6462
    %v6464 = vrot.slane %v6420, %v6463
    %v6465 = vlaneseq
    %v6466 = vshrl.u32 %v6465, 7
    %v6467 = vsub.s32 0, %v6466
    %v6468 = vrot.slane %v1237, %v6467
    %v6469 = vmul.f32 %v6423, %v6428
    %v6470 = vmul.f32 %v6423, %v6432
    %v6471 = vmul.f32 %v6423, %v6436
    %v6472 = vmul.f32 %v6423, %v6440
    %v6473 = vmul.f32 %v6423, %v6444
    %v6474 = vmul.f32 %v6423, %v6448
    %v6475 = vmul.f32 %v6423, %v6452
    %v6476 = vmul.f32 %v6423, %v6456
    %v6477 = vmul.f32 %v6423, %v6460
    %v6478 = vmul.f32 %v6423, %v6464
    %v6479 = vmul.f32 %v6423, %v1295
    %v6480 = vmul.f32 %v6423, %v1299
    %v6481 = vmul.f32 %v6423, %v6468
    %v6482 = vadd.f32 %v6363, %v6469
    %v6483 = vadd.f32 %v6364, %v6470
    %v6484 = vadd.f32 %v6365, %v6471
    %v6485 = vadd.f32 %v6366, %v6472
    %v6486 = vadd.f32 %v6367, %v6473
    %v6487 = vadd.f32 %v6368, %v6474
    %v6488 = vadd.f32 %v6369, %v6475
    %v6489 = vadd.f32 %v6370, %v6476
    %v6490 = vadd.f32 %v6371, %v6477
    %v6491 = vadd.f32 %v6372, %v6478
    %v6492 = vadd.f32 %v6373, %v6479
    %v6493 = vadd.f32 %v6374, %v6480
    %v6494 = vadd.f32 %v6375, %v6481
    %6508 = vrot.lane.b32.xlu0 %v6482, 127
    %v6509 = vpop.permute.xlu0 %6508
    %6510 = vrot.lane.b32.xlu0 %v6483, 127
    %v6511 = vpop.permute.xlu0 %6510
    %6512 = vrot.lane.b32.xlu0 %v6484, 127
    %v6513 = vpop.permute.xlu0 %6512
    %6514 = vrot.lane.b32.xlu0 %v6485, 127
    %v6515 = vpop.permute.xlu0 %6514
    %6516 = vrot.lane.b32.xlu0 %v6486, 127
    %v6517 = vpop.permute.xlu0 %6516
    %6518 = vrot.lane.b32.xlu0 %v6487, 127
    %v6519 = vpop.permute.xlu0 %6518
    %6520 = vrot.lane.b32.xlu0 %v6488, 127
    %v6521 = vpop.permute.xlu0 %6520
    %6522 = vrot.lane.b32.xlu0 %v6489, 127
    %v6523 = vpop.permute.xlu0 %6522
    %6524 = vrot.lane.b32.xlu0 %v6490, 127
    %v6525 = vpop.permute.xlu0 %6524
    %6526 = vrot.lane.b32.xlu0 %v6491, 127
    %v6527 = vpop.permute.xlu0 %6526
    %6528 = vrot.lane.b32.xlu0 %v6492, 127
    %v6529 = vpop.permute.xlu0 %6528
    %6530 = vrot.lane.b32.xlu0 %v6493, 127
    %v6531 = vpop.permute.xlu0 %6530
    %6532 = vrot.lane.b32.xlu0 %v6494, 127
    %v6533 = vpop.permute.xlu0 %6532
    %vm6534 = vcmask 1039360
    %v6535 = vsel %vm6534, %v6509, %v6511
    %v6536 = vsel %vm6534, %v6511, %v6513
    %v6537 = vsel %vm6534, %v6513, %v6515
    %v6538 = vsel %vm6534, %v6515, %v6517
    %v6539 = vsel %vm6534, %v6517, %v6519
    %v6540 = vsel %vm6534, %v6519, %v6521
    %v6541 = vsel %vm6534, %v6521, %v6523
    %v6542 = vsel %vm6534, %v6523, %v6525
    %v6543 = vsel %vm6534, %v6525, %v6527
    %v6544 = vsel %vm6534, %v6527, %v6529
    %v6545 = vsel %vm6534, %v6529, %v6531
    %v6546 = vsel %vm6534, %v6531, %v6533
    %6560 = vrot.lane.b32.xlu0 %v6482, 31
    %v6561 = vpop.permute.xlu0 %6560
    %vm6563 = vcmask 252928
    %v6564 = vsel %vm6563, %v6533, %v6561
    %v6565 = vmax.f32 %v6482, %v6535
    %v6566 = vmax.f32 %v6483, %v6536
    %v6567 = vmax.f32 %v6484, %v6537
    %v6568 = vmax.f32 %v6485, %v6538
    %v6569 = vmax.f32 %v6486, %v6539
    %v6570 = vmax.f32 %v6487, %v6540
    %v6571 = vmax.f32 %v6488, %v6541
    %v6572 = vmax.f32 %v6489, %v6542
    %v6573 = vmax.f32 %v6490, %v6543
    %v6574 = vmax.f32 %v6491, %v6544
    %v6575 = vmax.f32 %v6492, %v6545
    %v6576 = vmax.f32 %v6493, %v6546
    %v6577 = vmax.f32 %v6494, %v6564
    %6578 = vrot.lane.b32.xlu0 %v6482, 100
    %v6579 = vpop.permute.xlu0 %6578
    %6580 = vrot.lane.b32.xlu0 %v6483, 100
    %v6581 = vpop.permute.xlu0 %6580
    %6582 = vrot.lane.b32.xlu0 %v6484, 100
    %v6583 = vpop.permute.xlu0 %6582
    %6584 = vrot.lane.b32.xlu0 %v6485, 100
    %v6585 = vpop.permute.xlu0 %6584
    %6586 = vrot.lane.b32.xlu0 %v6486, 100
    %v6587 = vpop.permute.xlu0 %6586
    %6588 = vrot.lane.b32.xlu0 %v6487, 100
    %v6589 = vpop.permute.xlu0 %6588
    %6590 = vrot.lane.b32.xlu0 %v6488, 100
    %v6591 = vpop.permute.xlu0 %6590
    %6592 = vrot.lane.b32.xlu0 %v6489, 100
    %v6593 = vpop.permute.xlu0 %6592
    %6594 = vrot.lane.b32.xlu0 %v6490, 100
    %v6595 = vpop.permute.xlu0 %6594
    %6596 = vrot.lane.b32.xlu0 %v6491, 100
    %v6597 = vpop.permute.xlu0 %6596
    %6598 = vrot.lane.b32.xlu0 %v6492, 100
    %v6599 = vpop.permute.xlu0 %6598
    %6600 = vrot.lane.b32.xlu0 %v6493, 100
    %v6601 = vpop.permute.xlu0 %6600
    %6602 = vrot.lane.b32.xlu0 %v6494, 100
    %v6603 = vpop.permute.xlu0 %6602
    %v6604 = vsel %vm1286, %v6579, %v6581
    %v6605 = vsel %vm1286, %v6581, %v6583
    %v6606 = vsel %vm1286, %v6583, %v6585
    %v6607 = vsel %vm1286, %v6585, %v6587
    %v6608 = vsel %vm1286, %v6587, %v6589
    %v6609 = vsel %vm1286, %v6589, %v6591
    %v6610 = vsel %vm1286, %v6591, %v6593
    %v6611 = vsel %vm1286, %v6593, %v6595
    %v6612 = vsel %vm1286, %v6595, %v6597
    %v6613 = vsel %vm1286, %v6597, %v6599
    %v6614 = vsel %vm1286, %v6599, %v6601
    %v6615 = vsel %vm1286, %v6601, %v6603
    %6629 = vrot.lane.b32.xlu0 %v6482, 4
    %v6630 = vpop.permute.xlu0 %6629
    %v6632 = vsel %vm2776, %v6603, %v6630
    %6633 = vrot.lane.b32.xlu0 %v6482, 99
    %v6634 = vpop.permute.xlu0 %6633
    %6635 = vrot.lane.b32.xlu0 %v6483, 99
    %v6636 = vpop.permute.xlu0 %6635
    %6637 = vrot.lane.b32.xlu0 %v6484, 99
    %v6638 = vpop.permute.xlu0 %6637
    %6639 = vrot.lane.b32.xlu0 %v6485, 99
    %v6640 = vpop.permute.xlu0 %6639
    %6641 = vrot.lane.b32.xlu0 %v6486, 99
    %v6642 = vpop.permute.xlu0 %6641
    %6643 = vrot.lane.b32.xlu0 %v6487, 99
    %v6644 = vpop.permute.xlu0 %6643
    %6645 = vrot.lane.b32.xlu0 %v6488, 99
    %v6646 = vpop.permute.xlu0 %6645
    %6647 = vrot.lane.b32.xlu0 %v6489, 99
    %v6648 = vpop.permute.xlu0 %6647
    %6649 = vrot.lane.b32.xlu0 %v6490, 99
    %v6650 = vpop.permute.xlu0 %6649
    %6651 = vrot.lane.b32.xlu0 %v6491, 99
    %v6652 = vpop.permute.xlu0 %6651
    %6653 = vrot.lane.b32.xlu0 %v6492, 99
    %v6654 = vpop.permute.xlu0 %6653
    %6655 = vrot.lane.b32.xlu0 %v6493, 99
    %v6656 = vpop.permute.xlu0 %6655
    %6657 = vrot.lane.b32.xlu0 %v6494, 99
    %v6658 = vpop.permute.xlu0 %6657
    %vm6659 = vcmask 809984
    %v6660 = vsel %vm6659, %v6634, %v6636
    %v6661 = vsel %vm6659, %v6636, %v6638
    %v6662 = vsel %vm6659, %v6638, %v6640
    %v6663 = vsel %vm6659, %v6640, %v6642
    %v6664 = vsel %vm6659, %v6642, %v6644
    %v6665 = vsel %vm6659, %v6644, %v6646
    %v6666 = vsel %vm6659, %v6646, %v6648
    %v6667 = vsel %vm6659, %v6648, %v6650
    %v6668 = vsel %vm6659, %v6650, %v6652
    %v6669 = vsel %vm6659, %v6652, %v6654
    %v6670 = vsel %vm6659, %v6654, %v6656
    %v6671 = vsel %vm6659, %v6656, %v6658
    %6685 = vrot.lane.b32.xlu0 %v6482, 3
    %v6686 = vpop.permute.xlu0 %6685
    %vm6688 = vcmask 23552
    %v6689 = vsel %vm6688, %v6658, %v6686
    %v6690 = vmax.f32 %v6604, %v6660
    %v6691 = vmax.f32 %v6605, %v6661
    %v6692 = vmax.f32 %v6606, %v6662
    %v6693 = vmax.f32 %v6607, %v6663
    %v6694 = vmax.f32 %v6608, %v6664
    %v6695 = vmax.f32 %v6609, %v6665
    %v6696 = vmax.f32 %v6610, %v6666
    %v6697 = vmax.f32 %v6611, %v6667
    %v6698 = vmax.f32 %v6612, %v6668
    %v6699 = vmax.f32 %v6613, %v6669
    %v6700 = vmax.f32 %v6614, %v6670
    %v6701 = vmax.f32 %v6615, %v6671
    %v6702 = vmax.f32 %v6632, %v6689
    %v6703 = vmax.f32 %v6565, %v6690
    %v6704 = vmax.f32 %v6566, %v6691
    %v6705 = vmax.f32 %v6567, %v6692
    %v6706 = vmax.f32 %v6568, %v6693
    %v6707 = vmax.f32 %v6569, %v6694
    %v6708 = vmax.f32 %v6570, %v6695
    %v6709 = vmax.f32 %v6571, %v6696
    %v6710 = vmax.f32 %v6572, %v6697
    %v6711 = vmax.f32 %v6573, %v6698
    %v6712 = vmax.f32 %v6574, %v6699
    %v6713 = vmax.f32 %v6575, %v6700
    %v6714 = vmax.f32 %v6576, %v6701
    %v6715 = vmax.f32 %v6577, %v6702
    %v6716 = vld [vmem:[%s2] sm:$0xff]
    %6718 = vset.pattern.permute.xlu0 0
    %6719 = vperm.xlu0 %6718, %v6716
    %v6720 = vpop.permute.xlu0 %6719
    %v6722 = vadd.f32 %v6703, %v6720
    %v6723 = vadd.f32 %v6704, %v6720
    %v6724 = vadd.f32 %v6705, %v6720
    %v6725 = vadd.f32 %v6706, %v6720
    %v6726 = vadd.f32 %v6707, %v6720
    %v6727 = vadd.f32 %v6708, %v6720
    %v6728 = vadd.f32 %v6709, %v6720
    %v6729 = vadd.f32 %v6710, %v6720
    %v6730 = vadd.f32 %v6711, %v6720
    %v6731 = vadd.f32 %v6712, %v6720
    %v6732 = vadd.f32 %v6713, %v6720
    %v6733 = vadd.f32 %v6714, %v6720
    %v6734 = vadd.f32 %v6715, %v6720
    %v6735 = vmax.f32 %v6722, 0.0
    %v6736 = vmax.f32 %v6723, 0.0
    %v6737 = vmax.f32 %v6724, 0.0
    %v6738 = vmax.f32 %v6725, 0.0
    %v6739 = vmax.f32 %v6726, 0.0
    %v6740 = vmax.f32 %v6727, 0.0
    %v6741 = vmax.f32 %v6728, 0.0
    %v6742 = vmax.f32 %v6729, 0.0
    %v6743 = vmax.f32 %v6730, 0.0
    %v6744 = vmax.f32 %v6731, 0.0
    %v6745 = vmax.f32 %v6732, 0.0
    %v6746 = vmax.f32 %v6733, 0.0
    %v6747 = vmax.f32 %v6734, 0.0
    %6761 = vrot.lane.b32.xlu0 %v6735, 126
    %v6762 = vpop.permute.xlu0 %6761
    %6763 = vrot.lane.b32.xlu0 %v6736, 126
    %v6764 = vpop.permute.xlu0 %6763
    %6765 = vrot.lane.b32.xlu0 %v6737, 126
    %v6766 = vpop.permute.xlu0 %6765
    %6767 = vrot.lane.b32.xlu0 %v6738, 126
    %v6768 = vpop.permute.xlu0 %6767
    %6769 = vrot.lane.b32.xlu0 %v6739, 126
    %v6770 = vpop.permute.xlu0 %6769
    %6771 = vrot.lane.b32.xlu0 %v6740, 126
    %v6772 = vpop.permute.xlu0 %6771
    %6773 = vrot.lane.b32.xlu0 %v6741, 126
    %v6774 = vpop.permute.xlu0 %6773
    %6775 = vrot.lane.b32.xlu0 %v6742, 126
    %v6776 = vpop.permute.xlu0 %6775
    %6777 = vrot.lane.b32.xlu0 %v6743, 126
    %v6778 = vpop.permute.xlu0 %6777
    %6779 = vrot.lane.b32.xlu0 %v6744, 126
    %v6780 = vpop.permute.xlu0 %6779
    %6781 = vrot.lane.b32.xlu0 %v6745, 126
    %v6782 = vpop.permute.xlu0 %6781
    %6783 = vrot.lane.b32.xlu0 %v6746, 126
    %v6784 = vpop.permute.xlu0 %6783
    %6785 = vrot.lane.b32.xlu0 %v6747, 126
    %v6786 = vpop.permute.xlu0 %6785
    %v6787 = vsel %vm148, %v6762, %v6764
    %v6788 = vsel %vm148, %v6764, %v6766
    %v6789 = vsel %vm148, %v6766, %v6768
    %v6790 = vsel %vm148, %v6768, %v6770
    %v6791 = vsel %vm148, %v6770, %v6772
    %v6792 = vsel %vm148, %v6772, %v6774
    %v6793 = vsel %vm148, %v6774, %v6776
    %v6794 = vsel %vm148, %v6776, %v6778
    %v6795 = vsel %vm148, %v6778, %v6780
    %v6796 = vsel %vm148, %v6780, %v6782
    %v6797 = vsel %vm148, %v6782, %v6784
    %v6798 = vsel %vm148, %v6784, %v6786
    %6812 = vrot.lane.b32.xlu0 %v6735, 30
    %v6813 = vpop.permute.xlu0 %6812
    %v6815 = vsel %vm177, %v6786, %v6813
    %6816 = vrot.lane.b32.xlu0 %v6735, 124
    %v6817 = vpop.permute.xlu0 %6816
    %6818 = vrot.lane.b32.xlu0 %v6736, 124
    %v6819 = vpop.permute.xlu0 %6818
    %6820 = vrot.lane.b32.xlu0 %v6737, 124
    %v6821 = vpop.permute.xlu0 %6820
    %6822 = vrot.lane.b32.xlu0 %v6738, 124
    %v6823 = vpop.permute.xlu0 %6822
    %6824 = vrot.lane.b32.xlu0 %v6739, 124
    %v6825 = vpop.permute.xlu0 %6824
    %6826 = vrot.lane.b32.xlu0 %v6740, 124
    %v6827 = vpop.permute.xlu0 %6826
    %6828 = vrot.lane.b32.xlu0 %v6741, 124
    %v6829 = vpop.permute.xlu0 %6828
    %6830 = vrot.lane.b32.xlu0 %v6742, 124
    %v6831 = vpop.permute.xlu0 %6830
    %6832 = vrot.lane.b32.xlu0 %v6743, 124
    %v6833 = vpop.permute.xlu0 %6832
    %6834 = vrot.lane.b32.xlu0 %v6744, 124
    %v6835 = vpop.permute.xlu0 %6834
    %6836 = vrot.lane.b32.xlu0 %v6745, 124
    %v6837 = vpop.permute.xlu0 %6836
    %6838 = vrot.lane.b32.xlu0 %v6746, 124
    %v6839 = vpop.permute.xlu0 %6838
    %6840 = vrot.lane.b32.xlu0 %v6747, 124
    %v6841 = vpop.permute.xlu0 %6840
    %v6842 = vsel %vm287, %v6817, %v6819
    %v6843 = vsel %vm287, %v6819, %v6821
    %v6844 = vsel %vm287, %v6821, %v6823
    %v6845 = vsel %vm287, %v6823, %v6825
    %v6846 = vsel %vm287, %v6825, %v6827
    %v6847 = vsel %vm287, %v6827, %v6829
    %v6848 = vsel %vm287, %v6829, %v6831
    %v6849 = vsel %vm287, %v6831, %v6833
    %v6850 = vsel %vm287, %v6833, %v6835
    %v6851 = vsel %vm287, %v6835, %v6837
    %v6852 = vsel %vm287, %v6837, %v6839
    %v6853 = vsel %vm287, %v6839, %v6841
    %6867 = vrot.lane.b32.xlu0 %v6735, 28
    %v6868 = vpop.permute.xlu0 %6867
    %v6870 = vsel %vm316, %v6841, %v6868
    %6871 = vrot.lane.b32.xlu0 %v6735, 122
    %v6872 = vpop.permute.xlu0 %6871
    %6873 = vrot.lane.b32.xlu0 %v6736, 122
    %v6874 = vpop.permute.xlu0 %6873
    %6875 = vrot.lane.b32.xlu0 %v6737, 122
    %v6876 = vpop.permute.xlu0 %6875
    %6877 = vrot.lane.b32.xlu0 %v6738, 122
    %v6878 = vpop.permute.xlu0 %6877
    %6879 = vrot.lane.b32.xlu0 %v6739, 122
    %v6880 = vpop.permute.xlu0 %6879
    %6881 = vrot.lane.b32.xlu0 %v6740, 122
    %v6882 = vpop.permute.xlu0 %6881
    %6883 = vrot.lane.b32.xlu0 %v6741, 122
    %v6884 = vpop.permute.xlu0 %6883
    %6885 = vrot.lane.b32.xlu0 %v6742, 122
    %v6886 = vpop.permute.xlu0 %6885
    %6887 = vrot.lane.b32.xlu0 %v6743, 122
    %v6888 = vpop.permute.xlu0 %6887
    %6889 = vrot.lane.b32.xlu0 %v6744, 122
    %v6890 = vpop.permute.xlu0 %6889
    %6891 = vrot.lane.b32.xlu0 %v6745, 122
    %v6892 = vpop.permute.xlu0 %6891
    %6893 = vrot.lane.b32.xlu0 %v6746, 122
    %v6894 = vpop.permute.xlu0 %6893
    %6895 = vrot.lane.b32.xlu0 %v6747, 122
    %v6896 = vpop.permute.xlu0 %6895
    %v6897 = vsel %vm426, %v6872, %v6874
    %v6898 = vsel %vm426, %v6874, %v6876
    %v6899 = vsel %vm426, %v6876, %v6878
    %v6900 = vsel %vm426, %v6878, %v6880
    %v6901 = vsel %vm426, %v6880, %v6882
    %v6902 = vsel %vm426, %v6882, %v6884
    %v6903 = vsel %vm426, %v6884, %v6886
    %v6904 = vsel %vm426, %v6886, %v6888
    %v6905 = vsel %vm426, %v6888, %v6890
    %v6906 = vsel %vm426, %v6890, %v6892
    %v6907 = vsel %vm426, %v6892, %v6894
    %v6908 = vsel %vm426, %v6894, %v6896
    %6922 = vrot.lane.b32.xlu0 %v6735, 26
    %v6923 = vpop.permute.xlu0 %6922
    %v6925 = vsel %vm455, %v6896, %v6923
    %6926 = vrot.lane.b32.xlu0 %v6735, 120
    %v6927 = vpop.permute.xlu0 %6926
    %6928 = vrot.lane.b32.xlu0 %v6736, 120
    %v6929 = vpop.permute.xlu0 %6928
    %6930 = vrot.lane.b32.xlu0 %v6737, 120
    %v6931 = vpop.permute.xlu0 %6930
    %6932 = vrot.lane.b32.xlu0 %v6738, 120
    %v6933 = vpop.permute.xlu0 %6932
    %6934 = vrot.lane.b32.xlu0 %v6739, 120
    %v6935 = vpop.permute.xlu0 %6934
    %6936 = vrot.lane.b32.xlu0 %v6740, 120
    %v6937 = vpop.permute.xlu0 %6936
    %6938 = vrot.lane.b32.xlu0 %v6741, 120
    %v6939 = vpop.permute.xlu0 %6938
    %6940 = vrot.lane.b32.xlu0 %v6742, 120
    %v6941 = vpop.permute.xlu0 %6940
    %6942 = vrot.lane.b32.xlu0 %v6743, 120
    %v6943 = vpop.permute.xlu0 %6942
    %6944 = vrot.lane.b32.xlu0 %v6744, 120
    %v6945 = vpop.permute.xlu0 %6944
    %6946 = vrot.lane.b32.xlu0 %v6745, 120
    %v6947 = vpop.permute.xlu0 %6946
    %6948 = vrot.lane.b32.xlu0 %v6746, 120
    %v6949 = vpop.permute.xlu0 %6948
    %6950 = vrot.lane.b32.xlu0 %v6747, 120
    %v6951 = vpop.permute.xlu0 %6950
    %v6952 = vsel %vm565, %v6927, %v6929
    %v6953 = vsel %vm565, %v6929, %v6931
    %v6954 = vsel %vm565, %v6931, %v6933
    %v6955 = vsel %vm565, %v6933, %v6935
    %v6956 = vsel %vm565, %v6935, %v6937
    %v6957 = vsel %vm565, %v6937, %v6939
    %v6958 = vsel %vm565, %v6939, %v6941
    %v6959 = vsel %vm565, %v6941, %v6943
    %v6960 = vsel %vm565, %v6943, %v6945
    %v6961 = vsel %vm565, %v6945, %v6947
    %v6962 = vsel %vm565, %v6947, %v6949
    %v6963 = vsel %vm565, %v6949, %v6951
    %6977 = vrot.lane.b32.xlu0 %v6735, 24
    %v6978 = vpop.permute.xlu0 %6977
    %v6980 = vsel %vm594, %v6951, %v6978
    %6981 = vrot.lane.b32.xlu0 %v6735, 72
    %v6982 = vpop.permute.xlu0 %6981
    %6983 = vrot.lane.b32.xlu0 %v6736, 72
    %v6984 = vpop.permute.xlu0 %6983
    %6985 = vrot.lane.b32.xlu0 %v6737, 72
    %v6986 = vpop.permute.xlu0 %6985
    %6987 = vrot.lane.b32.xlu0 %v6738, 72
    %v6988 = vpop.permute.xlu0 %6987
    %6989 = vrot.lane.b32.xlu0 %v6739, 72
    %v6990 = vpop.permute.xlu0 %6989
    %6991 = vrot.lane.b32.xlu0 %v6740, 72
    %v6992 = vpop.permute.xlu0 %6991
    %6993 = vrot.lane.b32.xlu0 %v6741, 72
    %v6994 = vpop.permute.xlu0 %6993
    %6995 = vrot.lane.b32.xlu0 %v6742, 72
    %v6996 = vpop.permute.xlu0 %6995
    %6997 = vrot.lane.b32.xlu0 %v6743, 72
    %v6998 = vpop.permute.xlu0 %6997
    %6999 = vrot.lane.b32.xlu0 %v6744, 72
    %v7000 = vpop.permute.xlu0 %6999
    %7001 = vrot.lane.b32.xlu0 %v6745, 72
    %v7002 = vpop.permute.xlu0 %7001
    %7003 = vrot.lane.b32.xlu0 %v6746, 72
    %v7004 = vpop.permute.xlu0 %7003
    %7005 = vrot.lane.b32.xlu0 %v6747, 72
    %v7006 = vpop.permute.xlu0 %7005
    %v7007 = vsel %vm982, %v6982, %v6984
    %v7008 = vsel %vm982, %v6984, %v6986
    %v7009 = vsel %vm982, %v6986, %v6988
    %v7010 = vsel %vm982, %v6988, %v6990
    %v7011 = vsel %vm982, %v6990, %v6992
    %v7012 = vsel %vm982, %v6992, %v6994
    %v7013 = vsel %vm982, %v6994, %v6996
    %v7014 = vsel %vm982, %v6996, %v6998
    %v7015 = vsel %vm982, %v6998, %v7000
    %v7016 = vsel %vm982, %v7000, %v7002
    %v7017 = vsel %vm982, %v7002, %v7004
    %v7018 = vsel %vm982, %v7004, %v7006
    %7031 = vrot.lane.b32.xlu0 %v6735, 104
    %v7032 = vpop.permute.xlu0 %7031
    %v7034 = vsel %vm1010, %v7018, %v7032
    %7035 = vrot.lane.b32.xlu0 %v6735, 70
    %v7036 = vpop.permute.xlu0 %7035
    %7037 = vrot.lane.b32.xlu0 %v6736, 70
    %v7038 = vpop.permute.xlu0 %7037
    %7039 = vrot.lane.b32.xlu0 %v6737, 70
    %v7040 = vpop.permute.xlu0 %7039
    %7041 = vrot.lane.b32.xlu0 %v6738, 70
    %v7042 = vpop.permute.xlu0 %7041
    %7043 = vrot.lane.b32.xlu0 %v6739, 70
    %v7044 = vpop.permute.xlu0 %7043
    %7045 = vrot.lane.b32.xlu0 %v6740, 70
    %v7046 = vpop.permute.xlu0 %7045
    %7047 = vrot.lane.b32.xlu0 %v6741, 70
    %v7048 = vpop.permute.xlu0 %7047
    %7049 = vrot.lane.b32.xlu0 %v6742, 70
    %v7050 = vpop.permute.xlu0 %7049
    %7051 = vrot.lane.b32.xlu0 %v6743, 70
    %v7052 = vpop.permute.xlu0 %7051
    %7053 = vrot.lane.b32.xlu0 %v6744, 70
    %v7054 = vpop.permute.xlu0 %7053
    %7055 = vrot.lane.b32.xlu0 %v6745, 70
    %v7056 = vpop.permute.xlu0 %7055
    %7057 = vrot.lane.b32.xlu0 %v6746, 70
    %v7058 = vpop.permute.xlu0 %7057
    %7059 = vrot.lane.b32.xlu0 %v6747, 70
    %v7060 = vpop.permute.xlu0 %7059
    %v7061 = vsel %vm1120, %v7036, %v7038
    %v7062 = vsel %vm1120, %v7038, %v7040
    %v7063 = vsel %vm1120, %v7040, %v7042
    %v7064 = vsel %vm1120, %v7042, %v7044
    %v7065 = vsel %vm1120, %v7044, %v7046
    %v7066 = vsel %vm1120, %v7046, %v7048
    %v7067 = vsel %vm1120, %v7048, %v7050
    %v7068 = vsel %vm1120, %v7050, %v7052
    %v7069 = vsel %vm1120, %v7052, %v7054
    %v7070 = vsel %vm1120, %v7054, %v7056
    %v7071 = vsel %vm1120, %v7056, %v7058
    %v7072 = vsel %vm1120, %v7058, %v7060
    %7085 = vrot.lane.b32.xlu0 %v6735, 102
    %v7086 = vpop.permute.xlu0 %7085
    %v7088 = vsel %vm1148, %v7072, %v7086
    %7089 = vrot.lane.b32.xlu0 %v6735, 68
    %v7090 = vpop.permute.xlu0 %7089
    %7091 = vrot.lane.b32.xlu0 %v6736, 68
    %v7092 = vpop.permute.xlu0 %7091
    %7093 = vrot.lane.b32.xlu0 %v6737, 68
    %v7094 = vpop.permute.xlu0 %7093
    %7095 = vrot.lane.b32.xlu0 %v6738, 68
    %v7096 = vpop.permute.xlu0 %7095
    %7097 = vrot.lane.b32.xlu0 %v6739, 68
    %v7098 = vpop.permute.xlu0 %7097
    %7099 = vrot.lane.b32.xlu0 %v6740, 68
    %v7100 = vpop.permute.xlu0 %7099
    %7101 = vrot.lane.b32.xlu0 %v6741, 68
    %v7102 = vpop.permute.xlu0 %7101
    %7103 = vrot.lane.b32.xlu0 %v6742, 68
    %v7104 = vpop.permute.xlu0 %7103
    %7105 = vrot.lane.b32.xlu0 %v6743, 68
    %v7106 = vpop.permute.xlu0 %7105
    %7107 = vrot.lane.b32.xlu0 %v6744, 68
    %v7108 = vpop.permute.xlu0 %7107
    %7109 = vrot.lane.b32.xlu0 %v6745, 68
    %v7110 = vpop.permute.xlu0 %7109
    %7111 = vrot.lane.b32.xlu0 %v6746, 68
    %v7112 = vpop.permute.xlu0 %7111
    %7113 = vrot.lane.b32.xlu0 %v6747, 68
    %v7114 = vpop.permute.xlu0 %7113
    %v7115 = vsel %vm1258, %v7090, %v7092
    %v7116 = vsel %vm1258, %v7092, %v7094
    %v7117 = vsel %vm1258, %v7094, %v7096
    %v7118 = vsel %vm1258, %v7096, %v7098
    %v7119 = vsel %vm1258, %v7098, %v7100
    %v7120 = vsel %vm1258, %v7100, %v7102
    %v7121 = vsel %vm1258, %v7102, %v7104
    %v7122 = vsel %vm1258, %v7104, %v7106
    %v7123 = vsel %vm1258, %v7106, %v7108
    %v7124 = vsel %vm1258, %v7108, %v7110
    %v7125 = vsel %vm1258, %v7110, %v7112
    %v7126 = vsel %vm1258, %v7112, %v7114
    %7139 = vrot.lane.b32.xlu0 %v6735, 100
    %v7140 = vpop.permute.xlu0 %7139
    %v7142 = vsel %vm1286, %v7126, %v7140
    %7143 = vrot.lane.b32.xlu0 %v6735, 66
    %v7144 = vpop.permute.xlu0 %7143
    %7145 = vrot.lane.b32.xlu0 %v6736, 66
    %v7146 = vpop.permute.xlu0 %7145
    %7147 = vrot.lane.b32.xlu0 %v6737, 66
    %v7148 = vpop.permute.xlu0 %7147
    %7149 = vrot.lane.b32.xlu0 %v6738, 66
    %v7150 = vpop.permute.xlu0 %7149
    %7151 = vrot.lane.b32.xlu0 %v6739, 66
    %v7152 = vpop.permute.xlu0 %7151
    %7153 = vrot.lane.b32.xlu0 %v6740, 66
    %v7154 = vpop.permute.xlu0 %7153
    %7155 = vrot.lane.b32.xlu0 %v6741, 66
    %v7156 = vpop.permute.xlu0 %7155
    %7157 = vrot.lane.b32.xlu0 %v6742, 66
    %v7158 = vpop.permute.xlu0 %7157
    %7159 = vrot.lane.b32.xlu0 %v6743, 66
    %v7160 = vpop.permute.xlu0 %7159
    %7161 = vrot.lane.b32.xlu0 %v6744, 66
    %v7162 = vpop.permute.xlu0 %7161
    %7163 = vrot.lane.b32.xlu0 %v6745, 66
    %v7164 = vpop.permute.xlu0 %7163
    %7165 = vrot.lane.b32.xlu0 %v6746, 66
    %v7166 = vpop.permute.xlu0 %7165
    %7167 = vrot.lane.b32.xlu0 %v6747, 66
    %v7168 = vpop.permute.xlu0 %7167
    %v7169 = vsel %vm1396, %v7144, %v7146
    %v7170 = vsel %vm1396, %v7146, %v7148
    %v7171 = vsel %vm1396, %v7148, %v7150
    %v7172 = vsel %vm1396, %v7150, %v7152
    %v7173 = vsel %vm1396, %v7152, %v7154
    %v7174 = vsel %vm1396, %v7154, %v7156
    %v7175 = vsel %vm1396, %v7156, %v7158
    %v7176 = vsel %vm1396, %v7158, %v7160
    %v7177 = vsel %vm1396, %v7160, %v7162
    %v7178 = vsel %vm1396, %v7162, %v7164
    %v7179 = vsel %vm1396, %v7164, %v7166
    %v7180 = vsel %vm1396, %v7166, %v7168
    %7193 = vrot.lane.b32.xlu0 %v6735, 98
    %v7194 = vpop.permute.xlu0 %7193
    %v7196 = vsel %vm1424, %v7180, %v7194
    %7197 = vrot.lane.b32.xlu0 %v6735, 64
    %v7198 = vpop.permute.xlu0 %7197
    %7199 = vrot.lane.b32.xlu0 %v6736, 64
    %v7200 = vpop.permute.xlu0 %7199
    %7201 = vrot.lane.b32.xlu0 %v6737, 64
    %v7202 = vpop.permute.xlu0 %7201
    %7203 = vrot.lane.b32.xlu0 %v6738, 64
    %v7204 = vpop.permute.xlu0 %7203
    %7205 = vrot.lane.b32.xlu0 %v6739, 64
    %v7206 = vpop.permute.xlu0 %7205
    %7207 = vrot.lane.b32.xlu0 %v6740, 64
    %v7208 = vpop.permute.xlu0 %7207
    %7209 = vrot.lane.b32.xlu0 %v6741, 64
    %v7210 = vpop.permute.xlu0 %7209
    %7211 = vrot.lane.b32.xlu0 %v6742, 64
    %v7212 = vpop.permute.xlu0 %7211
    %7213 = vrot.lane.b32.xlu0 %v6743, 64
    %v7214 = vpop.permute.xlu0 %7213
    %7215 = vrot.lane.b32.xlu0 %v6744, 64
    %v7216 = vpop.permute.xlu0 %7215
    %7217 = vrot.lane.b32.xlu0 %v6745, 64
    %v7218 = vpop.permute.xlu0 %7217
    %7219 = vrot.lane.b32.xlu0 %v6746, 64
    %v7220 = vpop.permute.xlu0 %7219
    %7221 = vrot.lane.b32.xlu0 %v6747, 64
    %v7222 = vpop.permute.xlu0 %7221
    %v7223 = vsel %vm1534, %v7198, %v7200
    %v7224 = vsel %vm1534, %v7200, %v7202
    %v7225 = vsel %vm1534, %v7202, %v7204
    %v7226 = vsel %vm1534, %v7204, %v7206
    %v7227 = vsel %vm1534, %v7206, %v7208
    %v7228 = vsel %vm1534, %v7208, %v7210
    %v7229 = vsel %vm1534, %v7210, %v7212
    %v7230 = vsel %vm1534, %v7212, %v7214
    %v7231 = vsel %vm1534, %v7214, %v7216
    %v7232 = vsel %vm1534, %v7216, %v7218
    %v7233 = vsel %vm1534, %v7218, %v7220
    %v7234 = vsel %vm1534, %v7220, %v7222
    %7247 = vrot.lane.b32.xlu0 %v6735, 96
    %v7248 = vpop.permute.xlu0 %7247
    %v7250 = vsel %vm1562, %v7234, %v7248
    %7251 = vrot.lane.b32.xlu0 %v6735, 16
    %v7252 = vpop.permute.xlu0 %7251
    %7253 = vrot.lane.b32.xlu0 %v6736, 16
    %v7254 = vpop.permute.xlu0 %7253
    %7255 = vrot.lane.b32.xlu0 %v6737, 16
    %v7256 = vpop.permute.xlu0 %7255
    %7257 = vrot.lane.b32.xlu0 %v6738, 16
    %v7258 = vpop.permute.xlu0 %7257
    %7259 = vrot.lane.b32.xlu0 %v6739, 16
    %v7260 = vpop.permute.xlu0 %7259
    %7261 = vrot.lane.b32.xlu0 %v6740, 16
    %v7262 = vpop.permute.xlu0 %7261
    %7263 = vrot.lane.b32.xlu0 %v6741, 16
    %v7264 = vpop.permute.xlu0 %7263
    %7265 = vrot.lane.b32.xlu0 %v6742, 16
    %v7266 = vpop.permute.xlu0 %7265
    %7267 = vrot.lane.b32.xlu0 %v6743, 16
    %v7268 = vpop.permute.xlu0 %7267
    %7269 = vrot.lane.b32.xlu0 %v6744, 16
    %v7270 = vpop.permute.xlu0 %7269
    %7271 = vrot.lane.b32.xlu0 %v6745, 16
    %v7272 = vpop.permute.xlu0 %7271
    %7273 = vrot.lane.b32.xlu0 %v6746, 16
    %v7274 = vpop.permute.xlu0 %7273
    %7275 = vrot.lane.b32.xlu0 %v6747, 16
    %v7276 = vpop.permute.xlu0 %7275
    %v7277 = vsel %vm1948, %v7252, %v7254
    %v7278 = vsel %vm1948, %v7254, %v7256
    %v7279 = vsel %vm1948, %v7256, %v7258
    %v7280 = vsel %vm1948, %v7258, %v7260
    %v7281 = vsel %vm1948, %v7260, %v7262
    %v7282 = vsel %vm1948, %v7262, %v7264
    %v7283 = vsel %vm1948, %v7264, %v7266
    %v7284 = vsel %vm1948, %v7266, %v7268
    %v7285 = vsel %vm1948, %v7268, %v7270
    %v7286 = vsel %vm1948, %v7270, %v7272
    %v7287 = vsel %vm1948, %v7272, %v7274
    %v7288 = vsel %vm1948, %v7274, %v7276
    %7301 = vrot.lane.b32.xlu0 %v6735, 48
    %v7302 = vpop.permute.xlu0 %7301
    %v7304 = vsel %vm1976, %v7288, %v7302
    %7305 = vrot.lane.b32.xlu0 %v6735, 14
    %v7306 = vpop.permute.xlu0 %7305
    %7307 = vrot.lane.b32.xlu0 %v6736, 14
    %v7308 = vpop.permute.xlu0 %7307
    %7309 = vrot.lane.b32.xlu0 %v6737, 14
    %v7310 = vpop.permute.xlu0 %7309
    %7311 = vrot.lane.b32.xlu0 %v6738, 14
    %v7312 = vpop.permute.xlu0 %7311
    %7313 = vrot.lane.b32.xlu0 %v6739, 14
    %v7314 = vpop.permute.xlu0 %7313
    %7315 = vrot.lane.b32.xlu0 %v6740, 14
    %v7316 = vpop.permute.xlu0 %7315
    %7317 = vrot.lane.b32.xlu0 %v6741, 14
    %v7318 = vpop.permute.xlu0 %7317
    %7319 = vrot.lane.b32.xlu0 %v6742, 14
    %v7320 = vpop.permute.xlu0 %7319
    %7321 = vrot.lane.b32.xlu0 %v6743, 14
    %v7322 = vpop.permute.xlu0 %7321
    %7323 = vrot.lane.b32.xlu0 %v6744, 14
    %v7324 = vpop.permute.xlu0 %7323
    %7325 = vrot.lane.b32.xlu0 %v6745, 14
    %v7326 = vpop.permute.xlu0 %7325
    %7327 = vrot.lane.b32.xlu0 %v6746, 14
    %v7328 = vpop.permute.xlu0 %7327
    %7329 = vrot.lane.b32.xlu0 %v6747, 14
    %v7330 = vpop.permute.xlu0 %7329
    %v7331 = vsel %vm2086, %v7306, %v7308
    %v7332 = vsel %vm2086, %v7308, %v7310
    %v7333 = vsel %vm2086, %v7310, %v7312
    %v7334 = vsel %vm2086, %v7312, %v7314
    %v7335 = vsel %vm2086, %v7314, %v7316
    %v7336 = vsel %vm2086, %v7316, %v7318
    %v7337 = vsel %vm2086, %v7318, %v7320
    %v7338 = vsel %vm2086, %v7320, %v7322
    %v7339 = vsel %vm2086, %v7322, %v7324
    %v7340 = vsel %vm2086, %v7324, %v7326
    %v7341 = vsel %vm2086, %v7326, %v7328
    %v7342 = vsel %vm2086, %v7328, %v7330
    %7355 = vrot.lane.b32.xlu0 %v6735, 46
    %v7356 = vpop.permute.xlu0 %7355
    %v7358 = vsel %vm2114, %v7342, %v7356
    %7359 = vrot.lane.b32.xlu0 %v6735, 12
    %v7360 = vpop.permute.xlu0 %7359
    %7361 = vrot.lane.b32.xlu0 %v6736, 12
    %v7362 = vpop.permute.xlu0 %7361
    %7363 = vrot.lane.b32.xlu0 %v6737, 12
    %v7364 = vpop.permute.xlu0 %7363
    %7365 = vrot.lane.b32.xlu0 %v6738, 12
    %v7366 = vpop.permute.xlu0 %7365
    %7367 = vrot.lane.b32.xlu0 %v6739, 12
    %v7368 = vpop.permute.xlu0 %7367
    %7369 = vrot.lane.b32.xlu0 %v6740, 12
    %v7370 = vpop.permute.xlu0 %7369
    %7371 = vrot.lane.b32.xlu0 %v6741, 12
    %v7372 = vpop.permute.xlu0 %7371
    %7373 = vrot.lane.b32.xlu0 %v6742, 12
    %v7374 = vpop.permute.xlu0 %7373
    %7375 = vrot.lane.b32.xlu0 %v6743, 12
    %v7376 = vpop.permute.xlu0 %7375
    %7377 = vrot.lane.b32.xlu0 %v6744, 12
    %v7378 = vpop.permute.xlu0 %7377
    %7379 = vrot.lane.b32.xlu0 %v6745, 12
    %v7380 = vpop.permute.xlu0 %7379
    %7381 = vrot.lane.b32.xlu0 %v6746, 12
    %v7382 = vpop.permute.xlu0 %7381
    %7383 = vrot.lane.b32.xlu0 %v6747, 12
    %v7384 = vpop.permute.xlu0 %7383
    %v7385 = vsel %vm2224, %v7360, %v7362
    %v7386 = vsel %vm2224, %v7362, %v7364
    %v7387 = vsel %vm2224, %v7364, %v7366
    %v7388 = vsel %vm2224, %v7366, %v7368
    %v7389 = vsel %vm2224, %v7368, %v7370
    %v7390 = vsel %vm2224, %v7370, %v7372
    %v7391 = vsel %vm2224, %v7372, %v7374
    %v7392 = vsel %vm2224, %v7374, %v7376
    %v7393 = vsel %vm2224, %v7376, %v7378
    %v7394 = vsel %vm2224, %v7378, %v7380
    %v7395 = vsel %vm2224, %v7380, %v7382
    %v7396 = vsel %vm2224, %v7382, %v7384
    %7409 = vrot.lane.b32.xlu0 %v6735, 44
    %v7410 = vpop.permute.xlu0 %7409
    %v7412 = vsel %vm2252, %v7396, %v7410
    %7413 = vrot.lane.b32.xlu0 %v6735, 10
    %v7414 = vpop.permute.xlu0 %7413
    %7415 = vrot.lane.b32.xlu0 %v6736, 10
    %v7416 = vpop.permute.xlu0 %7415
    %7417 = vrot.lane.b32.xlu0 %v6737, 10
    %v7418 = vpop.permute.xlu0 %7417
    %7419 = vrot.lane.b32.xlu0 %v6738, 10
    %v7420 = vpop.permute.xlu0 %7419
    %7421 = vrot.lane.b32.xlu0 %v6739, 10
    %v7422 = vpop.permute.xlu0 %7421
    %7423 = vrot.lane.b32.xlu0 %v6740, 10
    %v7424 = vpop.permute.xlu0 %7423
    %7425 = vrot.lane.b32.xlu0 %v6741, 10
    %v7426 = vpop.permute.xlu0 %7425
    %7427 = vrot.lane.b32.xlu0 %v6742, 10
    %v7428 = vpop.permute.xlu0 %7427
    %7429 = vrot.lane.b32.xlu0 %v6743, 10
    %v7430 = vpop.permute.xlu0 %7429
    %7431 = vrot.lane.b32.xlu0 %v6744, 10
    %v7432 = vpop.permute.xlu0 %7431
    %7433 = vrot.lane.b32.xlu0 %v6745, 10
    %v7434 = vpop.permute.xlu0 %7433
    %7435 = vrot.lane.b32.xlu0 %v6746, 10
    %v7436 = vpop.permute.xlu0 %7435
    %7437 = vrot.lane.b32.xlu0 %v6747, 10
    %v7438 = vpop.permute.xlu0 %7437
    %v7439 = vsel %vm2362, %v7414, %v7416
    %v7440 = vsel %vm2362, %v7416, %v7418
    %v7441 = vsel %vm2362, %v7418, %v7420
    %v7442 = vsel %vm2362, %v7420, %v7422
    %v7443 = vsel %vm2362, %v7422, %v7424
    %v7444 = vsel %vm2362, %v7424, %v7426
    %v7445 = vsel %vm2362, %v7426, %v7428
    %v7446 = vsel %vm2362, %v7428, %v7430
    %v7447 = vsel %vm2362, %v7430, %v7432
    %v7448 = vsel %vm2362, %v7432, %v7434
    %v7449 = vsel %vm2362, %v7434, %v7436
    %v7450 = vsel %vm2362, %v7436, %v7438
    %7463 = vrot.lane.b32.xlu0 %v6735, 42
    %v7464 = vpop.permute.xlu0 %7463
    %v7466 = vsel %vm2390, %v7450, %v7464
    %7467 = vrot.lane.b32.xlu0 %v6735, 8
    %v7468 = vpop.permute.xlu0 %7467
    %7469 = vrot.lane.b32.xlu0 %v6736, 8
    %v7470 = vpop.permute.xlu0 %7469
    %7471 = vrot.lane.b32.xlu0 %v6737, 8
    %v7472 = vpop.permute.xlu0 %7471
    %7473 = vrot.lane.b32.xlu0 %v6738, 8
    %v7474 = vpop.permute.xlu0 %7473
    %7475 = vrot.lane.b32.xlu0 %v6739, 8
    %v7476 = vpop.permute.xlu0 %7475
    %7477 = vrot.lane.b32.xlu0 %v6740, 8
    %v7478 = vpop.permute.xlu0 %7477
    %7479 = vrot.lane.b32.xlu0 %v6741, 8
    %v7480 = vpop.permute.xlu0 %7479
    %7481 = vrot.lane.b32.xlu0 %v6742, 8
    %v7482 = vpop.permute.xlu0 %7481
    %7483 = vrot.lane.b32.xlu0 %v6743, 8
    %v7484 = vpop.permute.xlu0 %7483
    %7485 = vrot.lane.b32.xlu0 %v6744, 8
    %v7486 = vpop.permute.xlu0 %7485
    %7487 = vrot.lane.b32.xlu0 %v6745, 8
    %v7488 = vpop.permute.xlu0 %7487
    %7489 = vrot.lane.b32.xlu0 %v6746, 8
    %v7490 = vpop.permute.xlu0 %7489
    %7491 = vrot.lane.b32.xlu0 %v6747, 8
    %v7492 = vpop.permute.xlu0 %7491
    %v7493 = vsel %vm2500, %v7468, %v7470
    %v7494 = vsel %vm2500, %v7470, %v7472
    %v7495 = vsel %vm2500, %v7472, %v7474
    %v7496 = vsel %vm2500, %v7474, %v7476
    %v7497 = vsel %vm2500, %v7476, %v7478
    %v7498 = vsel %vm2500, %v7478, %v7480
    %v7499 = vsel %vm2500, %v7480, %v7482
    %v7500 = vsel %vm2500, %v7482, %v7484
    %v7501 = vsel %vm2500, %v7484, %v7486
    %v7502 = vsel %vm2500, %v7486, %v7488
    %v7503 = vsel %vm2500, %v7488, %v7490
    %v7504 = vsel %vm2500, %v7490, %v7492
    %7517 = vrot.lane.b32.xlu0 %v6735, 40
    %v7518 = vpop.permute.xlu0 %7517
    %v7520 = vsel %vm2528, %v7504, %v7518
    %7521 = vrot.lane.b32.xlu0 %v6736, 88
    %v7522 = vpop.permute.xlu0 %7521
    %7523 = vrot.lane.b32.xlu0 %v6737, 88
    %v7524 = vpop.permute.xlu0 %7523
    %7525 = vrot.lane.b32.xlu0 %v6738, 88
    %v7526 = vpop.permute.xlu0 %7525
    %7527 = vrot.lane.b32.xlu0 %v6739, 88
    %v7528 = vpop.permute.xlu0 %7527
    %7529 = vrot.lane.b32.xlu0 %v6740, 88
    %v7530 = vpop.permute.xlu0 %7529
    %7531 = vrot.lane.b32.xlu0 %v6741, 88
    %v7532 = vpop.permute.xlu0 %7531
    %7533 = vrot.lane.b32.xlu0 %v6742, 88
    %v7534 = vpop.permute.xlu0 %7533
    %7535 = vrot.lane.b32.xlu0 %v6743, 88
    %v7536 = vpop.permute.xlu0 %7535
    %7537 = vrot.lane.b32.xlu0 %v6744, 88
    %v7538 = vpop.permute.xlu0 %7537
    %7539 = vrot.lane.b32.xlu0 %v6745, 88
    %v7540 = vpop.permute.xlu0 %7539
    %7541 = vrot.lane.b32.xlu0 %v6746, 88
    %v7542 = vpop.permute.xlu0 %7541
    %7543 = vrot.lane.b32.xlu0 %v6747, 88
    %v7544 = vpop.permute.xlu0 %7543
    %v7545 = vsel %vm2912, %v7522, %v7524
    %v7546 = vsel %vm2912, %v7524, %v7526
    %v7547 = vsel %vm2912, %v7526, %v7528
    %v7548 = vsel %vm2912, %v7528, %v7530
    %v7549 = vsel %vm2912, %v7530, %v7532
    %v7550 = vsel %vm2912, %v7532, %v7534
    %v7551 = vsel %vm2912, %v7534, %v7536
    %v7552 = vsel %vm2912, %v7536, %v7538
    %v7553 = vsel %vm2912, %v7538, %v7540
    %v7554 = vsel %vm2912, %v7540, %v7542
    %v7555 = vsel %vm2912, %v7542, %v7544
    %v7569 = vsel %vm565, %v7555, %v6927
    %7570 = vrot.lane.b32.xlu0 %v6736, 86
    %v7571 = vpop.permute.xlu0 %7570
    %7572 = vrot.lane.b32.xlu0 %v6737, 86
    %v7573 = vpop.permute.xlu0 %7572
    %7574 = vrot.lane.b32.xlu0 %v6738, 86
    %v7575 = vpop.permute.xlu0 %7574
    %7576 = vrot.lane.b32.xlu0 %v6739, 86
    %v7577 = vpop.permute.xlu0 %7576
    %7578 = vrot.lane.b32.xlu0 %v6740, 86
    %v7579 = vpop.permute.xlu0 %7578
    %7580 = vrot.lane.b32.xlu0 %v6741, 86
    %v7581 = vpop.permute.xlu0 %7580
    %7582 = vrot.lane.b32.xlu0 %v6742, 86
    %v7583 = vpop.permute.xlu0 %7582
    %7584 = vrot.lane.b32.xlu0 %v6743, 86
    %v7585 = vpop.permute.xlu0 %7584
    %7586 = vrot.lane.b32.xlu0 %v6744, 86
    %v7587 = vpop.permute.xlu0 %7586
    %7588 = vrot.lane.b32.xlu0 %v6745, 86
    %v7589 = vpop.permute.xlu0 %7588
    %7590 = vrot.lane.b32.xlu0 %v6746, 86
    %v7591 = vpop.permute.xlu0 %7590
    %7592 = vrot.lane.b32.xlu0 %v6747, 86
    %v7593 = vpop.permute.xlu0 %7592
    %v7594 = vsel %vm3040, %v7571, %v7573
    %v7595 = vsel %vm3040, %v7573, %v7575
    %v7596 = vsel %vm3040, %v7575, %v7577
    %v7597 = vsel %vm3040, %v7577, %v7579
    %v7598 = vsel %vm3040, %v7579, %v7581
    %v7599 = vsel %vm3040, %v7581, %v7583
    %v7600 = vsel %vm3040, %v7583, %v7585
    %v7601 = vsel %vm3040, %v7585, %v7587
    %v7602 = vsel %vm3040, %v7587, %v7589
    %v7603 = vsel %vm3040, %v7589, %v7591
    %v7604 = vsel %vm3040, %v7591, %v7593
    %7616 = vrot.lane.b32.xlu0 %v6735, 118
    %v7617 = vpop.permute.xlu0 %7616
    %7618 = vrot.lane.b32.xlu0 %v6736, 118
    %v7619 = vpop.permute.xlu0 %7618
    %v7620 = vsel %vm704, %v7617, %v7619
    %v7624 = vsel %vm704, %v7604, %v7617
    %7625 = vrot.lane.b32.xlu0 %v6736, 84
    %v7626 = vpop.permute.xlu0 %7625
    %7627 = vrot.lane.b32.xlu0 %v6737, 84
    %v7628 = vpop.permute.xlu0 %7627
    %7629 = vrot.lane.b32.xlu0 %v6738, 84
    %v7630 = vpop.permute.xlu0 %7629
    %7631 = vrot.lane.b32.xlu0 %v6739, 84
    %v7632 = vpop.permute.xlu0 %7631
    %7633 = vrot.lane.b32.xlu0 %v6740, 84
    %v7634 = vpop.permute.xlu0 %7633
    %7635 = vrot.lane.b32.xlu0 %v6741, 84
    %v7636 = vpop.permute.xlu0 %7635
    %7637 = vrot.lane.b32.xlu0 %v6742, 84
    %v7638 = vpop.permute.xlu0 %7637
    %7639 = vrot.lane.b32.xlu0 %v6743, 84
    %v7640 = vpop.permute.xlu0 %7639
    %7641 = vrot.lane.b32.xlu0 %v6744, 84
    %v7642 = vpop.permute.xlu0 %7641
    %7643 = vrot.lane.b32.xlu0 %v6745, 84
    %v7644 = vpop.permute.xlu0 %7643
    %7645 = vrot.lane.b32.xlu0 %v6746, 84
    %v7646 = vpop.permute.xlu0 %7645
    %7647 = vrot.lane.b32.xlu0 %v6747, 84
    %v7648 = vpop.permute.xlu0 %7647
    %v7649 = vsel %vm3168, %v7626, %v7628
    %v7650 = vsel %vm3168, %v7628, %v7630
    %v7651 = vsel %vm3168, %v7630, %v7632
    %v7652 = vsel %vm3168, %v7632, %v7634
    %v7653 = vsel %vm3168, %v7634, %v7636
    %v7654 = vsel %vm3168, %v7636, %v7638
    %v7655 = vsel %vm3168, %v7638, %v7640
    %v7656 = vsel %vm3168, %v7640, %v7642
    %v7657 = vsel %vm3168, %v7642, %v7644
    %v7658 = vsel %vm3168, %v7644, %v7646
    %v7659 = vsel %vm3168, %v7646, %v7648
    %7671 = vrot.lane.b32.xlu0 %v6735, 116
    %v7672 = vpop.permute.xlu0 %7671
    %7673 = vrot.lane.b32.xlu0 %v6736, 116
    %v7674 = vpop.permute.xlu0 %7673
    %v7675 = vsel %vm843, %v7672, %v7674
    %v7679 = vsel %vm843, %v7659, %v7672
    %7680 = vrot.lane.b32.xlu0 %v6736, 82
    %v7681 = vpop.permute.xlu0 %7680
    %7682 = vrot.lane.b32.xlu0 %v6737, 82
    %v7683 = vpop.permute.xlu0 %7682
    %7684 = vrot.lane.b32.xlu0 %v6738, 82
    %v7685 = vpop.permute.xlu0 %7684
    %7686 = vrot.lane.b32.xlu0 %v6739, 82
    %v7687 = vpop.permute.xlu0 %7686
    %7688 = vrot.lane.b32.xlu0 %v6740, 82
    %v7689 = vpop.permute.xlu0 %7688
    %7690 = vrot.lane.b32.xlu0 %v6741, 82
    %v7691 = vpop.permute.xlu0 %7690
    %7692 = vrot.lane.b32.xlu0 %v6742, 82
    %v7693 = vpop.permute.xlu0 %7692
    %7694 = vrot.lane.b32.xlu0 %v6743, 82
    %v7695 = vpop.permute.xlu0 %7694
    %7696 = vrot.lane.b32.xlu0 %v6744, 82
    %v7697 = vpop.permute.xlu0 %7696
    %7698 = vrot.lane.b32.xlu0 %v6745, 82
    %v7699 = vpop.permute.xlu0 %7698
    %7700 = vrot.lane.b32.xlu0 %v6746, 82
    %v7701 = vpop.permute.xlu0 %7700
    %7702 = vrot.lane.b32.xlu0 %v6747, 82
    %v7703 = vpop.permute.xlu0 %7702
    %v7704 = vsel %vm3296, %v7681, %v7683
    %v7705 = vsel %vm3296, %v7683, %v7685
    %v7706 = vsel %vm3296, %v7685, %v7687
    %v7707 = vsel %vm3296, %v7687, %v7689
    %v7708 = vsel %vm3296, %v7689, %v7691
    %v7709 = vsel %vm3296, %v7691, %v7693
    %v7710 = vsel %vm3296, %v7693, %v7695
    %v7711 = vsel %vm3296, %v7695, %v7697
    %v7712 = vsel %vm3296, %v7697, %v7699
    %v7713 = vsel %vm3296, %v7699, %v7701
    %v7714 = vsel %vm3296, %v7701, %v7703
    %7726 = vrot.lane.b32.xlu0 %v6735, 114
    %v7727 = vpop.permute.xlu0 %7726
    %7728 = vrot.lane.b32.xlu0 %v6736, 114
    %v7729 = vpop.permute.xlu0 %7728
    %v7730 = vsel %vm3323, %v7727, %v7729
    %v7734 = vsel %vm3323, %v7714, %v7727
    %7735 = vrot.lane.b32.xlu0 %v6736, 80
    %v7736 = vpop.permute.xlu0 %7735
    %7737 = vrot.lane.b32.xlu0 %v6737, 80
    %v7738 = vpop.permute.xlu0 %7737
    %7739 = vrot.lane.b32.xlu0 %v6738, 80
    %v7740 = vpop.permute.xlu0 %7739
    %7741 = vrot.lane.b32.xlu0 %v6739, 80
    %v7742 = vpop.permute.xlu0 %7741
    %7743 = vrot.lane.b32.xlu0 %v6740, 80
    %v7744 = vpop.permute.xlu0 %7743
    %7745 = vrot.lane.b32.xlu0 %v6741, 80
    %v7746 = vpop.permute.xlu0 %7745
    %7747 = vrot.lane.b32.xlu0 %v6742, 80
    %v7748 = vpop.permute.xlu0 %7747
    %7749 = vrot.lane.b32.xlu0 %v6743, 80
    %v7750 = vpop.permute.xlu0 %7749
    %7751 = vrot.lane.b32.xlu0 %v6744, 80
    %v7752 = vpop.permute.xlu0 %7751
    %7753 = vrot.lane.b32.xlu0 %v6745, 80
    %v7754 = vpop.permute.xlu0 %7753
    %7755 = vrot.lane.b32.xlu0 %v6746, 80
    %v7756 = vpop.permute.xlu0 %7755
    %7757 = vrot.lane.b32.xlu0 %v6747, 80
    %v7758 = vpop.permute.xlu0 %7757
    %v7759 = vsel %vm3435, %v7736, %v7738
    %v7760 = vsel %vm3435, %v7738, %v7740
    %v7761 = vsel %vm3435, %v7740, %v7742
    %v7762 = vsel %vm3435, %v7742, %v7744
    %v7763 = vsel %vm3435, %v7744, %v7746
    %v7764 = vsel %vm3435, %v7746, %v7748
    %v7765 = vsel %vm3435, %v7748, %v7750
    %v7766 = vsel %vm3435, %v7750, %v7752
    %v7767 = vsel %vm3435, %v7752, %v7754
    %v7768 = vsel %vm3435, %v7754, %v7756
    %v7769 = vsel %vm3435, %v7756, %v7758
    %7781 = vrot.lane.b32.xlu0 %v6735, 112
    %v7782 = vpop.permute.xlu0 %7781
    %7783 = vrot.lane.b32.xlu0 %v6736, 112
    %v7784 = vpop.permute.xlu0 %7783
    %v7785 = vsel %vm3462, %v7782, %v7784
    %v7789 = vsel %vm3462, %v7769, %v7782
    %7790 = vrot.lane.b32.xlu0 %v6736, 32
    %v7791 = vpop.permute.xlu0 %7790
    %7792 = vrot.lane.b32.xlu0 %v6737, 32
    %v7793 = vpop.permute.xlu0 %7792
    %7794 = vrot.lane.b32.xlu0 %v6738, 32
    %v7795 = vpop.permute.xlu0 %7794
    %7796 = vrot.lane.b32.xlu0 %v6739, 32
    %v7797 = vpop.permute.xlu0 %7796
    %7798 = vrot.lane.b32.xlu0 %v6740, 32
    %v7799 = vpop.permute.xlu0 %7798
    %7800 = vrot.lane.b32.xlu0 %v6741, 32
    %v7801 = vpop.permute.xlu0 %7800
    %7802 = vrot.lane.b32.xlu0 %v6742, 32
    %v7803 = vpop.permute.xlu0 %7802
    %7804 = vrot.lane.b32.xlu0 %v6743, 32
    %v7805 = vpop.permute.xlu0 %7804
    %7806 = vrot.lane.b32.xlu0 %v6744, 32
    %v7807 = vpop.permute.xlu0 %7806
    %7808 = vrot.lane.b32.xlu0 %v6745, 32
    %v7809 = vpop.permute.xlu0 %7808
    %7810 = vrot.lane.b32.xlu0 %v6746, 32
    %v7811 = vpop.permute.xlu0 %7810
    %7812 = vrot.lane.b32.xlu0 %v6747, 32
    %v7813 = vpop.permute.xlu0 %7812
    %v7814 = vsel %vm3852, %v7791, %v7793
    %v7815 = vsel %vm3852, %v7793, %v7795
    %v7816 = vsel %vm3852, %v7795, %v7797
    %v7817 = vsel %vm3852, %v7797, %v7799
    %v7818 = vsel %vm3852, %v7799, %v7801
    %v7819 = vsel %vm3852, %v7801, %v7803
    %v7820 = vsel %vm3852, %v7803, %v7805
    %v7821 = vsel %vm3852, %v7805, %v7807
    %v7822 = vsel %vm3852, %v7807, %v7809
    %v7823 = vsel %vm3852, %v7809, %v7811
    %v7824 = vsel %vm3852, %v7811, %v7813
    %v7838 = vsel %vm1534, %v7824, %v7198
    %7839 = vrot.lane.b32.xlu0 %v6736, 30
    %v7840 = vpop.permute.xlu0 %7839
    %7841 = vrot.lane.b32.xlu0 %v6737, 30
    %v7842 = vpop.permute.xlu0 %7841
    %7843 = vrot.lane.b32.xlu0 %v6738, 30
    %v7844 = vpop.permute.xlu0 %7843
    %7845 = vrot.lane.b32.xlu0 %v6739, 30
    %v7846 = vpop.permute.xlu0 %7845
    %7847 = vrot.lane.b32.xlu0 %v6740, 30
    %v7848 = vpop.permute.xlu0 %7847
    %7849 = vrot.lane.b32.xlu0 %v6741, 30
    %v7850 = vpop.permute.xlu0 %7849
    %7851 = vrot.lane.b32.xlu0 %v6742, 30
    %v7852 = vpop.permute.xlu0 %7851
    %7853 = vrot.lane.b32.xlu0 %v6743, 30
    %v7854 = vpop.permute.xlu0 %7853
    %7855 = vrot.lane.b32.xlu0 %v6744, 30
    %v7856 = vpop.permute.xlu0 %7855
    %7857 = vrot.lane.b32.xlu0 %v6745, 30
    %v7858 = vpop.permute.xlu0 %7857
    %7859 = vrot.lane.b32.xlu0 %v6746, 30
    %v7860 = vpop.permute.xlu0 %7859
    %7861 = vrot.lane.b32.xlu0 %v6747, 30
    %v7862 = vpop.permute.xlu0 %7861
    %v7863 = vsel %vm177, %v7840, %v7842
    %v7864 = vsel %vm177, %v7842, %v7844
    %v7865 = vsel %vm177, %v7844, %v7846
    %v7866 = vsel %vm177, %v7846, %v7848
    %v7867 = vsel %vm177, %v7848, %v7850
    %v7868 = vsel %vm177, %v7850, %v7852
    %v7869 = vsel %vm177, %v7852, %v7854
    %v7870 = vsel %vm177, %v7854, %v7856
    %v7871 = vsel %vm177, %v7856, %v7858
    %v7872 = vsel %vm177, %v7858, %v7860
    %v7873 = vsel %vm177, %v7860, %v7862
    %7885 = vrot.lane.b32.xlu0 %v6735, 62
    %v7886 = vpop.permute.xlu0 %7885
    %7887 = vrot.lane.b32.xlu0 %v6736, 62
    %v7888 = vpop.permute.xlu0 %7887
    %v7889 = vsel %vm1672, %v7886, %v7888
    %v7893 = vsel %vm1672, %v7873, %v7886
    %7894 = vrot.lane.b32.xlu0 %v6736, 28
    %v7895 = vpop.permute.xlu0 %7894
    %7896 = vrot.lane.b32.xlu0 %v6737, 28
    %v7897 = vpop.permute.xlu0 %7896
    %7898 = vrot.lane.b32.xlu0 %v6738, 28
    %v7899 = vpop.permute.xlu0 %7898
    %7900 = vrot.lane.b32.xlu0 %v6739, 28
    %v7901 = vpop.permute.xlu0 %7900
    %7902 = vrot.lane.b32.xlu0 %v6740, 28
    %v7903 = vpop.permute.xlu0 %7902
    %7904 = vrot.lane.b32.xlu0 %v6741, 28
    %v7905 = vpop.permute.xlu0 %7904
    %7906 = vrot.lane.b32.xlu0 %v6742, 28
    %v7907 = vpop.permute.xlu0 %7906
    %7908 = vrot.lane.b32.xlu0 %v6743, 28
    %v7909 = vpop.permute.xlu0 %7908
    %7910 = vrot.lane.b32.xlu0 %v6744, 28
    %v7911 = vpop.permute.xlu0 %7910
    %7912 = vrot.lane.b32.xlu0 %v6745, 28
    %v7913 = vpop.permute.xlu0 %7912
    %7914 = vrot.lane.b32.xlu0 %v6746, 28
    %v7915 = vpop.permute.xlu0 %7914
    %7916 = vrot.lane.b32.xlu0 %v6747, 28
    %v7917 = vpop.permute.xlu0 %7916
    %v7918 = vsel %vm316, %v7895, %v7897
    %v7919 = vsel %vm316, %v7897, %v7899
    %v7920 = vsel %vm316, %v7899, %v7901
    %v7921 = vsel %vm316, %v7901, %v7903
    %v7922 = vsel %vm316, %v7903, %v7905
    %v7923 = vsel %vm316, %v7905, %v7907
    %v7924 = vsel %vm316, %v7907, %v7909
    %v7925 = vsel %vm316, %v7909, %v7911
    %v7926 = vsel %vm316, %v7911, %v7913
    %v7927 = vsel %vm316, %v7913, %v7915
    %v7928 = vsel %vm316, %v7915, %v7917
    %7940 = vrot.lane.b32.xlu0 %v6735, 60
    %v7941 = vpop.permute.xlu0 %7940
    %7942 = vrot.lane.b32.xlu0 %v6736, 60
    %v7943 = vpop.permute.xlu0 %7942
    %v7944 = vsel %vm1810, %v7941, %v7943
    %v7948 = vsel %vm1810, %v7928, %v7941
    %7949 = vrot.lane.b32.xlu0 %v6736, 26
    %v7950 = vpop.permute.xlu0 %7949
    %7951 = vrot.lane.b32.xlu0 %v6737, 26
    %v7952 = vpop.permute.xlu0 %7951
    %7953 = vrot.lane.b32.xlu0 %v6738, 26
    %v7954 = vpop.permute.xlu0 %7953
    %7955 = vrot.lane.b32.xlu0 %v6739, 26
    %v7956 = vpop.permute.xlu0 %7955
    %7957 = vrot.lane.b32.xlu0 %v6740, 26
    %v7958 = vpop.permute.xlu0 %7957
    %7959 = vrot.lane.b32.xlu0 %v6741, 26
    %v7960 = vpop.permute.xlu0 %7959
    %7961 = vrot.lane.b32.xlu0 %v6742, 26
    %v7962 = vpop.permute.xlu0 %7961
    %7963 = vrot.lane.b32.xlu0 %v6743, 26
    %v7964 = vpop.permute.xlu0 %7963
    %7965 = vrot.lane.b32.xlu0 %v6744, 26
    %v7966 = vpop.permute.xlu0 %7965
    %7967 = vrot.lane.b32.xlu0 %v6745, 26
    %v7968 = vpop.permute.xlu0 %7967
    %7969 = vrot.lane.b32.xlu0 %v6746, 26
    %v7970 = vpop.permute.xlu0 %7969
    %7971 = vrot.lane.b32.xlu0 %v6747, 26
    %v7972 = vpop.permute.xlu0 %7971
    %v7973 = vsel %vm455, %v7950, %v7952
    %v7974 = vsel %vm455, %v7952, %v7954
    %v7975 = vsel %vm455, %v7954, %v7956
    %v7976 = vsel %vm455, %v7956, %v7958
    %v7977 = vsel %vm455, %v7958, %v7960
    %v7978 = vsel %vm455, %v7960, %v7962
    %v7979 = vsel %vm455, %v7962, %v7964
    %v7980 = vsel %vm455, %v7964, %v7966
    %v7981 = vsel %vm455, %v7966, %v7968
    %v7982 = vsel %vm455, %v7968, %v7970
    %v7983 = vsel %vm455, %v7970, %v7972
    %7995 = vrot.lane.b32.xlu0 %v6735, 58
    %v7996 = vpop.permute.xlu0 %7995
    %7997 = vrot.lane.b32.xlu0 %v6736, 58
    %v7998 = vpop.permute.xlu0 %7997
    %v7999 = vsel %vm4260, %v7996, %v7998
    %v8003 = vsel %vm4260, %v7983, %v7996
    %8004 = vrot.lane.b32.xlu0 %v6736, 24
    %v8005 = vpop.permute.xlu0 %8004
    %8006 = vrot.lane.b32.xlu0 %v6737, 24
    %v8007 = vpop.permute.xlu0 %8006
    %8008 = vrot.lane.b32.xlu0 %v6738, 24
    %v8009 = vpop.permute.xlu0 %8008
    %8010 = vrot.lane.b32.xlu0 %v6739, 24
    %v8011 = vpop.permute.xlu0 %8010
    %8012 = vrot.lane.b32.xlu0 %v6740, 24
    %v8013 = vpop.permute.xlu0 %8012
    %8014 = vrot.lane.b32.xlu0 %v6741, 24
    %v8015 = vpop.permute.xlu0 %8014
    %8016 = vrot.lane.b32.xlu0 %v6742, 24
    %v8017 = vpop.permute.xlu0 %8016
    %8018 = vrot.lane.b32.xlu0 %v6743, 24
    %v8019 = vpop.permute.xlu0 %8018
    %8020 = vrot.lane.b32.xlu0 %v6744, 24
    %v8021 = vpop.permute.xlu0 %8020
    %8022 = vrot.lane.b32.xlu0 %v6745, 24
    %v8023 = vpop.permute.xlu0 %8022
    %8024 = vrot.lane.b32.xlu0 %v6746, 24
    %v8025 = vpop.permute.xlu0 %8024
    %8026 = vrot.lane.b32.xlu0 %v6747, 24
    %v8027 = vpop.permute.xlu0 %8026
    %v8028 = vsel %vm594, %v8005, %v8007
    %v8029 = vsel %vm594, %v8007, %v8009
    %v8030 = vsel %vm594, %v8009, %v8011
    %v8031 = vsel %vm594, %v8011, %v8013
    %v8032 = vsel %vm594, %v8013, %v8015
    %v8033 = vsel %vm594, %v8015, %v8017
    %v8034 = vsel %vm594, %v8017, %v8019
    %v8035 = vsel %vm594, %v8019, %v8021
    %v8036 = vsel %vm594, %v8021, %v8023
    %v8037 = vsel %vm594, %v8023, %v8025
    %v8038 = vsel %vm594, %v8025, %v8027
    %8050 = vrot.lane.b32.xlu0 %v6735, 56
    %v8051 = vpop.permute.xlu0 %8050
    %8052 = vrot.lane.b32.xlu0 %v6736, 56
    %v8053 = vpop.permute.xlu0 %8052
    %v8054 = vsel %vm4398, %v8051, %v8053
    %v8058 = vsel %vm4398, %v8038, %v8051
    %v8059 = vld [vmem:[%s3] sm:$0xff]
    %v8060 = vld [vmem:[%s3 + $0x8] sm:$0xff]
    %v8061 = vld [vmem:[%s3 + $0x10] sm:$0xff]
    %v8062 = vld [vmem:[%s3 + $0x18] sm:$0xff]
    %v8063 = vpack.c.bf16 %v6787, %v6735
    %v8064 = vpack.c.bf16 %v6788, %v6736
    %v8065 = vpack.c.bf16 %v6789, %v6737
    %v8066 = vpack.c.bf16 %v6790, %v6738
    %v8067 = vpack.c.bf16 %v6791, %v6739
    %v8068 = vpack.c.bf16 %v6792, %v6740
    %v8069 = vpack.c.bf16 %v6793, %v6741
    %v8070 = vpack.c.bf16 %v6794, %v6742
    %v8071 = vpack.c.bf16 %v6795, %v6743
    %v8072 = vpack.c.bf16 %v6796, %v6744
    %v8073 = vpack.c.bf16 %v6797, %v6745
    %v8074 = vpack.c.bf16 %v6798, %v6746
    %v8075 = vpack.c.bf16 %v6815, %v6747
    %v8076 = vpack.c.bf16 %v6897, %v6842
    %v8077 = vpack.c.bf16 %v6898, %v6843
    %v8078 = vpack.c.bf16 %v6899, %v6844
    %v8079 = vpack.c.bf16 %v6900, %v6845
    %v8080 = vpack.c.bf16 %v6901, %v6846
    %v8081 = vpack.c.bf16 %v6902, %v6847
    %v8082 = vpack.c.bf16 %v6903, %v6848
    %v8083 = vpack.c.bf16 %v6904, %v6849
    %v8084 = vpack.c.bf16 %v6905, %v6850
    %v8085 = vpack.c.bf16 %v6906, %v6851
    %v8086 = vpack.c.bf16 %v6907, %v6852
    %v8087 = vpack.c.bf16 %v6908, %v6853
    %v8088 = vpack.c.bf16 %v6925, %v6870
    %v8089 = vpack.c.bf16 %v7007, %v6952
    %v8090 = vpack.c.bf16 %v7008, %v6953
    %v8091 = vpack.c.bf16 %v7009, %v6954
    %v8092 = vpack.c.bf16 %v7010, %v6955
    %v8093 = vpack.c.bf16 %v7011, %v6956
    %v8094 = vpack.c.bf16 %v7012, %v6957
    %v8095 = vpack.c.bf16 %v7013, %v6958
    %v8096 = vpack.c.bf16 %v7014, %v6959
    %v8097 = vpack.c.bf16 %v7015, %v6960
    %v8098 = vpack.c.bf16 %v7016, %v6961
    %v8099 = vpack.c.bf16 %v7017, %v6962
    %v8100 = vpack.c.bf16 %v7034, %v6963
    %v8101 = vpack.c.bf16 %v7032, %v6980
    %v8102 = vpack.c.bf16 %v7115, %v7061
    %v8103 = vpack.c.bf16 %v7116, %v7062
    %v8104 = vpack.c.bf16 %v7117, %v7063
    %v8105 = vpack.c.bf16 %v7118, %v7064
    %v8106 = vpack.c.bf16 %v7119, %v7065
    %v8107 = vpack.c.bf16 %v7120, %v7066
    %v8108 = vpack.c.bf16 %v7121, %v7067
    %v8109 = vpack.c.bf16 %v7122, %v7068
    %v8110 = vpack.c.bf16 %v7123, %v7069
    %v8111 = vpack.c.bf16 %v7124, %v7070
    %v8112 = vpack.c.bf16 %v7125, %v7071
    %v8113 = vpack.c.bf16 %v7142, %v7088
    %v8114 = vpack.c.bf16 %v7140, %v7086
    %v8115 = vpack.c.bf16 %v7223, %v7169
    %v8116 = vpack.c.bf16 %v7224, %v7170
    %v8117 = vpack.c.bf16 %v7225, %v7171
    %v8118 = vpack.c.bf16 %v7226, %v7172
    %v8119 = vpack.c.bf16 %v7227, %v7173
    %v8120 = vpack.c.bf16 %v7228, %v7174
    %v8121 = vpack.c.bf16 %v7229, %v7175
    %v8122 = vpack.c.bf16 %v7230, %v7176
    %v8123 = vpack.c.bf16 %v7231, %v7177
    %v8124 = vpack.c.bf16 %v7232, %v7178
    %v8125 = vpack.c.bf16 %v7233, %v7179
    %v8126 = vpack.c.bf16 %v7250, %v7196
    %v8127 = vpack.c.bf16 %v7248, %v7194
    %v8128 = vpack.c.bf16 %v7331, %v7277
    %v8129 = vpack.c.bf16 %v7332, %v7278
    %v8130 = vpack.c.bf16 %v7333, %v7279
    %v8131 = vpack.c.bf16 %v7334, %v7280
    %v8132 = vpack.c.bf16 %v7335, %v7281
    %v8133 = vpack.c.bf16 %v7336, %v7282
    %v8134 = vpack.c.bf16 %v7337, %v7283
    %v8135 = vpack.c.bf16 %v7338, %v7284
    %v8136 = vpack.c.bf16 %v7339, %v7285
    %v8137 = vpack.c.bf16 %v7340, %v7286
    %v8138 = vpack.c.bf16 %v7341, %v7287
    %v8139 = vpack.c.bf16 %v7358, %v7304
    %v8140 = vpack.c.bf16 %v7356, %v7302
    %v8141 = vpack.c.bf16 %v7439, %v7385
    %v8142 = vpack.c.bf16 %v7440, %v7386
    %v8143 = vpack.c.bf16 %v7441, %v7387
    %v8144 = vpack.c.bf16 %v7442, %v7388
    %v8145 = vpack.c.bf16 %v7443, %v7389
    %v8146 = vpack.c.bf16 %v7444, %v7390
    %v8147 = vpack.c.bf16 %v7445, %v7391
    %v8148 = vpack.c.bf16 %v7446, %v7392
    %v8149 = vpack.c.bf16 %v7447, %v7393
    %v8150 = vpack.c.bf16 %v7448, %v7394
    %v8151 = vpack.c.bf16 %v7449, %v7395
    %v8152 = vpack.c.bf16 %v7466, %v7412
    %v8153 = vpack.c.bf16 %v7464, %v7410
    %v8154 = vpack.c.bf16 %v7545, %v7493
    %v8155 = vpack.c.bf16 %v7546, %v7494
    %v8156 = vpack.c.bf16 %v7547, %v7495
    %v8157 = vpack.c.bf16 %v7548, %v7496
    %v8158 = vpack.c.bf16 %v7549, %v7497
    %v8159 = vpack.c.bf16 %v7550, %v7498
    %v8160 = vpack.c.bf16 %v7551, %v7499
    %v8161 = vpack.c.bf16 %v7552, %v7500
    %v8162 = vpack.c.bf16 %v7553, %v7501
    %v8163 = vpack.c.bf16 %v7554, %v7502
    %v8164 = vpack.c.bf16 %v7569, %v7503
    %v8165 = vpack.c.bf16 %v6952, %v7520
    %v8166 = vpack.c.bf16 %v6929, %v7518
    %v8167 = vpack.c.bf16 %v7649, %v7594
    %v8168 = vpack.c.bf16 %v7650, %v7595
    %v8169 = vpack.c.bf16 %v7651, %v7596
    %v8170 = vpack.c.bf16 %v7652, %v7597
    %v8171 = vpack.c.bf16 %v7653, %v7598
    %v8172 = vpack.c.bf16 %v7654, %v7599
    %v8173 = vpack.c.bf16 %v7655, %v7600
    %v8174 = vpack.c.bf16 %v7656, %v7601
    %v8175 = vpack.c.bf16 %v7657, %v7602
    %v8176 = vpack.c.bf16 %v7658, %v7603
    %v8177 = vpack.c.bf16 %v7679, %v7624
    %v8178 = vpack.c.bf16 %v7675, %v7620
    %v8179 = vpack.c.bf16 %v7674, %v7619
    %v8180 = vpack.c.bf16 %v7759, %v7704
    %v8181 = vpack.c.bf16 %v7760, %v7705
    %v8182 = vpack.c.bf16 %v7761, %v7706
    %v8183 = vpack.c.bf16 %v7762, %v7707
    %v8184 = vpack.c.bf16 %v7763, %v7708
    %v8185 = vpack.c.bf16 %v7764, %v7709
    %v8186 = vpack.c.bf16 %v7765, %v7710
    %v8187 = vpack.c.bf16 %v7766, %v7711
    %v8188 = vpack.c.bf16 %v7767, %v7712
    %v8189 = vpack.c.bf16 %v7768, %v7713
    %v8190 = vpack.c.bf16 %v7789, %v7734
    %v8191 = vpack.c.bf16 %v7785, %v7730
    %v8192 = vpack.c.bf16 %v7784, %v7729
    %v8193 = vpack.c.bf16 %v7863, %v7814
    %v8194 = vpack.c.bf16 %v7864, %v7815
    %v8195 = vpack.c.bf16 %v7865, %v7816
    %v8196 = vpack.c.bf16 %v7866, %v7817
    %v8197 = vpack.c.bf16 %v7867, %v7818
    %v8198 = vpack.c.bf16 %v7868, %v7819
    %v8199 = vpack.c.bf16 %v7869, %v7820
    %v8200 = vpack.c.bf16 %v7870, %v7821
    %v8201 = vpack.c.bf16 %v7871, %v7822
    %v8202 = vpack.c.bf16 %v7872, %v7823
    %v8203 = vpack.c.bf16 %v7893, %v7838
    %v8204 = vpack.c.bf16 %v7889, %v7223
    %v8205 = vpack.c.bf16 %v7888, %v7200
    %v8206 = vpack.c.bf16 %v7973, %v7918
    %v8207 = vpack.c.bf16 %v7974, %v7919
    %v8208 = vpack.c.bf16 %v7975, %v7920
    %v8209 = vpack.c.bf16 %v7976, %v7921
    %v8210 = vpack.c.bf16 %v7977, %v7922
    %v8211 = vpack.c.bf16 %v7978, %v7923
    %v8212 = vpack.c.bf16 %v7979, %v7924
    %v8213 = vpack.c.bf16 %v7980, %v7925
    %v8214 = vpack.c.bf16 %v7981, %v7926
    %v8215 = vpack.c.bf16 %v7982, %v7927
    %v8216 = vpack.c.bf16 %v8003, %v7948
    %v8217 = vpack.c.bf16 %v7999, %v7944
    %v8218 = vpack.c.bf16 %v7998, %v7943
    %v8219 = vpack.c.bf16 %v8028, %v8028
    %v8220 = vpack.c.bf16 %v8029, %v8029
    %v8221 = vpack.c.bf16 %v8030, %v8030
    %v8222 = vpack.c.bf16 %v8031, %v8031
    %v8223 = vpack.c.bf16 %v8032, %v8032
    %v8224 = vpack.c.bf16 %v8033, %v8033
    %v8225 = vpack.c.bf16 %v8034, %v8034
    %v8226 = vpack.c.bf16 %v8035, %v8035
    %v8227 = vpack.c.bf16 %v8036, %v8036
    %v8228 = vpack.c.bf16 %v8037, %v8037
    %v8229 = vpack.c.bf16 %v8058, %v8058
    %v8230 = vpack.c.bf16 %v8054, %v8054
    %v8231 = vpack.c.bf16 %v8053, %v8053
    %v8236 = vunpack.c.l.b16 %v8059
    %v8237 = vunpack.c.h.b16 %v8059
    %v8238 = vunpack.c.l.b16 %v8060
    %v8239 = vunpack.c.h.b16 %v8060
    %v8240 = vunpack.c.l.b16 %v8061
    %v8241 = vunpack.c.h.b16 %v8061
    %v8242 = vunpack.c.l.b16 %v8062
    %v8243 = vunpack.c.h.b16 %v8062
    %v8244 = vpack.c.b16 %v8238, %v8236
    %v8245 = vpack.c.b16 %v8239, %v8237
    %v8246 = vpack.c.b16 %v8242, %v8240
    %v8247 = vpack.c.b16 %v8243, %v8241
    %v8251 = vsel %vm982, %v8245, 0
    %v8254 = vsel %vm982, %v8247, 0
    %vm8256 = vcmask 1043456
    %v8258 = vsel %vm8256, %v8219, 0
    %v8261 = vsel %vm8256, %v8220, 0
    %v8264 = vsel %vm8256, %v8221, 0
    %v8267 = vsel %vm8256, %v8222, 0
    %v8270 = vsel %vm8256, %v8223, 0
    %v8273 = vsel %vm8256, %v8224, 0
    %v8276 = vsel %vm8256, %v8225, 0
    %v8279 = vsel %vm8256, %v8226, 0
    %v8282 = vsel %vm8256, %v8227, 0
    %v8285 = vsel %vm8256, %v8228, 0
    %v8288 = vsel %vm8256, %v8229, 0
    %v8291 = vsel %vm8256, %v8230, 0
    %v8294 = vsel %vm8256, %v8231, 0
    %8296 = vmatprep.subr.bf16.mxu0 %v8155
    %8297 = vmatpush1.bf16.msra.mxu0 %v8154
    %8298 = vmatprep.subr.bf16.mxu0 %v8142
    %8299 = vmatpush1.bf16.msra.mxu0 %v8141
    %8300 = vmatprep.subr.bf16.mxu0 %v8129
    %8301 = vmatpush1.bf16.msra.mxu0 %v8128
    %8302 = vmatprep.subr.bf16.mxu0 %v8116
    %8303 = vmatpush1.bf16.msra.mxu0 %v8115
    %8304 = vmatprep.subr.bf16.mxu0 %v8103
    %8305 = vmatpush1.bf16.msra.mxu0 %v8102
    %8306 = vmatprep.subr.bf16.mxu0 %v8090
    %8307 = vmatpush1.bf16.msra.mxu0 %v8089
    %8308 = vmatprep.subr.bf16.mxu0 %v8077
    %8309 = vmatpush1.bf16.msra.mxu0 %v8076
    %8310 = vmatprep.subr.bf16.mxu0 %v8064
    %8311 = vmatpush1.bf16.msra.mxu0 %v8063
    %8312 = vmatprep.subr.bf16.mxu0 0
    %8313 = vmatpush2.bf16.msra.mxu0 0
    %8314 = vmatprep.subr.bf16.mxu0 0
    %8315 = vmatpush2.bf16.msra.mxu0 0
    %8316 = vmatprep.subr.bf16.mxu0 0
    %8317 = vmatpush2.bf16.msra.mxu0 0
    %8318 = vmatprep.subr.bf16.mxu0 %v8261
    %8319 = vmatpush2.bf16.msra.mxu0 %v8258
    %8320 = vmatprep.subr.bf16.mxu0 %v8207
    %8321 = vmatpush2.bf16.msra.mxu0 %v8206
    %8322 = vmatprep.subr.bf16.mxu0 %v8194
    %8323 = vmatpush2.bf16.msra.mxu0 %v8193
    %8324 = vmatprep.subr.bf16.mxu0 %v8181
    %8325 = vmatpush2.bf16.msra.mxu0 %v8180
    %8326 = vmatprep.subr.bf16.mxu0 %v8168
    %8327 = vmatpush2.bf16.msra.mxu0 %v8167
    %8328 = vmatprep.mubr.bf16.mxu0 %v8251
    %8329 = vmatmul.mubr.bf16.gmra.mxu0 %v8244
    %v8330 = vpop.f32.mrf.mxu0
    %v8331 = vadd.f32 0.0, %v8330
    %v8332 = vpop.f32.mrf.mxu0
    %v8333 = vadd.f32 0.0, %v8332
    %v8334 = vpop.f32.mrf.mxu0
    %v8335 = vadd.f32 0.0, %v8334
    %v8336 = vpop.f32.mrf.mxu0
    %v8337 = vadd.f32 0.0, %v8336
    %8338 = vmatprep.mubr.bf16.mxu0 %v8254
    %8339 = vmatmul.mubr.bf16.gmra.mxu0 %v8246
    %v8340 = vpop.f32.mrf.mxu0
    %v8341 = vadd.f32 0.0, %v8340
    %v8342 = vpop.f32.mrf.mxu0
    %v8343 = vadd.f32 0.0, %v8342
    %v8344 = vpop.f32.mrf.mxu0
    %v8345 = vadd.f32 0.0, %v8344
    %v8346 = vpop.f32.mrf.mxu0
    %v8347 = vadd.f32 0.0, %v8346
    %8348 = vdwg.mxu0
    %8349 = vmatprep.subr.bf16.mxu0 %v8157
    %8350 = vmatpush1.bf16.msra.mxu0 %v8156
    %8351 = vmatprep.subr.bf16.mxu0 %v8144
    %8352 = vmatpush1.bf16.msra.mxu0 %v8143
    %8353 = vmatprep.subr.bf16.mxu0 %v8131
    %8354 = vmatpush1.bf16.msra.mxu0 %v8130
    %8355 = vmatprep.subr.bf16.mxu0 %v8118
    %8356 = vmatpush1.bf16.msra.mxu0 %v8117
    %8357 = vmatprep.subr.bf16.mxu0 %v8105
    %8358 = vmatpush1.bf16.msra.mxu0 %v8104
    %8359 = vmatprep.subr.bf16.mxu0 %v8092
    %8360 = vmatpush1.bf16.msra.mxu0 %v8091
    %8361 = vmatprep.subr.bf16.mxu0 %v8079
    %8362 = vmatpush1.bf16.msra.mxu0 %v8078
    %8363 = vmatprep.subr.bf16.mxu0 %v8066
    %8364 = vmatpush1.bf16.msra.mxu0 %v8065
    %8365 = vmatprep.subr.bf16.mxu0 0
    %8366 = vmatpush2.bf16.msra.mxu0 0
    %8367 = vmatprep.subr.bf16.mxu0 0
    %8368 = vmatpush2.bf16.msra.mxu0 0
    %8369 = vmatprep.subr.bf16.mxu0 0
    %8370 = vmatpush2.bf16.msra.mxu0 0
    %8371 = vmatprep.subr.bf16.mxu0 %v8267
    %8372 = vmatpush2.bf16.msra.mxu0 %v8264
    %8373 = vmatprep.subr.bf16.mxu0 %v8209
    %8374 = vmatpush2.bf16.msra.mxu0 %v8208
    %8375 = vmatprep.subr.bf16.mxu0 %v8196
    %8376 = vmatpush2.bf16.msra.mxu0 %v8195
    %8377 = vmatprep.subr.bf16.mxu0 %v8183
    %8378 = vmatpush2.bf16.msra.mxu0 %v8182
    %8379 = vmatprep.subr.bf16.mxu0 %v8170
    %8380 = vmatpush2.bf16.msra.mxu0 %v8169
    %8381 = vmatprep.mubr.bf16.mxu0 %v8251
    %8382 = vmatmul.mubr.bf16.gmra.mxu0 %v8244
    %v8383 = vpop.f32.mrf.mxu0
    %v8384 = vadd.f32 0.0, %v8383
    %v8385 = vpop.f32.mrf.mxu0
    %v8386 = vadd.f32 0.0, %v8385
    %v8387 = vpop.f32.mrf.mxu0
    %v8388 = vadd.f32 0.0, %v8387
    %v8389 = vpop.f32.mrf.mxu0
    %v8390 = vadd.f32 0.0, %v8389
    %8391 = vmatprep.mubr.bf16.mxu0 %v8254
    %8392 = vmatmul.mubr.bf16.gmra.mxu0 %v8246
    %v8393 = vpop.f32.mrf.mxu0
    %v8394 = vadd.f32 0.0, %v8393
    %v8395 = vpop.f32.mrf.mxu0
    %v8396 = vadd.f32 0.0, %v8395
    %v8397 = vpop.f32.mrf.mxu0
    %v8398 = vadd.f32 0.0, %v8397
    %v8399 = vpop.f32.mrf.mxu0
    %v8400 = vadd.f32 0.0, %v8399
    %8401 = vdwg.mxu0
    %8402 = vmatprep.subr.bf16.mxu0 %v8159
    %8403 = vmatpush1.bf16.msra.mxu0 %v8158
    %8404 = vmatprep.subr.bf16.mxu0 %v8146
    %8405 = vmatpush1.bf16.msra.mxu0 %v8145
    %8406 = vmatprep.subr.bf16.mxu0 %v8133
    %8407 = vmatpush1.bf16.msra.mxu0 %v8132
    %8408 = vmatprep.subr.bf16.mxu0 %v8120
    %8409 = vmatpush1.bf16.msra.mxu0 %v8119
    %8410 = vmatprep.subr.bf16.mxu0 %v8107
    %8411 = vmatpush1.bf16.msra.mxu0 %v8106
    %8412 = vmatprep.subr.bf16.mxu0 %v8094
    %8413 = vmatpush1.bf16.msra.mxu0 %v8093
    %8414 = vmatprep.subr.bf16.mxu0 %v8081
    %8415 = vmatpush1.bf16.msra.mxu0 %v8080
    %8416 = vmatprep.subr.bf16.mxu0 %v8068
    %8417 = vmatpush1.bf16.msra.mxu0 %v8067
    %8418 = vmatprep.subr.bf16.mxu0 0
    %8419 = vmatpush2.bf16.msra.mxu0 0
    %8420 = vmatprep.subr.bf16.mxu0 0
    %8421 = vmatpush2.bf16.msra.mxu0 0
    %8422 = vmatprep.subr.bf16.mxu0 0
    %8423 = vmatpush2.bf16.msra.mxu0 0
    %8424 = vmatprep.subr.bf16.mxu0 %v8273
    %8425 = vmatpush2.bf16.msra.mxu0 %v8270
    %8426 = vmatprep.subr.bf16.mxu0 %v8211
    %8427 = vmatpush2.bf16.msra.mxu0 %v8210
    %8428 = vmatprep.subr.bf16.mxu0 %v8198
    %8429 = vmatpush2.bf16.msra.mxu0 %v8197
    %8430 = vmatprep.subr.bf16.mxu0 %v8185
    %8431 = vmatpush2.bf16.msra.mxu0 %v8184
    %8432 = vmatprep.subr.bf16.mxu0 %v8172
    %8433 = vmatpush2.bf16.msra.mxu0 %v8171
    %8434 = vmatprep.mubr.bf16.mxu0 %v8251
    %8435 = vmatmul.mubr.bf16.gmra.mxu0 %v8244
    %v8436 = vpop.f32.mrf.mxu0
    %v8437 = vadd.f32 0.0, %v8436
    %v8438 = vpop.f32.mrf.mxu0
    %v8439 = vadd.f32 0.0, %v8438
    %v8440 = vpop.f32.mrf.mxu0
    %v8441 = vadd.f32 0.0, %v8440
    %v8442 = vpop.f32.mrf.mxu0
    %v8443 = vadd.f32 0.0, %v8442
    %8444 = vmatprep.mubr.bf16.mxu0 %v8254
    %8445 = vmatmul.mubr.bf16.gmra.mxu0 %v8246
    %v8446 = vpop.f32.mrf.mxu0
    %v8447 = vadd.f32 0.0, %v8446
    %v8448 = vpop.f32.mrf.mxu0
    %v8449 = vadd.f32 0.0, %v8448
    %v8450 = vpop.f32.mrf.mxu0
    %v8451 = vadd.f32 0.0, %v8450
    %v8452 = vpop.f32.mrf.mxu0
    %v8453 = vadd.f32 0.0, %v8452
    %8454 = vdwg.mxu0
    %8455 = vmatprep.subr.bf16.mxu0 %v8161
    %8456 = vmatpush1.bf16.msra.mxu0 %v8160
    %8457 = vmatprep.subr.bf16.mxu0 %v8148
    %8458 = vmatpush1.bf16.msra.mxu0 %v8147
    %8459 = vmatprep.subr.bf16.mxu0 %v8135
    %8460 = vmatpush1.bf16.msra.mxu0 %v8134
    %8461 = vmatprep.subr.bf16.mxu0 %v8122
    %8462 = vmatpush1.bf16.msra.mxu0 %v8121
    %8463 = vmatprep.subr.bf16.mxu0 %v8109
    %8464 = vmatpush1.bf16.msra.mxu0 %v8108
    %8465 = vmatprep.subr.bf16.mxu0 %v8096
    %8466 = vmatpush1.bf16.msra.mxu0 %v8095
    %8467 = vmatprep.subr.bf16.mxu0 %v8083
    %8468 = vmatpush1.bf16.msra.mxu0 %v8082
    %8469 = vmatprep.subr.bf16.mxu0 %v8070
    %8470 = vmatpush1.bf16.msra.mxu0 %v8069
    %8471 = vmatprep.subr.bf16.mxu0 0
    %8472 = vmatpush2.bf16.msra.mxu0 0
    %8473 = vmatprep.subr.bf16.mxu0 0
    %8474 = vmatpush2.bf16.msra.mxu0 0
    %8475 = vmatprep.subr.bf16.mxu0 0
    %8476 = vmatpush2.bf16.msra.mxu0 0
    %8477 = vmatprep.subr.bf16.mxu0 %v8279
    %8478 = vmatpush2.bf16.msra.mxu0 %v8276
    %8479 = vmatprep.subr.bf16.mxu0 %v8213
    %8480 = vmatpush2.bf16.msra.mxu0 %v8212
    %8481 = vmatprep.subr.bf16.mxu0 %v8200
    %8482 = vmatpush2.bf16.msra.mxu0 %v8199
    %8483 = vmatprep.subr.bf16.mxu0 %v8187
    %8484 = vmatpush2.bf16.msra.mxu0 %v8186
    %8485 = vmatprep.subr.bf16.mxu0 %v8174
    %8486 = vmatpush2.bf16.msra.mxu0 %v8173
    %8487 = vmatprep.mubr.bf16.mxu0 %v8251
    %8488 = vmatmul.mubr.bf16.gmra.mxu0 %v8244
    %v8489 = vpop.f32.mrf.mxu0
    %v8490 = vadd.f32 0.0, %v8489
    %v8491 = vpop.f32.mrf.mxu0
    %v8492 = vadd.f32 0.0, %v8491
    %v8493 = vpop.f32.mrf.mxu0
    %v8494 = vadd.f32 0.0, %v8493
    %v8495 = vpop.f32.mrf.mxu0
    %v8496 = vadd.f32 0.0, %v8495
    %8497 = vmatprep.mubr.bf16.mxu0 %v8254
    %8498 = vmatmul.mubr.bf16.gmra.mxu0 %v8246
    %v8499 = vpop.f32.mrf.mxu0
    %v8500 = vadd.f32 0.0, %v8499
    %v8501 = vpop.f32.mrf.mxu0
    %v8502 = vadd.f32 0.0, %v8501
    %v8503 = vpop.f32.mrf.mxu0
    %v8504 = vadd.f32 0.0, %v8503
    %v8505 = vpop.f32.mrf.mxu0
    %v8506 = vadd.f32 0.0, %v8505
    %8507 = vdwg.mxu0
    %8508 = vmatprep.subr.bf16.mxu0 %v8163
    %8509 = vmatpush1.bf16.msra.mxu0 %v8162
    %8510 = vmatprep.subr.bf16.mxu0 %v8150
    %8511 = vmatpush1.bf16.msra.mxu0 %v8149
    %8512 = vmatprep.subr.bf16.mxu0 %v8137
    %8513 = vmatpush1.bf16.msra.mxu0 %v8136
    %8514 = vmatprep.subr.bf16.mxu0 %v8124
    %8515 = vmatpush1.bf16.msra.mxu0 %v8123
    %8516 = vmatprep.subr.bf16.mxu0 %v8111
    %8517 = vmatpush1.bf16.msra.mxu0 %v8110
    %8518 = vmatprep.subr.bf16.mxu0 %v8098
    %8519 = vmatpush1.bf16.msra.mxu0 %v8097
    %8520 = vmatprep.subr.bf16.mxu0 %v8085
    %8521 = vmatpush1.bf16.msra.mxu0 %v8084
    %8522 = vmatprep.subr.bf16.mxu0 %v8072
    %8523 = vmatpush1.bf16.msra.mxu0 %v8071
    %8524 = vmatprep.subr.bf16.mxu0 0
    %8525 = vmatpush2.bf16.msra.mxu0 0
    %8526 = vmatprep.subr.bf16.mxu0 0
    %8527 = vmatpush2.bf16.msra.mxu0 0
    %8528 = vmatprep.subr.bf16.mxu0 0
    %8529 = vmatpush2.bf16.msra.mxu0 0
    %8530 = vmatprep.subr.bf16.mxu0 %v8285
    %8531 = vmatpush2.bf16.msra.mxu0 %v8282
    %8532 = vmatprep.subr.bf16.mxu0 %v8215
    %8533 = vmatpush2.bf16.msra.mxu0 %v8214
    %8534 = vmatprep.subr.bf16.mxu0 %v8202
    %8535 = vmatpush2.bf16.msra.mxu0 %v8201
    %8536 = vmatprep.subr.bf16.mxu0 %v8189
    %8537 = vmatpush2.bf16.msra.mxu0 %v8188
    %8538 = vmatprep.subr.bf16.mxu0 %v8176
    %8539 = vmatpush2.bf16.msra.mxu0 %v8175
    %8540 = vmatprep.mubr.bf16.mxu0 %v8251
    %8541 = vmatmul.mubr.bf16.gmra.mxu0 %v8244
    %v8542 = vpop.f32.mrf.mxu0
    %v8543 = vadd.f32 0.0, %v8542
    %v8544 = vpop.f32.mrf.mxu0
    %v8545 = vadd.f32 0.0, %v8544
    %v8546 = vpop.f32.mrf.mxu0
    %v8547 = vadd.f32 0.0, %v8546
    %v8548 = vpop.f32.mrf.mxu0
    %v8549 = vadd.f32 0.0, %v8548
    %8550 = vmatprep.mubr.bf16.mxu0 %v8254
    %8551 = vmatmul.mubr.bf16.gmra.mxu0 %v8246
    %v8552 = vpop.f32.mrf.mxu0
    %v8553 = vadd.f32 0.0, %v8552
    %v8554 = vpop.f32.mrf.mxu0
    %v8555 = vadd.f32 0.0, %v8554
    %v8556 = vpop.f32.mrf.mxu0
    %v8557 = vadd.f32 0.0, %v8556
    %v8558 = vpop.f32.mrf.mxu0
    %v8559 = vadd.f32 0.0, %v8558
    %8560 = vdwg.mxu0
    %8561 = vmatprep.subr.bf16.mxu0 %v8165
    %8562 = vmatpush1.bf16.msra.mxu0 %v8164
    %8563 = vmatprep.subr.bf16.mxu0 %v8152
    %8564 = vmatpush1.bf16.msra.mxu0 %v8151
    %8565 = vmatprep.subr.bf16.mxu0 %v8139
    %8566 = vmatpush1.bf16.msra.mxu0 %v8138
    %8567 = vmatprep.subr.bf16.mxu0 %v8126
    %8568 = vmatpush1.bf16.msra.mxu0 %v8125
    %8569 = vmatprep.subr.bf16.mxu0 %v8113
    %8570 = vmatpush1.bf16.msra.mxu0 %v8112
    %8571 = vmatprep.subr.bf16.mxu0 %v8100
    %8572 = vmatpush1.bf16.msra.mxu0 %v8099
    %8573 = vmatprep.subr.bf16.mxu0 %v8087
    %8574 = vmatpush1.bf16.msra.mxu0 %v8086
    %8575 = vmatprep.subr.bf16.mxu0 %v8074
    %8576 = vmatpush1.bf16.msra.mxu0 %v8073
    %8577 = vmatprep.subr.bf16.mxu0 0
    %8578 = vmatpush2.bf16.msra.mxu0 0
    %8579 = vmatprep.subr.bf16.mxu0 0
    %8580 = vmatpush2.bf16.msra.mxu0 0
    %8581 = vmatprep.subr.bf16.mxu0 0
    %8582 = vmatpush2.bf16.msra.mxu0 0
    %8583 = vmatprep.subr.bf16.mxu0 %v8291
    %8584 = vmatpush2.bf16.msra.mxu0 %v8288
    %8585 = vmatprep.subr.bf16.mxu0 %v8217
    %8586 = vmatpush2.bf16.msra.mxu0 %v8216
    %8587 = vmatprep.subr.bf16.mxu0 %v8204
    %8588 = vmatpush2.bf16.msra.mxu0 %v8203
    %8589 = vmatprep.subr.bf16.mxu0 %v8191
    %8590 = vmatpush2.bf16.msra.mxu0 %v8190
    %8591 = vmatprep.subr.bf16.mxu0 %v8178
    %8592 = vmatpush2.bf16.msra.mxu0 %v8177
    %8593 = vmatprep.mubr.bf16.mxu0 %v8251
    %8594 = vmatmul.mubr.bf16.gmra.mxu0 %v8244
    %v8595 = vpop.f32.mrf.mxu0
    %v8596 = vadd.f32 0.0, %v8595
    %v8597 = vpop.f32.mrf.mxu0
    %v8598 = vadd.f32 0.0, %v8597
    %v8599 = vpop.f32.mrf.mxu0
    %v8600 = vadd.f32 0.0, %v8599
    %v8601 = vpop.f32.mrf.mxu0
    %v8602 = vadd.f32 0.0, %v8601
    %8603 = vmatprep.mubr.bf16.mxu0 %v8254
    %8604 = vmatmul.mubr.bf16.gmra.mxu0 %v8246
    %v8605 = vpop.f32.mrf.mxu0
    %v8606 = vadd.f32 0.0, %v8605
    %v8607 = vpop.f32.mrf.mxu0
    %v8608 = vadd.f32 0.0, %v8607
    %v8609 = vpop.f32.mrf.mxu0
    %v8610 = vadd.f32 0.0, %v8609
    %v8611 = vpop.f32.mrf.mxu0
    %v8612 = vadd.f32 0.0, %v8611
    %8613 = vdwg.mxu0
    %8614 = vmatprep.subr.bf16.mxu0 0
    %8615 = vmatpush1.bf16.msra.mxu0 %v8166
    %8616 = vmatprep.subr.bf16.mxu0 0
    %8617 = vmatpush1.bf16.msra.mxu0 %v8153
    %8618 = vmatprep.subr.bf16.mxu0 0
    %8619 = vmatpush1.bf16.msra.mxu0 %v8140
    %8620 = vmatprep.subr.bf16.mxu0 0
    %8621 = vmatpush1.bf16.msra.mxu0 %v8127
    %8622 = vmatprep.subr.bf16.mxu0 0
    %8623 = vmatpush1.bf16.msra.mxu0 %v8114
    %8624 = vmatprep.subr.bf16.mxu0 0
    %8625 = vmatpush1.bf16.msra.mxu0 %v8101
    %8626 = vmatprep.subr.bf16.mxu0 0
    %8627 = vmatpush1.bf16.msra.mxu0 %v8088
    %8628 = vmatprep.subr.bf16.mxu0 0
    %8629 = vmatpush1.bf16.msra.mxu0 %v8075
    %8630 = vmatprep.subr.bf16.mxu0 0
    %8631 = vmatpush2.bf16.msra.mxu0 0
    %8632 = vmatprep.subr.bf16.mxu0 0
    %8633 = vmatpush2.bf16.msra.mxu0 0
    %8634 = vmatprep.subr.bf16.mxu0 0
    %8635 = vmatpush2.bf16.msra.mxu0 0
    %8636 = vmatprep.subr.bf16.mxu0 0
    %8637 = vmatpush2.bf16.msra.mxu0 %v8294
    %8638 = vmatprep.subr.bf16.mxu0 0
    %8639 = vmatpush2.bf16.msra.mxu0 %v8218
    %8640 = vmatprep.subr.bf16.mxu0 0
    %8641 = vmatpush2.bf16.msra.mxu0 %v8205
    %8642 = vmatprep.subr.bf16.mxu0 0
    %8643 = vmatpush2.bf16.msra.mxu0 %v8192
    %8644 = vmatprep.subr.bf16.mxu0 0
    %8645 = vmatpush2.bf16.msra.mxu0 %v8179
    %8646 = vmatprep.mubr.bf16.mxu0 %v8251
    %8647 = vmatmul.mubr.bf16.gmra.mxu0 %v8244
    %v8648 = vpop.f32.mrf.mxu0
    %v8649 = vadd.f32 0.0, %v8648
    %v8650 = vpop.f32.mrf.mxu0
    %v8651 = vpop.f32.mrf.mxu0
    %v8652 = vadd.f32 0.0, %v8651
    %v8653 = vpop.f32.mrf.mxu0
    %8654 = vmatprep.mubr.bf16.mxu0 %v8254
    %8655 = vmatmul.mubr.bf16.gmra.mxu0 %v8246
    %v8656 = vpop.f32.mrf.mxu0
    %v8657 = vadd.f32 0.0, %v8656
    %v8658 = vpop.f32.mrf.mxu0
    %v8659 = vpop.f32.mrf.mxu0
    %v8660 = vadd.f32 0.0, %v8659
    %v8661 = vpop.f32.mrf.mxu0
    %8662 = vdwg.mxu0
    %8715 = vrot.lane.b32.xlu0 %v8331, 126
    %v8716 = vpop.permute.xlu0 %8715
    %8717 = vrot.lane.b32.xlu0 %v8333, 126
    %v8718 = vpop.permute.xlu0 %8717
    %8719 = vrot.lane.b32.xlu0 %v8384, 126
    %v8720 = vpop.permute.xlu0 %8719
    %8721 = vrot.lane.b32.xlu0 %v8386, 126
    %v8722 = vpop.permute.xlu0 %8721
    %8723 = vrot.lane.b32.xlu0 %v8437, 126
    %v8724 = vpop.permute.xlu0 %8723
    %8725 = vrot.lane.b32.xlu0 %v8439, 126
    %v8726 = vpop.permute.xlu0 %8725
    %8727 = vrot.lane.b32.xlu0 %v8490, 126
    %v8728 = vpop.permute.xlu0 %8727
    %8729 = vrot.lane.b32.xlu0 %v8492, 126
    %v8730 = vpop.permute.xlu0 %8729
    %8731 = vrot.lane.b32.xlu0 %v8543, 126
    %v8732 = vpop.permute.xlu0 %8731
    %8733 = vrot.lane.b32.xlu0 %v8545, 126
    %v8734 = vpop.permute.xlu0 %8733
    %8735 = vrot.lane.b32.xlu0 %v8596, 126
    %v8736 = vpop.permute.xlu0 %8735
    %8737 = vrot.lane.b32.xlu0 %v8598, 126
    %v8738 = vpop.permute.xlu0 %8737
    %8739 = vrot.lane.b32.xlu0 %v8649, 126
    %v8740 = vpop.permute.xlu0 %8739
    %8741 = vrot.lane.b32.xlu0 %v8335, 126
    %v8742 = vpop.permute.xlu0 %8741
    %8743 = vrot.lane.b32.xlu0 %v8337, 126
    %v8744 = vpop.permute.xlu0 %8743
    %8745 = vrot.lane.b32.xlu0 %v8388, 126
    %v8746 = vpop.permute.xlu0 %8745
    %8747 = vrot.lane.b32.xlu0 %v8390, 126
    %v8748 = vpop.permute.xlu0 %8747
    %8749 = vrot.lane.b32.xlu0 %v8441, 126
    %v8750 = vpop.permute.xlu0 %8749
    %8751 = vrot.lane.b32.xlu0 %v8443, 126
    %v8752 = vpop.permute.xlu0 %8751
    %8753 = vrot.lane.b32.xlu0 %v8494, 126
    %v8754 = vpop.permute.xlu0 %8753
    %8755 = vrot.lane.b32.xlu0 %v8496, 126
    %v8756 = vpop.permute.xlu0 %8755
    %8757 = vrot.lane.b32.xlu0 %v8547, 126
    %v8758 = vpop.permute.xlu0 %8757
    %8759 = vrot.lane.b32.xlu0 %v8549, 126
    %v8760 = vpop.permute.xlu0 %8759
    %8761 = vrot.lane.b32.xlu0 %v8600, 126
    %v8762 = vpop.permute.xlu0 %8761
    %8763 = vrot.lane.b32.xlu0 %v8602, 126
    %v8764 = vpop.permute.xlu0 %8763
    %8765 = vrot.lane.b32.xlu0 %v8652, 126
    %v8766 = vpop.permute.xlu0 %8765
    %8767 = vrot.lane.b32.xlu0 %v8341, 126
    %v8768 = vpop.permute.xlu0 %8767
    %8769 = vrot.lane.b32.xlu0 %v8343, 126
    %v8770 = vpop.permute.xlu0 %8769
    %8771 = vrot.lane.b32.xlu0 %v8394, 126
    %v8772 = vpop.permute.xlu0 %8771
    %8773 = vrot.lane.b32.xlu0 %v8396, 126
    %v8774 = vpop.permute.xlu0 %8773
    %8775 = vrot.lane.b32.xlu0 %v8447, 126
    %v8776 = vpop.permute.xlu0 %8775
    %8777 = vrot.lane.b32.xlu0 %v8449, 126
    %v8778 = vpop.permute.xlu0 %8777
    %8779 = vrot.lane.b32.xlu0 %v8500, 126
    %v8780 = vpop.permute.xlu0 %8779
    %8781 = vrot.lane.b32.xlu0 %v8502, 126
    %v8782 = vpop.permute.xlu0 %8781
    %8783 = vrot.lane.b32.xlu0 %v8553, 126
    %v8784 = vpop.permute.xlu0 %8783
    %8785 = vrot.lane.b32.xlu0 %v8555, 126
    %v8786 = vpop.permute.xlu0 %8785
    %8787 = vrot.lane.b32.xlu0 %v8606, 126
    %v8788 = vpop.permute.xlu0 %8787
    %8789 = vrot.lane.b32.xlu0 %v8608, 126
    %v8790 = vpop.permute.xlu0 %8789
    %8791 = vrot.lane.b32.xlu0 %v8657, 126
    %v8792 = vpop.permute.xlu0 %8791
    %8793 = vrot.lane.b32.xlu0 %v8345, 126
    %v8794 = vpop.permute.xlu0 %8793
    %8795 = vrot.lane.b32.xlu0 %v8347, 126
    %v8796 = vpop.permute.xlu0 %8795
    %8797 = vrot.lane.b32.xlu0 %v8398, 126
    %v8798 = vpop.permute.xlu0 %8797
    %8799 = vrot.lane.b32.xlu0 %v8400, 126
    %v8800 = vpop.permute.xlu0 %8799
    %8801 = vrot.lane.b32.xlu0 %v8451, 126
    %v8802 = vpop.permute.xlu0 %8801
    %8803 = vrot.lane.b32.xlu0 %v8453, 126
    %v8804 = vpop.permute.xlu0 %8803
    %8805 = vrot.lane.b32.xlu0 %v8504, 126
    %v8806 = vpop.permute.xlu0 %8805
    %8807 = vrot.lane.b32.xlu0 %v8506, 126
    %v8808 = vpop.permute.xlu0 %8807
    %8809 = vrot.lane.b32.xlu0 %v8557, 126
    %v8810 = vpop.permute.xlu0 %8809
    %8811 = vrot.lane.b32.xlu0 %v8559, 126
    %v8812 = vpop.permute.xlu0 %8811
    %8813 = vrot.lane.b32.xlu0 %v8610, 126
    %v8814 = vpop.permute.xlu0 %8813
    %8815 = vrot.lane.b32.xlu0 %v8612, 126
    %v8816 = vpop.permute.xlu0 %8815
    %8817 = vrot.lane.b32.xlu0 %v8660, 126
    %v8818 = vpop.permute.xlu0 %8817
    %v8819 = vsel %vm148, %v8716, %v8718
    %v8820 = vsel %vm148, %v8718, %v8720
    %v8821 = vsel %vm148, %v8720, %v8722
    %v8822 = vsel %vm148, %v8722, %v8724
    %v8823 = vsel %vm148, %v8724, %v8726
    %v8824 = vsel %vm148, %v8726, %v8728
    %v8825 = vsel %vm148, %v8728, %v8730
    %v8826 = vsel %vm148, %v8730, %v8732
    %v8827 = vsel %vm148, %v8732, %v8734
    %v8828 = vsel %vm148, %v8734, %v8736
    %v8829 = vsel %vm148, %v8736, %v8738
    %v8830 = vsel %vm148, %v8738, %v8740
    %v8831 = vsel %vm148, %v8742, %v8744
    %v8832 = vsel %vm148, %v8744, %v8746
    %v8833 = vsel %vm148, %v8746, %v8748
    %v8834 = vsel %vm148, %v8748, %v8750
    %v8835 = vsel %vm148, %v8750, %v8752
    %v8836 = vsel %vm148, %v8752, %v8754
    %v8837 = vsel %vm148, %v8754, %v8756
    %v8838 = vsel %vm148, %v8756, %v8758
    %v8839 = vsel %vm148, %v8758, %v8760
    %v8840 = vsel %vm148, %v8760, %v8762
    %v8841 = vsel %vm148, %v8762, %v8764
    %v8842 = vsel %vm148, %v8764, %v8766
    %v8843 = vsel %vm148, %v8768, %v8770
    %v8844 = vsel %vm148, %v8770, %v8772
    %v8845 = vsel %vm148, %v8772, %v8774
    %v8846 = vsel %vm148, %v8774, %v8776
    %v8847 = vsel %vm148, %v8776, %v8778
    %v8848 = vsel %vm148, %v8778, %v8780
    %v8849 = vsel %vm148, %v8780, %v8782
    %v8850 = vsel %vm148, %v8782, %v8784
    %v8851 = vsel %vm148, %v8784, %v8786
    %v8852 = vsel %vm148, %v8786, %v8788
    %v8853 = vsel %vm148, %v8788, %v8790
    %v8854 = vsel %vm148, %v8790, %v8792
    %v8855 = vsel %vm148, %v8794, %v8796
    %v8856 = vsel %vm148, %v8796, %v8798
    %v8857 = vsel %vm148, %v8798, %v8800
    %v8858 = vsel %vm148, %v8800, %v8802
    %v8859 = vsel %vm148, %v8802, %v8804
    %v8860 = vsel %vm148, %v8804, %v8806
    %v8861 = vsel %vm148, %v8806, %v8808
    %v8862 = vsel %vm148, %v8808, %v8810
    %v8863 = vsel %vm148, %v8810, %v8812
    %v8864 = vsel %vm148, %v8812, %v8814
    %v8865 = vsel %vm148, %v8814, %v8816
    %v8866 = vsel %vm148, %v8816, %v8818
    %8919 = vrot.lane.b32.xlu0 %v8331, 30
    %v8920 = vpop.permute.xlu0 %8919
    %8921 = vrot.lane.b32.xlu0 %v8335, 30
    %v8922 = vpop.permute.xlu0 %8921
    %8923 = vrot.lane.b32.xlu0 %v8341, 30
    %v8924 = vpop.permute.xlu0 %8923
    %8925 = vrot.lane.b32.xlu0 %v8345, 30
    %v8926 = vpop.permute.xlu0 %8925
    %v8931 = vsel %vm177, %v8740, %v8920
    %v8932 = vsel %vm177, %v8766, %v8922
    %v8933 = vsel %vm177, %v8792, %v8924
    %v8934 = vsel %vm177, %v8818, %v8926
    %v8935 = vmax.f32 %v8331, %v8819
    %v8936 = vmax.f32 %v8333, %v8820
    %v8937 = vmax.f32 %v8384, %v8821
    %v8938 = vmax.f32 %v8386, %v8822
    %v8939 = vmax.f32 %v8437, %v8823
    %v8940 = vmax.f32 %v8439, %v8824
    %v8941 = vmax.f32 %v8490, %v8825
    %v8942 = vmax.f32 %v8492, %v8826
    %v8943 = vmax.f32 %v8543, %v8827
    %v8944 = vmax.f32 %v8545, %v8828
    %v8945 = vmax.f32 %v8596, %v8829
    %v8946 = vmax.f32 %v8598, %v8830
    %v8947 = vmax.f32 %v8649, %v8931
    %v8948 = vmax.f32 %v8335, %v8831
    %v8949 = vmax.f32 %v8337, %v8832
    %v8950 = vmax.f32 %v8388, %v8833
    %v8951 = vmax.f32 %v8390, %v8834
    %v8952 = vmax.f32 %v8441, %v8835
    %v8953 = vmax.f32 %v8443, %v8836
    %v8954 = vmax.f32 %v8494, %v8837
    %v8955 = vmax.f32 %v8496, %v8838
    %v8956 = vmax.f32 %v8547, %v8839
    %v8957 = vmax.f32 %v8549, %v8840
    %v8958 = vmax.f32 %v8600, %v8841
    %v8959 = vmax.f32 %v8602, %v8842
    %v8960 = vmax.f32 %v8652, %v8932
    %v8961 = vmax.f32 %v8341, %v8843
    %v8962 = vmax.f32 %v8343, %v8844
    %v8963 = vmax.f32 %v8394, %v8845
    %v8964 = vmax.f32 %v8396, %v8846
    %v8965 = vmax.f32 %v8447, %v8847
    %v8966 = vmax.f32 %v8449, %v8848
    %v8967 = vmax.f32 %v8500, %v8849
    %v8968 = vmax.f32 %v8502, %v8850
    %v8969 = vmax.f32 %v8553, %v8851
    %v8970 = vmax.f32 %v8555, %v8852
    %v8971 = vmax.f32 %v8606, %v8853
    %v8972 = vmax.f32 %v8608, %v8854
    %v8973 = vmax.f32 %v8657, %v8933
    %v8974 = vmax.f32 %v8345, %v8855
    %v8975 = vmax.f32 %v8347, %v8856
    %v8976 = vmax.f32 %v8398, %v8857
    %v8977 = vmax.f32 %v8400, %v8858
    %v8978 = vmax.f32 %v8451, %v8859
    %v8979 = vmax.f32 %v8453, %v8860
    %v8980 = vmax.f32 %v8504, %v8861
    %v8981 = vmax.f32 %v8506, %v8862
    %v8982 = vmax.f32 %v8557, %v8863
    %v8983 = vmax.f32 %v8559, %v8864
    %v8984 = vmax.f32 %v8610, %v8865
    %v8985 = vmax.f32 %v8612, %v8866
    %v8986 = vmax.f32 %v8660, %v8934
    %8987 = vrot.lane.b32.xlu0 %v8331, 72
    %v8988 = vpop.permute.xlu0 %8987
    %8989 = vrot.lane.b32.xlu0 %v8333, 72
    %v8990 = vpop.permute.xlu0 %8989
    %8991 = vrot.lane.b32.xlu0 %v8384, 72
    %v8992 = vpop.permute.xlu0 %8991
    %8993 = vrot.lane.b32.xlu0 %v8386, 72
    %v8994 = vpop.permute.xlu0 %8993
    %8995 = vrot.lane.b32.xlu0 %v8437, 72
    %v8996 = vpop.permute.xlu0 %8995
    %8997 = vrot.lane.b32.xlu0 %v8439, 72
    %v8998 = vpop.permute.xlu0 %8997
    %8999 = vrot.lane.b32.xlu0 %v8490, 72
    %v9000 = vpop.permute.xlu0 %8999
    %9001 = vrot.lane.b32.xlu0 %v8492, 72
    %v9002 = vpop.permute.xlu0 %9001
    %9003 = vrot.lane.b32.xlu0 %v8543, 72
    %v9004 = vpop.permute.xlu0 %9003
    %9005 = vrot.lane.b32.xlu0 %v8545, 72
    %v9006 = vpop.permute.xlu0 %9005
    %9007 = vrot.lane.b32.xlu0 %v8596, 72
    %v9008 = vpop.permute.xlu0 %9007
    %9009 = vrot.lane.b32.xlu0 %v8598, 72
    %v9010 = vpop.permute.xlu0 %9009
    %9011 = vrot.lane.b32.xlu0 %v8649, 72
    %v9012 = vpop.permute.xlu0 %9011
    %9013 = vrot.lane.b32.xlu0 %v8335, 72
    %v9014 = vpop.permute.xlu0 %9013
    %9015 = vrot.lane.b32.xlu0 %v8337, 72
    %v9016 = vpop.permute.xlu0 %9015
    %9017 = vrot.lane.b32.xlu0 %v8388, 72
    %v9018 = vpop.permute.xlu0 %9017
    %9019 = vrot.lane.b32.xlu0 %v8390, 72
    %v9020 = vpop.permute.xlu0 %9019
    %9021 = vrot.lane.b32.xlu0 %v8441, 72
    %v9022 = vpop.permute.xlu0 %9021
    %9023 = vrot.lane.b32.xlu0 %v8443, 72
    %v9024 = vpop.permute.xlu0 %9023
    %9025 = vrot.lane.b32.xlu0 %v8494, 72
    %v9026 = vpop.permute.xlu0 %9025
    %9027 = vrot.lane.b32.xlu0 %v8496, 72
    %v9028 = vpop.permute.xlu0 %9027
    %9029 = vrot.lane.b32.xlu0 %v8547, 72
    %v9030 = vpop.permute.xlu0 %9029
    %9031 = vrot.lane.b32.xlu0 %v8549, 72
    %v9032 = vpop.permute.xlu0 %9031
    %9033 = vrot.lane.b32.xlu0 %v8600, 72
    %v9034 = vpop.permute.xlu0 %9033
    %9035 = vrot.lane.b32.xlu0 %v8602, 72
    %v9036 = vpop.permute.xlu0 %9035
    %9037 = vrot.lane.b32.xlu0 %v8652, 72
    %v9038 = vpop.permute.xlu0 %9037
    %9039 = vrot.lane.b32.xlu0 %v8341, 72
    %v9040 = vpop.permute.xlu0 %9039
    %9041 = vrot.lane.b32.xlu0 %v8343, 72
    %v9042 = vpop.permute.xlu0 %9041
    %9043 = vrot.lane.b32.xlu0 %v8394, 72
    %v9044 = vpop.permute.xlu0 %9043
    %9045 = vrot.lane.b32.xlu0 %v8396, 72
    %v9046 = vpop.permute.xlu0 %9045
    %9047 = vrot.lane.b32.xlu0 %v8447, 72
    %v9048 = vpop.permute.xlu0 %9047
    %9049 = vrot.lane.b32.xlu0 %v8449, 72
    %v9050 = vpop.permute.xlu0 %9049
    %9051 = vrot.lane.b32.xlu0 %v8500, 72
    %v9052 = vpop.permute.xlu0 %9051
    %9053 = vrot.lane.b32.xlu0 %v8502, 72
    %v9054 = vpop.permute.xlu0 %9053
    %9055 = vrot.lane.b32.xlu0 %v8553, 72
    %v9056 = vpop.permute.xlu0 %9055
    %9057 = vrot.lane.b32.xlu0 %v8555, 72
    %v9058 = vpop.permute.xlu0 %9057
    %9059 = vrot.lane.b32.xlu0 %v8606, 72
    %v9060 = vpop.permute.xlu0 %9059
    %9061 = vrot.lane.b32.xlu0 %v8608, 72
    %v9062 = vpop.permute.xlu0 %9061
    %9063 = vrot.lane.b32.xlu0 %v8657, 72
    %v9064 = vpop.permute.xlu0 %9063
    %9065 = vrot.lane.b32.xlu0 %v8345, 72
    %v9066 = vpop.permute.xlu0 %9065
    %9067 = vrot.lane.b32.xlu0 %v8347, 72
    %v9068 = vpop.permute.xlu0 %9067
    %9069 = vrot.lane.b32.xlu0 %v8398, 72
    %v9070 = vpop.permute.xlu0 %9069
    %9071 = vrot.lane.b32.xlu0 %v8400, 72
    %v9072 = vpop.permute.xlu0 %9071
    %9073 = vrot.lane.b32.xlu0 %v8451, 72
    %v9074 = vpop.permute.xlu0 %9073
    %9075 = vrot.lane.b32.xlu0 %v8453, 72
    %v9076 = vpop.permute.xlu0 %9075
    %9077 = vrot.lane.b32.xlu0 %v8504, 72
    %v9078 = vpop.permute.xlu0 %9077
    %9079 = vrot.lane.b32.xlu0 %v8506, 72
    %v9080 = vpop.permute.xlu0 %9079
    %9081 = vrot.lane.b32.xlu0 %v8557, 72
    %v9082 = vpop.permute.xlu0 %9081
    %9083 = vrot.lane.b32.xlu0 %v8559, 72
    %v9084 = vpop.permute.xlu0 %9083
    %9085 = vrot.lane.b32.xlu0 %v8610, 72
    %v9086 = vpop.permute.xlu0 %9085
    %9087 = vrot.lane.b32.xlu0 %v8612, 72
    %v9088 = vpop.permute.xlu0 %9087
    %9089 = vrot.lane.b32.xlu0 %v8660, 72
    %v9090 = vpop.permute.xlu0 %9089
    %v9091 = vsel %vm982, %v8988, %v8990
    %v9092 = vsel %vm982, %v8990, %v8992
    %v9093 = vsel %vm982, %v8992, %v8994
    %v9094 = vsel %vm982, %v8994, %v8996
    %v9095 = vsel %vm982, %v8996, %v8998
    %v9096 = vsel %vm982, %v8998, %v9000
    %v9097 = vsel %vm982, %v9000, %v9002
    %v9098 = vsel %vm982, %v9002, %v9004
    %v9099 = vsel %vm982, %v9004, %v9006
    %v9100 = vsel %vm982, %v9006, %v9008
    %v9101 = vsel %vm982, %v9008, %v9010
    %v9102 = vsel %vm982, %v9010, %v9012
    %v9103 = vsel %vm982, %v9014, %v9016
    %v9104 = vsel %vm982, %v9016, %v9018
    %v9105 = vsel %vm982, %v9018, %v9020
    %v9106 = vsel %vm982, %v9020, %v9022
    %v9107 = vsel %vm982, %v9022, %v9024
    %v9108 = vsel %vm982, %v9024, %v9026
    %v9109 = vsel %vm982, %v9026, %v9028
    %v9110 = vsel %vm982, %v9028, %v9030
    %v9111 = vsel %vm982, %v9030, %v9032
    %v9112 = vsel %vm982, %v9032, %v9034
    %v9113 = vsel %vm982, %v9034, %v9036
    %v9114 = vsel %vm982, %v9036, %v9038
    %v9115 = vsel %vm982, %v9040, %v9042
    %v9116 = vsel %vm982, %v9042, %v9044
    %v9117 = vsel %vm982, %v9044, %v9046
    %v9118 = vsel %vm982, %v9046, %v9048
    %v9119 = vsel %vm982, %v9048, %v9050
    %v9120 = vsel %vm982, %v9050, %v9052
    %v9121 = vsel %vm982, %v9052, %v9054
    %v9122 = vsel %vm982, %v9054, %v9056
    %v9123 = vsel %vm982, %v9056, %v9058
    %v9124 = vsel %vm982, %v9058, %v9060
    %v9125 = vsel %vm982, %v9060, %v9062
    %v9126 = vsel %vm982, %v9062, %v9064
    %v9127 = vsel %vm982, %v9066, %v9068
    %v9128 = vsel %vm982, %v9068, %v9070
    %v9129 = vsel %vm982, %v9070, %v9072
    %v9130 = vsel %vm982, %v9072, %v9074
    %v9131 = vsel %vm982, %v9074, %v9076
    %v9132 = vsel %vm982, %v9076, %v9078
    %v9133 = vsel %vm982, %v9078, %v9080
    %v9134 = vsel %vm982, %v9080, %v9082
    %v9135 = vsel %vm982, %v9082, %v9084
    %v9136 = vsel %vm982, %v9084, %v9086
    %v9137 = vsel %vm982, %v9086, %v9088
    %v9138 = vsel %vm982, %v9088, %v9090
    %9187 = vrot.lane.b32.xlu0 %v8331, 104
    %v9188 = vpop.permute.xlu0 %9187
    %9189 = vrot.lane.b32.xlu0 %v8335, 104
    %v9190 = vpop.permute.xlu0 %9189
    %9191 = vrot.lane.b32.xlu0 %v8341, 104
    %v9192 = vpop.permute.xlu0 %9191
    %9193 = vrot.lane.b32.xlu0 %v8345, 104
    %v9194 = vpop.permute.xlu0 %9193
    %v9199 = vsel %vm1010, %v9102, %v9188
    %v9200 = vsel %vm1010, %v9114, %v9190
    %v9201 = vsel %vm1010, %v9126, %v9192
    %v9202 = vsel %vm1010, %v9138, %v9194
    %9203 = vrot.lane.b32.xlu0 %v8331, 70
    %v9204 = vpop.permute.xlu0 %9203
    %9205 = vrot.lane.b32.xlu0 %v8333, 70
    %v9206 = vpop.permute.xlu0 %9205
    %9207 = vrot.lane.b32.xlu0 %v8384, 70
    %v9208 = vpop.permute.xlu0 %9207
    %9209 = vrot.lane.b32.xlu0 %v8386, 70
    %v9210 = vpop.permute.xlu0 %9209
    %9211 = vrot.lane.b32.xlu0 %v8437, 70
    %v9212 = vpop.permute.xlu0 %9211
    %9213 = vrot.lane.b32.xlu0 %v8439, 70
    %v9214 = vpop.permute.xlu0 %9213
    %9215 = vrot.lane.b32.xlu0 %v8490, 70
    %v9216 = vpop.permute.xlu0 %9215
    %9217 = vrot.lane.b32.xlu0 %v8492, 70
    %v9218 = vpop.permute.xlu0 %9217
    %9219 = vrot.lane.b32.xlu0 %v8543, 70
    %v9220 = vpop.permute.xlu0 %9219
    %9221 = vrot.lane.b32.xlu0 %v8545, 70
    %v9222 = vpop.permute.xlu0 %9221
    %9223 = vrot.lane.b32.xlu0 %v8596, 70
    %v9224 = vpop.permute.xlu0 %9223
    %9225 = vrot.lane.b32.xlu0 %v8598, 70
    %v9226 = vpop.permute.xlu0 %9225
    %9227 = vrot.lane.b32.xlu0 %v8649, 70
    %v9228 = vpop.permute.xlu0 %9227
    %9229 = vrot.lane.b32.xlu0 %v8335, 70
    %v9230 = vpop.permute.xlu0 %9229
    %9231 = vrot.lane.b32.xlu0 %v8337, 70
    %v9232 = vpop.permute.xlu0 %9231
    %9233 = vrot.lane.b32.xlu0 %v8388, 70
    %v9234 = vpop.permute.xlu0 %9233
    %9235 = vrot.lane.b32.xlu0 %v8390, 70
    %v9236 = vpop.permute.xlu0 %9235
    %9237 = vrot.lane.b32.xlu0 %v8441, 70
    %v9238 = vpop.permute.xlu0 %9237
    %9239 = vrot.lane.b32.xlu0 %v8443, 70
    %v9240 = vpop.permute.xlu0 %9239
    %9241 = vrot.lane.b32.xlu0 %v8494, 70
    %v9242 = vpop.permute.xlu0 %9241
    %9243 = vrot.lane.b32.xlu0 %v8496, 70
    %v9244 = vpop.permute.xlu0 %9243
    %9245 = vrot.lane.b32.xlu0 %v8547, 70
    %v9246 = vpop.permute.xlu0 %9245
    %9247 = vrot.lane.b32.xlu0 %v8549, 70
    %v9248 = vpop.permute.xlu0 %9247
    %9249 = vrot.lane.b32.xlu0 %v8600, 70
    %v9250 = vpop.permute.xlu0 %9249
    %9251 = vrot.lane.b32.xlu0 %v8602, 70
    %v9252 = vpop.permute.xlu0 %9251
    %9253 = vrot.lane.b32.xlu0 %v8652, 70
    %v9254 = vpop.permute.xlu0 %9253
    %9255 = vrot.lane.b32.xlu0 %v8341, 70
    %v9256 = vpop.permute.xlu0 %9255
    %9257 = vrot.lane.b32.xlu0 %v8343, 70
    %v9258 = vpop.permute.xlu0 %9257
    %9259 = vrot.lane.b32.xlu0 %v8394, 70
    %v9260 = vpop.permute.xlu0 %9259
    %9261 = vrot.lane.b32.xlu0 %v8396, 70
    %v9262 = vpop.permute.xlu0 %9261
    %9263 = vrot.lane.b32.xlu0 %v8447, 70
    %v9264 = vpop.permute.xlu0 %9263
    %9265 = vrot.lane.b32.xlu0 %v8449, 70
    %v9266 = vpop.permute.xlu0 %9265
    %9267 = vrot.lane.b32.xlu0 %v8500, 70
    %v9268 = vpop.permute.xlu0 %9267
    %9269 = vrot.lane.b32.xlu0 %v8502, 70
    %v9270 = vpop.permute.xlu0 %9269
    %9271 = vrot.lane.b32.xlu0 %v8553, 70
    %v9272 = vpop.permute.xlu0 %9271
    %9273 = vrot.lane.b32.xlu0 %v8555, 70
    %v9274 = vpop.permute.xlu0 %9273
    %9275 = vrot.lane.b32.xlu0 %v8606, 70
    %v9276 = vpop.permute.xlu0 %9275
    %9277 = vrot.lane.b32.xlu0 %v8608, 70
    %v9278 = vpop.permute.xlu0 %9277
    %9279 = vrot.lane.b32.xlu0 %v8657, 70
    %v9280 = vpop.permute.xlu0 %9279
    %9281 = vrot.lane.b32.xlu0 %v8345, 70
    %v9282 = vpop.permute.xlu0 %9281
    %9283 = vrot.lane.b32.xlu0 %v8347, 70
    %v9284 = vpop.permute.xlu0 %9283
    %9285 = vrot.lane.b32.xlu0 %v8398, 70
    %v9286 = vpop.permute.xlu0 %9285
    %9287 = vrot.lane.b32.xlu0 %v8400, 70
    %v9288 = vpop.permute.xlu0 %9287
    %9289 = vrot.lane.b32.xlu0 %v8451, 70
    %v9290 = vpop.permute.xlu0 %9289
    %9291 = vrot.lane.b32.xlu0 %v8453, 70
    %v9292 = vpop.permute.xlu0 %9291
    %9293 = vrot.lane.b32.xlu0 %v8504, 70
    %v9294 = vpop.permute.xlu0 %9293
    %9295 = vrot.lane.b32.xlu0 %v8506, 70
    %v9296 = vpop.permute.xlu0 %9295
    %9297 = vrot.lane.b32.xlu0 %v8557, 70
    %v9298 = vpop.permute.xlu0 %9297
    %9299 = vrot.lane.b32.xlu0 %v8559, 70
    %v9300 = vpop.permute.xlu0 %9299
    %9301 = vrot.lane.b32.xlu0 %v8610, 70
    %v9302 = vpop.permute.xlu0 %9301
    %9303 = vrot.lane.b32.xlu0 %v8612, 70
    %v9304 = vpop.permute.xlu0 %9303
    %9305 = vrot.lane.b32.xlu0 %v8660, 70
    %v9306 = vpop.permute.xlu0 %9305
    %v9307 = vsel %vm1120, %v9204, %v9206
    %v9308 = vsel %vm1120, %v9206, %v9208
    %v9309 = vsel %vm1120, %v9208, %v9210
    %v9310 = vsel %vm1120, %v9210, %v9212
    %v9311 = vsel %vm1120, %v9212, %v9214
    %v9312 = vsel %vm1120, %v9214, %v9216
    %v9313 = vsel %vm1120, %v9216, %v9218
    %v9314 = vsel %vm1120, %v9218, %v9220
    %v9315 = vsel %vm1120, %v9220, %v9222
    %v9316 = vsel %vm1120, %v9222, %v9224
    %v9317 = vsel %vm1120, %v9224, %v9226
    %v9318 = vsel %vm1120, %v9226, %v9228
    %v9319 = vsel %vm1120, %v9230, %v9232
    %v9320 = vsel %vm1120, %v9232, %v9234
    %v9321 = vsel %vm1120, %v9234, %v9236
    %v9322 = vsel %vm1120, %v9236, %v9238
    %v9323 = vsel %vm1120, %v9238, %v9240
    %v9324 = vsel %vm1120, %v9240, %v9242
    %v9325 = vsel %vm1120, %v9242, %v9244
    %v9326 = vsel %vm1120, %v9244, %v9246
    %v9327 = vsel %vm1120, %v9246, %v9248
    %v9328 = vsel %vm1120, %v9248, %v9250
    %v9329 = vsel %vm1120, %v9250, %v9252
    %v9330 = vsel %vm1120, %v9252, %v9254
    %v9331 = vsel %vm1120, %v9256, %v9258
    %v9332 = vsel %vm1120, %v9258, %v9260
    %v9333 = vsel %vm1120, %v9260, %v9262
    %v9334 = vsel %vm1120, %v9262, %v9264
    %v9335 = vsel %vm1120, %v9264, %v9266
    %v9336 = vsel %vm1120, %v9266, %v9268
    %v9337 = vsel %vm1120, %v9268, %v9270
    %v9338 = vsel %vm1120, %v9270, %v9272
    %v9339 = vsel %vm1120, %v9272, %v9274
    %v9340 = vsel %vm1120, %v9274, %v9276
    %v9341 = vsel %vm1120, %v9276, %v9278
    %v9342 = vsel %vm1120, %v9278, %v9280
    %v9343 = vsel %vm1120, %v9282, %v9284
    %v9344 = vsel %vm1120, %v9284, %v9286
    %v9345 = vsel %vm1120, %v9286, %v9288
    %v9346 = vsel %vm1120, %v9288, %v9290
    %v9347 = vsel %vm1120, %v9290, %v9292
    %v9348 = vsel %vm1120, %v9292, %v9294
    %v9349 = vsel %vm1120, %v9294, %v9296
    %v9350 = vsel %vm1120, %v9296, %v9298
    %v9351 = vsel %vm1120, %v9298, %v9300
    %v9352 = vsel %vm1120, %v9300, %v9302
    %v9353 = vsel %vm1120, %v9302, %v9304
    %v9354 = vsel %vm1120, %v9304, %v9306
    %9403 = vrot.lane.b32.xlu0 %v8331, 102
    %v9404 = vpop.permute.xlu0 %9403
    %9405 = vrot.lane.b32.xlu0 %v8335, 102
    %v9406 = vpop.permute.xlu0 %9405
    %9407 = vrot.lane.b32.xlu0 %v8341, 102
    %v9408 = vpop.permute.xlu0 %9407
    %9409 = vrot.lane.b32.xlu0 %v8345, 102
    %v9410 = vpop.permute.xlu0 %9409
    %v9415 = vsel %vm1148, %v9318, %v9404
    %v9416 = vsel %vm1148, %v9330, %v9406
    %v9417 = vsel %vm1148, %v9342, %v9408
    %v9418 = vsel %vm1148, %v9354, %v9410
    %v9419 = vmax.f32 %v9091, %v9307
    %v9420 = vmax.f32 %v9092, %v9308
    %v9421 = vmax.f32 %v9093, %v9309
    %v9422 = vmax.f32 %v9094, %v9310
    %v9423 = vmax.f32 %v9095, %v9311
    %v9424 = vmax.f32 %v9096, %v9312
    %v9425 = vmax.f32 %v9097, %v9313
    %v9426 = vmax.f32 %v9098, %v9314
    %v9427 = vmax.f32 %v9099, %v9315
    %v9428 = vmax.f32 %v9100, %v9316
    %v9429 = vmax.f32 %v9101, %v9317
    %v9430 = vmax.f32 %v9199, %v9415
    %v9431 = vmax.f32 %v9188, %v9404
    %v9432 = vmax.f32 %v9103, %v9319
    %v9433 = vmax.f32 %v9104, %v9320
    %v9434 = vmax.f32 %v9105, %v9321
    %v9435 = vmax.f32 %v9106, %v9322
    %v9436 = vmax.f32 %v9107, %v9323
    %v9437 = vmax.f32 %v9108, %v9324
    %v9438 = vmax.f32 %v9109, %v9325
    %v9439 = vmax.f32 %v9110, %v9326
    %v9440 = vmax.f32 %v9111, %v9327
    %v9441 = vmax.f32 %v9112, %v9328
    %v9442 = vmax.f32 %v9113, %v9329
    %v9443 = vmax.f32 %v9200, %v9416
    %v9444 = vmax.f32 %v9190, %v9406
    %v9445 = vmax.f32 %v9115, %v9331
    %v9446 = vmax.f32 %v9116, %v9332
    %v9447 = vmax.f32 %v9117, %v9333
    %v9448 = vmax.f32 %v9118, %v9334
    %v9449 = vmax.f32 %v9119, %v9335
    %v9450 = vmax.f32 %v9120, %v9336
    %v9451 = vmax.f32 %v9121, %v9337
    %v9452 = vmax.f32 %v9122, %v9338
    %v9453 = vmax.f32 %v9123, %v9339
    %v9454 = vmax.f32 %v9124, %v9340
    %v9455 = vmax.f32 %v9125, %v9341
    %v9456 = vmax.f32 %v9201, %v9417
    %v9457 = vmax.f32 %v9192, %v9408
    %v9458 = vmax.f32 %v9127, %v9343
    %v9459 = vmax.f32 %v9128, %v9344
    %v9460 = vmax.f32 %v9129, %v9345
    %v9461 = vmax.f32 %v9130, %v9346
    %v9462 = vmax.f32 %v9131, %v9347
    %v9463 = vmax.f32 %v9132, %v9348
    %v9464 = vmax.f32 %v9133, %v9349
    %v9465 = vmax.f32 %v9134, %v9350
    %v9466 = vmax.f32 %v9135, %v9351
    %v9467 = vmax.f32 %v9136, %v9352
    %v9468 = vmax.f32 %v9137, %v9353
    %v9469 = vmax.f32 %v9202, %v9418
    %v9470 = vmax.f32 %v9194, %v9410
    %v9471 = vmax.f32 %v8935, %v9419
    %v9472 = vmax.f32 %v8936, %v9420
    %v9473 = vmax.f32 %v8937, %v9421
    %v9474 = vmax.f32 %v8938, %v9422
    %v9475 = vmax.f32 %v8939, %v9423
    %v9476 = vmax.f32 %v8940, %v9424
    %v9477 = vmax.f32 %v8941, %v9425
    %v9478 = vmax.f32 %v8942, %v9426
    %v9479 = vmax.f32 %v8943, %v9427
    %v9480 = vmax.f32 %v8944, %v9428
    %v9481 = vmax.f32 %v8945, %v9429
    %v9482 = vmax.f32 %v8946, %v9430
    %v9483 = vmax.f32 %v8947, %v9431
    %v9484 = vmax.f32 %v8948, %v9432
    %v9485 = vmax.f32 %v8949, %v9433
    %v9486 = vmax.f32 %v8950, %v9434
    %v9487 = vmax.f32 %v8951, %v9435
    %v9488 = vmax.f32 %v8952, %v9436
    %v9489 = vmax.f32 %v8953, %v9437
    %v9490 = vmax.f32 %v8954, %v9438
    %v9491 = vmax.f32 %v8955, %v9439
    %v9492 = vmax.f32 %v8956, %v9440
    %v9493 = vmax.f32 %v8957, %v9441
    %v9494 = vmax.f32 %v8958, %v9442
    %v9495 = vmax.f32 %v8959, %v9443
    %v9496 = vmax.f32 %v8960, %v9444
    %v9497 = vmax.f32 %v8961, %v9445
    %v9498 = vmax.f32 %v8962, %v9446
    %v9499 = vmax.f32 %v8963, %v9447
    %v9500 = vmax.f32 %v8964, %v9448
    %v9501 = vmax.f32 %v8965, %v9449
    %v9502 = vmax.f32 %v8966, %v9450
    %v9503 = vmax.f32 %v8967, %v9451
    %v9504 = vmax.f32 %v8968, %v9452
    %v9505 = vmax.f32 %v8969, %v9453
    %v9506 = vmax.f32 %v8970, %v9454
    %v9507 = vmax.f32 %v8971, %v9455
    %v9508 = vmax.f32 %v8972, %v9456
    %v9509 = vmax.f32 %v8973, %v9457
    %v9510 = vmax.f32 %v8974, %v9458
    %v9511 = vmax.f32 %v8975, %v9459
    %v9512 = vmax.f32 %v8976, %v9460
    %v9513 = vmax.f32 %v8977, %v9461
    %v9514 = vmax.f32 %v8978, %v9462
    %v9515 = vmax.f32 %v8979, %v9463
    %v9516 = vmax.f32 %v8980, %v9464
    %v9517 = vmax.f32 %v8981, %v9465
    %v9518 = vmax.f32 %v8982, %v9466
    %v9519 = vmax.f32 %v8983, %v9467
    %v9520 = vmax.f32 %v8984, %v9468
    %v9521 = vmax.f32 %v8985, %v9469
    %v9522 = vmax.f32 %v8986, %v9470
    %v9523 = vld [vmem:[%s4] sm:$0xff]
    %v9524 = vld [vmem:[%s4 + $0x8] sm:$0xff]
    %v9525 = vld [vmem:[%s4 + $0x10] sm:$0xff]
    %v9526 = vld [vmem:[%s4 + $0x18] sm:$0xff]
    %9528 = vset.pattern.permute.xlu0 0
    %9529 = vperm.xlu0 %9528, %v9523
    %v9530 = vpop.permute.xlu0 %9529
    %9533 = vset.pattern.permute.xlu0 0
    %9534 = vperm.xlu0 %9533, %v9524
    %v9535 = vpop.permute.xlu0 %9534
    %9538 = vset.pattern.permute.xlu0 0
    %9539 = vperm.xlu0 %9538, %v9525
    %v9540 = vpop.permute.xlu0 %9539
    %9543 = vset.pattern.permute.xlu0 0
    %9544 = vperm.xlu0 %9543, %v9526
    %v9545 = vpop.permute.xlu0 %9544
    %v9547 = vadd.f32 %v9471, %v9530
    %v9548 = vadd.f32 %v9472, %v9530
    %v9549 = vadd.f32 %v9473, %v9530
    %v9550 = vadd.f32 %v9474, %v9530
    %v9551 = vadd.f32 %v9475, %v9530
    %v9552 = vadd.f32 %v9476, %v9530
    %v9553 = vadd.f32 %v9477, %v9530
    %v9554 = vadd.f32 %v9478, %v9530
    %v9555 = vadd.f32 %v9479, %v9530
    %v9556 = vadd.f32 %v9480, %v9530
    %v9557 = vadd.f32 %v9481, %v9530
    %v9558 = vadd.f32 %v9482, %v9530
    %v9559 = vadd.f32 %v9483, %v9530
    %v9560 = vadd.f32 %v9484, %v9535
    %v9561 = vadd.f32 %v9485, %v9535
    %v9562 = vadd.f32 %v9486, %v9535
    %v9563 = vadd.f32 %v9487, %v9535
    %v9564 = vadd.f32 %v9488, %v9535
    %v9565 = vadd.f32 %v9489, %v9535
    %v9566 = vadd.f32 %v9490, %v9535
    %v9567 = vadd.f32 %v9491, %v9535
    %v9568 = vadd.f32 %v9492, %v9535
    %v9569 = vadd.f32 %v9493, %v9535
    %v9570 = vadd.f32 %v9494, %v9535
    %v9571 = vadd.f32 %v9495, %v9535
    %v9572 = vadd.f32 %v9496, %v9535
    %v9573 = vadd.f32 %v9497, %v9540
    %v9574 = vadd.f32 %v9498, %v9540
    %v9575 = vadd.f32 %v9499, %v9540
    %v9576 = vadd.f32 %v9500, %v9540
    %v9577 = vadd.f32 %v9501, %v9540
    %v9578 = vadd.f32 %v9502, %v9540
    %v9579 = vadd.f32 %v9503, %v9540
    %v9580 = vadd.f32 %v9504, %v9540
    %v9581 = vadd.f32 %v9505, %v9540
    %v9582 = vadd.f32 %v9506, %v9540
    %v9583 = vadd.f32 %v9507, %v9540
    %v9584 = vadd.f32 %v9508, %v9540
    %v9585 = vadd.f32 %v9509, %v9540
    %v9586 = vadd.f32 %v9510, %v9545
    %v9587 = vadd.f32 %v9511, %v9545
    %v9588 = vadd.f32 %v9512, %v9545
    %v9589 = vadd.f32 %v9513, %v9545
    %v9590 = vadd.f32 %v9514, %v9545
    %v9591 = vadd.f32 %v9515, %v9545
    %v9592 = vadd.f32 %v9516, %v9545
    %v9593 = vadd.f32 %v9517, %v9545
    %v9594 = vadd.f32 %v9518, %v9545
    %v9595 = vadd.f32 %v9519, %v9545
    %v9596 = vadd.f32 %v9520, %v9545
    %v9597 = vadd.f32 %v9521, %v9545
    %v9598 = vadd.f32 %v9522, %v9545
    %v9599 = vmax.f32 %v9547, 0.0
    %v9600 = vmax.f32 %v9548, 0.0
    %v9601 = vmax.f32 %v9549, 0.0
    %v9602 = vmax.f32 %v9550, 0.0
    %v9603 = vmax.f32 %v9551, 0.0
    %v9604 = vmax.f32 %v9552, 0.0
    %v9605 = vmax.f32 %v9553, 0.0
    %v9606 = vmax.f32 %v9554, 0.0
    %v9607 = vmax.f32 %v9555, 0.0
    %v9608 = vmax.f32 %v9556, 0.0
    %v9609 = vmax.f32 %v9557, 0.0
    %v9610 = vmax.f32 %v9558, 0.0
    %v9611 = vmax.f32 %v9559, 0.0
    %v9612 = vmax.f32 %v9560, 0.0
    %v9613 = vmax.f32 %v9561, 0.0
    %v9614 = vmax.f32 %v9562, 0.0
    %v9615 = vmax.f32 %v9563, 0.0
    %v9616 = vmax.f32 %v9564, 0.0
    %v9617 = vmax.f32 %v9565, 0.0
    %v9618 = vmax.f32 %v9566, 0.0
    %v9619 = vmax.f32 %v9567, 0.0
    %v9620 = vmax.f32 %v9568, 0.0
    %v9621 = vmax.f32 %v9569, 0.0
    %v9622 = vmax.f32 %v9570, 0.0
    %v9623 = vmax.f32 %v9571, 0.0
    %v9624 = vmax.f32 %v9572, 0.0
    %v9625 = vmax.f32 %v9573, 0.0
    %v9626 = vmax.f32 %v9574, 0.0
    %v9627 = vmax.f32 %v9575, 0.0
    %v9628 = vmax.f32 %v9576, 0.0
    %v9629 = vmax.f32 %v9577, 0.0
    %v9630 = vmax.f32 %v9578, 0.0
    %v9631 = vmax.f32 %v9579, 0.0
    %v9632 = vmax.f32 %v9580, 0.0
    %v9633 = vmax.f32 %v9581, 0.0
    %v9634 = vmax.f32 %v9582, 0.0
    %v9635 = vmax.f32 %v9583, 0.0
    %v9636 = vmax.f32 %v9584, 0.0
    %v9637 = vmax.f32 %v9585, 0.0
    %v9638 = vmax.f32 %v9586, 0.0
    %v9639 = vmax.f32 %v9587, 0.0
    %v9640 = vmax.f32 %v9588, 0.0
    %v9641 = vmax.f32 %v9589, 0.0
    %v9642 = vmax.f32 %v9590, 0.0
    %v9643 = vmax.f32 %v9591, 0.0
    %v9644 = vmax.f32 %v9592, 0.0
    %v9645 = vmax.f32 %v9593, 0.0
    %v9646 = vmax.f32 %v9594, 0.0
    %v9647 = vmax.f32 %v9595, 0.0
    %v9648 = vmax.f32 %v9596, 0.0
    %v9649 = vmax.f32 %v9597, 0.0
    %v9650 = vmax.f32 %v9598, 0.0
    %9703 = vrot.lane.b32.xlu0 %v9599, 124
    %v9704 = vpop.permute.xlu0 %9703
    %9705 = vrot.lane.b32.xlu0 %v9600, 124
    %v9706 = vpop.permute.xlu0 %9705
    %9707 = vrot.lane.b32.xlu0 %v9601, 124
    %v9708 = vpop.permute.xlu0 %9707
    %9709 = vrot.lane.b32.xlu0 %v9602, 124
    %v9710 = vpop.permute.xlu0 %9709
    %9711 = vrot.lane.b32.xlu0 %v9603, 124
    %v9712 = vpop.permute.xlu0 %9711
    %9713 = vrot.lane.b32.xlu0 %v9604, 124
    %v9714 = vpop.permute.xlu0 %9713
    %9715 = vrot.lane.b32.xlu0 %v9605, 124
    %v9716 = vpop.permute.xlu0 %9715
    %9717 = vrot.lane.b32.xlu0 %v9606, 124
    %v9718 = vpop.permute.xlu0 %9717
    %9719 = vrot.lane.b32.xlu0 %v9607, 124
    %v9720 = vpop.permute.xlu0 %9719
    %9721 = vrot.lane.b32.xlu0 %v9608, 124
    %v9722 = vpop.permute.xlu0 %9721
    %9723 = vrot.lane.b32.xlu0 %v9609, 124
    %v9724 = vpop.permute.xlu0 %9723
    %9725 = vrot.lane.b32.xlu0 %v9610, 124
    %v9726 = vpop.permute.xlu0 %9725
    %9727 = vrot.lane.b32.xlu0 %v9611, 124
    %v9728 = vpop.permute.xlu0 %9727
    %9729 = vrot.lane.b32.xlu0 %v9612, 124
    %v9730 = vpop.permute.xlu0 %9729
    %9731 = vrot.lane.b32.xlu0 %v9613, 124
    %v9732 = vpop.permute.xlu0 %9731
    %9733 = vrot.lane.b32.xlu0 %v9614, 124
    %v9734 = vpop.permute.xlu0 %9733
    %9735 = vrot.lane.b32.xlu0 %v9615, 124
    %v9736 = vpop.permute.xlu0 %9735
    %9737 = vrot.lane.b32.xlu0 %v9616, 124
    %v9738 = vpop.permute.xlu0 %9737
    %9739 = vrot.lane.b32.xlu0 %v9617, 124
    %v9740 = vpop.permute.xlu0 %9739
    %9741 = vrot.lane.b32.xlu0 %v9618, 124
    %v9742 = vpop.permute.xlu0 %9741
    %9743 = vrot.lane.b32.xlu0 %v9619, 124
    %v9744 = vpop.permute.xlu0 %9743
    %9745 = vrot.lane.b32.xlu0 %v9620, 124
    %v9746 = vpop.permute.xlu0 %9745
    %9747 = vrot.lane.b32.xlu0 %v9621, 124
    %v9748 = vpop.permute.xlu0 %9747
    %9749 = vrot.lane.b32.xlu0 %v9622, 124
    %v9750 = vpop.permute.xlu0 %9749
    %9751 = vrot.lane.b32.xlu0 %v9623, 124
    %v9752 = vpop.permute.xlu0 %9751
    %9753 = vrot.lane.b32.xlu0 %v9624, 124
    %v9754 = vpop.permute.xlu0 %9753
    %9755 = vrot.lane.b32.xlu0 %v9625, 124
    %v9756 = vpop.permute.xlu0 %9755
    %9757 = vrot.lane.b32.xlu0 %v9626, 124
    %v9758 = vpop.permute.xlu0 %9757
    %9759 = vrot.lane.b32.xlu0 %v9627, 124
    %v9760 = vpop.permute.xlu0 %9759
    %9761 = vrot.lane.b32.xlu0 %v9628, 124
    %v9762 = vpop.permute.xlu0 %9761
    %9763 = vrot.lane.b32.xlu0 %v9629, 124
    %v9764 = vpop.permute.xlu0 %9763
    %9765 = vrot.lane.b32.xlu0 %v9630, 124
    %v9766 = vpop.permute.xlu0 %9765
    %9767 = vrot.lane.b32.xlu0 %v9631, 124
    %v9768 = vpop.permute.xlu0 %9767
    %9769 = vrot.lane.b32.xlu0 %v9632, 124
    %v9770 = vpop.permute.xlu0 %9769
    %9771 = vrot.lane.b32.xlu0 %v9633, 124
    %v9772 = vpop.permute.xlu0 %9771
    %9773 = vrot.lane.b32.xlu0 %v9634, 124
    %v9774 = vpop.permute.xlu0 %9773
    %9775 = vrot.lane.b32.xlu0 %v9635, 124
    %v9776 = vpop.permute.xlu0 %9775
    %9777 = vrot.lane.b32.xlu0 %v9636, 124
    %v9778 = vpop.permute.xlu0 %9777
    %9779 = vrot.lane.b32.xlu0 %v9637, 124
    %v9780 = vpop.permute.xlu0 %9779
    %9781 = vrot.lane.b32.xlu0 %v9638, 124
    %v9782 = vpop.permute.xlu0 %9781
    %9783 = vrot.lane.b32.xlu0 %v9639, 124
    %v9784 = vpop.permute.xlu0 %9783
    %9785 = vrot.lane.b32.xlu0 %v9640, 124
    %v9786 = vpop.permute.xlu0 %9785
    %9787 = vrot.lane.b32.xlu0 %v9641, 124
    %v9788 = vpop.permute.xlu0 %9787
    %9789 = vrot.lane.b32.xlu0 %v9642, 124
    %v9790 = vpop.permute.xlu0 %9789
    %9791 = vrot.lane.b32.xlu0 %v9643, 124
    %v9792 = vpop.permute.xlu0 %9791
    %9793 = vrot.lane.b32.xlu0 %v9644, 124
    %v9794 = vpop.permute.xlu0 %9793
    %9795 = vrot.lane.b32.xlu0 %v9645, 124
    %v9796 = vpop.permute.xlu0 %9795
    %9797 = vrot.lane.b32.xlu0 %v9646, 124
    %v9798 = vpop.permute.xlu0 %9797
    %9799 = vrot.lane.b32.xlu0 %v9647, 124
    %v9800 = vpop.permute.xlu0 %9799
    %9801 = vrot.lane.b32.xlu0 %v9648, 124
    %v9802 = vpop.permute.xlu0 %9801
    %9803 = vrot.lane.b32.xlu0 %v9649, 124
    %v9804 = vpop.permute.xlu0 %9803
    %9805 = vrot.lane.b32.xlu0 %v9650, 124
    %v9806 = vpop.permute.xlu0 %9805
    %v9807 = vsel %vm287, %v9704, %v9706
    %v9808 = vsel %vm287, %v9706, %v9708
    %v9809 = vsel %vm287, %v9708, %v9710
    %v9810 = vsel %vm287, %v9710, %v9712
    %v9811 = vsel %vm287, %v9712, %v9714
    %v9812 = vsel %vm287, %v9714, %v9716
    %v9813 = vsel %vm287, %v9716, %v9718
    %v9814 = vsel %vm287, %v9718, %v9720
    %v9815 = vsel %vm287, %v9720, %v9722
    %v9816 = vsel %vm287, %v9722, %v9724
    %v9817 = vsel %vm287, %v9724, %v9726
    %v9818 = vsel %vm287, %v9726, %v9728
    %v9819 = vsel %vm287, %v9730, %v9732
    %v9820 = vsel %vm287, %v9732, %v9734
    %v9821 = vsel %vm287, %v9734, %v9736
    %v9822 = vsel %vm287, %v9736, %v9738
    %v9823 = vsel %vm287, %v9738, %v9740
    %v9824 = vsel %vm287, %v9740, %v9742
    %v9825 = vsel %vm287, %v9742, %v9744
    %v9826 = vsel %vm287, %v9744, %v9746
    %v9827 = vsel %vm287, %v9746, %v9748
    %v9828 = vsel %vm287, %v9748, %v9750
    %v9829 = vsel %vm287, %v9750, %v9752
    %v9830 = vsel %vm287, %v9752, %v9754
    %v9831 = vsel %vm287, %v9756, %v9758
    %v9832 = vsel %vm287, %v9758, %v9760
    %v9833 = vsel %vm287, %v9760, %v9762
    %v9834 = vsel %vm287, %v9762, %v9764
    %v9835 = vsel %vm287, %v9764, %v9766
    %v9836 = vsel %vm287, %v9766, %v9768
    %v9837 = vsel %vm287, %v9768, %v9770
    %v9838 = vsel %vm287, %v9770, %v9772
    %v9839 = vsel %vm287, %v9772, %v9774
    %v9840 = vsel %vm287, %v9774, %v9776
    %v9841 = vsel %vm287, %v9776, %v9778
    %v9842 = vsel %vm287, %v9778, %v9780
    %v9843 = vsel %vm287, %v9782, %v9784
    %v9844 = vsel %vm287, %v9784, %v9786
    %v9845 = vsel %vm287, %v9786, %v9788
    %v9846 = vsel %vm287, %v9788, %v9790
    %v9847 = vsel %vm287, %v9790, %v9792
    %v9848 = vsel %vm287, %v9792, %v9794
    %v9849 = vsel %vm287, %v9794, %v9796
    %v9850 = vsel %vm287, %v9796, %v9798
    %v9851 = vsel %vm287, %v9798, %v9800
    %v9852 = vsel %vm287, %v9800, %v9802
    %v9853 = vsel %vm287, %v9802, %v9804
    %v9854 = vsel %vm287, %v9804, %v9806
    %9907 = vrot.lane.b32.xlu0 %v9599, 28
    %v9908 = vpop.permute.xlu0 %9907
    %9909 = vrot.lane.b32.xlu0 %v9612, 28
    %v9910 = vpop.permute.xlu0 %9909
    %9911 = vrot.lane.b32.xlu0 %v9625, 28
    %v9912 = vpop.permute.xlu0 %9911
    %9913 = vrot.lane.b32.xlu0 %v9638, 28
    %v9914 = vpop.permute.xlu0 %9913
    %v9919 = vsel %vm316, %v9728, %v9908
    %v9920 = vsel %vm316, %v9754, %v9910
    %v9921 = vsel %vm316, %v9780, %v9912
    %v9922 = vsel %vm316, %v9806, %v9914
    %9923 = vrot.lane.b32.xlu0 %v9599, 16
    %v9924 = vpop.permute.xlu0 %9923
    %9925 = vrot.lane.b32.xlu0 %v9600, 16
    %v9926 = vpop.permute.xlu0 %9925
    %9927 = vrot.lane.b32.xlu0 %v9601, 16
    %v9928 = vpop.permute.xlu0 %9927
    %9929 = vrot.lane.b32.xlu0 %v9602, 16
    %v9930 = vpop.permute.xlu0 %9929
    %9931 = vrot.lane.b32.xlu0 %v9603, 16
    %v9932 = vpop.permute.xlu0 %9931
    %9933 = vrot.lane.b32.xlu0 %v9604, 16
    %v9934 = vpop.permute.xlu0 %9933
    %9935 = vrot.lane.b32.xlu0 %v9605, 16
    %v9936 = vpop.permute.xlu0 %9935
    %9937 = vrot.lane.b32.xlu0 %v9606, 16
    %v9938 = vpop.permute.xlu0 %9937
    %9939 = vrot.lane.b32.xlu0 %v9607, 16
    %v9940 = vpop.permute.xlu0 %9939
    %9941 = vrot.lane.b32.xlu0 %v9608, 16
    %v9942 = vpop.permute.xlu0 %9941
    %9943 = vrot.lane.b32.xlu0 %v9609, 16
    %v9944 = vpop.permute.xlu0 %9943
    %9945 = vrot.lane.b32.xlu0 %v9610, 16
    %v9946 = vpop.permute.xlu0 %9945
    %9947 = vrot.lane.b32.xlu0 %v9611, 16
    %v9948 = vpop.permute.xlu0 %9947
    %9949 = vrot.lane.b32.xlu0 %v9612, 16
    %v9950 = vpop.permute.xlu0 %9949
    %9951 = vrot.lane.b32.xlu0 %v9613, 16
    %v9952 = vpop.permute.xlu0 %9951
    %9953 = vrot.lane.b32.xlu0 %v9614, 16
    %v9954 = vpop.permute.xlu0 %9953
    %9955 = vrot.lane.b32.xlu0 %v9615, 16
    %v9956 = vpop.permute.xlu0 %9955
    %9957 = vrot.lane.b32.xlu0 %v9616, 16
    %v9958 = vpop.permute.xlu0 %9957
    %9959 = vrot.lane.b32.xlu0 %v9617, 16
    %v9960 = vpop.permute.xlu0 %9959
    %9961 = vrot.lane.b32.xlu0 %v9618, 16
    %v9962 = vpop.permute.xlu0 %9961
    %9963 = vrot.lane.b32.xlu0 %v9619, 16
    %v9964 = vpop.permute.xlu0 %9963
    %9965 = vrot.lane.b32.xlu0 %v9620, 16
    %v9966 = vpop.permute.xlu0 %9965
    %9967 = vrot.lane.b32.xlu0 %v9621, 16
    %v9968 = vpop.permute.xlu0 %9967
    %9969 = vrot.lane.b32.xlu0 %v9622, 16
    %v9970 = vpop.permute.xlu0 %9969
    %9971 = vrot.lane.b32.xlu0 %v9623, 16
    %v9972 = vpop.permute.xlu0 %9971
    %9973 = vrot.lane.b32.xlu0 %v9624, 16
    %v9974 = vpop.permute.xlu0 %9973
    %9975 = vrot.lane.b32.xlu0 %v9625, 16
    %v9976 = vpop.permute.xlu0 %9975
    %9977 = vrot.lane.b32.xlu0 %v9626, 16
    %v9978 = vpop.permute.xlu0 %9977
    %9979 = vrot.lane.b32.xlu0 %v9627, 16
    %v9980 = vpop.permute.xlu0 %9979
    %9981 = vrot.lane.b32.xlu0 %v9628, 16
    %v9982 = vpop.permute.xlu0 %9981
    %9983 = vrot.lane.b32.xlu0 %v9629, 16
    %v9984 = vpop.permute.xlu0 %9983
    %9985 = vrot.lane.b32.xlu0 %v9630, 16
    %v9986 = vpop.permute.xlu0 %9985
    %9987 = vrot.lane.b32.xlu0 %v9631, 16
    %v9988 = vpop.permute.xlu0 %9987
    %9989 = vrot.lane.b32.xlu0 %v9632, 16
    %v9990 = vpop.permute.xlu0 %9989
    %9991 = vrot.lane.b32.xlu0 %v9633, 16
    %v9992 = vpop.permute.xlu0 %9991
    %9993 = vrot.lane.b32.xlu0 %v9634, 16
    %v9994 = vpop.permute.xlu0 %9993
    %9995 = vrot.lane.b32.xlu0 %v9635, 16
    %v9996 = vpop.permute.xlu0 %9995
    %9997 = vrot.lane.b32.xlu0 %v9636, 16
    %v9998 = vpop.permute.xlu0 %9997
    %9999 = vrot.lane.b32.xlu0 %v9637, 16
    %v10000 = vpop.permute.xlu0 %9999
    %10001 = vrot.lane.b32.xlu0 %v9638, 16
    %v10002 = vpop.permute.xlu0 %10001
    %10003 = vrot.lane.b32.xlu0 %v9639, 16
    %v10004 = vpop.permute.xlu0 %10003
    %10005 = vrot.lane.b32.xlu0 %v9640, 16
    %v10006 = vpop.permute.xlu0 %10005
    %10007 = vrot.lane.b32.xlu0 %v9641, 16
    %v10008 = vpop.permute.xlu0 %10007
    %10009 = vrot.lane.b32.xlu0 %v9642, 16
    %v10010 = vpop.permute.xlu0 %10009
    %10011 = vrot.lane.b32.xlu0 %v9643, 16
    %v10012 = vpop.permute.xlu0 %10011
    %10013 = vrot.lane.b32.xlu0 %v9644, 16
    %v10014 = vpop.permute.xlu0 %10013
    %10015 = vrot.lane.b32.xlu0 %v9645, 16
    %v10016 = vpop.permute.xlu0 %10015
    %10017 = vrot.lane.b32.xlu0 %v9646, 16
    %v10018 = vpop.permute.xlu0 %10017
    %10019 = vrot.lane.b32.xlu0 %v9647, 16
    %v10020 = vpop.permute.xlu0 %10019
    %10021 = vrot.lane.b32.xlu0 %v9648, 16
    %v10022 = vpop.permute.xlu0 %10021
    %10023 = vrot.lane.b32.xlu0 %v9649, 16
    %v10024 = vpop.permute.xlu0 %10023
    %10025 = vrot.lane.b32.xlu0 %v9650, 16
    %v10026 = vpop.permute.xlu0 %10025
    %v10027 = vsel %vm1948, %v9924, %v9926
    %v10028 = vsel %vm1948, %v9926, %v9928
    %v10029 = vsel %vm1948, %v9928, %v9930
    %v10030 = vsel %vm1948, %v9930, %v9932
    %v10031 = vsel %vm1948, %v9932, %v9934
    %v10032 = vsel %vm1948, %v9934, %v9936
    %v10033 = vsel %vm1948, %v9936, %v9938
    %v10034 = vsel %vm1948, %v9938, %v9940
    %v10035 = vsel %vm1948, %v9940, %v9942
    %v10036 = vsel %vm1948, %v9942, %v9944
    %v10037 = vsel %vm1948, %v9944, %v9946
    %v10038 = vsel %vm1948, %v9946, %v9948
    %v10039 = vsel %vm1948, %v9950, %v9952
    %v10040 = vsel %vm1948, %v9952, %v9954
    %v10041 = vsel %vm1948, %v9954, %v9956
    %v10042 = vsel %vm1948, %v9956, %v9958
    %v10043 = vsel %vm1948, %v9958, %v9960
    %v10044 = vsel %vm1948, %v9960, %v9962
    %v10045 = vsel %vm1948, %v9962, %v9964
    %v10046 = vsel %vm1948, %v9964, %v9966
    %v10047 = vsel %vm1948, %v9966, %v9968
    %v10048 = vsel %vm1948, %v9968, %v9970
    %v10049 = vsel %vm1948, %v9970, %v9972
    %v10050 = vsel %vm1948, %v9972, %v9974
    %v10051 = vsel %vm1948, %v9976, %v9978
    %v10052 = vsel %vm1948, %v9978, %v9980
    %v10053 = vsel %vm1948, %v9980, %v9982
    %v10054 = vsel %vm1948, %v9982, %v9984
    %v10055 = vsel %vm1948, %v9984, %v9986
    %v10056 = vsel %vm1948, %v9986, %v9988
    %v10057 = vsel %vm1948, %v9988, %v9990
    %v10058 = vsel %vm1948, %v9990, %v9992
    %v10059 = vsel %vm1948, %v9992, %v9994
    %v10060 = vsel %vm1948, %v9994, %v9996
    %v10061 = vsel %vm1948, %v9996, %v9998
    %v10062 = vsel %vm1948, %v9998, %v10000
    %v10063 = vsel %vm1948, %v10002, %v10004
    %v10064 = vsel %vm1948, %v10004, %v10006
    %v10065 = vsel %vm1948, %v10006, %v10008
    %v10066 = vsel %vm1948, %v10008, %v10010
    %v10067 = vsel %vm1948, %v10010, %v10012
    %v10068 = vsel %vm1948, %v10012, %v10014
    %v10069 = vsel %vm1948, %v10014, %v10016
    %v10070 = vsel %vm1948, %v10016, %v10018
    %v10071 = vsel %vm1948, %v10018, %v10020
    %v10072 = vsel %vm1948, %v10020, %v10022
    %v10073 = vsel %vm1948, %v10022, %v10024
    %v10074 = vsel %vm1948, %v10024, %v10026
    %10123 = vrot.lane.b32.xlu0 %v9599, 48
    %v10124 = vpop.permute.xlu0 %10123
    %10125 = vrot.lane.b32.xlu0 %v9612, 48
    %v10126 = vpop.permute.xlu0 %10125
    %10127 = vrot.lane.b32.xlu0 %v9625, 48
    %v10128 = vpop.permute.xlu0 %10127
    %10129 = vrot.lane.b32.xlu0 %v9638, 48
    %v10130 = vpop.permute.xlu0 %10129
    %v10135 = vsel %vm1976, %v10038, %v10124
    %v10136 = vsel %vm1976, %v10050, %v10126
    %v10137 = vsel %vm1976, %v10062, %v10128
    %v10138 = vsel %vm1976, %v10074, %v10130
    %10139 = vrot.lane.b32.xlu0 %v9599, 12
    %v10140 = vpop.permute.xlu0 %10139
    %10141 = vrot.lane.b32.xlu0 %v9600, 12
    %v10142 = vpop.permute.xlu0 %10141
    %10143 = vrot.lane.b32.xlu0 %v9601, 12
    %v10144 = vpop.permute.xlu0 %10143
    %10145 = vrot.lane.b32.xlu0 %v9602, 12
    %v10146 = vpop.permute.xlu0 %10145
    %10147 = vrot.lane.b32.xlu0 %v9603, 12
    %v10148 = vpop.permute.xlu0 %10147
    %10149 = vrot.lane.b32.xlu0 %v9604, 12
    %v10150 = vpop.permute.xlu0 %10149
    %10151 = vrot.lane.b32.xlu0 %v9605, 12
    %v10152 = vpop.permute.xlu0 %10151
    %10153 = vrot.lane.b32.xlu0 %v9606, 12
    %v10154 = vpop.permute.xlu0 %10153
    %10155 = vrot.lane.b32.xlu0 %v9607, 12
    %v10156 = vpop.permute.xlu0 %10155
    %10157 = vrot.lane.b32.xlu0 %v9608, 12
    %v10158 = vpop.permute.xlu0 %10157
    %10159 = vrot.lane.b32.xlu0 %v9609, 12
    %v10160 = vpop.permute.xlu0 %10159
    %10161 = vrot.lane.b32.xlu0 %v9610, 12
    %v10162 = vpop.permute.xlu0 %10161
    %10163 = vrot.lane.b32.xlu0 %v9611, 12
    %v10164 = vpop.permute.xlu0 %10163
    %10165 = vrot.lane.b32.xlu0 %v9612, 12
    %v10166 = vpop.permute.xlu0 %10165
    %10167 = vrot.lane.b32.xlu0 %v9613, 12
    %v10168 = vpop.permute.xlu0 %10167
    %10169 = vrot.lane.b32.xlu0 %v9614, 12
    %v10170 = vpop.permute.xlu0 %10169
    %10171 = vrot.lane.b32.xlu0 %v9615, 12
    %v10172 = vpop.permute.xlu0 %10171
    %10173 = vrot.lane.b32.xlu0 %v9616, 12
    %v10174 = vpop.permute.xlu0 %10173
    %10175 = vrot.lane.b32.xlu0 %v9617, 12
    %v10176 = vpop.permute.xlu0 %10175
    %10177 = vrot.lane.b32.xlu0 %v9618, 12
    %v10178 = vpop.permute.xlu0 %10177
    %10179 = vrot.lane.b32.xlu0 %v9619, 12
    %v10180 = vpop.permute.xlu0 %10179
    %10181 = vrot.lane.b32.xlu0 %v9620, 12
    %v10182 = vpop.permute.xlu0 %10181
    %10183 = vrot.lane.b32.xlu0 %v9621, 12
    %v10184 = vpop.permute.xlu0 %10183
    %10185 = vrot.lane.b32.xlu0 %v9622, 12
    %v10186 = vpop.permute.xlu0 %10185
    %10187 = vrot.lane.b32.xlu0 %v9623, 12
    %v10188 = vpop.permute.xlu0 %10187
    %10189 = vrot.lane.b32.xlu0 %v9624, 12
    %v10190 = vpop.permute.xlu0 %10189
    %10191 = vrot.lane.b32.xlu0 %v9625, 12
    %v10192 = vpop.permute.xlu0 %10191
    %10193 = vrot.lane.b32.xlu0 %v9626, 12
    %v10194 = vpop.permute.xlu0 %10193
    %10195 = vrot.lane.b32.xlu0 %v9627, 12
    %v10196 = vpop.permute.xlu0 %10195
    %10197 = vrot.lane.b32.xlu0 %v9628, 12
    %v10198 = vpop.permute.xlu0 %10197
    %10199 = vrot.lane.b32.xlu0 %v9629, 12
    %v10200 = vpop.permute.xlu0 %10199
    %10201 = vrot.lane.b32.xlu0 %v9630, 12
    %v10202 = vpop.permute.xlu0 %10201
    %10203 = vrot.lane.b32.xlu0 %v9631, 12
    %v10204 = vpop.permute.xlu0 %10203
    %10205 = vrot.lane.b32.xlu0 %v9632, 12
    %v10206 = vpop.permute.xlu0 %10205
    %10207 = vrot.lane.b32.xlu0 %v9633, 12
    %v10208 = vpop.permute.xlu0 %10207
    %10209 = vrot.lane.b32.xlu0 %v9634, 12
    %v10210 = vpop.permute.xlu0 %10209
    %10211 = vrot.lane.b32.xlu0 %v9635, 12
    %v10212 = vpop.permute.xlu0 %10211
    %10213 = vrot.lane.b32.xlu0 %v9636, 12
    %v10214 = vpop.permute.xlu0 %10213
    %10215 = vrot.lane.b32.xlu0 %v9637, 12
    %v10216 = vpop.permute.xlu0 %10215
    %10217 = vrot.lane.b32.xlu0 %v9638, 12
    %v10218 = vpop.permute.xlu0 %10217
    %10219 = vrot.lane.b32.xlu0 %v9639, 12
    %v10220 = vpop.permute.xlu0 %10219
    %10221 = vrot.lane.b32.xlu0 %v9640, 12
    %v10222 = vpop.permute.xlu0 %10221
    %10223 = vrot.lane.b32.xlu0 %v9641, 12
    %v10224 = vpop.permute.xlu0 %10223
    %10225 = vrot.lane.b32.xlu0 %v9642, 12
    %v10226 = vpop.permute.xlu0 %10225
    %10227 = vrot.lane.b32.xlu0 %v9643, 12
    %v10228 = vpop.permute.xlu0 %10227
    %10229 = vrot.lane.b32.xlu0 %v9644, 12
    %v10230 = vpop.permute.xlu0 %10229
    %10231 = vrot.lane.b32.xlu0 %v9645, 12
    %v10232 = vpop.permute.xlu0 %10231
    %10233 = vrot.lane.b32.xlu0 %v9646, 12
    %v10234 = vpop.permute.xlu0 %10233
    %10235 = vrot.lane.b32.xlu0 %v9647, 12
    %v10236 = vpop.permute.xlu0 %10235
    %10237 = vrot.lane.b32.xlu0 %v9648, 12
    %v10238 = vpop.permute.xlu0 %10237
    %10239 = vrot.lane.b32.xlu0 %v9649, 12
    %v10240 = vpop.permute.xlu0 %10239
    %10241 = vrot.lane.b32.xlu0 %v9650, 12
    %v10242 = vpop.permute.xlu0 %10241
    %v10243 = vsel %vm2224, %v10140, %v10142
    %v10244 = vsel %vm2224, %v10142, %v10144
    %v10245 = vsel %vm2224, %v10144, %v10146
    %v10246 = vsel %vm2224, %v10146, %v10148
    %v10247 = vsel %vm2224, %v10148, %v10150
    %v10248 = vsel %vm2224, %v10150, %v10152
    %v10249 = vsel %vm2224, %v10152, %v10154
    %v10250 = vsel %vm2224, %v10154, %v10156
    %v10251 = vsel %vm2224, %v10156, %v10158
    %v10252 = vsel %vm2224, %v10158, %v10160
    %v10253 = vsel %vm2224, %v10160, %v10162
    %v10254 = vsel %vm2224, %v10162, %v10164
    %v10255 = vsel %vm2224, %v10166, %v10168
    %v10256 = vsel %vm2224, %v10168, %v10170
    %v10257 = vsel %vm2224, %v10170, %v10172
    %v10258 = vsel %vm2224, %v10172, %v10174
    %v10259 = vsel %vm2224, %v10174, %v10176
    %v10260 = vsel %vm2224, %v10176, %v10178
    %v10261 = vsel %vm2224, %v10178, %v10180
    %v10262 = vsel %vm2224, %v10180, %v10182
    %v10263 = vsel %vm2224, %v10182, %v10184
    %v10264 = vsel %vm2224, %v10184, %v10186
    %v10265 = vsel %vm2224, %v10186, %v10188
    %v10266 = vsel %vm2224, %v10188, %v10190
    %v10267 = vsel %vm2224, %v10192, %v10194
    %v10268 = vsel %vm2224, %v10194, %v10196
    %v10269 = vsel %vm2224, %v10196, %v10198
    %v10270 = vsel %vm2224, %v10198, %v10200
    %v10271 = vsel %vm2224, %v10200, %v10202
    %v10272 = vsel %vm2224, %v10202, %v10204
    %v10273 = vsel %vm2224, %v10204, %v10206
    %v10274 = vsel %vm2224, %v10206, %v10208
    %v10275 = vsel %vm2224, %v10208, %v10210
    %v10276 = vsel %vm2224, %v10210, %v10212
    %v10277 = vsel %vm2224, %v10212, %v10214
    %v10278 = vsel %vm2224, %v10214, %v10216
    %v10279 = vsel %vm2224, %v10218, %v10220
    %v10280 = vsel %vm2224, %v10220, %v10222
    %v10281 = vsel %vm2224, %v10222, %v10224
    %v10282 = vsel %vm2224, %v10224, %v10226
    %v10283 = vsel %vm2224, %v10226, %v10228
    %v10284 = vsel %vm2224, %v10228, %v10230
    %v10285 = vsel %vm2224, %v10230, %v10232
    %v10286 = vsel %vm2224, %v10232, %v10234
    %v10287 = vsel %vm2224, %v10234, %v10236
    %v10288 = vsel %vm2224, %v10236, %v10238
    %v10289 = vsel %vm2224, %v10238, %v10240
    %v10290 = vsel %vm2224, %v10240, %v10242
    %10339 = vrot.lane.b32.xlu0 %v9599, 44
    %v10340 = vpop.permute.xlu0 %10339
    %10341 = vrot.lane.b32.xlu0 %v9612, 44
    %v10342 = vpop.permute.xlu0 %10341
    %10343 = vrot.lane.b32.xlu0 %v9625, 44
    %v10344 = vpop.permute.xlu0 %10343
    %10345 = vrot.lane.b32.xlu0 %v9638, 44
    %v10346 = vpop.permute.xlu0 %10345
    %v10351 = vsel %vm2252, %v10254, %v10340
    %v10352 = vsel %vm2252, %v10266, %v10342
    %v10353 = vsel %vm2252, %v10278, %v10344
    %v10354 = vsel %vm2252, %v10290, %v10346
    %v10355 = vlaneseq
    %v10356 = vshrl.u32 %v10355, 7
    %v10357 = vadd.s32 %v10356, 8
    %v10358 = vadd.s32 %v10356, 16
    %v10359 = vadd.s32 %v10356, 24
    %v10360 = vadd.s32 %v10356, 32
    %v10361 = vadd.s32 %v10356, 40
    %v10362 = vadd.s32 %v10356, 48
    %v10363 = vadd.s32 %v10356, 56
    %v10364 = vadd.s32 %v10356, 64
    %v10365 = vadd.s32 %v10356, 72
    %v10366 = vadd.s32 %v10356, 80
    %v10367 = vadd.s32 %v10356, 88
    %v10368 = vadd.s32 %v10356, 96
    %v10369 = vadd.s32 %v10356, 104
    %v10370 = vadd.s32 %v10356, 112
    %v10371 = vadd.s32 %v10356, 120
    %v10372 = vadd.s32 %v10356, 128
    %v10373 = vadd.s32 %v10356, 136
    %v10374 = vadd.s32 %v10356, 144
    %v10375 = vadd.s32 %v10356, 152
    %v10376 = vadd.s32 %v10356, 160
    %v10377 = vadd.s32 %v10356, 168
    %v10378 = vadd.s32 %v10356, 176
    %v10379 = vadd.s32 %v10356, 184
    %v10380 = vadd.s32 %v10356, 192
    %v10381 = vadd.s32 %v10356, 200
    %v10382 = vadd.s32 %v10356, 208
    %v10383 = vadd.s32 %v10356, 216
    %v10384 = vadd.s32 %v10356, 224
    %v10385 = vadd.s32 %v10356, 232
    %v10386 = vadd.s32 %v10356, 240
    %v10387 = vadd.s32 %v10356, 248
    %v10388 = vadd.s32 %v10356, 256
    %v10389 = vadd.s32 %v10356, 264
    %v10390 = vadd.s32 %v10356, 272
    %v10391 = vadd.s32 %v10356, 280
    %v10392 = vadd.s32 %v10356, 288
    %v10393 = vadd.s32 %v10356, 296
    %v10394 = vadd.s32 %v10356, 304
    %v10395 = vadd.s32 %v10356, 312
    %v10396 = vadd.s32 %v10356, 320
    %v10397 = vadd.s32 %v10356, 328
    %v10398 = vadd.s32 %v10356, 336
    %v10399 = vadd.s32 %v10356, 344
    %v10400 = vadd.s32 %v10356, 352
    %v10401 = vadd.s32 %v10356, 360
    %v10402 = vadd.s32 %v10356, 368
    %v10403 = vadd.s32 %v10356, 376
    %v10404 = vadd.s32 %v10356, 384
    %v10405 = vadd.s32 %v10356, 392
    %v10406 = vadd.s32 %v10356, 400
    %v10407 = vadd.s32 %v10356, 408
    %v10408 = vadd.s32 %v10356, 416
    %v10409 = vadd.s32 %v10356, 424
    %v10410 = vadd.s32 %v10356, 432
    %v10411 = vadd.s32 %v10356, 440
    %v10412 = vadd.s32 %v10356, 448
    %v10413 = vadd.s32 %v10356, 456
    %v10414 = vadd.s32 %v10356, 464
    %v10415 = vadd.s32 %v10356, 472
    %v10416 = vadd.s32 %v10356, 480
    %v10417 = vadd.s32 %v10356, 488
    %v10418 = vadd.s32 %v10356, 496
    %v10419 = vadd.s32 %v10356, 504
    %v10420 = vadd.s32 %v10356, 512
    %v10421 = vadd.s32 %v10356, 520
    %v10422 = vadd.s32 %v10356, 528
    %v10423 = vadd.s32 %v10356, 536
    %v10424 = vadd.s32 %v10356, 544
    %v10425 = vadd.s32 %v10356, 552
    %v10426 = vadd.s32 %v10356, 560
    %v10427 = vadd.s32 %v10356, 568
    %v10428 = vadd.s32 %v10356, 576
    %v10429 = vadd.s32 %v10356, 584
    %v10430 = vadd.s32 %v10356, 592
    %v10431 = vadd.s32 %v10356, 600
    %v10432 = vadd.s32 %v10356, 608
    %v10433 = vadd.s32 %v10356, 616
    %v10434 = vadd.s32 %v10356, 624
    %v10435 = vadd.s32 %v10356, 632
    %v10436 = vadd.s32 %v10356, 640
    %v10437 = vadd.s32 %v10356, 648
    %v10438 = vadd.s32 %v10356, 656
    %v10439 = vadd.s32 %v10356, 664
    %v10440 = vadd.s32 %v10356, 672
    %v10441 = vadd.s32 %v10356, 680
    %v10442 = vadd.s32 %v10356, 688
    %v10443 = vadd.s32 %v10356, 696
    %v10444 = vadd.s32 %v10356, 704
    %v10445 = vadd.s32 %v10356, 712
    %v10446 = vadd.s32 %v10356, 720
    %v10447 = vadd.s32 %v10356, 728
    %v10448 = vadd.s32 %v10356, 736
    %v10449 = vadd.s32 %v10356, 744
    %v10450 = vadd.s32 %v10356, 752
    %v10451 = vadd.s32 %v10356, 760
    %v10452 = vadd.s32 %v10356, 768
    %v10453 = vadd.s32 %v10356, 776
    %v10454 = vadd.s32 %v10356, 784
    %v10455 = vadd.s32 %v10356, 792
    %v10456 = vadd.s32 %v10356, 800
    %v10457 = vadd.s32 %v10356, 808
    %v10458 = vadd.s32 %v10356, 816
    %v10459 = vadd.s32 %v10356, 824
    %v10460 = vadd.s32 %v10356, 832
    %v10461 = vadd.s32 %v10356, 840
    %v10462 = vadd.s32 %v10356, 848
    %v10463 = vadd.s32 %v10356, 856
    %v10464 = vadd.s32 %v10356, 864
    %v10465 = vadd.s32 %v10356, 872
    %v10466 = vadd.s32 %v10356, 880
    %v10467 = vadd.s32 %v10356, 888
    %v10468 = vadd.s32 %v10356, 896
    %v10469 = vadd.s32 %v10356, 904
    %v10470 = vadd.s32 %v10356, 912
    %v10471 = vadd.s32 %v10356, 920
    %v10472 = vadd.s32 %v10356, 928
    %v10473 = vadd.s32 %v10356, 936
    %v10474 = vadd.s32 %v10356, 944
    %v10475 = vadd.s32 %v10356, 952
    %v10476 = vadd.s32 %v10356, 960
    %v10477 = vadd.s32 %v10356, 968
    %v10478 = vadd.s32 %v10356, 976
    %v10479 = vadd.s32 %v10356, 984
    %v10480 = vadd.s32 %v10356, 992
    %v10481 = vadd.s32 %v10356, 1000
    %v10482 = vadd.s32 %v10356, 1008
    %v10483 = vadd.s32 %v10356, 1016
    %v10484 = vadd.s32 %v10356, 1024
    %v10485 = vadd.s32 %v10356, 1032
    %v10486 = vadd.s32 %v10356, 1040
    %v10487 = vadd.s32 %v10356, 1048
    %v10488 = vadd.s32 %v10356, 1056
    %v10489 = vadd.s32 %v10356, 1064
    %v10490 = vadd.s32 %v10356, 1072
    %v10491 = vadd.s32 %v10356, 1080
    %v10492 = vadd.s32 %v10356, 1088
    %v10493 = vadd.s32 %v10356, 1096
    %v10494 = vadd.s32 %v10356, 1104
    %v10495 = vadd.s32 %v10356, 1112
    %v10496 = vadd.s32 %v10356, 1120
    %v10497 = vadd.s32 %v10356, 1128
    %v10498 = vadd.s32 %v10356, 1136
    %v10499 = vadd.s32 %v10356, 1144
    %v10500 = vadd.s32 %v10356, 1152
    %v10501 = vadd.s32 %v10356, 1160
    %v10502 = vadd.s32 %v10356, 1168
    %v10503 = vadd.s32 %v10356, 1176
    %v10504 = vadd.s32 %v10356, 1184
    %v10505 = vadd.s32 %v10356, 1192
    %v10506 = vadd.s32 %v10356, 1200
    %v10507 = vadd.s32 %v10356, 1208
    %v10508 = vadd.s32 %v10356, 1216
    %v10509 = vadd.s32 %v10356, 1224
    %v10510 = vadd.s32 %v10356, 1232
    %v10511 = vadd.s32 %v10356, 1240
    %v10512 = vadd.s32 %v10356, 1248
    %v10513 = vadd.s32 %v10356, 1256
    %v10514 = vadd.s32 %v10356, 1264
    %v10515 = vadd.s32 %v10356, 1272
    %v10516 = vadd.s32 %v10356, 1280
    %v10517 = vadd.s32 %v10356, 1288
    %v10518 = vadd.s32 %v10356, 1296
    %v10519 = vadd.s32 %v10356, 1304
    %v10520 = vadd.s32 %v10356, 1312
    %v10521 = vadd.s32 %v10356, 1320
    %v10522 = vadd.s32 %v10356, 1328
    %v10523 = vadd.s32 %v10356, 1336
    %v10524 = vadd.s32 %v10356, 1344
    %v10525 = vadd.s32 %v10356, 1352
    %v10526 = vadd.s32 %v10356, 1360
    %v10527 = vadd.s32 %v10356, 1368
    %v10528 = vadd.s32 %v10356, 1376
    %v10529 = vadd.s32 %v10356, 1384
    %v10530 = vadd.s32 %v10356, 1392
    %v10531 = vadd.s32 %v10356, 1400
    %v10532 = vadd.s32 %v10356, 1408
    %v10533 = vadd.s32 %v10356, 1416
    %v10534 = vadd.s32 %v10356, 1424
    %v10535 = vadd.s32 %v10356, 1432
    %v10536 = vadd.s32 %v10356, 1440
    %v10537 = vadd.s32 %v10356, 1448
    %v10538 = vadd.s32 %v10356, 1456
    %v10539 = vadd.s32 %v10356, 1464
    %v10540 = vadd.s32 %v10356, 1472
    %v10541 = vadd.s32 %v10356, 1480
    %v10542 = vadd.s32 %v10356, 1488
    %v10543 = vadd.s32 %v10356, 1496
    %v10544 = vadd.s32 %v10356, 1504
    %v10545 = vadd.s32 %v10356, 1512
    %v10546 = vadd.s32 %v10356, 1520
    %v10547 = vadd.s32 %v10356, 1528
    %v10548 = vadd.s32 %v10356, 1536
    %v10549 = vadd.s32 %v10356, 1544
    %v10550 = vadd.s32 %v10356, 1552
    %v10551 = vadd.s32 %v10356, 1560
    %v10552 = vlaneseq
    %v10553 = vand.u32 %v10552, 127
    %v10554 = vmul.u32 %v10553, 784
    %vm10555 = vcmp.eq.s32.totalorder %v10356, %v10554
    %vm10556 = vcmp.eq.s32.totalorder %v10357, %v10554
    %vm10557 = vcmp.eq.s32.totalorder %v10358, %v10554
    %vm10558 = vcmp.eq.s32.totalorder %v10359, %v10554
    %vm10559 = vcmp.eq.s32.totalorder %v10360, %v10554
    %vm10560 = vcmp.eq.s32.totalorder %v10361, %v10554
    %vm10561 = vcmp.eq.s32.totalorder %v10362, %v10554
    %vm10562 = vcmp.eq.s32.totalorder %v10363, %v10554
    %vm10563 = vcmp.eq.s32.totalorder %v10364, %v10554
    %vm10564 = vcmp.eq.s32.totalorder %v10365, %v10554
    %vm10565 = vcmp.eq.s32.totalorder %v10366, %v10554
    %vm10566 = vcmp.eq.s32.totalorder %v10367, %v10554
    %vm10567 = vcmp.eq.s32.totalorder %v10368, %v10554
    %vm10568 = vcmp.eq.s32.totalorder %v10369, %v10554
    %vm10569 = vcmp.eq.s32.totalorder %v10370, %v10554
    %vm10570 = vcmp.eq.s32.totalorder %v10371, %v10554
    %vm10571 = vcmp.eq.s32.totalorder %v10372, %v10554
    %vm10572 = vcmp.eq.s32.totalorder %v10373, %v10554
    %vm10573 = vcmp.eq.s32.totalorder %v10374, %v10554
    %vm10574 = vcmp.eq.s32.totalorder %v10375, %v10554
    %vm10575 = vcmp.eq.s32.totalorder %v10376, %v10554
    %vm10576 = vcmp.eq.s32.totalorder %v10377, %v10554
    %vm10577 = vcmp.eq.s32.totalorder %v10378, %v10554
    %vm10578 = vcmp.eq.s32.totalorder %v10379, %v10554
    %vm10579 = vcmp.eq.s32.totalorder %v10380, %v10554
    %vm10580 = vcmp.eq.s32.totalorder %v10381, %v10554
    %vm10581 = vcmp.eq.s32.totalorder %v10382, %v10554
    %vm10582 = vcmp.eq.s32.totalorder %v10383, %v10554
    %vm10583 = vcmp.eq.s32.totalorder %v10384, %v10554
    %vm10584 = vcmp.eq.s32.totalorder %v10385, %v10554
    %vm10585 = vcmp.eq.s32.totalorder %v10386, %v10554
    %vm10586 = vcmp.eq.s32.totalorder %v10387, %v10554
    %vm10587 = vcmp.eq.s32.totalorder %v10388, %v10554
    %vm10588 = vcmp.eq.s32.totalorder %v10389, %v10554
    %vm10589 = vcmp.eq.s32.totalorder %v10390, %v10554
    %vm10590 = vcmp.eq.s32.totalorder %v10391, %v10554
    %vm10591 = vcmp.eq.s32.totalorder %v10392, %v10554
    %vm10592 = vcmp.eq.s32.totalorder %v10393, %v10554
    %vm10593 = vcmp.eq.s32.totalorder %v10394, %v10554
    %vm10594 = vcmp.eq.s32.totalorder %v10395, %v10554
    %vm10595 = vcmp.eq.s32.totalorder %v10396, %v10554
    %vm10596 = vcmp.eq.s32.totalorder %v10397, %v10554
    %vm10597 = vcmp.eq.s32.totalorder %v10398, %v10554
    %vm10598 = vcmp.eq.s32.totalorder %v10399, %v10554
    %vm10599 = vcmp.eq.s32.totalorder %v10400, %v10554
    %vm10600 = vcmp.eq.s32.totalorder %v10401, %v10554
    %vm10601 = vcmp.eq.s32.totalorder %v10402, %v10554
    %vm10602 = vcmp.eq.s32.totalorder %v10403, %v10554
    %vm10603 = vcmp.eq.s32.totalorder %v10404, %v10554
    %vm10604 = vcmp.eq.s32.totalorder %v10405, %v10554
    %vm10605 = vcmp.eq.s32.totalorder %v10406, %v10554
    %vm10606 = vcmp.eq.s32.totalorder %v10407, %v10554
    %vm10607 = vcmp.eq.s32.totalorder %v10408, %v10554
    %vm10608 = vcmp.eq.s32.totalorder %v10409, %v10554
    %vm10609 = vcmp.eq.s32.totalorder %v10410, %v10554
    %vm10610 = vcmp.eq.s32.totalorder %v10411, %v10554
    %vm10611 = vcmp.eq.s32.totalorder %v10412, %v10554
    %vm10612 = vcmp.eq.s32.totalorder %v10413, %v10554
    %vm10613 = vcmp.eq.s32.totalorder %v10414, %v10554
    %vm10614 = vcmp.eq.s32.totalorder %v10415, %v10554
    %vm10615 = vcmp.eq.s32.totalorder %v10416, %v10554
    %vm10616 = vcmp.eq.s32.totalorder %v10417, %v10554
    %vm10617 = vcmp.eq.s32.totalorder %v10418, %v10554
    %vm10618 = vcmp.eq.s32.totalorder %v10419, %v10554
    %vm10619 = vcmp.eq.s32.totalorder %v10420, %v10554
    %vm10620 = vcmp.eq.s32.totalorder %v10421, %v10554
    %vm10621 = vcmp.eq.s32.totalorder %v10422, %v10554
    %vm10622 = vcmp.eq.s32.totalorder %v10423, %v10554
    %vm10623 = vcmp.eq.s32.totalorder %v10424, %v10554
    %vm10624 = vcmp.eq.s32.totalorder %v10425, %v10554
    %vm10625 = vcmp.eq.s32.totalorder %v10426, %v10554
    %vm10626 = vcmp.eq.s32.totalorder %v10427, %v10554
    %vm10627 = vcmp.eq.s32.totalorder %v10428, %v10554
    %vm10628 = vcmp.eq.s32.totalorder %v10429, %v10554
    %vm10629 = vcmp.eq.s32.totalorder %v10430, %v10554
    %vm10630 = vcmp.eq.s32.totalorder %v10431, %v10554
    %vm10631 = vcmp.eq.s32.totalorder %v10432, %v10554
    %vm10632 = vcmp.eq.s32.totalorder %v10433, %v10554
    %vm10633 = vcmp.eq.s32.totalorder %v10434, %v10554
    %vm10634 = vcmp.eq.s32.totalorder %v10435, %v10554
    %vm10635 = vcmp.eq.s32.totalorder %v10436, %v10554
    %vm10636 = vcmp.eq.s32.totalorder %v10437, %v10554
    %vm10637 = vcmp.eq.s32.totalorder %v10438, %v10554
    %vm10638 = vcmp.eq.s32.totalorder %v10439, %v10554
    %vm10639 = vcmp.eq.s32.totalorder %v10440, %v10554
    %vm10640 = vcmp.eq.s32.totalorder %v10441, %v10554
    %vm10641 = vcmp.eq.s32.totalorder %v10442, %v10554
    %vm10642 = vcmp.eq.s32.totalorder %v10443, %v10554
    %vm10643 = vcmp.eq.s32.totalorder %v10444, %v10554
    %vm10644 = vcmp.eq.s32.totalorder %v10445, %v10554
    %vm10645 = vcmp.eq.s32.totalorder %v10446, %v10554
    %vm10646 = vcmp.eq.s32.totalorder %v10447, %v10554
    %vm10647 = vcmp.eq.s32.totalorder %v10448, %v10554
    %vm10648 = vcmp.eq.s32.totalorder %v10449, %v10554
    %vm10649 = vcmp.eq.s32.totalorder %v10450, %v10554
    %vm10650 = vcmp.eq.s32.totalorder %v10451, %v10554
    %vm10651 = vcmp.eq.s32.totalorder %v10452, %v10554
    %vm10652 = vcmp.eq.s32.totalorder %v10453, %v10554
    %vm10653 = vcmp.eq.s32.totalorder %v10454, %v10554
    %vm10654 = vcmp.eq.s32.totalorder %v10455, %v10554
    %vm10655 = vcmp.eq.s32.totalorder %v10456, %v10554
    %vm10656 = vcmp.eq.s32.totalorder %v10457, %v10554
    %vm10657 = vcmp.eq.s32.totalorder %v10458, %v10554
    %vm10658 = vcmp.eq.s32.totalorder %v10459, %v10554
    %vm10659 = vcmp.eq.s32.totalorder %v10460, %v10554
    %vm10660 = vcmp.eq.s32.totalorder %v10461, %v10554
    %vm10661 = vcmp.eq.s32.totalorder %v10462, %v10554
    %vm10662 = vcmp.eq.s32.totalorder %v10463, %v10554
    %vm10663 = vcmp.eq.s32.totalorder %v10464, %v10554
    %vm10664 = vcmp.eq.s32.totalorder %v10465, %v10554
    %vm10665 = vcmp.eq.s32.totalorder %v10466, %v10554
    %vm10666 = vcmp.eq.s32.totalorder %v10467, %v10554
    %vm10667 = vcmp.eq.s32.totalorder %v10468, %v10554
    %vm10668 = vcmp.eq.s32.totalorder %v10469, %v10554
    %vm10669 = vcmp.eq.s32.totalorder %v10470, %v10554
    %vm10670 = vcmp.eq.s32.totalorder %v10471, %v10554
    %vm10671 = vcmp.eq.s32.totalorder %v10472, %v10554
    %vm10672 = vcmp.eq.s32.totalorder %v10473, %v10554
    %vm10673 = vcmp.eq.s32.totalorder %v10474, %v10554
    %vm10674 = vcmp.eq.s32.totalorder %v10475, %v10554
    %vm10675 = vcmp.eq.s32.totalorder %v10476, %v10554
    %vm10676 = vcmp.eq.s32.totalorder %v10477, %v10554
    %vm10677 = vcmp.eq.s32.totalorder %v10478, %v10554
    %vm10678 = vcmp.eq.s32.totalorder %v10479, %v10554
    %vm10679 = vcmp.eq.s32.totalorder %v10480, %v10554
    %vm10680 = vcmp.eq.s32.totalorder %v10481, %v10554
    %vm10681 = vcmp.eq.s32.totalorder %v10482, %v10554
    %vm10682 = vcmp.eq.s32.totalorder %v10483, %v10554
    %vm10683 = vcmp.eq.s32.totalorder %v10484, %v10554
    %vm10684 = vcmp.eq.s32.totalorder %v10485, %v10554
    %vm10685 = vcmp.eq.s32.totalorder %v10486, %v10554
    %vm10686 = vcmp.eq.s32.totalorder %v10487, %v10554
    %vm10687 = vcmp.eq.s32.totalorder %v10488, %v10554
    %vm10688 = vcmp.eq.s32.totalorder %v10489, %v10554
    %vm10689 = vcmp.eq.s32.totalorder %v10490, %v10554
    %vm10690 = vcmp.eq.s32.totalorder %v10491, %v10554
    %vm10691 = vcmp.eq.s32.totalorder %v10492, %v10554
    %vm10692 = vcmp.eq.s32.totalorder %v10493, %v10554
    %vm10693 = vcmp.eq.s32.totalorder %v10494, %v10554
    %vm10694 = vcmp.eq.s32.totalorder %v10495, %v10554
    %vm10695 = vcmp.eq.s32.totalorder %v10496, %v10554
    %vm10696 = vcmp.eq.s32.totalorder %v10497, %v10554
    %vm10697 = vcmp.eq.s32.totalorder %v10498, %v10554
    %vm10698 = vcmp.eq.s32.totalorder %v10499, %v10554
    %vm10699 = vcmp.eq.s32.totalorder %v10500, %v10554
    %vm10700 = vcmp.eq.s32.totalorder %v10501, %v10554
    %vm10701 = vcmp.eq.s32.totalorder %v10502, %v10554
    %vm10702 = vcmp.eq.s32.totalorder %v10503, %v10554
    %vm10703 = vcmp.eq.s32.totalorder %v10504, %v10554
    %vm10704 = vcmp.eq.s32.totalorder %v10505, %v10554
    %vm10705 = vcmp.eq.s32.totalorder %v10506, %v10554
    %vm10706 = vcmp.eq.s32.totalorder %v10507, %v10554
    %vm10707 = vcmp.eq.s32.totalorder %v10508, %v10554
    %vm10708 = vcmp.eq.s32.totalorder %v10509, %v10554
    %vm10709 = vcmp.eq.s32.totalorder %v10510, %v10554
    %vm10710 = vcmp.eq.s32.totalorder %v10511, %v10554
    %vm10711 = vcmp.eq.s32.totalorder %v10512, %v10554
    %vm10712 = vcmp.eq.s32.totalorder %v10513, %v10554
    %vm10713 = vcmp.eq.s32.totalorder %v10514, %v10554
    %vm10714 = vcmp.eq.s32.totalorder %v10515, %v10554
    %vm10715 = vcmp.eq.s32.totalorder %v10516, %v10554
    %vm10716 = vcmp.eq.s32.totalorder %v10517, %v10554
    %vm10717 = vcmp.eq.s32.totalorder %v10518, %v10554
    %vm10718 = vcmp.eq.s32.totalorder %v10519, %v10554
    %vm10719 = vcmp.eq.s32.totalorder %v10520, %v10554
    %vm10720 = vcmp.eq.s32.totalorder %v10521, %v10554
    %vm10721 = vcmp.eq.s32.totalorder %v10522, %v10554
    %vm10722 = vcmp.eq.s32.totalorder %v10523, %v10554
    %vm10723 = vcmp.eq.s32.totalorder %v10524, %v10554
    %vm10724 = vcmp.eq.s32.totalorder %v10525, %v10554
    %vm10725 = vcmp.eq.s32.totalorder %v10526, %v10554
    %vm10726 = vcmp.eq.s32.totalorder %v10527, %v10554
    %vm10727 = vcmp.eq.s32.totalorder %v10528, %v10554
    %vm10728 = vcmp.eq.s32.totalorder %v10529, %v10554
    %vm10729 = vcmp.eq.s32.totalorder %v10530, %v10554
    %vm10730 = vcmp.eq.s32.totalorder %v10531, %v10554
    %vm10731 = vcmp.eq.s32.totalorder %v10532, %v10554
    %vm10732 = vcmp.eq.s32.totalorder %v10533, %v10554
    %vm10733 = vcmp.eq.s32.totalorder %v10534, %v10554
    %vm10734 = vcmp.eq.s32.totalorder %v10535, %v10554
    %vm10735 = vcmp.eq.s32.totalorder %v10536, %v10554
    %vm10736 = vcmp.eq.s32.totalorder %v10537, %v10554
    %vm10737 = vcmp.eq.s32.totalorder %v10538, %v10554
    %vm10738 = vcmp.eq.s32.totalorder %v10539, %v10554
    %vm10739 = vcmp.eq.s32.totalorder %v10540, %v10554
    %vm10740 = vcmp.eq.s32.totalorder %v10541, %v10554
    %vm10741 = vcmp.eq.s32.totalorder %v10542, %v10554
    %vm10742 = vcmp.eq.s32.totalorder %v10543, %v10554
    %vm10743 = vcmp.eq.s32.totalorder %v10544, %v10554
    %vm10744 = vcmp.eq.s32.totalorder %v10545, %v10554
    %vm10745 = vcmp.eq.s32.totalorder %v10546, %v10554
    %vm10746 = vcmp.eq.s32.totalorder %v10547, %v10554
    %vm10747 = vcmp.eq.s32.totalorder %v10548, %v10554
    %vm10748 = vcmp.eq.s32.totalorder %v10549, %v10554
    %vm10749 = vcmp.eq.s32.totalorder %v10550, %v10554
    %vm10750 = vcmp.eq.s32.totalorder %v10551, %v10554
    %v10751 = vsel %vm10555, 1, 0
    %v10752 = vsel %vm10556, 1, 0
    %v10753 = vsel %vm10557, 1, 0
    %v10754 = vsel %vm10558, 1, 0
    %v10755 = vsel %vm10559, 1, 0
    %v10756 = vsel %vm10560, 1, 0
    %v10757 = vsel %vm10561, 1, 0
    %v10758 = vsel %vm10562, 1, 0
    %v10759 = vsel %vm10563, 1, 0
    %v10760 = vsel %vm10564, 1, 0
    %v10761 = vsel %vm10565, 1, 0
    %v10762 = vsel %vm10566, 1, 0
    %v10763 = vsel %vm10567, 1, 0
    %v10764 = vsel %vm10568, 1, 0
    %v10765 = vsel %vm10569, 1, 0
    %v10766 = vsel %vm10570, 1, 0
    %v10767 = vsel %vm10571, 1, 0
    %v10768 = vsel %vm10572, 1, 0
    %v10769 = vsel %vm10573, 1, 0
    %v10770 = vsel %vm10574, 1, 0
    %v10771 = vsel %vm10575, 1, 0
    %v10772 = vsel %vm10576, 1, 0
    %v10773 = vsel %vm10577, 1, 0
    %v10774 = vsel %vm10578, 1, 0
    %v10775 = vsel %vm10579, 1, 0
    %v10776 = vsel %vm10580, 1, 0
    %v10777 = vsel %vm10581, 1, 0
    %v10778 = vsel %vm10582, 1, 0
    %v10779 = vsel %vm10583, 1, 0
    %v10780 = vsel %vm10584, 1, 0
    %v10781 = vsel %vm10585, 1, 0
    %v10782 = vsel %vm10586, 1, 0
    %v10783 = vsel %vm10587, 1, 0
    %v10784 = vsel %vm10588, 1, 0
    %v10785 = vsel %vm10589, 1, 0
    %v10786 = vsel %vm10590, 1, 0
    %v10787 = vsel %vm10591, 1, 0
    %v10788 = vsel %vm10592, 1, 0
    %v10789 = vsel %vm10593, 1, 0
    %v10790 = vsel %vm10594, 1, 0
    %v10791 = vsel %vm10595, 1, 0
    %v10792 = vsel %vm10596, 1, 0
    %v10793 = vsel %vm10597, 1, 0
    %v10794 = vsel %vm10598, 1, 0
    %v10795 = vsel %vm10599, 1, 0
    %v10796 = vsel %vm10600, 1, 0
    %v10797 = vsel %vm10601, 1, 0
    %v10798 = vsel %vm10602, 1, 0
    %v10799 = vsel %vm10603, 1, 0
    %v10800 = vsel %vm10604, 1, 0
    %v10801 = vsel %vm10605, 1, 0
    %v10802 = vsel %vm10606, 1, 0
    %v10803 = vsel %vm10607, 1, 0
    %v10804 = vsel %vm10608, 1, 0
    %v10805 = vsel %vm10609, 1, 0
    %v10806 = vsel %vm10610, 1, 0
    %v10807 = vsel %vm10611, 1, 0
    %v10808 = vsel %vm10612, 1, 0
    %v10809 = vsel %vm10613, 1, 0
    %v10810 = vsel %vm10614, 1, 0
    %v10811 = vsel %vm10615, 1, 0
    %v10812 = vsel %vm10616, 1, 0
    %v10813 = vsel %vm10617, 1, 0
    %v10814 = vsel %vm10618, 1, 0
    %v10815 = vsel %vm10619, 1, 0
    %v10816 = vsel %vm10620, 1, 0
    %v10817 = vsel %vm10621, 1, 0
    %v10818 = vsel %vm10622, 1, 0
    %v10819 = vsel %vm10623, 1, 0
    %v10820 = vsel %vm10624, 1, 0
    %v10821 = vsel %vm10625, 1, 0
    %v10822 = vsel %vm10626, 1, 0
    %v10823 = vsel %vm10627, 1, 0
    %v10824 = vsel %vm10628, 1, 0
    %v10825 = vsel %vm10629, 1, 0
    %v10826 = vsel %vm10630, 1, 0
    %v10827 = vsel %vm10631, 1, 0
    %v10828 = vsel %vm10632, 1, 0
    %v10829 = vsel %vm10633, 1, 0
    %v10830 = vsel %vm10634, 1, 0
    %v10831 = vsel %vm10635, 1, 0
    %v10832 = vsel %vm10636, 1, 0
    %v10833 = vsel %vm10637, 1, 0
    %v10834 = vsel %vm10638, 1, 0
    %v10835 = vsel %vm10639, 1, 0
    %v10836 = vsel %vm10640, 1, 0
    %v10837 = vsel %vm10641, 1, 0
    %v10838 = vsel %vm10642, 1, 0
    %v10839 = vsel %vm10643, 1, 0
    %v10840 = vsel %vm10644, 1, 0
    %v10841 = vsel %vm10645, 1, 0
    %v10842 = vsel %vm10646, 1, 0
    %v10843 = vsel %vm10647, 1, 0
    %v10844 = vsel %vm10648, 1, 0
    %v10845 = vsel %vm10649, 1, 0
    %v10846 = vsel %vm10650, 1, 0
    %v10847 = vsel %vm10651, 1, 0
    %v10848 = vsel %vm10652, 1, 0
    %v10849 = vsel %vm10653, 1, 0
    %v10850 = vsel %vm10654, 1, 0
    %v10851 = vsel %vm10655, 1, 0
    %v10852 = vsel %vm10656, 1, 0
    %v10853 = vsel %vm10657, 1, 0
    %v10854 = vsel %vm10658, 1, 0
    %v10855 = vsel %vm10659, 1, 0
    %v10856 = vsel %vm10660, 1, 0
    %v10857 = vsel %vm10661, 1, 0
    %v10858 = vsel %vm10662, 1, 0
    %v10859 = vsel %vm10663, 1, 0
    %v10860 = vsel %vm10664, 1, 0
    %v10861 = vsel %vm10665, 1, 0
    %v10862 = vsel %vm10666, 1, 0
    %v10863 = vsel %vm10667, 1, 0
    %v10864 = vsel %vm10668, 1, 0
    %v10865 = vsel %vm10669, 1, 0
    %v10866 = vsel %vm10670, 1, 0
    %v10867 = vsel %vm10671, 1, 0
    %v10868 = vsel %vm10672, 1, 0
    %v10869 = vsel %vm10673, 1, 0
    %v10870 = vsel %vm10674, 1, 0
    %v10871 = vsel %vm10675, 1, 0
    %v10872 = vsel %vm10676, 1, 0
    %v10873 = vsel %vm10677, 1, 0
    %v10874 = vsel %vm10678, 1, 0
    %v10875 = vsel %vm10679, 1, 0
    %v10876 = vsel %vm10680, 1, 0
    %v10877 = vsel %vm10681, 1, 0
    %v10878 = vsel %vm10682, 1, 0
    %v10879 = vsel %vm10683, 1, 0
    %v10880 = vsel %vm10684, 1, 0
    %v10881 = vsel %vm10685, 1, 0
    %v10882 = vsel %vm10686, 1, 0
    %v10883 = vsel %vm10687, 1, 0
    %v10884 = vsel %vm10688, 1, 0
    %v10885 = vsel %vm10689, 1, 0
    %v10886 = vsel %vm10690, 1, 0
    %v10887 = vsel %vm10691, 1, 0
    %v10888 = vsel %vm10692, 1, 0
    %v10889 = vsel %vm10693, 1, 0
    %v10890 = vsel %vm10694, 1, 0
    %v10891 = vsel %vm10695, 1, 0
    %v10892 = vsel %vm10696, 1, 0
    %v10893 = vsel %vm10697, 1, 0
    %v10894 = vsel %vm10698, 1, 0
    %v10895 = vsel %vm10699, 1, 0
    %v10896 = vsel %vm10700, 1, 0
    %v10897 = vsel %vm10701, 1, 0
    %v10898 = vsel %vm10702, 1, 0
    %v10899 = vsel %vm10703, 1, 0
    %v10900 = vsel %vm10704, 1, 0
    %v10901 = vsel %vm10705, 1, 0
    %v10902 = vsel %vm10706, 1, 0
    %v10903 = vsel %vm10707, 1, 0
    %v10904 = vsel %vm10708, 1, 0
    %v10905 = vsel %vm10709, 1, 0
    %v10906 = vsel %vm10710, 1, 0
    %v10907 = vsel %vm10711, 1, 0
    %v10908 = vsel %vm10712, 1, 0
    %v10909 = vsel %vm10713, 1, 0
    %v10910 = vsel %vm10714, 1, 0
    %v10911 = vsel %vm10715, 1, 0
    %v10912 = vsel %vm10716, 1, 0
    %v10913 = vsel %vm10717, 1, 0
    %v10914 = vsel %vm10718, 1, 0
    %v10915 = vsel %vm10719, 1, 0
    %v10916 = vsel %vm10720, 1, 0
    %v10917 = vsel %vm10721, 1, 0
    %v10918 = vsel %vm10722, 1, 0
    %v10919 = vsel %vm10723, 1, 0
    %v10920 = vsel %vm10724, 1, 0
    %v10921 = vsel %vm10725, 1, 0
    %v10922 = vsel %vm10726, 1, 0
    %v10923 = vsel %vm10727, 1, 0
    %v10924 = vsel %vm10728, 1, 0
    %v10925 = vsel %vm10729, 1, 0
    %v10926 = vsel %vm10730, 1, 0
    %v10927 = vsel %vm10731, 1, 0
    %v10928 = vsel %vm10732, 1, 0
    %v10929 = vsel %vm10733, 1, 0
    %v10930 = vsel %vm10734, 1, 0
    %v10931 = vsel %vm10735, 1, 0
    %v10932 = vsel %vm10736, 1, 0
    %v10933 = vsel %vm10737, 1, 0
    %v10934 = vsel %vm10738, 1, 0
    %v10935 = vsel %vm10739, 1, 0
    %v10936 = vsel %vm10740, 1, 0
    %v10937 = vsel %vm10741, 1, 0
    %v10938 = vsel %vm10742, 1, 0
    %v10939 = vsel %vm10743, 1, 0
    %v10940 = vsel %vm10744, 1, 0
    %v10941 = vsel %vm10745, 1, 0
    %v10942 = vsel %vm10746, 1, 0
    %v10943 = vsel %vm10747, 1, 0
    %v10944 = vsel %vm10748, 1, 0
    %v10945 = vsel %vm10749, 1, 0
    %v10946 = vsel %vm10750, 1, 0
    %v10947 = vcvt.s32.f32 %v10751
    %v10948 = vcvt.s32.f32 %v10752
    %v10949 = vcvt.s32.f32 %v10753
    %v10950 = vcvt.s32.f32 %v10754
    %v10951 = vcvt.s32.f32 %v10755
    %v10952 = vcvt.s32.f32 %v10756
    %v10953 = vcvt.s32.f32 %v10757
    %v10954 = vcvt.s32.f32 %v10758
    %v10955 = vcvt.s32.f32 %v10759
    %v10956 = vcvt.s32.f32 %v10760
    %v10957 = vcvt.s32.f32 %v10761
    %v10958 = vcvt.s32.f32 %v10762
    %v10959 = vcvt.s32.f32 %v10763
    %v10960 = vcvt.s32.f32 %v10764
    %v10961 = vcvt.s32.f32 %v10765
    %v10962 = vcvt.s32.f32 %v10766
    %v10963 = vcvt.s32.f32 %v10767
    %v10964 = vcvt.s32.f32 %v10768
    %v10965 = vcvt.s32.f32 %v10769
    %v10966 = vcvt.s32.f32 %v10770
    %v10967 = vcvt.s32.f32 %v10771
    %v10968 = vcvt.s32.f32 %v10772
    %v10969 = vcvt.s32.f32 %v10773
    %v10970 = vcvt.s32.f32 %v10774
    %v10971 = vcvt.s32.f32 %v10775
    %v10972 = vcvt.s32.f32 %v10776
    %v10973 = vcvt.s32.f32 %v10777
    %v10974 = vcvt.s32.f32 %v10778
    %v10975 = vcvt.s32.f32 %v10779
    %v10976 = vcvt.s32.f32 %v10780
    %v10977 = vcvt.s32.f32 %v10781
    %v10978 = vcvt.s32.f32 %v10782
    %v10979 = vcvt.s32.f32 %v10783
    %v10980 = vcvt.s32.f32 %v10784
    %v10981 = vcvt.s32.f32 %v10785
    %v10982 = vcvt.s32.f32 %v10786
    %v10983 = vcvt.s32.f32 %v10787
    %v10984 = vcvt.s32.f32 %v10788
    %v10985 = vcvt.s32.f32 %v10789
    %v10986 = vcvt.s32.f32 %v10790
    %v10987 = vcvt.s32.f32 %v10791
    %v10988 = vcvt.s32.f32 %v10792
    %v10989 = vcvt.s32.f32 %v10793
    %v10990 = vcvt.s32.f32 %v10794
    %v10991 = vcvt.s32.f32 %v10795
    %v10992 = vcvt.s32.f32 %v10796
    %v10993 = vcvt.s32.f32 %v10797
    %v10994 = vcvt.s32.f32 %v10798
    %v10995 = vcvt.s32.f32 %v10799
    %v10996 = vcvt.s32.f32 %v10800
    %v10997 = vcvt.s32.f32 %v10801
    %v10998 = vcvt.s32.f32 %v10802
    %v10999 = vcvt.s32.f32 %v10803
    %v11000 = vcvt.s32.f32 %v10804
    %v11001 = vcvt.s32.f32 %v10805
    %v11002 = vcvt.s32.f32 %v10806
    %v11003 = vcvt.s32.f32 %v10807
    %v11004 = vcvt.s32.f32 %v10808
    %v11005 = vcvt.s32.f32 %v10809
    %v11006 = vcvt.s32.f32 %v10810
    %v11007 = vcvt.s32.f32 %v10811
    %v11008 = vcvt.s32.f32 %v10812
    %v11009 = vcvt.s32.f32 %v10813
    %v11010 = vcvt.s32.f32 %v10814
    %v11011 = vcvt.s32.f32 %v10815
    %v11012 = vcvt.s32.f32 %v10816
    %v11013 = vcvt.s32.f32 %v10817
    %v11014 = vcvt.s32.f32 %v10818
    %v11015 = vcvt.s32.f32 %v10819
    %v11016 = vcvt.s32.f32 %v10820
    %v11017 = vcvt.s32.f32 %v10821
    %v11018 = vcvt.s32.f32 %v10822
    %v11019 = vcvt.s32.f32 %v10823
    %v11020 = vcvt.s32.f32 %v10824
    %v11021 = vcvt.s32.f32 %v10825
    %v11022 = vcvt.s32.f32 %v10826
    %v11023 = vcvt.s32.f32 %v10827
    %v11024 = vcvt.s32.f32 %v10828
    %v11025 = vcvt.s32.f32 %v10829
    %v11026 = vcvt.s32.f32 %v10830
    %v11027 = vcvt.s32.f32 %v10831
    %v11028 = vcvt.s32.f32 %v10832
    %v11029 = vcvt.s32.f32 %v10833
    %v11030 = vcvt.s32.f32 %v10834
    %v11031 = vcvt.s32.f32 %v10835
    %v11032 = vcvt.s32.f32 %v10836
    %v11033 = vcvt.s32.f32 %v10837
    %v11034 = vcvt.s32.f32 %v10838
    %v11035 = vcvt.s32.f32 %v10839
    %v11036 = vcvt.s32.f32 %v10840
    %v11037 = vcvt.s32.f32 %v10841
    %v11038 = vcvt.s32.f32 %v10842
    %v11039 = vcvt.s32.f32 %v10843
    %v11040 = vcvt.s32.f32 %v10844
    %v11041 = vcvt.s32.f32 %v10845
    %v11042 = vcvt.s32.f32 %v10846
    %v11043 = vcvt.s32.f32 %v10847
    %v11044 = vcvt.s32.f32 %v10848
    %v11045 = vcvt.s32.f32 %v10849
    %v11046 = vcvt.s32.f32 %v10850
    %v11047 = vcvt.s32.f32 %v10851
    %v11048 = vcvt.s32.f32 %v10852
    %v11049 = vcvt.s32.f32 %v10853
    %v11050 = vcvt.s32.f32 %v10854
    %v11051 = vcvt.s32.f32 %v10855
    %v11052 = vcvt.s32.f32 %v10856
    %v11053 = vcvt.s32.f32 %v10857
    %v11054 = vcvt.s32.f32 %v10858
    %v11055 = vcvt.s32.f32 %v10859
    %v11056 = vcvt.s32.f32 %v10860
    %v11057 = vcvt.s32.f32 %v10861
    %v11058 = vcvt.s32.f32 %v10862
    %v11059 = vcvt.s32.f32 %v10863
    %v11060 = vcvt.s32.f32 %v10864
    %v11061 = vcvt.s32.f32 %v10865
    %v11062 = vcvt.s32.f32 %v10866
    %v11063 = vcvt.s32.f32 %v10867
    %v11064 = vcvt.s32.f32 %v10868
    %v11065 = vcvt.s32.f32 %v10869
    %v11066 = vcvt.s32.f32 %v10870
    %v11067 = vcvt.s32.f32 %v10871
    %v11068 = vcvt.s32.f32 %v10872
    %v11069 = vcvt.s32.f32 %v10873
    %v11070 = vcvt.s32.f32 %v10874
    %v11071 = vcvt.s32.f32 %v10875
    %v11072 = vcvt.s32.f32 %v10876
    %v11073 = vcvt.s32.f32 %v10877
    %v11074 = vcvt.s32.f32 %v10878
    %v11075 = vcvt.s32.f32 %v10879
    %v11076 = vcvt.s32.f32 %v10880
    %v11077 = vcvt.s32.f32 %v10881
    %v11078 = vcvt.s32.f32 %v10882
    %v11079 = vcvt.s32.f32 %v10883
    %v11080 = vcvt.s32.f32 %v10884
    %v11081 = vcvt.s32.f32 %v10885
    %v11082 = vcvt.s32.f32 %v10886
    %v11083 = vcvt.s32.f32 %v10887
    %v11084 = vcvt.s32.f32 %v10888
    %v11085 = vcvt.s32.f32 %v10889
    %v11086 = vcvt.s32.f32 %v10890
    %v11087 = vcvt.s32.f32 %v10891
    %v11088 = vcvt.s32.f32 %v10892
    %v11089 = vcvt.s32.f32 %v10893
    %v11090 = vcvt.s32.f32 %v10894
    %v11091 = vcvt.s32.f32 %v10895
    %v11092 = vcvt.s32.f32 %v10896
    %v11093 = vcvt.s32.f32 %v10897
    %v11094 = vcvt.s32.f32 %v10898
    %v11095 = vcvt.s32.f32 %v10899
    %v11096 = vcvt.s32.f32 %v10900
    %v11097 = vcvt.s32.f32 %v10901
    %v11098 = vcvt.s32.f32 %v10902
    %v11099 = vcvt.s32.f32 %v10903
    %v11100 = vcvt.s32.f32 %v10904
    %v11101 = vcvt.s32.f32 %v10905
    %v11102 = vcvt.s32.f32 %v10906
    %v11103 = vcvt.s32.f32 %v10907
    %v11104 = vcvt.s32.f32 %v10908
    %v11105 = vcvt.s32.f32 %v10909
    %v11106 = vcvt.s32.f32 %v10910
    %v11107 = vcvt.s32.f32 %v10911
    %v11108 = vcvt.s32.f32 %v10912
    %v11109 = vcvt.s32.f32 %v10913
    %v11110 = vcvt.s32.f32 %v10914
    %v11111 = vcvt.s32.f32 %v10915
    %v11112 = vcvt.s32.f32 %v10916
    %v11113 = vcvt.s32.f32 %v10917
    %v11114 = vcvt.s32.f32 %v10918
    %v11115 = vcvt.s32.f32 %v10919
    %v11116 = vcvt.s32.f32 %v10920
    %v11117 = vcvt.s32.f32 %v10921
    %v11118 = vcvt.s32.f32 %v10922
    %v11119 = vcvt.s32.f32 %v10923
    %v11120 = vcvt.s32.f32 %v10924
    %v11121 = vcvt.s32.f32 %v10925
    %v11122 = vcvt.s32.f32 %v10926
    %v11123 = vcvt.s32.f32 %v10927
    %v11124 = vcvt.s32.f32 %v10928
    %v11125 = vcvt.s32.f32 %v10929
    %v11126 = vcvt.s32.f32 %v10930
    %v11127 = vcvt.s32.f32 %v10931
    %v11128 = vcvt.s32.f32 %v10932
    %v11129 = vcvt.s32.f32 %v10933
    %v11130 = vcvt.s32.f32 %v10934
    %v11131 = vcvt.s32.f32 %v10935
    %v11132 = vcvt.s32.f32 %v10936
    %v11133 = vcvt.s32.f32 %v10937
    %v11134 = vcvt.s32.f32 %v10938
    %v11135 = vcvt.s32.f32 %v10939
    %v11136 = vcvt.s32.f32 %v10940
    %v11137 = vcvt.s32.f32 %v10941
    %v11138 = vcvt.s32.f32 %v10942
    %v11139 = vcvt.s32.f32 %v10943
    %v11140 = vcvt.s32.f32 %v10944
    %v11141 = vcvt.s32.f32 %v10945
    %v11142 = vcvt.s32.f32 %v10946
    %v11143 = vsel %vm3852, %v9611, 0
    %v11145 = vsel %vm3852, %v9624, 0
    %v11147 = vsel %vm3852, %v9637, 0
    %v11149 = vsel %vm3852, %v9650, 0
    %v11152 = vsel %vm3852, %v9919, 0
    %v11155 = vsel %vm3852, %v9920, 0
    %v11158 = vsel %vm3852, %v9921, 0
    %v11161 = vsel %vm3852, %v9922, 0
    %v11163 = vsel %vm3852, %v10124, 0
    %v11165 = vsel %vm3852, %v10126, 0
    %v11167 = vsel %vm3852, %v10128, 0
    %v11169 = vsel %vm3852, %v10130, 0
    %v11171 = vsel %vm3852, %v10340, 0
    %v11173 = vsel %vm3852, %v10342, 0
    %v11175 = vsel %vm3852, %v10344, 0
    %v11177 = vsel %vm3852, %v10346, 0
    %11179 = vmatprep.subr.mxu0 0.0
    %11180 = vmatpush1.msra.mxu0 %v10962
    %11181 = vmatprep.subr.mxu0 0.0
    %11182 = vmatpush1.msra.mxu0 %v10961
    %11183 = vmatprep.subr.mxu0 0.0
    %11184 = vmatpush1.msra.mxu0 %v10960
    %11185 = vmatprep.subr.mxu0 0.0
    %11186 = vmatpush1.msra.mxu0 %v10959
    %11187 = vmatprep.subr.mxu0 0.0
    %11188 = vmatpush1.msra.mxu0 %v10958
    %11189 = vmatprep.subr.mxu0 0.0
    %11190 = vmatpush1.msra.mxu0 %v10957
    %11191 = vmatprep.subr.mxu0 0.0
    %11192 = vmatpush1.msra.mxu0 %v10956
    %11193 = vmatprep.subr.mxu0 0.0
    %11194 = vmatpush1.msra.mxu0 %v10955
    %11195 = vmatprep.subr.mxu0 0.0
    %11196 = vmatpush1.msra.mxu0 %v10954
    %11197 = vmatprep.subr.mxu0 0.0
    %11198 = vmatpush1.msra.mxu0 %v10953
    %11199 = vmatprep.subr.mxu0 0.0
    %11200 = vmatpush1.msra.mxu0 %v10952
    %11201 = vmatprep.subr.mxu0 0.0
    %11202 = vmatpush1.msra.mxu0 %v10951
    %11203 = vmatprep.subr.mxu0 0.0
    %11204 = vmatpush1.msra.mxu0 %v10950
    %11205 = vmatprep.subr.mxu0 0.0
    %11206 = vmatpush1.msra.mxu0 %v10949
    %11207 = vmatprep.subr.mxu0 0.0
    %11208 = vmatpush1.msra.mxu0 %v10948
    %11209 = vmatprep.subr.mxu0 0.0
    %11210 = vmatpush1.msra.mxu0 %v10947
    %11211 = vmatprep.subr.mxu0 0.0
    %11212 = vmatpush2.msra.mxu0 %v10978
    %11213 = vmatprep.subr.mxu0 0.0
    %11214 = vmatpush2.msra.mxu0 %v10977
    %11215 = vmatprep.subr.mxu0 0.0
    %11216 = vmatpush2.msra.mxu0 %v10976
    %11217 = vmatprep.subr.mxu0 0.0
    %11218 = vmatpush2.msra.mxu0 %v10975
    %11219 = vmatprep.subr.mxu0 0.0
    %11220 = vmatpush2.msra.mxu0 %v10974
    %11221 = vmatprep.subr.mxu0 0.0
    %11222 = vmatpush2.msra.mxu0 %v10973
    %11223 = vmatprep.subr.mxu0 0.0
    %11224 = vmatpush2.msra.mxu0 %v10972
    %11225 = vmatprep.subr.mxu0 0.0
    %11226 = vmatpush2.msra.mxu0 %v10971
    %11227 = vmatprep.subr.mxu0 0.0
    %11228 = vmatpush2.msra.mxu0 %v10970
    %11229 = vmatprep.subr.mxu0 0.0
    %11230 = vmatpush2.msra.mxu0 %v10969
    %11231 = vmatprep.subr.mxu0 0.0
    %11232 = vmatpush2.msra.mxu0 %v10968
    %11233 = vmatprep.subr.mxu0 0.0
    %11234 = vmatpush2.msra.mxu0 %v10967
    %11235 = vmatprep.subr.mxu0 0.0
    %11236 = vmatpush2.msra.mxu0 %v10966
    %11237 = vmatprep.subr.mxu0 0.0
    %11238 = vmatpush2.msra.mxu0 %v10965
    %11239 = vmatprep.subr.mxu0 0.0
    %11240 = vmatpush2.msra.mxu0 %v10964
    %11241 = vmatprep.subr.mxu0 0.0
    %11242 = vmatpush2.msra.mxu0 %v10963
    %11243 = vmatprep.mubr.f32.mxu0 %v9600
    %11244 = vmatmul.mubr.f32.gmra.mxu0 %v9599
    %v11245 = vpop.f32.mrf.mxu0
    %v11246 = vadd.f32 0.0, %v11245
    %v11247 = vpop.f32.mrf.mxu0
    %11248 = vmatprep.mubr.f32.mxu0 %v9613
    %11249 = vmatmul.mubr.f32.gmra.mxu0 %v9612
    %v11250 = vpop.f32.mrf.mxu0
    %v11251 = vadd.f32 0.0, %v11250
    %v11252 = vpop.f32.mrf.mxu0
    %11253 = vmatprep.mubr.f32.mxu0 %v9626
    %11254 = vmatmul.mubr.f32.gmra.mxu0 %v9625
    %v11255 = vpop.f32.mrf.mxu0
    %v11256 = vadd.f32 0.0, %v11255
    %v11257 = vpop.f32.mrf.mxu0
    %11258 = vmatprep.mubr.f32.mxu0 %v9639
    %11259 = vmatmul.mubr.f32.gmra.mxu0 %v9638
    %v11260 = vpop.f32.mrf.mxu0
    %v11261 = vadd.f32 0.0, %v11260
    %v11262 = vpop.f32.mrf.mxu0
    %11263 = vmatprep.mubr.f32.mxu0 %v9808
    %11264 = vmatmul.mubr.f32.gmra.mxu0 %v9807
    %v11265 = vpop.f32.mrf.mxu0
    %v11266 = vadd.f32 0.0, %v11265
    %v11267 = vpop.f32.mrf.mxu0
    %11268 = vmatprep.mubr.f32.mxu0 %v9820
    %11269 = vmatmul.mubr.f32.gmra.mxu0 %v9819
    %v11270 = vpop.f32.mrf.mxu0
    %v11271 = vadd.f32 0.0, %v11270
    %v11272 = vpop.f32.mrf.mxu0
    %11273 = vmatprep.mubr.f32.mxu0 %v9832
    %11274 = vmatmul.mubr.f32.gmra.mxu0 %v9831
    %v11275 = vpop.f32.mrf.mxu0
    %v11276 = vadd.f32 0.0, %v11275
    %v11277 = vpop.f32.mrf.mxu0
    %11278 = vmatprep.mubr.f32.mxu0 %v9844
    %11279 = vmatmul.mubr.f32.gmra.mxu0 %v9843
    %v11280 = vpop.f32.mrf.mxu0
    %v11281 = vadd.f32 0.0, %v11280
    %v11282 = vpop.f32.mrf.mxu0
    %11283 = vmatprep.mubr.f32.mxu0 %v10028
    %11284 = vmatmul.mubr.f32.gmra.mxu0 %v10027
    %v11285 = vpop.f32.mrf.mxu0
    %v11286 = vadd.f32 0.0, %v11285
    %v11287 = vpop.f32.mrf.mxu0
    %11288 = vmatprep.mubr.f32.mxu0 %v10040
    %11289 = vmatmul.mubr.f32.gmra.mxu0 %v10039
    %v11290 = vpop.f32.mrf.mxu0
    %v11291 = vadd.f32 0.0, %v11290
    %v11292 = vpop.f32.mrf.mxu0
    %11293 = vmatprep.mubr.f32.mxu0 %v10052
    %11294 = vmatmul.mubr.f32.gmra.mxu0 %v10051
    %v11295 = vpop.f32.mrf.mxu0
    %v11296 = vadd.f32 0.0, %v11295
    %v11297 = vpop.f32.mrf.mxu0
    %11298 = vmatprep.mubr.f32.mxu0 %v10064
    %11299 = vmatmul.mubr.f32.gmra.mxu0 %v10063
    %v11300 = vpop.f32.mrf.mxu0
    %v11301 = vadd.f32 0.0, %v11300
    %v11302 = vpop.f32.mrf.mxu0
    %11303 = vmatprep.mubr.f32.mxu0 %v10244
    %11304 = vmatmul.mubr.f32.gmra.mxu0 %v10243
    %v11305 = vpop.f32.mrf.mxu0
    %v11306 = vadd.f32 0.0, %v11305
    %v11307 = vpop.f32.mrf.mxu0
    %11308 = vmatprep.mubr.f32.mxu0 %v10256
    %11309 = vmatmul.mubr.f32.gmra.mxu0 %v10255
    %v11310 = vpop.f32.mrf.mxu0
    %v11311 = vadd.f32 0.0, %v11310
    %v11312 = vpop.f32.mrf.mxu0
    %11313 = vmatprep.mubr.f32.mxu0 %v10268
    %11314 = vmatmul.mubr.f32.gmra.mxu0 %v10267
    %v11315 = vpop.f32.mrf.mxu0
    %v11316 = vadd.f32 0.0, %v11315
    %v11317 = vpop.f32.mrf.mxu0
    %11318 = vmatprep.mubr.f32.mxu0 %v10280
    %11319 = vmatmul.mubr.f32.gmra.mxu0 %v10279
    %v11320 = vpop.f32.mrf.mxu0
    %v11321 = vadd.f32 0.0, %v11320
    %v11322 = vpop.f32.mrf.mxu0
    %11323 = vdwg.mxu0
    %11324 = vmatprep.subr.mxu0 0.0
    %11325 = vmatpush1.msra.mxu0 %v10994
    %11326 = vmatprep.subr.mxu0 0.0
    %11327 = vmatpush1.msra.mxu0 %v10993
    %11328 = vmatprep.subr.mxu0 0.0
    %11329 = vmatpush1.msra.mxu0 %v10992
    %11330 = vmatprep.subr.mxu0 0.0
    %11331 = vmatpush1.msra.mxu0 %v10991
    %11332 = vmatprep.subr.mxu0 0.0
    %11333 = vmatpush1.msra.mxu0 %v10990
    %11334 = vmatprep.subr.mxu0 0.0
    %11335 = vmatpush1.msra.mxu0 %v10989
    %11336 = vmatprep.subr.mxu0 0.0
    %11337 = vmatpush1.msra.mxu0 %v10988
    %11338 = vmatprep.subr.mxu0 0.0
    %11339 = vmatpush1.msra.mxu0 %v10987
    %11340 = vmatprep.subr.mxu0 0.0
    %11341 = vmatpush1.msra.mxu0 %v10986
    %11342 = vmatprep.subr.mxu0 0.0
    %11343 = vmatpush1.msra.mxu0 %v10985
    %11344 = vmatprep.subr.mxu0 0.0
    %11345 = vmatpush1.msra.mxu0 %v10984
    %11346 = vmatprep.subr.mxu0 0.0
    %11347 = vmatpush1.msra.mxu0 %v10983
    %11348 = vmatprep.subr.mxu0 0.0
    %11349 = vmatpush1.msra.mxu0 %v10982
    %11350 = vmatprep.subr.mxu0 0.0
    %11351 = vmatpush1.msra.mxu0 %v10981
    %11352 = vmatprep.subr.mxu0 0.0
    %11353 = vmatpush1.msra.mxu0 %v10980
    %11354 = vmatprep.subr.mxu0 0.0
    %11355 = vmatpush1.msra.mxu0 %v10979
    %11356 = vmatprep.subr.mxu0 0.0
    %11357 = vmatpush2.msra.mxu0 %v11010
    %11358 = vmatprep.subr.mxu0 0.0
    %11359 = vmatpush2.msra.mxu0 %v11009
    %11360 = vmatprep.subr.mxu0 0.0
    %11361 = vmatpush2.msra.mxu0 %v11008
    %11362 = vmatprep.subr.mxu0 0.0
    %11363 = vmatpush2.msra.mxu0 %v11007
    %11364 = vmatprep.subr.mxu0 0.0
    %11365 = vmatpush2.msra.mxu0 %v11006
    %11366 = vmatprep.subr.mxu0 0.0
    %11367 = vmatpush2.msra.mxu0 %v11005
    %11368 = vmatprep.subr.mxu0 0.0
    %11369 = vmatpush2.msra.mxu0 %v11004
    %11370 = vmatprep.subr.mxu0 0.0
    %11371 = vmatpush2.msra.mxu0 %v11003
    %11372 = vmatprep.subr.mxu0 0.0
    %11373 = vmatpush2.msra.mxu0 %v11002
    %11374 = vmatprep.subr.mxu0 0.0
    %11375 = vmatpush2.msra.mxu0 %v11001
    %11376 = vmatprep.subr.mxu0 0.0
    %11377 = vmatpush2.msra.mxu0 %v11000
    %11378 = vmatprep.subr.mxu0 0.0
    %11379 = vmatpush2.msra.mxu0 %v10999
    %11380 = vmatprep.subr.mxu0 0.0
    %11381 = vmatpush2.msra.mxu0 %v10998
    %11382 = vmatprep.subr.mxu0 0.0
    %11383 = vmatpush2.msra.mxu0 %v10997
    %11384 = vmatprep.subr.mxu0 0.0
    %11385 = vmatpush2.msra.mxu0 %v10996
    %11386 = vmatprep.subr.mxu0 0.0
    %11387 = vmatpush2.msra.mxu0 %v10995
    %11388 = vmatprep.mubr.f32.mxu0 %v9602
    %11389 = vmatmul.mubr.f32.gmra.mxu0 %v9601
    %v11390 = vpop.f32.mrf.mxu0
    %v11391 = vadd.f32 %v11246, %v11390
    %v11392 = vpop.f32.mrf.mxu0
    %11393 = vmatprep.mubr.f32.mxu0 %v9615
    %11394 = vmatmul.mubr.f32.gmra.mxu0 %v9614
    %v11395 = vpop.f32.mrf.mxu0
    %v11396 = vadd.f32 %v11251, %v11395
    %v11397 = vpop.f32.mrf.mxu0
    %11398 = vmatprep.mubr.f32.mxu0 %v9628
    %11399 = vmatmul.mubr.f32.gmra.mxu0 %v9627
    %v11400 = vpop.f32.mrf.mxu0
    %v11401 = vadd.f32 %v11256, %v11400
    %v11402 = vpop.f32.mrf.mxu0
    %11403 = vmatprep.mubr.f32.mxu0 %v9641
    %11404 = vmatmul.mubr.f32.gmra.mxu0 %v9640
    %v11405 = vpop.f32.mrf.mxu0
    %v11406 = vadd.f32 %v11261, %v11405
    %v11407 = vpop.f32.mrf.mxu0
    %11408 = vmatprep.mubr.f32.mxu0 %v9810
    %11409 = vmatmul.mubr.f32.gmra.mxu0 %v9809
    %v11410 = vpop.f32.mrf.mxu0
    %v11411 = vadd.f32 %v11266, %v11410
    %v11412 = vpop.f32.mrf.mxu0
    %11413 = vmatprep.mubr.f32.mxu0 %v9822
    %11414 = vmatmul.mubr.f32.gmra.mxu0 %v9821
    %v11415 = vpop.f32.mrf.mxu0
    %v11416 = vadd.f32 %v11271, %v11415
    %v11417 = vpop.f32.mrf.mxu0
    %11418 = vmatprep.mubr.f32.mxu0 %v9834
    %11419 = vmatmul.mubr.f32.gmra.mxu0 %v9833
    %v11420 = vpop.f32.mrf.mxu0
    %v11421 = vadd.f32 %v11276, %v11420
    %v11422 = vpop.f32.mrf.mxu0
    %11423 = vmatprep.mubr.f32.mxu0 %v9846
    %11424 = vmatmul.mubr.f32.gmra.mxu0 %v9845
    %v11425 = vpop.f32.mrf.mxu0
    %v11426 = vadd.f32 %v11281, %v11425
    %v11427 = vpop.f32.mrf.mxu0
    %11428 = vmatprep.mubr.f32.mxu0 %v10030
    %11429 = vmatmul.mubr.f32.gmra.mxu0 %v10029
    %v11430 = vpop.f32.mrf.mxu0
    %v11431 = vadd.f32 %v11286, %v11430
    %v11432 = vpop.f32.mrf.mxu0
    %11433 = vmatprep.mubr.f32.mxu0 %v10042
    %11434 = vmatmul.mubr.f32.gmra.mxu0 %v10041
    %v11435 = vpop.f32.mrf.mxu0
    %v11436 = vadd.f32 %v11291, %v11435
    %v11437 = vpop.f32.mrf.mxu0
    %11438 = vmatprep.mubr.f32.mxu0 %v10054
    %11439 = vmatmul.mubr.f32.gmra.mxu0 %v10053
    %v11440 = vpop.f32.mrf.mxu0
    %v11441 = vadd.f32 %v11296, %v11440
    %v11442 = vpop.f32.mrf.mxu0
    %11443 = vmatprep.mubr.f32.mxu0 %v10066
    %11444 = vmatmul.mubr.f32.gmra.mxu0 %v10065
    %v11445 = vpop.f32.mrf.mxu0
    %v11446 = vadd.f32 %v11301, %v11445
    %v11447 = vpop.f32.mrf.mxu0
    %11448 = vmatprep.mubr.f32.mxu0 %v10246
    %11449 = vmatmul.mubr.f32.gmra.mxu0 %v10245
    %v11450 = vpop.f32.mrf.mxu0
    %v11451 = vadd.f32 %v11306, %v11450
    %v11452 = vpop.f32.mrf.mxu0
    %11453 = vmatprep.mubr.f32.mxu0 %v10258
    %11454 = vmatmul.mubr.f32.gmra.mxu0 %v10257
    %v11455 = vpop.f32.mrf.mxu0
    %v11456 = vadd.f32 %v11311, %v11455
    %v11457 = vpop.f32.mrf.mxu0
    %11458 = vmatprep.mubr.f32.mxu0 %v10270
    %11459 = vmatmul.mubr.f32.gmra.mxu0 %v10269
    %v11460 = vpop.f32.mrf.mxu0
    %v11461 = vadd.f32 %v11316, %v11460
    %v11462 = vpop.f32.mrf.mxu0
    %11463 = vmatprep.mubr.f32.mxu0 %v10282
    %11464 = vmatmul.mubr.f32.gmra.mxu0 %v10281
    %v11465 = vpop.f32.mrf.mxu0
    %v11466 = vadd.f32 %v11321, %v11465
    %v11467 = vpop.f32.mrf.mxu0
    %11468 = vdwg.mxu0
    %11469 = vmatprep.subr.mxu0 0.0
    %11470 = vmatpush1.msra.mxu0 %v11026
    %11471 = vmatprep.subr.mxu0 0.0
    %11472 = vmatpush1.msra.mxu0 %v11025
    %11473 = vmatprep.subr.mxu0 0.0
    %11474 = vmatpush1.msra.mxu0 %v11024
    %11475 = vmatprep.subr.mxu0 0.0
    %11476 = vmatpush1.msra.mxu0 %v11023
    %11477 = vmatprep.subr.mxu0 0.0
    %11478 = vmatpush1.msra.mxu0 %v11022
    %11479 = vmatprep.subr.mxu0 0.0
    %11480 = vmatpush1.msra.mxu0 %v11021
    %11481 = vmatprep.subr.mxu0 0.0
    %11482 = vmatpush1.msra.mxu0 %v11020
    %11483 = vmatprep.subr.mxu0 0.0
    %11484 = vmatpush1.msra.mxu0 %v11019
    %11485 = vmatprep.subr.mxu0 0.0
    %11486 = vmatpush1.msra.mxu0 %v11018
    %11487 = vmatprep.subr.mxu0 0.0
    %11488 = vmatpush1.msra.mxu0 %v11017
    %11489 = vmatprep.subr.mxu0 0.0
    %11490 = vmatpush1.msra.mxu0 %v11016
    %11491 = vmatprep.subr.mxu0 0.0
    %11492 = vmatpush1.msra.mxu0 %v11015
    %11493 = vmatprep.subr.mxu0 0.0
    %11494 = vmatpush1.msra.mxu0 %v11014
    %11495 = vmatprep.subr.mxu0 0.0
    %11496 = vmatpush1.msra.mxu0 %v11013
    %11497 = vmatprep.subr.mxu0 0.0
    %11498 = vmatpush1.msra.mxu0 %v11012
    %11499 = vmatprep.subr.mxu0 0.0
    %11500 = vmatpush1.msra.mxu0 %v11011
    %11501 = vmatprep.subr.mxu0 0.0
    %11502 = vmatpush2.msra.mxu0 %v11042
    %11503 = vmatprep.subr.mxu0 0.0
    %11504 = vmatpush2.msra.mxu0 %v11041
    %11505 = vmatprep.subr.mxu0 0.0
    %11506 = vmatpush2.msra.mxu0 %v11040
    %11507 = vmatprep.subr.mxu0 0.0
    %11508 = vmatpush2.msra.mxu0 %v11039
    %11509 = vmatprep.subr.mxu0 0.0
    %11510 = vmatpush2.msra.mxu0 %v11038
    %11511 = vmatprep.subr.mxu0 0.0
    %11512 = vmatpush2.msra.mxu0 %v11037
    %11513 = vmatprep.subr.mxu0 0.0
    %11514 = vmatpush2.msra.mxu0 %v11036
    %11515 = vmatprep.subr.mxu0 0.0
    %11516 = vmatpush2.msra.mxu0 %v11035
    %11517 = vmatprep.subr.mxu0 0.0
    %11518 = vmatpush2.msra.mxu0 %v11034
    %11519 = vmatprep.subr.mxu0 0.0
    %11520 = vmatpush2.msra.mxu0 %v11033
    %11521 = vmatprep.subr.mxu0 0.0
    %11522 = vmatpush2.msra.mxu0 %v11032
    %11523 = vmatprep.subr.mxu0 0.0
    %11524 = vmatpush2.msra.mxu0 %v11031
    %11525 = vmatprep.subr.mxu0 0.0
    %11526 = vmatpush2.msra.mxu0 %v11030
    %11527 = vmatprep.subr.mxu0 0.0
    %11528 = vmatpush2.msra.mxu0 %v11029
    %11529 = vmatprep.subr.mxu0 0.0
    %11530 = vmatpush2.msra.mxu0 %v11028
    %11531 = vmatprep.subr.mxu0 0.0
    %11532 = vmatpush2.msra.mxu0 %v11027
    %11533 = vmatprep.mubr.f32.mxu0 %v9604
    %11534 = vmatmul.mubr.f32.gmra.mxu0 %v9603
    %v11535 = vpop.f32.mrf.mxu0
    %v11536 = vadd.f32 %v11391, %v11535
    %v11537 = vpop.f32.mrf.mxu0
    %11538 = vmatprep.mubr.f32.mxu0 %v9617
    %11539 = vmatmul.mubr.f32.gmra.mxu0 %v9616
    %v11540 = vpop.f32.mrf.mxu0
    %v11541 = vadd.f32 %v11396, %v11540
    %v11542 = vpop.f32.mrf.mxu0
    %11543 = vmatprep.mubr.f32.mxu0 %v9630
    %11544 = vmatmul.mubr.f32.gmra.mxu0 %v9629
    %v11545 = vpop.f32.mrf.mxu0
    %v11546 = vadd.f32 %v11401, %v11545
    %v11547 = vpop.f32.mrf.mxu0
    %11548 = vmatprep.mubr.f32.mxu0 %v9643
    %11549 = vmatmul.mubr.f32.gmra.mxu0 %v9642
    %v11550 = vpop.f32.mrf.mxu0
    %v11551 = vadd.f32 %v11406, %v11550
    %v11552 = vpop.f32.mrf.mxu0
    %11553 = vmatprep.mubr.f32.mxu0 %v9812
    %11554 = vmatmul.mubr.f32.gmra.mxu0 %v9811
    %v11555 = vpop.f32.mrf.mxu0
    %v11556 = vadd.f32 %v11411, %v11555
    %v11557 = vpop.f32.mrf.mxu0
    %11558 = vmatprep.mubr.f32.mxu0 %v9824
    %11559 = vmatmul.mubr.f32.gmra.mxu0 %v9823
    %v11560 = vpop.f32.mrf.mxu0
    %v11561 = vadd.f32 %v11416, %v11560
    %v11562 = vpop.f32.mrf.mxu0
    %11563 = vmatprep.mubr.f32.mxu0 %v9836
    %11564 = vmatmul.mubr.f32.gmra.mxu0 %v9835
    %v11565 = vpop.f32.mrf.mxu0
    %v11566 = vadd.f32 %v11421, %v11565
    %v11567 = vpop.f32.mrf.mxu0
    %11568 = vmatprep.mubr.f32.mxu0 %v9848
    %11569 = vmatmul.mubr.f32.gmra.mxu0 %v9847
    %v11570 = vpop.f32.mrf.mxu0
    %v11571 = vadd.f32 %v11426, %v11570
    %v11572 = vpop.f32.mrf.mxu0
    %11573 = vmatprep.mubr.f32.mxu0 %v10032
    %11574 = vmatmul.mubr.f32.gmra.mxu0 %v10031
    %v11575 = vpop.f32.mrf.mxu0
    %v11576 = vadd.f32 %v11431, %v11575
    %v11577 = vpop.f32.mrf.mxu0
    %11578 = vmatprep.mubr.f32.mxu0 %v10044
    %11579 = vmatmul.mubr.f32.gmra.mxu0 %v10043
    %v11580 = vpop.f32.mrf.mxu0
    %v11581 = vadd.f32 %v11436, %v11580
    %v11582 = vpop.f32.mrf.mxu0
    %11583 = vmatprep.mubr.f32.mxu0 %v10056
    %11584 = vmatmul.mubr.f32.gmra.mxu0 %v10055
    %v11585 = vpop.f32.mrf.mxu0
    %v11586 = vadd.f32 %v11441, %v11585
    %v11587 = vpop.f32.mrf.mxu0
    %11588 = vmatprep.mubr.f32.mxu0 %v10068
    %11589 = vmatmul.mubr.f32.gmra.mxu0 %v10067
    %v11590 = vpop.f32.mrf.mxu0
    %v11591 = vadd.f32 %v11446, %v11590
    %v11592 = vpop.f32.mrf.mxu0
    %11593 = vmatprep.mubr.f32.mxu0 %v10248
    %11594 = vmatmul.mubr.f32.gmra.mxu0 %v10247
    %v11595 = vpop.f32.mrf.mxu0
    %v11596 = vadd.f32 %v11451, %v11595
    %v11597 = vpop.f32.mrf.mxu0
    %11598 = vmatprep.mubr.f32.mxu0 %v10260
    %11599 = vmatmul.mubr.f32.gmra.mxu0 %v10259
    %v11600 = vpop.f32.mrf.mxu0
    %v11601 = vadd.f32 %v11456, %v11600
    %v11602 = vpop.f32.mrf.mxu0
    %11603 = vmatprep.mubr.f32.mxu0 %v10272
    %11604 = vmatmul.mubr.f32.gmra.mxu0 %v10271
    %v11605 = vpop.f32.mrf.mxu0
    %v11606 = vadd.f32 %v11461, %v11605
    %v11607 = vpop.f32.mrf.mxu0
    %11608 = vmatprep.mubr.f32.mxu0 %v10284
    %11609 = vmatmul.mubr.f32.gmra.mxu0 %v10283
    %v11610 = vpop.f32.mrf.mxu0
    %v11611 = vadd.f32 %v11466, %v11610
    %v11612 = vpop.f32.mrf.mxu0
    %11613 = vdwg.mxu0
    %11614 = vmatprep.subr.mxu0 0.0
    %11615 = vmatpush1.msra.mxu0 %v11058
    %11616 = vmatprep.subr.mxu0 0.0
    %11617 = vmatpush1.msra.mxu0 %v11057
    %11618 = vmatprep.subr.mxu0 0.0
    %11619 = vmatpush1.msra.mxu0 %v11056
    %11620 = vmatprep.subr.mxu0 0.0
    %11621 = vmatpush1.msra.mxu0 %v11055
    %11622 = vmatprep.subr.mxu0 0.0
    %11623 = vmatpush1.msra.mxu0 %v11054
    %11624 = vmatprep.subr.mxu0 0.0
    %11625 = vmatpush1.msra.mxu0 %v11053
    %11626 = vmatprep.subr.mxu0 0.0
    %11627 = vmatpush1.msra.mxu0 %v11052
    %11628 = vmatprep.subr.mxu0 0.0
    %11629 = vmatpush1.msra.mxu0 %v11051
    %11630 = vmatprep.subr.mxu0 0.0
    %11631 = vmatpush1.msra.mxu0 %v11050
    %11632 = vmatprep.subr.mxu0 0.0
    %11633 = vmatpush1.msra.mxu0 %v11049
    %11634 = vmatprep.subr.mxu0 0.0
    %11635 = vmatpush1.msra.mxu0 %v11048
    %11636 = vmatprep.subr.mxu0 0.0
    %11637 = vmatpush1.msra.mxu0 %v11047
    %11638 = vmatprep.subr.mxu0 0.0
    %11639 = vmatpush1.msra.mxu0 %v11046
    %11640 = vmatprep.subr.mxu0 0.0
    %11641 = vmatpush1.msra.mxu0 %v11045
    %11642 = vmatprep.subr.mxu0 0.0
    %11643 = vmatpush1.msra.mxu0 %v11044
    %11644 = vmatprep.subr.mxu0 0.0
    %11645 = vmatpush1.msra.mxu0 %v11043
    %11646 = vmatprep.subr.mxu0 0.0
    %11647 = vmatpush2.msra.mxu0 %v11074
    %11648 = vmatprep.subr.mxu0 0.0
    %11649 = vmatpush2.msra.mxu0 %v11073
    %11650 = vmatprep.subr.mxu0 0.0
    %11651 = vmatpush2.msra.mxu0 %v11072
    %11652 = vmatprep.subr.mxu0 0.0
    %11653 = vmatpush2.msra.mxu0 %v11071
    %11654 = vmatprep.subr.mxu0 0.0
    %11655 = vmatpush2.msra.mxu0 %v11070
    %11656 = vmatprep.subr.mxu0 0.0
    %11657 = vmatpush2.msra.mxu0 %v11069
    %11658 = vmatprep.subr.mxu0 0.0
    %11659 = vmatpush2.msra.mxu0 %v11068
    %11660 = vmatprep.subr.mxu0 0.0
    %11661 = vmatpush2.msra.mxu0 %v11067
    %11662 = vmatprep.subr.mxu0 0.0
    %11663 = vmatpush2.msra.mxu0 %v11066
    %11664 = vmatprep.subr.mxu0 0.0
    %11665 = vmatpush2.msra.mxu0 %v11065
    %11666 = vmatprep.subr.mxu0 0.0
    %11667 = vmatpush2.msra.mxu0 %v11064
    %11668 = vmatprep.subr.mxu0 0.0
    %11669 = vmatpush2.msra.mxu0 %v11063
    %11670 = vmatprep.subr.mxu0 0.0
    %11671 = vmatpush2.msra.mxu0 %v11062
    %11672 = vmatprep.subr.mxu0 0.0
    %11673 = vmatpush2.msra.mxu0 %v11061
    %11674 = vmatprep.subr.mxu0 0.0
    %11675 = vmatpush2.msra.mxu0 %v11060
    %11676 = vmatprep.subr.mxu0 0.0
    %11677 = vmatpush2.msra.mxu0 %v11059
    %11678 = vmatprep.mubr.f32.mxu0 %v9606
    %11679 = vmatmul.mubr.f32.gmra.mxu0 %v9605
    %v11680 = vpop.f32.mrf.mxu0
    %v11681 = vadd.f32 %v11536, %v11680
    %v11682 = vpop.f32.mrf.mxu0
    %11683 = vmatprep.mubr.f32.mxu0 %v9619
    %11684 = vmatmul.mubr.f32.gmra.mxu0 %v9618
    %v11685 = vpop.f32.mrf.mxu0
    %v11686 = vadd.f32 %v11541, %v11685
    %v11687 = vpop.f32.mrf.mxu0
    %11688 = vmatprep.mubr.f32.mxu0 %v9632
    %11689 = vmatmul.mubr.f32.gmra.mxu0 %v9631
    %v11690 = vpop.f32.mrf.mxu0
    %v11691 = vadd.f32 %v11546, %v11690
    %v11692 = vpop.f32.mrf.mxu0
    %11693 = vmatprep.mubr.f32.mxu0 %v9645
    %11694 = vmatmul.mubr.f32.gmra.mxu0 %v9644
    %v11695 = vpop.f32.mrf.mxu0
    %v11696 = vadd.f32 %v11551, %v11695
    %v11697 = vpop.f32.mrf.mxu0
    %11698 = vmatprep.mubr.f32.mxu0 %v9814
    %11699 = vmatmul.mubr.f32.gmra.mxu0 %v9813
    %v11700 = vpop.f32.mrf.mxu0
    %v11701 = vadd.f32 %v11556, %v11700
    %v11702 = vpop.f32.mrf.mxu0
    %11703 = vmatprep.mubr.f32.mxu0 %v9826
    %11704 = vmatmul.mubr.f32.gmra.mxu0 %v9825
    %v11705 = vpop.f32.mrf.mxu0
    %v11706 = vadd.f32 %v11561, %v11705
    %v11707 = vpop.f32.mrf.mxu0
    %11708 = vmatprep.mubr.f32.mxu0 %v9838
    %11709 = vmatmul.mubr.f32.gmra.mxu0 %v9837
    %v11710 = vpop.f32.mrf.mxu0
    %v11711 = vadd.f32 %v11566, %v11710
    %v11712 = vpop.f32.mrf.mxu0
    %11713 = vmatprep.mubr.f32.mxu0 %v9850
    %11714 = vmatmul.mubr.f32.gmra.mxu0 %v9849
    %v11715 = vpop.f32.mrf.mxu0
    %v11716 = vadd.f32 %v11571, %v11715
    %v11717 = vpop.f32.mrf.mxu0
    %11718 = vmatprep.mubr.f32.mxu0 %v10034
    %11719 = vmatmul.mubr.f32.gmra.mxu0 %v10033
    %v11720 = vpop.f32.mrf.mxu0
    %v11721 = vadd.f32 %v11576, %v11720
    %v11722 = vpop.f32.mrf.mxu0
    %11723 = vmatprep.mubr.f32.mxu0 %v10046
    %11724 = vmatmul.mubr.f32.gmra.mxu0 %v10045
    %v11725 = vpop.f32.mrf.mxu0
    %v11726 = vadd.f32 %v11581, %v11725
    %v11727 = vpop.f32.mrf.mxu0
    %11728 = vmatprep.mubr.f32.mxu0 %v10058
    %11729 = vmatmul.mubr.f32.gmra.mxu0 %v10057
    %v11730 = vpop.f32.mrf.mxu0
    %v11731 = vadd.f32 %v11586, %v11730
    %v11732 = vpop.f32.mrf.mxu0
    %11733 = vmatprep.mubr.f32.mxu0 %v10070
    %11734 = vmatmul.mubr.f32.gmra.mxu0 %v10069
    %v11735 = vpop.f32.mrf.mxu0
    %v11736 = vadd.f32 %v11591, %v11735
    %v11737 = vpop.f32.mrf.mxu0
    %11738 = vmatprep.mubr.f32.mxu0 %v10250
    %11739 = vmatmul.mubr.f32.gmra.mxu0 %v10249
    %v11740 = vpop.f32.mrf.mxu0
    %v11741 = vadd.f32 %v11596, %v11740
    %v11742 = vpop.f32.mrf.mxu0
    %11743 = vmatprep.mubr.f32.mxu0 %v10262
    %11744 = vmatmul.mubr.f32.gmra.mxu0 %v10261
    %v11745 = vpop.f32.mrf.mxu0
    %v11746 = vadd.f32 %v11601, %v11745
    %v11747 = vpop.f32.mrf.mxu0
    %11748 = vmatprep.mubr.f32.mxu0 %v10274
    %11749 = vmatmul.mubr.f32.gmra.mxu0 %v10273
    %v11750 = vpop.f32.mrf.mxu0
    %v11751 = vadd.f32 %v11606, %v11750
    %v11752 = vpop.f32.mrf.mxu0
    %11753 = vmatprep.mubr.f32.mxu0 %v10286
    %11754 = vmatmul.mubr.f32.gmra.mxu0 %v10285
    %v11755 = vpop.f32.mrf.mxu0
    %v11756 = vadd.f32 %v11611, %v11755
    %v11757 = vpop.f32.mrf.mxu0
    %11758 = vdwg.mxu0
    %11759 = vmatprep.subr.mxu0 0.0
    %11760 = vmatpush1.msra.mxu0 %v11090
    %11761 = vmatprep.subr.mxu0 0.0
    %11762 = vmatpush1.msra.mxu0 %v11089
    %11763 = vmatprep.subr.mxu0 0.0
    %11764 = vmatpush1.msra.mxu0 %v11088
    %11765 = vmatprep.subr.mxu0 0.0
    %11766 = vmatpush1.msra.mxu0 %v11087
    %11767 = vmatprep.subr.mxu0 0.0
    %11768 = vmatpush1.msra.mxu0 %v11086
    %11769 = vmatprep.subr.mxu0 0.0
    %11770 = vmatpush1.msra.mxu0 %v11085
    %11771 = vmatprep.subr.mxu0 0.0
    %11772 = vmatpush1.msra.mxu0 %v11084
    %11773 = vmatprep.subr.mxu0 0.0
    %11774 = vmatpush1.msra.mxu0 %v11083
    %11775 = vmatprep.subr.mxu0 0.0
    %11776 = vmatpush1.msra.mxu0 %v11082
    %11777 = vmatprep.subr.mxu0 0.0
    %11778 = vmatpush1.msra.mxu0 %v11081
    %11779 = vmatprep.subr.mxu0 0.0
    %11780 = vmatpush1.msra.mxu0 %v11080
    %11781 = vmatprep.subr.mxu0 0.0
    %11782 = vmatpush1.msra.mxu0 %v11079
    %11783 = vmatprep.subr.mxu0 0.0
    %11784 = vmatpush1.msra.mxu0 %v11078
    %11785 = vmatprep.subr.mxu0 0.0
    %11786 = vmatpush1.msra.mxu0 %v11077
    %11787 = vmatprep.subr.mxu0 0.0
    %11788 = vmatpush1.msra.mxu0 %v11076
    %11789 = vmatprep.subr.mxu0 0.0
    %11790 = vmatpush1.msra.mxu0 %v11075
    %11791 = vmatprep.subr.mxu0 0.0
    %11792 = vmatpush2.msra.mxu0 %v11106
    %11793 = vmatprep.subr.mxu0 0.0
    %11794 = vmatpush2.msra.mxu0 %v11105
    %11795 = vmatprep.subr.mxu0 0.0
    %11796 = vmatpush2.msra.mxu0 %v11104
    %11797 = vmatprep.subr.mxu0 0.0
    %11798 = vmatpush2.msra.mxu0 %v11103
    %11799 = vmatprep.subr.mxu0 0.0
    %11800 = vmatpush2.msra.mxu0 %v11102
    %11801 = vmatprep.subr.mxu0 0.0
    %11802 = vmatpush2.msra.mxu0 %v11101
    %11803 = vmatprep.subr.mxu0 0.0
    %11804 = vmatpush2.msra.mxu0 %v11100
    %11805 = vmatprep.subr.mxu0 0.0
    %11806 = vmatpush2.msra.mxu0 %v11099
    %11807 = vmatprep.subr.mxu0 0.0
    %11808 = vmatpush2.msra.mxu0 %v11098
    %11809 = vmatprep.subr.mxu0 0.0
    %11810 = vmatpush2.msra.mxu0 %v11097
    %11811 = vmatprep.subr.mxu0 0.0
    %11812 = vmatpush2.msra.mxu0 %v11096
    %11813 = vmatprep.subr.mxu0 0.0
    %11814 = vmatpush2.msra.mxu0 %v11095
    %11815 = vmatprep.subr.mxu0 0.0
    %11816 = vmatpush2.msra.mxu0 %v11094
    %11817 = vmatprep.subr.mxu0 0.0
    %11818 = vmatpush2.msra.mxu0 %v11093
    %11819 = vmatprep.subr.mxu0 0.0
    %11820 = vmatpush2.msra.mxu0 %v11092
    %11821 = vmatprep.subr.mxu0 0.0
    %11822 = vmatpush2.msra.mxu0 %v11091
    %11823 = vmatprep.mubr.f32.mxu0 %v9608
    %11824 = vmatmul.mubr.f32.gmra.mxu0 %v9607
    %v11825 = vpop.f32.mrf.mxu0
    %v11826 = vadd.f32 %v11681, %v11825
    %v11827 = vpop.f32.mrf.mxu0
    %11828 = vmatprep.mubr.f32.mxu0 %v9621
    %11829 = vmatmul.mubr.f32.gmra.mxu0 %v9620
    %v11830 = vpop.f32.mrf.mxu0
    %v11831 = vadd.f32 %v11686, %v11830
    %v11832 = vpop.f32.mrf.mxu0
    %11833 = vmatprep.mubr.f32.mxu0 %v9634
    %11834 = vmatmul.mubr.f32.gmra.mxu0 %v9633
    %v11835 = vpop.f32.mrf.mxu0
    %v11836 = vadd.f32 %v11691, %v11835
    %v11837 = vpop.f32.mrf.mxu0
    %11838 = vmatprep.mubr.f32.mxu0 %v9647
    %11839 = vmatmul.mubr.f32.gmra.mxu0 %v9646
    %v11840 = vpop.f32.mrf.mxu0
    %v11841 = vadd.f32 %v11696, %v11840
    %v11842 = vpop.f32.mrf.mxu0
    %11843 = vmatprep.mubr.f32.mxu0 %v9816
    %11844 = vmatmul.mubr.f32.gmra.mxu0 %v9815
    %v11845 = vpop.f32.mrf.mxu0
    %v11846 = vadd.f32 %v11701, %v11845
    %v11847 = vpop.f32.mrf.mxu0
    %11848 = vmatprep.mubr.f32.mxu0 %v9828
    %11849 = vmatmul.mubr.f32.gmra.mxu0 %v9827
    %v11850 = vpop.f32.mrf.mxu0
    %v11851 = vadd.f32 %v11706, %v11850
    %v11852 = vpop.f32.mrf.mxu0
    %11853 = vmatprep.mubr.f32.mxu0 %v9840
    %11854 = vmatmul.mubr.f32.gmra.mxu0 %v9839
    %v11855 = vpop.f32.mrf.mxu0
    %v11856 = vadd.f32 %v11711, %v11855
    %v11857 = vpop.f32.mrf.mxu0
    %11858 = vmatprep.mubr.f32.mxu0 %v9852
    %11859 = vmatmul.mubr.f32.gmra.mxu0 %v9851
    %v11860 = vpop.f32.mrf.mxu0
    %v11861 = vadd.f32 %v11716, %v11860
    %v11862 = vpop.f32.mrf.mxu0
    %11863 = vmatprep.mubr.f32.mxu0 %v10036
    %11864 = vmatmul.mubr.f32.gmra.mxu0 %v10035
    %v11865 = vpop.f32.mrf.mxu0
    %v11866 = vadd.f32 %v11721, %v11865
    %v11867 = vpop.f32.mrf.mxu0
    %11868 = vmatprep.mubr.f32.mxu0 %v10048
    %11869 = vmatmul.mubr.f32.gmra.mxu0 %v10047
    %v11870 = vpop.f32.mrf.mxu0
    %v11871 = vadd.f32 %v11726, %v11870
    %v11872 = vpop.f32.mrf.mxu0
    %11873 = vmatprep.mubr.f32.mxu0 %v10060
    %11874 = vmatmul.mubr.f32.gmra.mxu0 %v10059
    %v11875 = vpop.f32.mrf.mxu0
    %v11876 = vadd.f32 %v11731, %v11875
    %v11877 = vpop.f32.mrf.mxu0
    %11878 = vmatprep.mubr.f32.mxu0 %v10072
    %11879 = vmatmul.mubr.f32.gmra.mxu0 %v10071
    %v11880 = vpop.f32.mrf.mxu0
    %v11881 = vadd.f32 %v11736, %v11880
    %v11882 = vpop.f32.mrf.mxu0
    %11883 = vmatprep.mubr.f32.mxu0 %v10252
    %11884 = vmatmul.mubr.f32.gmra.mxu0 %v10251
    %v11885 = vpop.f32.mrf.mxu0
    %v11886 = vadd.f32 %v11741, %v11885
    %v11887 = vpop.f32.mrf.mxu0
    %11888 = vmatprep.mubr.f32.mxu0 %v10264
    %11889 = vmatmul.mubr.f32.gmra.mxu0 %v10263
    %v11890 = vpop.f32.mrf.mxu0
    %v11891 = vadd.f32 %v11746, %v11890
    %v11892 = vpop.f32.mrf.mxu0
    %11893 = vmatprep.mubr.f32.mxu0 %v10276
    %11894 = vmatmul.mubr.f32.gmra.mxu0 %v10275
    %v11895 = vpop.f32.mrf.mxu0
    %v11896 = vadd.f32 %v11751, %v11895
    %v11897 = vpop.f32.mrf.mxu0
    %11898 = vmatprep.mubr.f32.mxu0 %v10288
    %11899 = vmatmul.mubr.f32.gmra.mxu0 %v10287
    %v11900 = vpop.f32.mrf.mxu0
    %v11901 = vadd.f32 %v11756, %v11900
    %v11902 = vpop.f32.mrf.mxu0
    %11903 = vdwg.mxu0
    %11904 = vmatprep.subr.mxu0 0.0
    %11905 = vmatpush1.msra.mxu0 %v11122
    %11906 = vmatprep.subr.mxu0 0.0
    %11907 = vmatpush1.msra.mxu0 %v11121
    %11908 = vmatprep.subr.mxu0 0.0
    %11909 = vmatpush1.msra.mxu0 %v11120
    %11910 = vmatprep.subr.mxu0 0.0
    %11911 = vmatpush1.msra.mxu0 %v11119
    %11912 = vmatprep.subr.mxu0 0.0
    %11913 = vmatpush1.msra.mxu0 %v11118
    %11914 = vmatprep.subr.mxu0 0.0
    %11915 = vmatpush1.msra.mxu0 %v11117
    %11916 = vmatprep.subr.mxu0 0.0
    %11917 = vmatpush1.msra.mxu0 %v11116
    %11918 = vmatprep.subr.mxu0 0.0
    %11919 = vmatpush1.msra.mxu0 %v11115
    %11920 = vmatprep.subr.mxu0 0.0
    %11921 = vmatpush1.msra.mxu0 %v11114
    %11922 = vmatprep.subr.mxu0 0.0
    %11923 = vmatpush1.msra.mxu0 %v11113
    %11924 = vmatprep.subr.mxu0 0.0
    %11925 = vmatpush1.msra.mxu0 %v11112
    %11926 = vmatprep.subr.mxu0 0.0
    %11927 = vmatpush1.msra.mxu0 %v11111
    %11928 = vmatprep.subr.mxu0 0.0
    %11929 = vmatpush1.msra.mxu0 %v11110
    %11930 = vmatprep.subr.mxu0 0.0
    %11931 = vmatpush1.msra.mxu0 %v11109
    %11932 = vmatprep.subr.mxu0 0.0
    %11933 = vmatpush1.msra.mxu0 %v11108
    %11934 = vmatprep.subr.mxu0 0.0
    %11935 = vmatpush1.msra.mxu0 %v11107
    %11936 = vmatprep.subr.mxu0 0.0
    %11937 = vmatpush2.msra.mxu0 %v11138
    %11938 = vmatprep.subr.mxu0 0.0
    %11939 = vmatpush2.msra.mxu0 %v11137
    %11940 = vmatprep.subr.mxu0 0.0
    %11941 = vmatpush2.msra.mxu0 %v11136
    %11942 = vmatprep.subr.mxu0 0.0
    %11943 = vmatpush2.msra.mxu0 %v11135
    %11944 = vmatprep.subr.mxu0 0.0
    %11945 = vmatpush2.msra.mxu0 %v11134
    %11946 = vmatprep.subr.mxu0 0.0
    %11947 = vmatpush2.msra.mxu0 %v11133
    %11948 = vmatprep.subr.mxu0 0.0
    %11949 = vmatpush2.msra.mxu0 %v11132
    %11950 = vmatprep.subr.mxu0 0.0
    %11951 = vmatpush2.msra.mxu0 %v11131
    %11952 = vmatprep.subr.mxu0 0.0
    %11953 = vmatpush2.msra.mxu0 %v11130
    %11954 = vmatprep.subr.mxu0 0.0
    %11955 = vmatpush2.msra.mxu0 %v11129
    %11956 = vmatprep.subr.mxu0 0.0
    %11957 = vmatpush2.msra.mxu0 %v11128
    %11958 = vmatprep.subr.mxu0 0.0
    %11959 = vmatpush2.msra.mxu0 %v11127
    %11960 = vmatprep.subr.mxu0 0.0
    %11961 = vmatpush2.msra.mxu0 %v11126
    %11962 = vmatprep.subr.mxu0 0.0
    %11963 = vmatpush2.msra.mxu0 %v11125
    %11964 = vmatprep.subr.mxu0 0.0
    %11965 = vmatpush2.msra.mxu0 %v11124
    %11966 = vmatprep.subr.mxu0 0.0
    %11967 = vmatpush2.msra.mxu0 %v11123
    %11968 = vmatprep.mubr.f32.mxu0 %v9610
    %11969 = vmatmul.mubr.f32.gmra.mxu0 %v9609
    %v11970 = vpop.f32.mrf.mxu0
    %v11971 = vadd.f32 %v11826, %v11970
    %v11972 = vpop.f32.mrf.mxu0
    %11973 = vmatprep.mubr.f32.mxu0 %v9623
    %11974 = vmatmul.mubr.f32.gmra.mxu0 %v9622
    %v11975 = vpop.f32.mrf.mxu0
    %v11976 = vadd.f32 %v11831, %v11975
    %v11977 = vpop.f32.mrf.mxu0
    %11978 = vmatprep.mubr.f32.mxu0 %v9636
    %11979 = vmatmul.mubr.f32.gmra.mxu0 %v9635
    %v11980 = vpop.f32.mrf.mxu0
    %v11981 = vadd.f32 %v11836, %v11980
    %v11982 = vpop.f32.mrf.mxu0
    %11983 = vmatprep.mubr.f32.mxu0 %v9649
    %11984 = vmatmul.mubr.f32.gmra.mxu0 %v9648
    %v11985 = vpop.f32.mrf.mxu0
    %v11986 = vadd.f32 %v11841, %v11985
    %v11987 = vpop.f32.mrf.mxu0
    %11988 = vmatprep.mubr.f32.mxu0 %v9818
    %11989 = vmatmul.mubr.f32.gmra.mxu0 %v9817
    %v11990 = vpop.f32.mrf.mxu0
    %v11991 = vadd.f32 %v11846, %v11990
    %v11992 = vpop.f32.mrf.mxu0
    %11993 = vmatprep.mubr.f32.mxu0 %v9830
    %11994 = vmatmul.mubr.f32.gmra.mxu0 %v9829
    %v11995 = vpop.f32.mrf.mxu0
    %v11996 = vadd.f32 %v11851, %v11995
    %v11997 = vpop.f32.mrf.mxu0
    %11998 = vmatprep.mubr.f32.mxu0 %v9842
    %11999 = vmatmul.mubr.f32.gmra.mxu0 %v9841
    %v12000 = vpop.f32.mrf.mxu0
    %v12001 = vadd.f32 %v11856, %v12000
    %v12002 = vpop.f32.mrf.mxu0
    %12003 = vmatprep.mubr.f32.mxu0 %v9854
    %12004 = vmatmul.mubr.f32.gmra.mxu0 %v9853
    %v12005 = vpop.f32.mrf.mxu0
    %v12006 = vadd.f32 %v11861, %v12005
    %v12007 = vpop.f32.mrf.mxu0
    %12008 = vmatprep.mubr.f32.mxu0 %v10135
    %12009 = vmatmul.mubr.f32.gmra.mxu0 %v10037
    %v12010 = vpop.f32.mrf.mxu0
    %v12011 = vadd.f32 %v11866, %v12010
    %v12012 = vpop.f32.mrf.mxu0
    %12013 = vmatprep.mubr.f32.mxu0 %v10136
    %12014 = vmatmul.mubr.f32.gmra.mxu0 %v10049
    %v12015 = vpop.f32.mrf.mxu0
    %v12016 = vadd.f32 %v11871, %v12015
    %v12017 = vpop.f32.mrf.mxu0
    %12018 = vmatprep.mubr.f32.mxu0 %v10137
    %12019 = vmatmul.mubr.f32.gmra.mxu0 %v10061
    %v12020 = vpop.f32.mrf.mxu0
    %v12021 = vadd.f32 %v11876, %v12020
    %v12022 = vpop.f32.mrf.mxu0
    %12023 = vmatprep.mubr.f32.mxu0 %v10138
    %12024 = vmatmul.mubr.f32.gmra.mxu0 %v10073
    %v12025 = vpop.f32.mrf.mxu0
    %v12026 = vadd.f32 %v11881, %v12025
    %v12027 = vpop.f32.mrf.mxu0
    %12028 = vmatprep.mubr.f32.mxu0 %v10351
    %12029 = vmatmul.mubr.f32.gmra.mxu0 %v10253
    %v12030 = vpop.f32.mrf.mxu0
    %v12031 = vadd.f32 %v11886, %v12030
    %v12032 = vpop.f32.mrf.mxu0
    %12033 = vmatprep.mubr.f32.mxu0 %v10352
    %12034 = vmatmul.mubr.f32.gmra.mxu0 %v10265
    %v12035 = vpop.f32.mrf.mxu0
    %v12036 = vadd.f32 %v11891, %v12035
    %v12037 = vpop.f32.mrf.mxu0
    %12038 = vmatprep.mubr.f32.mxu0 %v10353
    %12039 = vmatmul.mubr.f32.gmra.mxu0 %v10277
    %v12040 = vpop.f32.mrf.mxu0
    %v12041 = vadd.f32 %v11896, %v12040
    %v12042 = vpop.f32.mrf.mxu0
    %12043 = vmatprep.mubr.f32.mxu0 %v10354
    %12044 = vmatmul.mubr.f32.gmra.mxu0 %v10289
    %v12045 = vpop.f32.mrf.mxu0
    %v12046 = vadd.f32 %v11901, %v12045
    %v12047 = vpop.f32.mrf.mxu0
    %12048 = vdwg.mxu0
    %12049 = vmatprep.subr.mxu0 0.0
    %12050 = vmatpush1.msra.mxu0 0.0
    %12051 = vmatprep.subr.mxu0 0.0
    %12052 = vmatpush1.msra.mxu0 0.0
    %12053 = vmatprep.subr.mxu0 0.0
    %12054 = vmatpush1.msra.mxu0 0.0
    %12055 = vmatprep.subr.mxu0 0.0
    %12056 = vmatpush1.msra.mxu0 0.0
    %12057 = vmatprep.subr.mxu0 0.0
    %12058 = vmatpush1.msra.mxu0 0.0
    %12059 = vmatprep.subr.mxu0 0.0
    %12060 = vmatpush1.msra.mxu0 0.0
    %12061 = vmatprep.subr.mxu0 0.0
    %12062 = vmatpush1.msra.mxu0 0.0
    %12063 = vmatprep.subr.mxu0 0.0
    %12064 = vmatpush1.msra.mxu0 0.0
    %12065 = vmatprep.subr.mxu0 0.0
    %12066 = vmatpush1.msra.mxu0 0.0
    %12067 = vmatprep.subr.mxu0 0.0
    %12068 = vmatpush1.msra.mxu0 0.0
    %12069 = vmatprep.subr.mxu0 0.0
    %12070 = vmatpush1.msra.mxu0 0.0
    %12071 = vmatprep.subr.mxu0 0.0
    %12072 = vmatpush1.msra.mxu0 0.0
    %12073 = vmatprep.subr.mxu0 0.0
    %12074 = vmatpush1.msra.mxu0 %v11142
    %12075 = vmatprep.subr.mxu0 0.0
    %12076 = vmatpush1.msra.mxu0 %v11141
    %12077 = vmatprep.subr.mxu0 0.0
    %12078 = vmatpush1.msra.mxu0 %v11140
    %12079 = vmatprep.subr.mxu0 0.0
    %12080 = vmatpush1.msra.mxu0 %v11139
    %12081 = vmatprep.subr.mxu0 0.0
    %12082 = vmatpush2.msra.mxu0 0.0
    %12083 = vmatprep.subr.mxu0 0.0
    %12084 = vmatpush2.msra.mxu0 0.0
    %12085 = vmatprep.subr.mxu0 0.0
    %12086 = vmatpush2.msra.mxu0 0.0
    %12087 = vmatprep.subr.mxu0 0.0
    %12088 = vmatpush2.msra.mxu0 0.0
    %12089 = vmatprep.subr.mxu0 0.0
    %12090 = vmatpush2.msra.mxu0 0.0
    %12091 = vmatprep.subr.mxu0 0.0
    %12092 = vmatpush2.msra.mxu0 0.0
    %12093 = vmatprep.subr.mxu0 0.0
    %12094 = vmatpush2.msra.mxu0 0.0
    %12095 = vmatprep.subr.mxu0 0.0
    %12096 = vmatpush2.msra.mxu0 0.0
    %12097 = vmatprep.subr.mxu0 0.0
    %12098 = vmatpush2.msra.mxu0 0.0
    %12099 = vmatprep.subr.mxu0 0.0
    %12100 = vmatpush2.msra.mxu0 0.0
    %12101 = vmatprep.subr.mxu0 0.0
    %12102 = vmatpush2.msra.mxu0 0.0
    %12103 = vmatprep.subr.mxu0 0.0
    %12104 = vmatpush2.msra.mxu0 0.0
    %12105 = vmatprep.subr.mxu0 0.0
    %12106 = vmatpush2.msra.mxu0 0.0
    %12107 = vmatprep.subr.mxu0 0.0
    %12108 = vmatpush2.msra.mxu0 0.0
    %12109 = vmatprep.subr.mxu0 0.0
    %12110 = vmatpush2.msra.mxu0 0.0
    %12111 = vmatprep.subr.mxu0 0.0
    %12112 = vmatpush2.msra.mxu0 0.0
    %12113 = vmatprep.mubr.f32.mxu0 0.0
    %12114 = vmatmul.mubr.f32.gmra.mxu0 %v11143
    %v12115 = vpop.f32.mrf.mxu0
    %v12116 = vadd.f32 %v11971, %v12115
    %v12117 = vpop.f32.mrf.mxu0
    %12118 = vmatprep.mubr.f32.mxu0 0.0
    %12119 = vmatmul.mubr.f32.gmra.mxu0 %v11145
    %v12120 = vpop.f32.mrf.mxu0
    %v12121 = vadd.f32 %v11976, %v12120
    %v12122 = vpop.f32.mrf.mxu0
    %12123 = vmatprep.mubr.f32.mxu0 0.0
    %12124 = vmatmul.mubr.f32.gmra.mxu0 %v11147
    %v12125 = vpop.f32.mrf.mxu0
    %v12126 = vadd.f32 %v11981, %v12125
    %v12127 = vpop.f32.mrf.mxu0
    %12128 = vmatprep.mubr.f32.mxu0 0.0
    %12129 = vmatmul.mubr.f32.gmra.mxu0 %v11149
    %v12130 = vpop.f32.mrf.mxu0
    %v12131 = vadd.f32 %v11986, %v12130
    %v12132 = vpop.f32.mrf.mxu0
    %12133 = vmatprep.mubr.f32.mxu0 0.0
    %12134 = vmatmul.mubr.f32.gmra.mxu0 %v11152
    %v12135 = vpop.f32.mrf.mxu0
    %v12136 = vadd.f32 %v11991, %v12135
    %v12137 = vpop.f32.mrf.mxu0
    %12138 = vmatprep.mubr.f32.mxu0 0.0
    %12139 = vmatmul.mubr.f32.gmra.mxu0 %v11155
    %v12140 = vpop.f32.mrf.mxu0
    %v12141 = vadd.f32 %v11996, %v12140
    %v12142 = vpop.f32.mrf.mxu0
    %12143 = vmatprep.mubr.f32.mxu0 0.0
    %12144 = vmatmul.mubr.f32.gmra.mxu0 %v11158
    %v12145 = vpop.f32.mrf.mxu0
    %v12146 = vadd.f32 %v12001, %v12145
    %v12147 = vpop.f32.mrf.mxu0
    %12148 = vmatprep.mubr.f32.mxu0 0.0
    %12149 = vmatmul.mubr.f32.gmra.mxu0 %v11161
    %v12150 = vpop.f32.mrf.mxu0
    %v12151 = vadd.f32 %v12006, %v12150
    %v12152 = vpop.f32.mrf.mxu0
    %12153 = vmatprep.mubr.f32.mxu0 0.0
    %12154 = vmatmul.mubr.f32.gmra.mxu0 %v11163
    %v12155 = vpop.f32.mrf.mxu0
    %v12156 = vadd.f32 %v12011, %v12155
    %v12157 = vpop.f32.mrf.mxu0
    %12158 = vmatprep.mubr.f32.mxu0 0.0
    %12159 = vmatmul.mubr.f32.gmra.mxu0 %v11165
    %v12160 = vpop.f32.mrf.mxu0
    %v12161 = vadd.f32 %v12016, %v12160
    %v12162 = vpop.f32.mrf.mxu0
    %12163 = vmatprep.mubr.f32.mxu0 0.0
    %12164 = vmatmul.mubr.f32.gmra.mxu0 %v11167
    %v12165 = vpop.f32.mrf.mxu0
    %v12166 = vadd.f32 %v12021, %v12165
    %v12167 = vpop.f32.mrf.mxu0
    %12168 = vmatprep.mubr.f32.mxu0 0.0
    %12169 = vmatmul.mubr.f32.gmra.mxu0 %v11169
    %v12170 = vpop.f32.mrf.mxu0
    %v12171 = vadd.f32 %v12026, %v12170
    %v12172 = vpop.f32.mrf.mxu0
    %12173 = vmatprep.mubr.f32.mxu0 0.0
    %12174 = vmatmul.mubr.f32.gmra.mxu0 %v11171
    %v12175 = vpop.f32.mrf.mxu0
    %v12176 = vadd.f32 %v12031, %v12175
    %v12177 = vpop.f32.mrf.mxu0
    %12178 = vmatprep.mubr.f32.mxu0 0.0
    %12179 = vmatmul.mubr.f32.gmra.mxu0 %v11173
    %v12180 = vpop.f32.mrf.mxu0
    %v12181 = vadd.f32 %v12036, %v12180
    %v12182 = vpop.f32.mrf.mxu0
    %12183 = vmatprep.mubr.f32.mxu0 0.0
    %12184 = vmatmul.mubr.f32.gmra.mxu0 %v11175
    %v12185 = vpop.f32.mrf.mxu0
    %v12186 = vadd.f32 %v12041, %v12185
    %v12187 = vpop.f32.mrf.mxu0
    %12188 = vmatprep.mubr.f32.mxu0 0.0
    %12189 = vmatmul.mubr.f32.gmra.mxu0 %v11177
    %v12190 = vpop.f32.mrf.mxu0
    %v12191 = vadd.f32 %v12046, %v12190
    %v12192 = vpop.f32.mrf.mxu0
    %12193 = vdwg.mxu0
    %12194 = vxpose.xlu0.b32.start [1/16] %v12116, 128
    %12195 = vxpose.xlu0.b32.cont [2/16] %v12121, 128
    %12196 = vxpose.xlu0.b32.cont [3/16] %v12126, 128
    %12197 = vxpose.xlu0.b32.cont [4/16] %v12131, 128
    %12198 = vxpose.xlu0.b32.cont [5/16] %v12136, 128
    %12199 = vxpose.xlu0.b32.cont [6/16] %v12141, 128
    %12200 = vxpose.xlu0.b32.cont [7/16] %v12146, 128
    %12201 = vxpose.xlu0.b32.cont [8/16] %v12151, 128
    %12202 = vxpose.xlu0.b32.cont [9/16] %v12156, 128
    %12203 = vxpose.xlu0.b32.cont [10/16] %v12161, 128
    %12204 = vxpose.xlu0.b32.cont [11/16] %v12166, 128
    %12205 = vxpose.xlu0.b32.cont [12/16] %v12171, 128
    %12206 = vxpose.xlu0.b32.cont [13/16] %v12176, 128
    %12207 = vxpose.xlu0.b32.cont [14/16] %v12181, 128
    %12208 = vxpose.xlu0.b32.cont [15/16] %v12186, 128
    %12209 = vxpose.xlu0.b32.end [16/16] %v12191, 128
    %v12210 = vpop.trf.xlu0
    %v12211 = vpop.trf.xlu0
    %v12212 = vpop.trf.xlu0
    %v12213 = vpop.trf.xlu0
    %v12214 = vpop.trf.xlu0
    %v12215 = vpop.trf.xlu0
    %v12216 = vpop.trf.xlu0
    %v12217 = vpop.trf.xlu0
    %v12218 = vpop.trf.xlu0
    %v12219 = vpop.trf.xlu0
    %v12220 = vpop.trf.xlu0
    %v12221 = vpop.trf.xlu0
    %v12222 = vpop.trf.xlu0
    %v12223 = vpop.trf.xlu0
    %v12224 = vpop.trf.xlu0
    %v12225 = vpop.trf.xlu0
    %v12226 = vpack.c.bf16 %v12210, %v12210
    %v12227 = vld [vmem:[%s5] sm:$0xf]
    %v12228 = vld [vmem:[%s5 + $0x4] sm:$0xf]
    %v12229 = vld [vmem:[%s5 + $0x8] sm:$0xf]
    %v12230 = vld [vmem:[%s5 + $0xc] sm:$0xf]
    %v12231 = vld [vmem:[%s5 + $0x10] sm:$0xf]
    %v12232 = vld [vmem:[%s5 + $0x14] sm:$0xf]
    %v12233 = vld [vmem:[%s5 + $0x18] sm:$0xf]
    %v12234 = vld [vmem:[%s5 + $0x1c] sm:$0xf]
    %v12235 = vld [vmem:[%s5 + $0x20] sm:$0xf]
    %v12236 = vld [vmem:[%s5 + $0x24] sm:$0xf]
    %v12237 = vld [vmem:[%s5 + $0x28] sm:$0xf]
    %v12238 = vld [vmem:[%s5 + $0x2c] sm:$0xf]
    %v12239 = vld [vmem:[%s5 + $0x30] sm:$0xf]
    %v12240 = vld [vmem:[%s5 + $0x34] sm:$0xf]
    %v12241 = vld [vmem:[%s5 + $0x38] sm:$0xf]
    %v12242 = vld [vmem:[%s5 + $0x3c] sm:$0xf]
    %v12243 = vld [vmem:[%s6] sm:$0x1]
    %v12245 = vlaneseq
    %v12246 = vshrl.u32 %v12245, 7
    %v12247 = vsub.s32 0, %v12246
    %v12248 = vrot.slane %v12243, %v12247
    %v12266 = vunpack.c.l.b16 %v12227
    %v12267 = vunpack.c.l.b16 %v12228
    %v12268 = vunpack.c.l.b16 %v12229
    %v12269 = vunpack.c.l.b16 %v12230
    %v12270 = vunpack.c.l.b16 %v12231
    %v12271 = vunpack.c.l.b16 %v12232
    %v12272 = vunpack.c.l.b16 %v12233
    %v12273 = vunpack.c.l.b16 %v12234
    %v12274 = vunpack.c.l.b16 %v12235
    %v12275 = vunpack.c.l.b16 %v12236
    %v12276 = vunpack.c.l.b16 %v12237
    %v12277 = vunpack.c.l.b16 %v12238
    %v12278 = vunpack.c.l.b16 %v12239
    %v12279 = vunpack.c.l.b16 %v12240
    %v12280 = vunpack.c.l.b16 %v12241
    %v12281 = vunpack.c.l.b16 %v12242
    %v12282 = vpack.c.b16 %v12267, %v12266
    %v12283 = vpack.c.b16 %v12269, %v12268
    %v12284 = vpack.c.b16 %v12271, %v12270
    %v12285 = vpack.c.b16 %v12273, %v12272
    %v12286 = vpack.c.b16 %v12275, %v12274
    %v12287 = vpack.c.b16 %v12277, %v12276
    %v12288 = vpack.c.b16 %v12279, %v12278
    %v12289 = vpack.c.b16 %v12281, %v12280
    %12298 = vmatprep.subr.bf16.mxu0 0
    %12299 = vmatpush1.bf16.msra.mxu0 %v12289
    %12300 = vmatprep.subr.bf16.mxu0 0
    %12301 = vmatpush1.bf16.msra.mxu0 %v12288
    %12302 = vmatprep.subr.bf16.mxu0 0
    %12303 = vmatpush1.bf16.msra.mxu0 %v12287
    %12304 = vmatprep.subr.bf16.mxu0 0
    %12305 = vmatpush1.bf16.msra.mxu0 %v12286
    %12306 = vmatprep.subr.bf16.mxu0 0
    %12307 = vmatpush1.bf16.msra.mxu0 %v12285
    %12308 = vmatprep.subr.bf16.mxu0 0
    %12309 = vmatpush1.bf16.msra.mxu0 %v12284
    %12310 = vmatprep.subr.bf16.mxu0 0
    %12311 = vmatpush1.bf16.msra.mxu0 %v12283
    %12312 = vmatprep.subr.bf16.mxu0 0
    %12313 = vmatpush1.bf16.msra.mxu0 %v12282
    %12314 = vmatprep.subr.bf16.mxu0 0
    %12315 = vmatpush2.bf16.msra.mxu0 0
    %12316 = vmatprep.subr.bf16.mxu0 0
    %12317 = vmatpush2.bf16.msra.mxu0 0
    %12318 = vmatprep.subr.bf16.mxu0 0
    %12319 = vmatpush2.bf16.msra.mxu0 0
    %12320 = vmatprep.subr.bf16.mxu0 0
    %12321 = vmatpush2.bf16.msra.mxu0 0
    %12322 = vmatprep.subr.bf16.mxu0 0
    %12323 = vmatpush2.bf16.msra.mxu0 0
    %12324 = vmatprep.subr.bf16.mxu0 0
    %12325 = vmatpush2.bf16.msra.mxu0 0
    %12326 = vmatprep.subr.bf16.mxu0 0
    %12327 = vmatpush2.bf16.msra.mxu0 0
    %12328 = vmatprep.subr.bf16.mxu0 0
    %12329 = vmatpush2.bf16.msra.mxu0 0
    %12330 = vmatprep.mubr.bf16.mxu0 0
    %12331 = vmatmul.mubr.bf16.gmra.mxu0 %v12226
    %v12332 = vpop.f32.mrf.mxu0
    %v12333 = vadd.f32 %v12248, %v12332
    %v12334 = vpop.f32.mrf.mxu0
    %v12335 = vpop.f32.mrf.mxu0
    %v12336 = vpop.f32.mrf.mxu0
    %12337 = vdwg.mxu0
    %v12338 = vmax.f32 %v12333, 0.0
    %v12339 = vpack.c.bf16 %v12338, %v12338
    %v12340 = vld [vmem:[%s7] sm:$0xf]
    %v12341 = vld [vmem:[%s7 + $0x4] sm:$0xf]
    %v12342 = vld [vmem:[%s7 + $0x8] sm:$0xf]
    %v12343 = vld [vmem:[%s7 + $0xc] sm:$0xf]
    %v12344 = vld [vmem:[%s7 + $0x10] sm:$0xf]
    %v12345 = vld [vmem:[%s7 + $0x14] sm:$0xf]
    %v12346 = vld [vmem:[%s7 + $0x18] sm:$0x1]
    %v12347 = vld [vmem:[%s8] sm:$0x1]
    %v12349 = vlaneseq
    %v12350 = vshrl.u32 %v12349, 7
    %v12351 = vsub.s32 0, %v12350
    %v12352 = vrot.slane %v12347, %v12351
    %v12361 = vunpack.c.l.b16 %v12340
    %v12362 = vunpack.c.l.b16 %v12341
    %v12363 = vunpack.c.l.b16 %v12342
    %v12364 = vunpack.c.l.b16 %v12343
    %v12365 = vunpack.c.l.b16 %v12344
    %v12366 = vunpack.c.l.b16 %v12345
    %v12367 = vunpack.c.l.b16 %v12346
    %v12368 = vpack.c.b16 %v12362, %v12361
    %v12369 = vpack.c.b16 %v12364, %v12363
    %v12370 = vpack.c.b16 %v12366, %v12365
    %v12371 = vpack.c.b16 %v12367, %v12367
    %vm12375 = vcmask 408576
    %v12377 = vsel %vm12375, %v12339, 0
    %vm12379 = vcmask 1040384
    %v12381 = vsel %vm12379, %v12371, 0
    %12383 = vmatprep.subr.bf16.mxu0 0
    %12384 = vmatpush1.bf16.msra.mxu0 0
    %12385 = vmatprep.subr.bf16.mxu0 0
    %12386 = vmatpush1.bf16.msra.mxu0 0
    %12387 = vmatprep.subr.bf16.mxu0 0
    %12388 = vmatpush1.bf16.msra.mxu0 0
    %12389 = vmatprep.subr.bf16.mxu0 0
    %12390 = vmatpush1.bf16.msra.mxu0 0
    %12391 = vmatprep.subr.bf16.mxu0 0
    %12392 = vmatpush1.bf16.msra.mxu0 %v12381
    %12393 = vmatprep.subr.bf16.mxu0 0
    %12394 = vmatpush1.bf16.msra.mxu0 %v12370
    %12395 = vmatprep.subr.bf16.mxu0 0
    %12396 = vmatpush1.bf16.msra.mxu0 %v12369
    %12397 = vmatprep.subr.bf16.mxu0 0
    %12398 = vmatpush1.bf16.msra.mxu0 %v12368
    %12399 = vmatprep.subr.bf16.mxu0 0
    %12400 = vmatpush2.bf16.msra.mxu0 0
    %12401 = vmatprep.subr.bf16.mxu0 0
    %12402 = vmatpush2.bf16.msra.mxu0 0
    %12403 = vmatprep.subr.bf16.mxu0 0
    %12404 = vmatpush2.bf16.msra.mxu0 0
    %12405 = vmatprep.subr.bf16.mxu0 0
    %12406 = vmatpush2.bf16.msra.mxu0 0
    %12407 = vmatprep.subr.bf16.mxu0 0
    %12408 = vmatpush2.bf16.msra.mxu0 0
    %12409 = vmatprep.subr.bf16.mxu0 0
    %12410 = vmatpush2.bf16.msra.mxu0 0
    %12411 = vmatprep.subr.bf16.mxu0 0
    %12412 = vmatpush2.bf16.msra.mxu0 0
    %12413 = vmatprep.subr.bf16.mxu0 0
    %12414 = vmatpush2.bf16.msra.mxu0 0
    %12415 = vmatprep.mubr.bf16.mxu0 0
    %12416 = vmatmul.mubr.bf16.gmra.mxu0 %v12377
    %v12417 = vpop.f32.mrf.mxu0
    %v12418 = vadd.f32 %v12352, %v12417
    %v12419 = vpop.f32.mrf.mxu0
    %v12420 = vpop.f32.mrf.mxu0
    %v12421 = vpop.f32.mrf.mxu0
    %12422 = vdwg.mxu0
    %v12423 = vmax.f32 %v12418, 0.0
    %vm12424 = vcmask 74752
    %v12425 = vsel %vm12424, %v12423, -inf
    %12426 = vmax.xlane.f32.xlu0 %v12425
    %v12427 = vpop.xlane.xlu0 %12426
    %v12428 = vsub.f32 %v12423, %v12427
    %v12429 = vmul.f32 %v12428, 1.442695
    %v12430 = vpow.pop %v12429
    %v12431 = vsel %vm12424, %v12430, 0.0
    %12432 = vadd.xlane.f32.xlu0 %v12431
    %v12433 = vpop.xlane.xlu0 %12432
    %v12434 = vlog2.pop %v12433
    %v12435 = vmul.f32 %v12434, 0.6931472
    %v12436 = vsub.f32 %v12428, %v12435
    %12437 = vst.msk [vmem:[#allocation2] sm:$0x3] %vm12424, %v12436
    // Predicated region
    $region38: #{cnn_dilation_net_forward.1} parent=1 // pred_check
      _
    $region39: #{cnn_dilation_net_forward.1} parent=1 // pred_check_branch
      %12439 = sbr.rel (0) target = $region41
    $region40: #{cnn_dilation_net_forward.1} parent=1 // pred_region
      %s12441 = ssub.s32 32, 32
      %12442 = vsyncadd [#allocation3], %s12441
      %s12444 = sshll.u32 [#allocation2], 4
      %s12445 = int_to_ptr.vmem [resolvable:$true] %s12444
      %12447 = dma.vmem_to_hbm [thread:$0]  %s12445, 32, %s9, [#allocation3]
    $region41: #{cnn_dilation_net_forward.1} parent=1 // pred_fallthru
      _
    // Predicated region
    $region42: #{cnn_dilation_net_forward.1} parent=1 // pred_check
      _
    $region43: #{cnn_dilation_net_forward.1} parent=1 // pred_check_branch
      %12449 = sbr.rel (0) target = $region45
    $region44: #{cnn_dilation_net_forward.1} parent=1 // pred_region
      %12450 = dma.done [#allocation3], 32
    $region45: #{cnn_dilation_net_forward.1} parent=1 // pred_fallthru
      _
    %12451 = vsyncpa [#allocation3], 1

</llo_original>
